<compile_context>
chip_gen: v7x
topology: tpu7x:2x2x1
jax: 0.10.0
libtpu: 0.0.40
codegen_flags: <defaults>
</compile_context>

<pallas_src>
import functools

import jax
import jax.numpy as jnp
from jax import lax
from jax.experimental import pallas as pl
from jax.experimental.pallas import tpu as pltpu

TM = 128                      # conv-kernel output rows per grid step
TE = 512                      # elementwise rows per grid step
EPS = 1e-5
VMEM_LIMIT = 32 * 1024 * 1024


# ----------------------------------------------------------------------------
# Pallas kernels
# ----------------------------------------------------------------------------
def _convT_kernel(a_ref, w_ref, b_ref, m_ref, y_ref, sum_ref, sq_ref, *, offs, tm):
    """Direct conv (of the dilated/padded input) via an unrolled tap loop.

    a_ref : (RpadA, Cin) f32   full padded input slab (flat padded strides), resident in VMEM
    w_ref : (T, Cin, Cout) bf16 flipped kernel taps
    b_ref : (1, Cout) f32      bias
    m_ref : (tm, 1) f32        1.0 for rows that are *valid* output voxels, else 0.0
    y_ref : (tm, Cout) f32     conv output rows (overlapped layout, garbage rows masked later)
    sum_ref, sq_ref : (1, 1, Cout) f32  per-tile BatchNorm partial statistics (valid rows only)
    """
    i = pl.program_id(0)
    cout = w_ref.shape[2]
    acc = jnp.zeros((tm, cout), jnp.float32)
    for t, off in enumerate(offs):
        # aligned dynamic base (multiple of 8 sublanes) + static residual slice -> cheap relayout
        start = pl.multiple_of(i * tm + (off // 8) * 8, 8)
        blk = a_ref[pl.ds(start, tm + 8), :]                     # (tm+8, Cin) f32
        r = off % 8
        a_t = blk[r:r + tm, :].astype(jnp.bfloat16)              # bf16 MXU operand
        acc = acc + jnp.dot(a_t, w_ref[t], preferred_element_type=jnp.float32)
    y = acc + b_ref[...]
    y_ref[...] = y.astype(y_ref.dtype)
    ym = y * m_ref[...]                                          # zero out invalid rows
    sum_ref[...] = jnp.sum(ym, axis=0, keepdims=True)[None]      # (1,1,Cout)
    sq_ref[...] = jnp.sum(ym * y, axis=0, keepdims=True)[None]   # (1,1,Cout)


def _bn_relu_kernel(y_ref, s_ref, t_ref, o_ref):
    """o = relu(y * scale + shift)   (per-channel scale/shift, channels on lanes, unpadded)."""
    o_ref[...] = jnp.maximum(y_ref[...] * s_ref[...] + t_ref[...], 0.0)


def _bn_relu_add_bn_relu_kernel(y_ref, s2_ref, t2_ref, sc_ref, ssc_ref, tsc_ref, o_ref):
    """o = relu( relu(y*s2 + t2) + (sc*ssc + tsc) )   -- fused bn2+relu, shortcut-bn, add, relu."""
    h = jnp.maximum(y_ref[...] * s2_ref[...] + t2_ref[...], 0.0)
    s = sc_ref[...] * ssc_ref[...] + tsc_ref[...]
    o_ref[...] = jnp.maximum(h + s, 0.0)


# ----------------------------------------------------------------------------
# ConvTranspose3d (+ bias + fused BN batch statistics) wrapper
# ----------------------------------------------------------------------------
def conv_transpose3d_bn_stats(x_cl, w, b, gamma, beta, stride, padding):
    """x_cl:(N,D,H,W,Cin) channels-last f32; w:(Cin,Cout,kD,kH,kW) PyTorch layout; b:(Cout,).

    Returns (y:(N*Do*Ho*Wo, Cout) f32, bn_scale:(Cout,), bn_shift:(Cout,), (N,Do,Ho,Wo))."""
    N, D, H, W, Cin = x_cl.shape
    _, Cout, kD, kH, kW = w.shape
    sD, sH, sW = stride
    pD, pH, pW = padding

    # dilate-by-stride + pad-by-(k-1-p) in a single lax.pad (interior padding) -- no scatter.
    xp = lax.pad(
        x_cl.astype(jnp.float32), jnp.zeros((), jnp.float32),
        ((0, 0, 0),
         (kD - 1 - pD, kD - 1 - pD, sD - 1),
         (kH - 1 - pH, kH - 1 - pH, sH - 1),
         (kW - 1 - pW, kW - 1 - pW, sW - 1),
         (0, 0, 0)))
    Dp, Hp, Wp = xp.shape[1], xp.shape[2], xp.shape[3]
    Do, Ho, Wo = Dp - kD + 1, Hp - kH + 1, Wp - kW + 1      # == (D-1)*s + k - 2p

    F = Dp * Hp * Wp
    R = N * F                                                # overlapped (padded-stride) rows
    Mtiles = pl.cdiv(R, TM)
    Rout = Mtiles * TM

    # flat row offsets per kernel tap (static Python ints), weight taps are spatially flipped
    offs = tuple(kd * Hp * Wp + kh * Wp + kw
                 for kd in range(kD) for kh in range(kH) for kw in range(kW))
    maxoff = offs[-1]
    RpadA = Rout + ((maxoff // 8) + 2) * 8

    A = jnp.pad(xp.reshape(R, Cin), ((0, RpadA - R), (0, 0)))               # f32 slab
    wt = jnp.transpose(w[:, :, ::-1, ::-1, ::-1], (2, 3, 4, 0, 1))
    wt = wt.reshape(kD * kH * kW, Cin, Cout).astype(jnp.bfloat16)
    bias2d = b.reshape(1, Cout).astype(jnp.float32)

    # validity mask: row f is a real output voxel iff its padded-grid coords are in-range
    fidx = jnp.arange(Rout, dtype=jnp.int32)
    rem = fidx % F
    dpi = rem // (Hp * Wp)
    hpi = (rem // Wp) % Hp
    wpi = rem % Wp
    valid = (fidx < R) & (dpi < Do) & (hpi < Ho) & (wpi < Wo)
    mask = valid.astype(jnp.float32).reshape(Rout, 1)

    kernel = functools.partial(_convT_kernel, offs=offs, tm=TM)
    y_ov, ysum, ysq = pl.pallas_call(
        kernel,
        out_shape=(jax.ShapeDtypeStruct((Rout, Cout), jnp.float32),
                   jax.ShapeDtypeStruct((Mtiles, 1, Cout), jnp.float32),
                   jax.ShapeDtypeStruct((Mtiles, 1, Cout), jnp.float32)),
        grid=(Mtiles,),
        in_specs=[
            pl.BlockSpec((RpadA, Cin), lambda i: (0, 0)),                 # whole slab in VMEM
            pl.BlockSpec((kD * kH * kW, Cin, Cout), lambda i: (0, 0, 0)),
            pl.BlockSpec((1, Cout), lambda i: (0, 0)),
            pl.BlockSpec((TM, 1), lambda i: (i, 0)),
        ],
        out_specs=(
            pl.BlockSpec((TM, Cout), lambda i: (i, 0)),
            pl.BlockSpec((1, 1, Cout), lambda i: (i, 0, 0)),
            pl.BlockSpec((1, 1, Cout), lambda i: (i, 0, 0)),
        ),
        compiler_params=pltpu.CompilerParams(
            dimension_semantics=("parallel",), vmem_limit_bytes=VMEM_LIMIT),
    )(A, wt, bias2d, mask)

    # tiny cross-tile reduction of the fused BN statistics (biased variance, like training-mode BN)
    cnt = N * Do * Ho * Wo
    mean = jnp.sum(ysum, axis=(0, 1)) / cnt
    var = jnp.maximum(jnp.sum(ysq, axis=(0, 1)) / cnt - mean * mean, 0.0)
    scale = gamma * lax.rsqrt(var + EPS)
    shift = beta - mean * scale

    # keep only the valid output voxels (strided view of the overlapped rows)
    y = y_ov[:R].reshape(N, Dp, Hp, Wp, Cout)[:, :Do, :Ho, :Wo, :]
    y = y.reshape(N * Do * Ho * Wo, Cout)
    return y, scale, shift, (N, Do, Ho, Wo)


# ----------------------------------------------------------------------------
# Fused elementwise Pallas wrappers (channels-last slabs, unpadded C lanes)
# ----------------------------------------------------------------------------
def bn_relu(y, scale, shift):
    R, C = y.shape
    Rp = pl.cdiv(R, TE) * TE
    out = pl.pallas_call(
        _bn_relu_kernel,
        out_shape=jax.ShapeDtypeStruct((Rp, C), jnp.float32),
        grid=(Rp // TE,),
        in_specs=[pl.BlockSpec((TE, C), lambda i: (i, 0)),
                  pl.BlockSpec((1, C), lambda i: (0, 0)),
                  pl.BlockSpec((1, C), lambda i: (0, 0))],
        out_specs=pl.BlockSpec((TE, C), lambda i: (i, 0)),
        compiler_params=pltpu.CompilerParams(
            dimension_semantics=("parallel",), vmem_limit_bytes=VMEM_LIMIT),
    )(jnp.pad(y, ((0, Rp - R), (0, 0))), scale.reshape(1, C), shift.reshape(1, C))
    return out[:R]


def bn_relu_add_bn_relu(y, s2, t2, sc, ssc, tsc):
    R, C = y.shape
    assert sc.shape == y.shape, (sc.shape, y.shape)
    Rp = pl.cdiv(R, TE) * TE
    pad = ((0, Rp - R), (0, 0))
    out = pl.pallas_call(
        _bn_relu_add_bn_relu_kernel,
        out_shape=jax.ShapeDtypeStruct((Rp, C), jnp.float32),
        grid=(Rp // TE,),
        in_specs=[pl.BlockSpec((TE, C), lambda i: (i, 0)),
                  pl.BlockSpec((1, C), lambda i: (0, 0)),
                  pl.BlockSpec((1, C), lambda i: (0, 0)),
                  pl.BlockSpec((TE, C), lambda i: (i, 0)),
                  pl.BlockSpec((1, C), lambda i: (0, 0)),
                  pl.BlockSpec((1, C), lambda i: (0, 0))],
        out_specs=pl.BlockSpec((TE, C), lambda i: (i, 0)),
        compiler_params=pltpu.CompilerParams(
            dimension_semantics=("parallel",), vmem_limit_bytes=VMEM_LIMIT),
    )(jnp.pad(y, pad), s2.reshape(1, C), t2.reshape(1, C),
      jnp.pad(sc.astype(jnp.float32), pad), ssc.reshape(1, C), tsc.reshape(1, C))
    return out[:R]


# ----------------------------------------------------------------------------
# DeconvBlock forward (training-mode BatchNorm3d: batch statistics, biased variance)
# ----------------------------------------------------------------------------
@functools.partial(jax.jit, static_argnames=("upsample",))
def deconv_block_forward(x, p, upsample=True):
    N, Cin, D, H, W = x.shape
    Cout = p["w1"].shape[1]
    x_cl = jnp.transpose(x, (0, 2, 3, 4, 1)).astype(jnp.float32)   # NCDHW -> NDHWC, once
    stride1 = (2, 2, 2) if upsample else (1, 1, 1)

    # x = ReLU(BN1(ConvT1(x)))
    y1, s1, t1, sp1 = conv_transpose3d_bn_stats(
        x_cl, p["w1"], p["b1"], p["gamma1"], p["beta1"], stride1, (1, 1, 1))
    h1 = bn_relu(y1, s1, t1)
    h1_cl = h1.reshape(sp1[0], sp1[1], sp1[2], sp1[3], Cout)       # stays channels-last

    # y2 = ConvT2(h1)  (BN2 affine applied in the final fused kernel)
    y2, s2, t2, sp2 = conv_transpose3d_bn_stats(
        h1_cl, p["w2"], p["b2"], p["gamma2"], p["beta2"], (1, 1, 1), (1, 1, 1))

    # shortcut
    if upsample:
        ysc, ssc, tsc, _ = conv_transpose3d_bn_stats(
            x_cl, p["wsc"], p["bsc"], p["gamma_sc"], p["beta_sc"], (2, 2, 2), (0, 0, 0))
    else:
        assert Cin == Cout, "identity shortcut requires in_channels == out_channels"
        ysc = x_cl.reshape(N * D * H * W, Cin)
        ssc = jnp.ones((Cout,), jnp.float32)
        tsc = jnp.zeros((Cout,), jnp.float32)

    # out = ReLU( ReLU(BN2(y2)) + shortcut )
    out2d = bn_relu_add_bn_relu(y2, s2, t2, ysc, ssc, tsc)
    Nn, Do, Ho, Wo = sp2
    out = out2d.reshape(Nn, Do, Ho, Wo, Cout)
    return jnp.transpose(out, (0, 4, 1, 2, 3))                     # NCDHW at module boundary


# ----------------------------------------------------------------------------
# Pure-JAX reference (same bf16-operand / f32-accumulate numerics) for validation
# ----------------------------------------------------------------------------
def _ref_conv_transpose3d(x, w, b, stride, padding):
    kD, kH, kW = w.shape[2], w.shape[3], w.shape[4]
    wr = jnp.transpose(jnp.flip(w, axis=(2, 3, 4)), (1, 0, 2, 3, 4)).astype(jnp.bfloat16)
    pads = [(kD - 1 - padding[0],) * 2, (kH - 1 - padding[1],) * 2, (kW - 1 - padding[2],) * 2]
    y = lax.conv_general_dilated(
        x.astype(jnp.bfloat16), wr, window_strides=(1, 1, 1), padding=pads,
        lhs_dilation=stride, rhs_dilation=(1, 1, 1),
        dimension_numbers=("NCDHW", "OIDHW", "NCDHW"),
        preferred_element_type=jnp.float32)
    return y + b.reshape(1, -1, 1, 1, 1)


def _ref_bn(y, gamma, beta):
    mean = y.mean(axis=(0, 2, 3, 4), keepdims=True)
    var = y.var(axis=(0, 2, 3, 4), keepdims=True)
    return (y - mean) * lax.rsqrt(var + EPS) * gamma.reshape(1, -1, 1, 1, 1) \
        + beta.reshape(1, -1, 1, 1, 1)


def deconv_block_reference(x, p, upsample):
    s1 = (2, 2, 2) if upsample else (1, 1, 1)
    h1 = jax.nn.relu(_ref_bn(_ref_conv_transpose3d(x, p["w1"], p["b1"], s1, (1, 1, 1)),
                             p["gamma1"], p["beta1"]))
    h2 = jax.nn.relu(_ref_bn(_ref_conv_transpose3d(h1, p["w2"], p["b2"], (1, 1, 1), (1, 1, 1)),
                             p["gamma2"], p["beta2"]))
    if upsample:
        sc = _ref_bn(_ref_conv_transpose3d(x, p["wsc"], p["bsc"], (2, 2, 2), (0, 0, 0)),
                     p["gamma_sc"], p["beta_sc"])
    else:
        sc = x
    return jax.nn.relu(h2 + sc)


# ----------------------------------------------------------------------------
if __name__ == "__main__":
    key = jax.random.PRNGKey(0)
    ks = jax.random.split(key, 12)

    N, Cin, Cout, D, H, W, k = 2, 4, 4, 4, 4, 4, 3
    x = jax.random.normal(ks[0], (N, Cin, D, H, W), jnp.float32)

    params = {
        # ConvTranspose3d weights use PyTorch layout (Cin, Cout, kD, kH, kW)
        "w1": 0.1 * jax.random.normal(ks[1], (Cin, Cout, k, k, k), jnp.float32),
        "b1": 0.1 * jax.random.normal(ks[2], (Cout,), jnp.float32),
        "w2": 0.1 * jax.random.normal(ks[3], (Cout, Cout, k, k, k), jnp.float32),
        "b2": 0.1 * jax.random.normal(ks[4], (Cout,), jnp.float32),
        "wsc": 0.1 * jax.random.normal(ks[5], (Cin, Cout, 1, 1, 1), jnp.float32),
        "bsc": 0.1 * jax.random.normal(ks[6], (Cout,), jnp.float32),
        "gamma1": 1.0 + 0.1 * jax.random.normal(ks[7], (Cout,), jnp.float32),
        "beta1": 0.1 * jax.random.normal(ks[8], (Cout,), jnp.float32),
        "gamma2": 1.0 + 0.1 * jax.random.normal(ks[9], (Cout,), jnp.float32),
        "beta2": 0.1 * jax.random.normal(ks[10], (Cout,), jnp.float32),
        "gamma_sc": jnp.ones((Cout,), jnp.float32),
        "beta_sc": jnp.zeros((Cout,), jnp.float32),
    }

    # upsample=True path (stride-2 deconv + conv-transpose shortcut)
    out = deconv_block_forward(x, params, upsample=True)
    ref = deconv_block_reference(x, params, True)
    out, ref = jax.block_until_ready((out, ref))
    expected_spatial = (D - 1) * 2 + k - 2  # 7
    assert out.shape == (N, Cout, expected_spatial, expected_spatial, expected_spatial), out.shape
    assert bool(jnp.all(jnp.isfinite(out)))
    assert bool(jnp.all(out >= 0.0))
    assert bool(jnp.allclose(out, ref, rtol=5e-3, atol=5e-3))

    # upsample=False path (stride-1 deconvs + identity shortcut, Cin == Cout)
    out2 = deconv_block_forward(x, params, upsample=False)
    ref2 = deconv_block_reference(x, params, False)
    out2, ref2 = jax.block_until_ready((out2, ref2))
    assert out2.shape == (N, Cout, D, H, W), out2.shape
    assert bool(jnp.all(jnp.isfinite(out2)))
    assert bool(jnp.allclose(out2, ref2, rtol=5e-3, atol=5e-3))

    print("KERNEL_OK")
</pallas_src>

<mosaic_0001>
module attributes {stable_mosaic.version = 11 : i64} {
  func.func @_convT_kernel(%arg0: i32, %arg1: memref<1728x4xf32, #tpu.memory_space<vmem>>, %arg2: memref<27x4x4xbf16, #tpu.memory_space<vmem>>, %arg3: memref<1x4xf32, #tpu.memory_space<vmem>>, %arg4: memref<128x1xf32, #tpu.memory_space<vmem>>, %arg5: memref<128x4xf32, #tpu.memory_space<vmem>>, %arg6: memref<1x1x4xf32, #tpu.memory_space<vmem>>, %arg7: memref<1x1x4xf32, #tpu.memory_space<vmem>>) attributes {dimension_semantics = [#tpu.dimension_semantics<parallel>], iteration_bounds = array<i64: 12>, scalar_prefetch = 0 : i64, scratch_operands = 0 : i64, tpu.core_type = #tpu.core_type<tc>, window_params = [{pipeline_mode = #tpu.pipeline_mode<synchronous>, transform_indices = @transform_0, window_bounds = array<i64: 1728, 4>}, {pipeline_mode = #tpu.pipeline_mode<synchronous>, transform_indices = @transform_1, window_bounds = array<i64: 27, 4, 4>}, {pipeline_mode = #tpu.pipeline_mode<synchronous>, transform_indices = @transform_2, window_bounds = array<i64: 1, 4>}, {transform_indices = @transform_3, window_bounds = array<i64: 128, 1>}, {transform_indices = @transform_4, window_bounds = array<i64: 128, 4>}, {transform_indices = @transform_5, window_bounds = array<i64: 1, 1, 4>}, {transform_indices = @transform_6, window_bounds = array<i64: 1, 1, 4>}]} {
    %cst = arith.constant 0.000000e+00 : f32
    %0 = vector.broadcast %cst : f32 to vector<128x4xf32>
    %c128_i32 = arith.constant 128 : i32
    %1 = arith.muli %arg0, %c128_i32 : i32
    %c0_i32 = arith.constant 0 : i32
    %2 = arith.addi %1, %c0_i32 : i32
    %3 = tpu.assume_multiple %2, 8 : i32
    %4 = arith.index_cast %3 : i32 to index
    %c0 = arith.constant 0 : index
    %5 = vector.load %arg1[%4, %c0] : memref<1728x4xf32, #tpu.memory_space<vmem>>, vector<136x4xf32>
    %6 = vector.extract_strided_slice %5 {offsets = [0, 0], sizes = [128, 4], strides = [1, 1]} : vector<136x4xf32> to vector<128x4xf32>
    %7 = arith.truncf %6 : vector<128x4xf32> to vector<128x4xbf16>
    %c0_0 = arith.constant 0 : index
    %c0_1 = arith.constant 0 : index
    %c0_2 = arith.constant 0 : index
    %8 = vector.load %arg2[%c0_0, %c0_1, %c0_2] : memref<27x4x4xbf16, #tpu.memory_space<vmem>>, vector<1x4x4xbf16>
    %9 = vector.shape_cast %8 : vector<1x4x4xbf16> to vector<4x4xbf16>
    %cst_3 = arith.constant dense<0.000000e+00> : vector<128x4xf32>
    %10 = tpu.matmul %7, %9, %cst_3 {dimension_numbers = #tpu.dot_dimension_numbers<[1], [0], [0], [1], [0, 0, 1, 1], [], []>} : vector<128x4xbf16>, vector<4x4xbf16>, vector<128x4xf32> -> vector<128x4xf32>
    %11 = arith.addf %0, %10 : vector<128x4xf32>
    %c128_i32_4 = arith.constant 128 : i32
    %12 = arith.muli %arg0, %c128_i32_4 : i32
    %c0_i32_5 = arith.constant 0 : i32
    %13 = arith.addi %12, %c0_i32_5 : i32
    %14 = tpu.assume_multiple %13, 8 : i32
    %15 = arith.index_cast %14 : i32 to index
    %c0_6 = arith.constant 0 : index
    %16 = vector.load %arg1[%15, %c0_6] : memref<1728x4xf32, #tpu.memory_space<vmem>>, vector<136x4xf32>
    %17 = vector.extract_strided_slice %16 {offsets = [1, 0], sizes = [128, 4], strides = [1, 1]} : vector<136x4xf32> to vector<128x4xf32>
    %18 = arith.truncf %17 : vector<128x4xf32> to vector<128x4xbf16>
    %c1 = arith.constant 1 : index
    %c0_7 = arith.constant 0 : index
    %c0_8 = arith.constant 0 : index
    %19 = vector.load %arg2[%c1, %c0_7, %c0_8] : memref<27x4x4xbf16, #tpu.memory_space<vmem>>, vector<1x4x4xbf16>
    %20 = vector.shape_cast %19 : vector<1x4x4xbf16> to vector<4x4xbf16>
    %cst_9 = arith.constant dense<0.000000e+00> : vector<128x4xf32>
    %21 = tpu.matmul %18, %20, %cst_9 {dimension_numbers = #tpu.dot_dimension_numbers<[1], [0], [0], [1], [0, 0, 1, 1], [], []>} : vector<128x4xbf16>, vector<4x4xbf16>, vector<128x4xf32> -> vector<128x4xf32>
    %22 = arith.addf %11, %21 : vector<128x4xf32>
    %c128_i32_10 = arith.constant 128 : i32
    %23 = arith.muli %arg0, %c128_i32_10 : i32
    %c0_i32_11 = arith.constant 0 : i32
    %24 = arith.addi %23, %c0_i32_11 : i32
    %25 = tpu.assume_multiple %24, 8 : i32
    %26 = arith.index_cast %25 : i32 to index
    %c0_12 = arith.constant 0 : index
    %27 = vector.load %arg1[%26, %c0_12] : memref<1728x4xf32, #tpu.memory_space<vmem>>, vector<136x4xf32>
    %28 = vector.extract_strided_slice %27 {offsets = [2, 0], sizes = [128, 4], strides = [1, 1]} : vector<136x4xf32> to vector<128x4xf32>
    %29 = arith.truncf %28 : vector<128x4xf32> to vector<128x4xbf16>
    %c2 = arith.constant 2 : index
    %c0_13 = arith.constant 0 : index
    %c0_14 = arith.constant 0 : index
    %30 = vector.load %arg2[%c2, %c0_13, %c0_14] : memref<27x4x4xbf16, #tpu.memory_space<vmem>>, vector<1x4x4xbf16>
    %31 = vector.shape_cast %30 : vector<1x4x4xbf16> to vector<4x4xbf16>
    %cst_15 = arith.constant dense<0.000000e+00> : vector<128x4xf32>
    %32 = tpu.matmul %29, %31, %cst_15 {dimension_numbers = #tpu.dot_dimension_numbers<[1], [0], [0], [1], [0, 0, 1, 1], [], []>} : vector<128x4xbf16>, vector<4x4xbf16>, vector<128x4xf32> -> vector<128x4xf32>
    %33 = arith.addf %22, %32 : vector<128x4xf32>
    %c128_i32_16 = arith.constant 128 : i32
    %34 = arith.muli %arg0, %c128_i32_16 : i32
    %c8_i32 = arith.constant 8 : i32
    %35 = arith.addi %34, %c8_i32 : i32
    %36 = tpu.assume_multiple %35, 8 : i32
    %37 = arith.index_cast %36 : i32 to index
    %c0_17 = arith.constant 0 : index
    %38 = vector.load %arg1[%37, %c0_17] : memref<1728x4xf32, #tpu.memory_space<vmem>>, vector<136x4xf32>
    %39 = vector.extract_strided_slice %38 {offsets = [1, 0], sizes = [128, 4], strides = [1, 1]} : vector<136x4xf32> to vector<128x4xf32>
    %40 = arith.truncf %39 : vector<128x4xf32> to vector<128x4xbf16>
    %c3 = arith.constant 3 : index
    %c0_18 = arith.constant 0 : index
    %c0_19 = arith.constant 0 : index
    %41 = vector.load %arg2[%c3, %c0_18, %c0_19] : memref<27x4x4xbf16, #tpu.memory_space<vmem>>, vector<1x4x4xbf16>
    %42 = vector.shape_cast %41 : vector<1x4x4xbf16> to vector<4x4xbf16>
    %cst_20 = arith.constant dense<0.000000e+00> : vector<128x4xf32>
    %43 = tpu.matmul %40, %42, %cst_20 {dimension_numbers = #tpu.dot_dimension_numbers<[1], [0], [0], [1], [0, 0, 1, 1], [], []>} : vector<128x4xbf16>, vector<4x4xbf16>, vector<128x4xf32> -> vector<128x4xf32>
    %44 = arith.addf %33, %43 : vector<128x4xf32>
    %c128_i32_21 = arith.constant 128 : i32
    %45 = arith.muli %arg0, %c128_i32_21 : i32
    %c8_i32_22 = arith.constant 8 : i32
    %46 = arith.addi %45, %c8_i32_22 : i32
    %47 = tpu.assume_multiple %46, 8 : i32
    %48 = arith.index_cast %47 : i32 to index
    %c0_23 = arith.constant 0 : index
    %49 = vector.load %arg1[%48, %c0_23] : memref<1728x4xf32, #tpu.memory_space<vmem>>, vector<136x4xf32>
    %50 = vector.extract_strided_slice %49 {offsets = [2, 0], sizes = [128, 4], strides = [1, 1]} : vector<136x4xf32> to vector<128x4xf32>
    %51 = arith.truncf %50 : vector<128x4xf32> to vector<128x4xbf16>
    %c4 = arith.constant 4 : index
    %c0_24 = arith.constant 0 : index
    %c0_25 = arith.constant 0 : index
    %52 = vector.load %arg2[%c4, %c0_24, %c0_25] : memref<27x4x4xbf16, #tpu.memory_space<vmem>>, vector<1x4x4xbf16>
    %53 = vector.shape_cast %52 : vector<1x4x4xbf16> to vector<4x4xbf16>
    %cst_26 = arith.constant dense<0.000000e+00> : vector<128x4xf32>
    %54 = tpu.matmul %51, %53, %cst_26 {dimension_numbers = #tpu.dot_dimension_numbers<[1], [0], [0], [1], [0, 0, 1, 1], [], []>} : vector<128x4xbf16>, vector<4x4xbf16>, vector<128x4xf32> -> vector<128x4xf32>
    %55 = arith.addf %44, %54 : vector<128x4xf32>
    %c128_i32_27 = arith.constant 128 : i32
    %56 = arith.muli %arg0, %c128_i32_27 : i32
    %c8_i32_28 = arith.constant 8 : i32
    %57 = arith.addi %56, %c8_i32_28 : i32
    %58 = tpu.assume_multiple %57, 8 : i32
    %59 = arith.index_cast %58 : i32 to index
    %c0_29 = arith.constant 0 : index
    %60 = vector.load %arg1[%59, %c0_29] : memref<1728x4xf32, #tpu.memory_space<vmem>>, vector<136x4xf32>
    %61 = vector.extract_strided_slice %60 {offsets = [3, 0], sizes = [128, 4], strides = [1, 1]} : vector<136x4xf32> to vector<128x4xf32>
    %62 = arith.truncf %61 : vector<128x4xf32> to vector<128x4xbf16>
    %c5 = arith.constant 5 : index
    %c0_30 = arith.constant 0 : index
    %c0_31 = arith.constant 0 : index
    %63 = vector.load %arg2[%c5, %c0_30, %c0_31] : memref<27x4x4xbf16, #tpu.memory_space<vmem>>, vector<1x4x4xbf16>
    %64 = vector.shape_cast %63 : vector<1x4x4xbf16> to vector<4x4xbf16>
    %cst_32 = arith.constant dense<0.000000e+00> : vector<128x4xf32>
    %65 = tpu.matmul %62, %64, %cst_32 {dimension_numbers = #tpu.dot_dimension_numbers<[1], [0], [0], [1], [0, 0, 1, 1], [], []>} : vector<128x4xbf16>, vector<4x4xbf16>, vector<128x4xf32> -> vector<128x4xf32>
    %66 = arith.addf %55, %65 : vector<128x4xf32>
    %c128_i32_33 = arith.constant 128 : i32
    %67 = arith.muli %arg0, %c128_i32_33 : i32
    %c16_i32 = arith.constant 16 : i32
    %68 = arith.addi %67, %c16_i32 : i32
    %69 = tpu.assume_multiple %68, 8 : i32
    %70 = arith.index_cast %69 : i32 to index
    %c0_34 = arith.constant 0 : index
    %71 = vector.load %arg1[%70, %c0_34] : memref<1728x4xf32, #tpu.memory_space<vmem>>, vector<136x4xf32>
    %72 = vector.extract_strided_slice %71 {offsets = [2, 0], sizes = [128, 4], strides = [1, 1]} : vector<136x4xf32> to vector<128x4xf32>
    %73 = arith.truncf %72 : vector<128x4xf32> to vector<128x4xbf16>
    %c6 = arith.constant 6 : index
    %c0_35 = arith.constant 0 : index
    %c0_36 = arith.constant 0 : index
    %74 = vector.load %arg2[%c6, %c0_35, %c0_36] : memref<27x4x4xbf16, #tpu.memory_space<vmem>>, vector<1x4x4xbf16>
    %75 = vector.shape_cast %74 : vector<1x4x4xbf16> to vector<4x4xbf16>
    %cst_37 = arith.constant dense<0.000000e+00> : vector<128x4xf32>
    %76 = tpu.matmul %73, %75, %cst_37 {dimension_numbers = #tpu.dot_dimension_numbers<[1], [0], [0], [1], [0, 0, 1, 1], [], []>} : vector<128x4xbf16>, vector<4x4xbf16>, vector<128x4xf32> -> vector<128x4xf32>
    %77 = arith.addf %66, %76 : vector<128x4xf32>
    %c128_i32_38 = arith.constant 128 : i32
    %78 = arith.muli %arg0, %c128_i32_38 : i32
    %c16_i32_39 = arith.constant 16 : i32
    %79 = arith.addi %78, %c16_i32_39 : i32
    %80 = tpu.assume_multiple %79, 8 : i32
    %81 = arith.index_cast %80 : i32 to index
    %c0_40 = arith.constant 0 : index
    %82 = vector.load %arg1[%81, %c0_40] : memref<1728x4xf32, #tpu.memory_space<vmem>>, vector<136x4xf32>
    %83 = vector.extract_strided_slice %82 {offsets = [3, 0], sizes = [128, 4], strides = [1, 1]} : vector<136x4xf32> to vector<128x4xf32>
    %84 = arith.truncf %83 : vector<128x4xf32> to vector<128x4xbf16>
    %c7 = arith.constant 7 : index
    %c0_41 = arith.constant 0 : index
    %c0_42 = arith.constant 0 : index
    %85 = vector.load %arg2[%c7, %c0_41, %c0_42] : memref<27x4x4xbf16, #tpu.memory_space<vmem>>, vector<1x4x4xbf16>
    %86 = vector.shape_cast %85 : vector<1x4x4xbf16> to vector<4x4xbf16>
    %cst_43 = arith.constant dense<0.000000e+00> : vector<128x4xf32>
    %87 = tpu.matmul %84, %86, %cst_43 {dimension_numbers = #tpu.dot_dimension_numbers<[1], [0], [0], [1], [0, 0, 1, 1], [], []>} : vector<128x4xbf16>, vector<4x4xbf16>, vector<128x4xf32> -> vector<128x4xf32>
    %88 = arith.addf %77, %87 : vector<128x4xf32>
    %c128_i32_44 = arith.constant 128 : i32
    %89 = arith.muli %arg0, %c128_i32_44 : i32
    %c16_i32_45 = arith.constant 16 : i32
    %90 = arith.addi %89, %c16_i32_45 : i32
    %91 = tpu.assume_multiple %90, 8 : i32
    %92 = arith.index_cast %91 : i32 to index
    %c0_46 = arith.constant 0 : index
    %93 = vector.load %arg1[%92, %c0_46] : memref<1728x4xf32, #tpu.memory_space<vmem>>, vector<136x4xf32>
    %94 = vector.extract_strided_slice %93 {offsets = [4, 0], sizes = [128, 4], strides = [1, 1]} : vector<136x4xf32> to vector<128x4xf32>
    %95 = arith.truncf %94 : vector<128x4xf32> to vector<128x4xbf16>
    %c8 = arith.constant 8 : index
    %c0_47 = arith.constant 0 : index
    %c0_48 = arith.constant 0 : index
    %96 = vector.load %arg2[%c8, %c0_47, %c0_48] : memref<27x4x4xbf16, #tpu.memory_space<vmem>>, vector<1x4x4xbf16>
    %97 = vector.shape_cast %96 : vector<1x4x4xbf16> to vector<4x4xbf16>
    %cst_49 = arith.constant dense<0.000000e+00> : vector<128x4xf32>
    %98 = tpu.matmul %95, %97, %cst_49 {dimension_numbers = #tpu.dot_dimension_numbers<[1], [0], [0], [1], [0, 0, 1, 1], [], []>} : vector<128x4xbf16>, vector<4x4xbf16>, vector<128x4xf32> -> vector<128x4xf32>
    %99 = arith.addf %88, %98 : vector<128x4xf32>
    %c128_i32_50 = arith.constant 128 : i32
    %100 = arith.muli %arg0, %c128_i32_50 : i32
    %c80_i32 = arith.constant 80 : i32
    %101 = arith.addi %100, %c80_i32 : i32
    %102 = tpu.assume_multiple %101, 8 : i32
    %103 = arith.index_cast %102 : i32 to index
    %c0_51 = arith.constant 0 : index
    %104 = vector.load %arg1[%103, %c0_51] : memref<1728x4xf32, #tpu.memory_space<vmem>>, vector<136x4xf32>
    %105 = vector.extract_strided_slice %104 {offsets = [1, 0], sizes = [128, 4], strides = [1, 1]} : vector<136x4xf32> to vector<128x4xf32>
    %106 = arith.truncf %105 : vector<128x4xf32> to vector<128x4xbf16>
    %c9 = arith.constant 9 : index
    %c0_52 = arith.constant 0 : index
    %c0_53 = arith.constant 0 : index
    %107 = vector.load %arg2[%c9, %c0_52, %c0_53] : memref<27x4x4xbf16, #tpu.memory_space<vmem>>, vector<1x4x4xbf16>
    %108 = vector.shape_cast %107 : vector<1x4x4xbf16> to vector<4x4xbf16>
    %cst_54 = arith.constant dense<0.000000e+00> : vector<128x4xf32>
    %109 = tpu.matmul %106, %108, %cst_54 {dimension_numbers = #tpu.dot_dimension_numbers<[1], [0], [0], [1], [0, 0, 1, 1], [], []>} : vector<128x4xbf16>, vector<4x4xbf16>, vector<128x4xf32> -> vector<128x4xf32>
    %110 = arith.addf %99, %109 : vector<128x4xf32>
    %c128_i32_55 = arith.constant 128 : i32
    %111 = arith.muli %arg0, %c128_i32_55 : i32
    %c80_i32_56 = arith.constant 80 : i32
    %112 = arith.addi %111, %c80_i32_56 : i32
    %113 = tpu.assume_multiple %112, 8 : i32
    %114 = arith.index_cast %113 : i32 to index
    %c0_57 = arith.constant 0 : index
    %115 = vector.load %arg1[%114, %c0_57] : memref<1728x4xf32, #tpu.memory_space<vmem>>, vector<136x4xf32>
    %116 = vector.extract_strided_slice %115 {offsets = [2, 0], sizes = [128, 4], strides = [1, 1]} : vector<136x4xf32> to vector<128x4xf32>
    %117 = arith.truncf %116 : vector<128x4xf32> to vector<128x4xbf16>
    %c10 = arith.constant 10 : index
    %c0_58 = arith.constant 0 : index
    %c0_59 = arith.constant 0 : index
    %118 = vector.load %arg2[%c10, %c0_58, %c0_59] : memref<27x4x4xbf16, #tpu.memory_space<vmem>>, vector<1x4x4xbf16>
    %119 = vector.shape_cast %118 : vector<1x4x4xbf16> to vector<4x4xbf16>
    %cst_60 = arith.constant dense<0.000000e+00> : vector<128x4xf32>
    %120 = tpu.matmul %117, %119, %cst_60 {dimension_numbers = #tpu.dot_dimension_numbers<[1], [0], [0], [1], [0, 0, 1, 1], [], []>} : vector<128x4xbf16>, vector<4x4xbf16>, vector<128x4xf32> -> vector<128x4xf32>
    %121 = arith.addf %110, %120 : vector<128x4xf32>
    %c128_i32_61 = arith.constant 128 : i32
    %122 = arith.muli %arg0, %c128_i32_61 : i32
    %c80_i32_62 = arith.constant 80 : i32
    %123 = arith.addi %122, %c80_i32_62 : i32
    %124 = tpu.assume_multiple %123, 8 : i32
    %125 = arith.index_cast %124 : i32 to index
    %c0_63 = arith.constant 0 : index
    %126 = vector.load %arg1[%125, %c0_63] : memref<1728x4xf32, #tpu.memory_space<vmem>>, vector<136x4xf32>
    %127 = vector.extract_strided_slice %126 {offsets = [3, 0], sizes = [128, 4], strides = [1, 1]} : vector<136x4xf32> to vector<128x4xf32>
    %128 = arith.truncf %127 : vector<128x4xf32> to vector<128x4xbf16>
    %c11 = arith.constant 11 : index
    %c0_64 = arith.constant 0 : index
    %c0_65 = arith.constant 0 : index
    %129 = vector.load %arg2[%c11, %c0_64, %c0_65] : memref<27x4x4xbf16, #tpu.memory_space<vmem>>, vector<1x4x4xbf16>
    %130 = vector.shape_cast %129 : vector<1x4x4xbf16> to vector<4x4xbf16>
    %cst_66 = arith.constant dense<0.000000e+00> : vector<128x4xf32>
    %131 = tpu.matmul %128, %130, %cst_66 {dimension_numbers = #tpu.dot_dimension_numbers<[1], [0], [0], [1], [0, 0, 1, 1], [], []>} : vector<128x4xbf16>, vector<4x4xbf16>, vector<128x4xf32> -> vector<128x4xf32>
    %132 = arith.addf %121, %131 : vector<128x4xf32>
    %c128_i32_67 = arith.constant 128 : i32
    %133 = arith.muli %arg0, %c128_i32_67 : i32
    %c88_i32 = arith.constant 88 : i32
    %134 = arith.addi %133, %c88_i32 : i32
    %135 = tpu.assume_multiple %134, 8 : i32
    %136 = arith.index_cast %135 : i32 to index
    %c0_68 = arith.constant 0 : index
    %137 = vector.load %arg1[%136, %c0_68] : memref<1728x4xf32, #tpu.memory_space<vmem>>, vector<136x4xf32>
    %138 = vector.extract_strided_slice %137 {offsets = [2, 0], sizes = [128, 4], strides = [1, 1]} : vector<136x4xf32> to vector<128x4xf32>
    %139 = arith.truncf %138 : vector<128x4xf32> to vector<128x4xbf16>
    %c12 = arith.constant 12 : index
    %c0_69 = arith.constant 0 : index
    %c0_70 = arith.constant 0 : index
    %140 = vector.load %arg2[%c12, %c0_69, %c0_70] : memref<27x4x4xbf16, #tpu.memory_space<vmem>>, vector<1x4x4xbf16>
    %141 = vector.shape_cast %140 : vector<1x4x4xbf16> to vector<4x4xbf16>
    %cst_71 = arith.constant dense<0.000000e+00> : vector<128x4xf32>
    %142 = tpu.matmul %139, %141, %cst_71 {dimension_numbers = #tpu.dot_dimension_numbers<[1], [0], [0], [1], [0, 0, 1, 1], [], []>} : vector<128x4xbf16>, vector<4x4xbf16>, vector<128x4xf32> -> vector<128x4xf32>
    %143 = arith.addf %132, %142 : vector<128x4xf32>
    %c128_i32_72 = arith.constant 128 : i32
    %144 = arith.muli %arg0, %c128_i32_72 : i32
    %c88_i32_73 = arith.constant 88 : i32
    %145 = arith.addi %144, %c88_i32_73 : i32
    %146 = tpu.assume_multiple %145, 8 : i32
    %147 = arith.index_cast %146 : i32 to index
    %c0_74 = arith.constant 0 : index
    %148 = vector.load %arg1[%147, %c0_74] : memref<1728x4xf32, #tpu.memory_space<vmem>>, vector<136x4xf32>
    %149 = vector.extract_strided_slice %148 {offsets = [3, 0], sizes = [128, 4], strides = [1, 1]} : vector<136x4xf32> to vector<128x4xf32>
    %150 = arith.truncf %149 : vector<128x4xf32> to vector<128x4xbf16>
    %c13 = arith.constant 13 : index
    %c0_75 = arith.constant 0 : index
    %c0_76 = arith.constant 0 : index
    %151 = vector.load %arg2[%c13, %c0_75, %c0_76] : memref<27x4x4xbf16, #tpu.memory_space<vmem>>, vector<1x4x4xbf16>
    %152 = vector.shape_cast %151 : vector<1x4x4xbf16> to vector<4x4xbf16>
    %cst_77 = arith.constant dense<0.000000e+00> : vector<128x4xf32>
    %153 = tpu.matmul %150, %152, %cst_77 {dimension_numbers = #tpu.dot_dimension_numbers<[1], [0], [0], [1], [0, 0, 1, 1], [], []>} : vector<128x4xbf16>, vector<4x4xbf16>, vector<128x4xf32> -> vector<128x4xf32>
    %154 = arith.addf %143, %153 : vector<128x4xf32>
    %c128_i32_78 = arith.constant 128 : i32
    %155 = arith.muli %arg0, %c128_i32_78 : i32
    %c88_i32_79 = arith.constant 88 : i32
    %156 = arith.addi %155, %c88_i32_79 : i32
    %157 = tpu.assume_multiple %156, 8 : i32
    %158 = arith.index_cast %157 : i32 to index
    %c0_80 = arith.constant 0 : index
    %159 = vector.load %arg1[%158, %c0_80] : memref<1728x4xf32, #tpu.memory_space<vmem>>, vector<136x4xf32>
    %160 = vector.extract_strided_slice %159 {offsets = [4, 0], sizes = [128, 4], strides = [1, 1]} : vector<136x4xf32> to vector<128x4xf32>
    %161 = arith.truncf %160 : vector<128x4xf32> to vector<128x4xbf16>
    %c14 = arith.constant 14 : index
    %c0_81 = arith.constant 0 : index
    %c0_82 = arith.constant 0 : index
    %162 = vector.load %arg2[%c14, %c0_81, %c0_82] : memref<27x4x4xbf16, #tpu.memory_space<vmem>>, vector<1x4x4xbf16>
    %163 = vector.shape_cast %162 : vector<1x4x4xbf16> to vector<4x4xbf16>
    %cst_83 = arith.constant dense<0.000000e+00> : vector<128x4xf32>
    %164 = tpu.matmul %161, %163, %cst_83 {dimension_numbers = #tpu.dot_dimension_numbers<[1], [0], [0], [1], [0, 0, 1, 1], [], []>} : vector<128x4xbf16>, vector<4x4xbf16>, vector<128x4xf32> -> vector<128x4xf32>
    %165 = arith.addf %154, %164 : vector<128x4xf32>
    %c128_i32_84 = arith.constant 128 : i32
    %166 = arith.muli %arg0, %c128_i32_84 : i32
    %c96_i32 = arith.constant 96 : i32
    %167 = arith.addi %166, %c96_i32 : i32
    %168 = tpu.assume_multiple %167, 8 : i32
    %169 = arith.index_cast %168 : i32 to index
    %c0_85 = arith.constant 0 : index
    %170 = vector.load %arg1[%169, %c0_85] : memref<1728x4xf32, #tpu.memory_space<vmem>>, vector<136x4xf32>
    %171 = vector.extract_strided_slice %170 {offsets = [3, 0], sizes = [128, 4], strides = [1, 1]} : vector<136x4xf32> to vector<128x4xf32>
    %172 = arith.truncf %171 : vector<128x4xf32> to vector<128x4xbf16>
    %c15 = arith.constant 15 : index
    %c0_86 = arith.constant 0 : index
    %c0_87 = arith.constant 0 : index
    %173 = vector.load %arg2[%c15, %c0_86, %c0_87] : memref<27x4x4xbf16, #tpu.memory_space<vmem>>, vector<1x4x4xbf16>
    %174 = vector.shape_cast %173 : vector<1x4x4xbf16> to vector<4x4xbf16>
    %cst_88 = arith.constant dense<0.000000e+00> : vector<128x4xf32>
    %175 = tpu.matmul %172, %174, %cst_88 {dimension_numbers = #tpu.dot_dimension_numbers<[1], [0], [0], [1], [0, 0, 1, 1], [], []>} : vector<128x4xbf16>, vector<4x4xbf16>, vector<128x4xf32> -> vector<128x4xf32>
    %176 = arith.addf %165, %175 : vector<128x4xf32>
    %c128_i32_89 = arith.constant 128 : i32
    %177 = arith.muli %arg0, %c128_i32_89 : i32
    %c96_i32_90 = arith.constant 96 : i32
    %178 = arith.addi %177, %c96_i32_90 : i32
    %179 = tpu.assume_multiple %178, 8 : i32
    %180 = arith.index_cast %179 : i32 to index
    %c0_91 = arith.constant 0 : index
    %181 = vector.load %arg1[%180, %c0_91] : memref<1728x4xf32, #tpu.memory_space<vmem>>, vector<136x4xf32>
    %182 = vector.extract_strided_slice %181 {offsets = [4, 0], sizes = [128, 4], strides = [1, 1]} : vector<136x4xf32> to vector<128x4xf32>
    %183 = arith.truncf %182 : vector<128x4xf32> to vector<128x4xbf16>
    %c16 = arith.constant 16 : index
    %c0_92 = arith.constant 0 : index
    %c0_93 = arith.constant 0 : index
    %184 = vector.load %arg2[%c16, %c0_92, %c0_93] : memref<27x4x4xbf16, #tpu.memory_space<vmem>>, vector<1x4x4xbf16>
    %185 = vector.shape_cast %184 : vector<1x4x4xbf16> to vector<4x4xbf16>
    %cst_94 = arith.constant dense<0.000000e+00> : vector<128x4xf32>
    %186 = tpu.matmul %183, %185, %cst_94 {dimension_numbers = #tpu.dot_dimension_numbers<[1], [0], [0], [1], [0, 0, 1, 1], [], []>} : vector<128x4xbf16>, vector<4x4xbf16>, vector<128x4xf32> -> vector<128x4xf32>
    %187 = arith.addf %176, %186 : vector<128x4xf32>
    %c128_i32_95 = arith.constant 128 : i32
    %188 = arith.muli %arg0, %c128_i32_95 : i32
    %c96_i32_96 = arith.constant 96 : i32
    %189 = arith.addi %188, %c96_i32_96 : i32
    %190 = tpu.assume_multiple %189, 8 : i32
    %191 = arith.index_cast %190 : i32 to index
    %c0_97 = arith.constant 0 : index
    %192 = vector.load %arg1[%191, %c0_97] : memref<1728x4xf32, #tpu.memory_space<vmem>>, vector<136x4xf32>
    %193 = vector.extract_strided_slice %192 {offsets = [5, 0], sizes = [128, 4], strides = [1, 1]} : vector<136x4xf32> to vector<128x4xf32>
    %194 = arith.truncf %193 : vector<128x4xf32> to vector<128x4xbf16>
    %c17 = arith.constant 17 : index
    %c0_98 = arith.constant 0 : index
    %c0_99 = arith.constant 0 : index
    %195 = vector.load %arg2[%c17, %c0_98, %c0_99] : memref<27x4x4xbf16, #tpu.memory_space<vmem>>, vector<1x4x4xbf16>
    %196 = vector.shape_cast %195 : vector<1x4x4xbf16> to vector<4x4xbf16>
    %cst_100 = arith.constant dense<0.000000e+00> : vector<128x4xf32>
    %197 = tpu.matmul %194, %196, %cst_100 {dimension_numbers = #tpu.dot_dimension_numbers<[1], [0], [0], [1], [0, 0, 1, 1], [], []>} : vector<128x4xbf16>, vector<4x4xbf16>, vector<128x4xf32> -> vector<128x4xf32>
    %198 = arith.addf %187, %197 : vector<128x4xf32>
    %c128_i32_101 = arith.constant 128 : i32
    %199 = arith.muli %arg0, %c128_i32_101 : i32
    %c160_i32 = arith.constant 160 : i32
    %200 = arith.addi %199, %c160_i32 : i32
    %201 = tpu.assume_multiple %200, 8 : i32
    %202 = arith.index_cast %201 : i32 to index
    %c0_102 = arith.constant 0 : index
    %203 = vector.load %arg1[%202, %c0_102] : memref<1728x4xf32, #tpu.memory_space<vmem>>, vector<136x4xf32>
    %204 = vector.extract_strided_slice %203 {offsets = [2, 0], sizes = [128, 4], strides = [1, 1]} : vector<136x4xf32> to vector<128x4xf32>
    %205 = arith.truncf %204 : vector<128x4xf32> to vector<128x4xbf16>
    %c18 = arith.constant 18 : index
    %c0_103 = arith.constant 0 : index
    %c0_104 = arith.constant 0 : index
    %206 = vector.load %arg2[%c18, %c0_103, %c0_104] : memref<27x4x4xbf16, #tpu.memory_space<vmem>>, vector<1x4x4xbf16>
    %207 = vector.shape_cast %206 : vector<1x4x4xbf16> to vector<4x4xbf16>
    %cst_105 = arith.constant dense<0.000000e+00> : vector<128x4xf32>
    %208 = tpu.matmul %205, %207, %cst_105 {dimension_numbers = #tpu.dot_dimension_numbers<[1], [0], [0], [1], [0, 0, 1, 1], [], []>} : vector<128x4xbf16>, vector<4x4xbf16>, vector<128x4xf32> -> vector<128x4xf32>
    %209 = arith.addf %198, %208 : vector<128x4xf32>
    %c128_i32_106 = arith.constant 128 : i32
    %210 = arith.muli %arg0, %c128_i32_106 : i32
    %c160_i32_107 = arith.constant 160 : i32
    %211 = arith.addi %210, %c160_i32_107 : i32
    %212 = tpu.assume_multiple %211, 8 : i32
    %213 = arith.index_cast %212 : i32 to index
    %c0_108 = arith.constant 0 : index
    %214 = vector.load %arg1[%213, %c0_108] : memref<1728x4xf32, #tpu.memory_space<vmem>>, vector<136x4xf32>
    %215 = vector.extract_strided_slice %214 {offsets = [3, 0], sizes = [128, 4], strides = [1, 1]} : vector<136x4xf32> to vector<128x4xf32>
    %216 = arith.truncf %215 : vector<128x4xf32> to vector<128x4xbf16>
    %c19 = arith.constant 19 : index
    %c0_109 = arith.constant 0 : index
    %c0_110 = arith.constant 0 : index
    %217 = vector.load %arg2[%c19, %c0_109, %c0_110] : memref<27x4x4xbf16, #tpu.memory_space<vmem>>, vector<1x4x4xbf16>
    %218 = vector.shape_cast %217 : vector<1x4x4xbf16> to vector<4x4xbf16>
    %cst_111 = arith.constant dense<0.000000e+00> : vector<128x4xf32>
    %219 = tpu.matmul %216, %218, %cst_111 {dimension_numbers = #tpu.dot_dimension_numbers<[1], [0], [0], [1], [0, 0, 1, 1], [], []>} : vector<128x4xbf16>, vector<4x4xbf16>, vector<128x4xf32> -> vector<128x4xf32>
    %220 = arith.addf %209, %219 : vector<128x4xf32>
    %c128_i32_112 = arith.constant 128 : i32
    %221 = arith.muli %arg0, %c128_i32_112 : i32
    %c160_i32_113 = arith.constant 160 : i32
    %222 = arith.addi %221, %c160_i32_113 : i32
    %223 = tpu.assume_multiple %222, 8 : i32
    %224 = arith.index_cast %223 : i32 to index
    %c0_114 = arith.constant 0 : index
    %225 = vector.load %arg1[%224, %c0_114] : memref<1728x4xf32, #tpu.memory_space<vmem>>, vector<136x4xf32>
    %226 = vector.extract_strided_slice %225 {offsets = [4, 0], sizes = [128, 4], strides = [1, 1]} : vector<136x4xf32> to vector<128x4xf32>
    %227 = arith.truncf %226 : vector<128x4xf32> to vector<128x4xbf16>
    %c20 = arith.constant 20 : index
    %c0_115 = arith.constant 0 : index
    %c0_116 = arith.constant 0 : index
    %228 = vector.load %arg2[%c20, %c0_115, %c0_116] : memref<27x4x4xbf16, #tpu.memory_space<vmem>>, vector<1x4x4xbf16>
    %229 = vector.shape_cast %228 : vector<1x4x4xbf16> to vector<4x4xbf16>
    %cst_117 = arith.constant dense<0.000000e+00> : vector<128x4xf32>
    %230 = tpu.matmul %227, %229, %cst_117 {dimension_numbers = #tpu.dot_dimension_numbers<[1], [0], [0], [1], [0, 0, 1, 1], [], []>} : vector<128x4xbf16>, vector<4x4xbf16>, vector<128x4xf32> -> vector<128x4xf32>
    %231 = arith.addf %220, %230 : vector<128x4xf32>
    %c128_i32_118 = arith.constant 128 : i32
    %232 = arith.muli %arg0, %c128_i32_118 : i32
    %c168_i32 = arith.constant 168 : i32
    %233 = arith.addi %232, %c168_i32 : i32
    %234 = tpu.assume_multiple %233, 8 : i32
    %235 = arith.index_cast %234 : i32 to index
    %c0_119 = arith.constant 0 : index
    %236 = vector.load %arg1[%235, %c0_119] : memref<1728x4xf32, #tpu.memory_space<vmem>>, vector<136x4xf32>
    %237 = vector.extract_strided_slice %236 {offsets = [3, 0], sizes = [128, 4], strides = [1, 1]} : vector<136x4xf32> to vector<128x4xf32>
    %238 = arith.truncf %237 : vector<128x4xf32> to vector<128x4xbf16>
    %c21 = arith.constant 21 : index
    %c0_120 = arith.constant 0 : index
    %c0_121 = arith.constant 0 : index
    %239 = vector.load %arg2[%c21, %c0_120, %c0_121] : memref<27x4x4xbf16, #tpu.memory_space<vmem>>, vector<1x4x4xbf16>
    %240 = vector.shape_cast %239 : vector<1x4x4xbf16> to vector<4x4xbf16>
    %cst_122 = arith.constant dense<0.000000e+00> : vector<128x4xf32>
    %241 = tpu.matmul %238, %240, %cst_122 {dimension_numbers = #tpu.dot_dimension_numbers<[1], [0], [0], [1], [0, 0, 1, 1], [], []>} : vector<128x4xbf16>, vector<4x4xbf16>, vector<128x4xf32> -> vector<128x4xf32>
    %242 = arith.addf %231, %241 : vector<128x4xf32>
    %c128_i32_123 = arith.constant 128 : i32
    %243 = arith.muli %arg0, %c128_i32_123 : i32
    %c168_i32_124 = arith.constant 168 : i32
    %244 = arith.addi %243, %c168_i32_124 : i32
    %245 = tpu.assume_multiple %244, 8 : i32
    %246 = arith.index_cast %245 : i32 to index
    %c0_125 = arith.constant 0 : index
    %247 = vector.load %arg1[%246, %c0_125] : memref<1728x4xf32, #tpu.memory_space<vmem>>, vector<136x4xf32>
    %248 = vector.extract_strided_slice %247 {offsets = [4, 0], sizes = [128, 4], strides = [1, 1]} : vector<136x4xf32> to vector<128x4xf32>
    %249 = arith.truncf %248 : vector<128x4xf32> to vector<128x4xbf16>
    %c22 = arith.constant 22 : index
    %c0_126 = arith.constant 0 : index
    %c0_127 = arith.constant 0 : index
    %250 = vector.load %arg2[%c22, %c0_126, %c0_127] : memref<27x4x4xbf16, #tpu.memory_space<vmem>>, vector<1x4x4xbf16>
    %251 = vector.shape_cast %250 : vector<1x4x4xbf16> to vector<4x4xbf16>
    %cst_128 = arith.constant dense<0.000000e+00> : vector<128x4xf32>
    %252 = tpu.matmul %249, %251, %cst_128 {dimension_numbers = #tpu.dot_dimension_numbers<[1], [0], [0], [1], [0, 0, 1, 1], [], []>} : vector<128x4xbf16>, vector<4x4xbf16>, vector<128x4xf32> -> vector<128x4xf32>
    %253 = arith.addf %242, %252 : vector<128x4xf32>
    %c128_i32_129 = arith.constant 128 : i32
    %254 = arith.muli %arg0, %c128_i32_129 : i32
    %c168_i32_130 = arith.constant 168 : i32
    %255 = arith.addi %254, %c168_i32_130 : i32
    %256 = tpu.assume_multiple %255, 8 : i32
    %257 = arith.index_cast %256 : i32 to index
    %c0_131 = arith.constant 0 : index
    %258 = vector.load %arg1[%257, %c0_131] : memref<1728x4xf32, #tpu.memory_space<vmem>>, vector<136x4xf32>
    %259 = vector.extract_strided_slice %258 {offsets = [5, 0], sizes = [128, 4], strides = [1, 1]} : vector<136x4xf32> to vector<128x4xf32>
    %260 = arith.truncf %259 : vector<128x4xf32> to vector<128x4xbf16>
    %c23 = arith.constant 23 : index
    %c0_132 = arith.constant 0 : index
    %c0_133 = arith.constant 0 : index
    %261 = vector.load %arg2[%c23, %c0_132, %c0_133] : memref<27x4x4xbf16, #tpu.memory_space<vmem>>, vector<1x4x4xbf16>
    %262 = vector.shape_cast %261 : vector<1x4x4xbf16> to vector<4x4xbf16>
    %cst_134 = arith.constant dense<0.000000e+00> : vector<128x4xf32>
    %263 = tpu.matmul %260, %262, %cst_134 {dimension_numbers = #tpu.dot_dimension_numbers<[1], [0], [0], [1], [0, 0, 1, 1], [], []>} : vector<128x4xbf16>, vector<4x4xbf16>, vector<128x4xf32> -> vector<128x4xf32>
    %264 = arith.addf %253, %263 : vector<128x4xf32>
    %c128_i32_135 = arith.constant 128 : i32
    %265 = arith.muli %arg0, %c128_i32_135 : i32
    %c176_i32 = arith.constant 176 : i32
    %266 = arith.addi %265, %c176_i32 : i32
    %267 = tpu.assume_multiple %266, 8 : i32
    %268 = arith.index_cast %267 : i32 to index
    %c0_136 = arith.constant 0 : index
    %269 = vector.load %arg1[%268, %c0_136] : memref<1728x4xf32, #tpu.memory_space<vmem>>, vector<136x4xf32>
    %270 = vector.extract_strided_slice %269 {offsets = [4, 0], sizes = [128, 4], strides = [1, 1]} : vector<136x4xf32> to vector<128x4xf32>
    %271 = arith.truncf %270 : vector<128x4xf32> to vector<128x4xbf16>
    %c24 = arith.constant 24 : index
    %c0_137 = arith.constant 0 : index
    %c0_138 = arith.constant 0 : index
    %272 = vector.load %arg2[%c24, %c0_137, %c0_138] : memref<27x4x4xbf16, #tpu.memory_space<vmem>>, vector<1x4x4xbf16>
    %273 = vector.shape_cast %272 : vector<1x4x4xbf16> to vector<4x4xbf16>
    %cst_139 = arith.constant dense<0.000000e+00> : vector<128x4xf32>
    %274 = tpu.matmul %271, %273, %cst_139 {dimension_numbers = #tpu.dot_dimension_numbers<[1], [0], [0], [1], [0, 0, 1, 1], [], []>} : vector<128x4xbf16>, vector<4x4xbf16>, vector<128x4xf32> -> vector<128x4xf32>
    %275 = arith.addf %264, %274 : vector<128x4xf32>
    %c128_i32_140 = arith.constant 128 : i32
    %276 = arith.muli %arg0, %c128_i32_140 : i32
    %c176_i32_141 = arith.constant 176 : i32
    %277 = arith.addi %276, %c176_i32_141 : i32
    %278 = tpu.assume_multiple %277, 8 : i32
    %279 = arith.index_cast %278 : i32 to index
    %c0_142 = arith.constant 0 : index
    %280 = vector.load %arg1[%279, %c0_142] : memref<1728x4xf32, #tpu.memory_space<vmem>>, vector<136x4xf32>
    %281 = vector.extract_strided_slice %280 {offsets = [5, 0], sizes = [128, 4], strides = [1, 1]} : vector<136x4xf32> to vector<128x4xf32>
    %282 = arith.truncf %281 : vector<128x4xf32> to vector<128x4xbf16>
    %c25 = arith.constant 25 : index
    %c0_143 = arith.constant 0 : index
    %c0_144 = arith.constant 0 : index
    %283 = vector.load %arg2[%c25, %c0_143, %c0_144] : memref<27x4x4xbf16, #tpu.memory_space<vmem>>, vector<1x4x4xbf16>
    %284 = vector.shape_cast %283 : vector<1x4x4xbf16> to vector<4x4xbf16>
    %cst_145 = arith.constant dense<0.000000e+00> : vector<128x4xf32>
    %285 = tpu.matmul %282, %284, %cst_145 {dimension_numbers = #tpu.dot_dimension_numbers<[1], [0], [0], [1], [0, 0, 1, 1], [], []>} : vector<128x4xbf16>, vector<4x4xbf16>, vector<128x4xf32> -> vector<128x4xf32>
    %286 = arith.addf %275, %285 : vector<128x4xf32>
    %c128_i32_146 = arith.constant 128 : i32
    %287 = arith.muli %arg0, %c128_i32_146 : i32
    %c176_i32_147 = arith.constant 176 : i32
    %288 = arith.addi %287, %c176_i32_147 : i32
    %289 = tpu.assume_multiple %288, 8 : i32
    %290 = arith.index_cast %289 : i32 to index
    %c0_148 = arith.constant 0 : index
    %291 = vector.load %arg1[%290, %c0_148] : memref<1728x4xf32, #tpu.memory_space<vmem>>, vector<136x4xf32>
    %292 = vector.extract_strided_slice %291 {offsets = [6, 0], sizes = [128, 4], strides = [1, 1]} : vector<136x4xf32> to vector<128x4xf32>
    %293 = arith.truncf %292 : vector<128x4xf32> to vector<128x4xbf16>
    %c26 = arith.constant 26 : index
    %c0_149 = arith.constant 0 : index
    %c0_150 = arith.constant 0 : index
    %294 = vector.load %arg2[%c26, %c0_149, %c0_150] : memref<27x4x4xbf16, #tpu.memory_space<vmem>>, vector<1x4x4xbf16>
    %295 = vector.shape_cast %294 : vector<1x4x4xbf16> to vector<4x4xbf16>
    %cst_151 = arith.constant dense<0.000000e+00> : vector<128x4xf32>
    %296 = tpu.matmul %293, %295, %cst_151 {dimension_numbers = #tpu.dot_dimension_numbers<[1], [0], [0], [1], [0, 0, 1, 1], [], []>} : vector<128x4xbf16>, vector<4x4xbf16>, vector<128x4xf32> -> vector<128x4xf32>
    %297 = arith.addf %286, %296 : vector<128x4xf32>
    %c0_152 = arith.constant 0 : index
    %c0_153 = arith.constant 0 : index
    %298 = vector.load %arg3[%c0_152, %c0_153] : memref<1x4xf32, #tpu.memory_space<vmem>>, vector<1x4xf32>
    %299 = vector.broadcast %298 : vector<1x4xf32> to vector<128x4xf32>
    %300 = arith.addf %297, %299 : vector<128x4xf32>
    %c0_154 = arith.constant 0 : index
    %c0_155 = arith.constant 0 : index
    %301 = vector.load %arg5[%c0_154, %c0_155] : memref<128x4xf32, #tpu.memory_space<vmem>>, vector<128x4xf32>
    tpu.vector_store %arg5[%c0_154, %c0_155], %300 {strides = array<i32>} : memref<128x4xf32, #tpu.memory_space<vmem>>, vector<128x4xf32>,
    %c0_156 = arith.constant 0 : index
    %c0_157 = arith.constant 0 : index
    %302 = vector.load %arg4[%c0_156, %c0_157] : memref<128x1xf32, #tpu.memory_space<vmem>>, vector<128x1xf32>
    %303 = vector.broadcast %302 : vector<128x1xf32> to vector<128x4xf32>
    %304 = arith.mulf %300, %303 : vector<128x4xf32>
    %cst_158 = arith.constant dense<0.000000e+00> : vector<4xf32>
    %305 = vector.multi_reduction <add>, %304, %cst_158 [0] : vector<128x4xf32> to vector<4xf32>
    %306 = vector.shape_cast %305 : vector<4xf32> to vector<1x4xf32>
    %307 = vector.shape_cast %306 : vector<1x4xf32> to vector<1x1x4xf32>
    %c0_159 = arith.constant 0 : index
    %c0_160 = arith.constant 0 : index
    %c0_161 = arith.constant 0 : index
    %308 = vector.load %arg6[%c0_159, %c0_160, %c0_161] : memref<1x1x4xf32, #tpu.memory_space<vmem>>, vector<1x1x4xf32>
    tpu.vector_store %arg6[%c0_159, %c0_160, %c0_161], %307 {strides = array<i32>} : memref<1x1x4xf32, #tpu.memory_space<vmem>>, vector<1x1x4xf32>,
    %309 = arith.mulf %304, %300 : vector<128x4xf32>
    %cst_162 = arith.constant dense<0.000000e+00> : vector<4xf32>
    %310 = vector.multi_reduction <add>, %309, %cst_162 [0] : vector<128x4xf32> to vector<4xf32>
    %311 = vector.shape_cast %310 : vector<4xf32> to vector<1x4xf32>
    %312 = vector.shape_cast %311 : vector<1x4xf32> to vector<1x1x4xf32>
    %c0_163 = arith.constant 0 : index
    %c0_164 = arith.constant 0 : index
    %c0_165 = arith.constant 0 : index
    %313 = vector.load %arg7[%c0_163, %c0_164, %c0_165] : memref<1x1x4xf32, #tpu.memory_space<vmem>>, vector<1x1x4xf32>
    tpu.vector_store %arg7[%c0_163, %c0_164, %c0_165], %312 {strides = array<i32>} : memref<1x1x4xf32, #tpu.memory_space<vmem>>, vector<1x1x4xf32>,
    return
  }
  func.func @transform_0(%arg0: i32) -> (i32, i32) {
    %c0_i32 = arith.constant 0 : i32
    %c0_i32_0 = arith.constant 0 : i32
    %c0_i32_1 = arith.constant 0 : i32
    return %c0_i32, %c0_i32_0 : i32, i32
  }
  func.func @transform_1(%arg0: i32) -> (i32, i32, i32) {
    %c0_i32 = arith.constant 0 : i32
    %c0_i32_0 = arith.constant 0 : i32
    %c0_i32_1 = arith.constant 0 : i32
    %c0_i32_2 = arith.constant 0 : i32
    return %c0_i32, %c0_i32_0, %c0_i32_1 : i32, i32, i32
  }
  func.func @transform_2(%arg0: i32) -> (i32, i32) {
    %c0_i32 = arith.constant 0 : i32
    %c0_i32_0 = arith.constant 0 : i32
    %c0_i32_1 = arith.constant 0 : i32
    return %c0_i32, %c0_i32_0 : i32, i32
  }
  func.func @transform_3(%arg0: i32) -> (i32, i32) {
    %c0_i32 = arith.constant 0 : i32
    %c0_i32_0 = arith.constant 0 : i32
    return %arg0, %c0_i32 : i32, i32
  }
  func.func @transform_4(%arg0: i32) -> (i32, i32) {
    %c0_i32 = arith.constant 0 : i32
    %c0_i32_0 = arith.constant 0 : i32
    return %arg0, %c0_i32 : i32, i32
  }
  func.func @transform_5(%arg0: i32) -> (i32, i32, i32) {
    %c0_i32 = arith.constant 0 : i32
    %c0_i32_0 = arith.constant 0 : i32
    %c0_i32_1 = arith.constant 0 : i32
    return %arg0, %c0_i32, %c0_i32_0 : i32, i32, i32
  }
  func.func @transform_6(%arg0: i32) -> (i32, i32, i32) {
    %c0_i32 = arith.constant 0 : i32
    %c0_i32_0 = arith.constant 0 : i32
    %c0_i32_1 = arith.constant 0 : i32
    return %arg0, %c0_i32, %c0_i32_0 : i32, i32, i32
  }
}

module attributes {stable_mosaic.version = 11 : i64} {
  func.func @_bn_relu_kernel(%arg0: i32, %arg1: memref<512x4xf32, #tpu.memory_space<vmem>>, %arg2: memref<1x4xf32, #tpu.memory_space<vmem>>, %arg3: memref<1x4xf32, #tpu.memory_space<vmem>>, %arg4: memref<512x4xf32, #tpu.memory_space<vmem>>) attributes {dimension_semantics = [#tpu.dimension_semantics<parallel>], iteration_bounds = array<i64: 2>, scalar_prefetch = 0 : i64, scratch_operands = 0 : i64, tpu.core_type = #tpu.core_type<tc>, window_params = [{transform_indices = @transform_0, window_bounds = array<i64: 512, 4>}, {pipeline_mode = #tpu.pipeline_mode<synchronous>, transform_indices = @transform_1, window_bounds = array<i64: 1, 4>}, {pipeline_mode = #tpu.pipeline_mode<synchronous>, transform_indices = @transform_2, window_bounds = array<i64: 1, 4>}, {transform_indices = @transform_3, window_bounds = array<i64: 512, 4>}]} {
    %c0 = arith.constant 0 : index
    %c0_0 = arith.constant 0 : index
    %0 = vector.load %arg1[%c0, %c0_0] : memref<512x4xf32, #tpu.memory_space<vmem>>, vector<512x4xf32>
    %c0_1 = arith.constant 0 : index
    %c0_2 = arith.constant 0 : index
    %1 = vector.load %arg2[%c0_1, %c0_2] : memref<1x4xf32, #tpu.memory_space<vmem>>, vector<1x4xf32>
    %2 = vector.broadcast %1 : vector<1x4xf32> to vector<512x4xf32>
    %3 = arith.mulf %0, %2 : vector<512x4xf32>
    %c0_3 = arith.constant 0 : index
    %c0_4 = arith.constant 0 : index
    %4 = vector.load %arg3[%c0_3, %c0_4] : memref<1x4xf32, #tpu.memory_space<vmem>>, vector<1x4xf32>
    %5 = vector.broadcast %4 : vector<1x4xf32> to vector<512x4xf32>
    %6 = arith.addf %3, %5 : vector<512x4xf32>
    %cst = arith.constant 0.000000e+00 : f32
    %7 = vector.broadcast %cst : f32 to vector<512x4xf32>
    %8 = arith.maximumf %6, %7 : vector<512x4xf32>
    %c0_5 = arith.constant 0 : index
    %c0_6 = arith.constant 0 : index
    %9 = vector.load %arg4[%c0_5, %c0_6] : memref<512x4xf32, #tpu.memory_space<vmem>>, vector<512x4xf32>
    tpu.vector_store %arg4[%c0_5, %c0_6], %8 {strides = array<i32>} : memref<512x4xf32, #tpu.memory_space<vmem>>, vector<512x4xf32>,
    return
  }
  func.func @transform_0(%arg0: i32) -> (i32, i32) {
    %c0_i32 = arith.constant 0 : i32
    %c0_i32_0 = arith.constant 0 : i32
    return %arg0, %c0_i32 : i32, i32
  }
  func.func @transform_1(%arg0: i32) -> (i32, i32) {
    %c0_i32 = arith.constant 0 : i32
    %c0_i32_0 = arith.constant 0 : i32
    %c0_i32_1 = arith.constant 0 : i32
    return %c0_i32, %c0_i32_0 : i32, i32
  }
  func.func @transform_2(%arg0: i32) -> (i32, i32) {
    %c0_i32 = arith.constant 0 : i32
    %c0_i32_0 = arith.constant 0 : i32
    %c0_i32_1 = arith.constant 0 : i32
    return %c0_i32, %c0_i32_0 : i32, i32
  }
  func.func @transform_3(%arg0: i32) -> (i32, i32) {
    %c0_i32 = arith.constant 0 : i32
    %c0_i32_0 = arith.constant 0 : i32
    return %arg0, %c0_i32 : i32, i32
  }
}

module attributes {stable_mosaic.version = 11 : i64} {
  func.func @_bn_relu_add_bn_relu_kernel(%arg0: i32, %arg1: memref<512x4xf32, #tpu.memory_space<vmem>>, %arg2: memref<1x4xf32, #tpu.memory_space<vmem>>, %arg3: memref<1x4xf32, #tpu.memory_space<vmem>>, %arg4: memref<512x4xf32, #tpu.memory_space<vmem>>, %arg5: memref<1x4xf32, #tpu.memory_space<vmem>>, %arg6: memref<1x4xf32, #tpu.memory_space<vmem>>, %arg7: memref<512x4xf32, #tpu.memory_space<vmem>>) attributes {dimension_semantics = [#tpu.dimension_semantics<parallel>], iteration_bounds = array<i64: 2>, scalar_prefetch = 0 : i64, scratch_operands = 0 : i64, tpu.core_type = #tpu.core_type<tc>, window_params = [{transform_indices = @transform_0, window_bounds = array<i64: 512, 4>}, {pipeline_mode = #tpu.pipeline_mode<synchronous>, transform_indices = @transform_1, window_bounds = array<i64: 1, 4>}, {pipeline_mode = #tpu.pipeline_mode<synchronous>, transform_indices = @transform_2, window_bounds = array<i64: 1, 4>}, {transform_indices = @transform_3, window_bounds = array<i64: 512, 4>}, {pipeline_mode = #tpu.pipeline_mode<synchronous>, transform_indices = @transform_4, window_bounds = array<i64: 1, 4>}, {pipeline_mode = #tpu.pipeline_mode<synchronous>, transform_indices = @transform_5, window_bounds = array<i64: 1, 4>}, {transform_indices = @transform_6, window_bounds = array<i64: 512, 4>}]} {
    %c0 = arith.constant 0 : index
    %c0_0 = arith.constant 0 : index
    %0 = vector.load %arg1[%c0, %c0_0] : memref<512x4xf32, #tpu.memory_space<vmem>>, vector<512x4xf32>
    %c0_1 = arith.constant 0 : index
    %c0_2 = arith.constant 0 : index
    %1 = vector.load %arg2[%c0_1, %c0_2] : memref<1x4xf32, #tpu.memory_space<vmem>>, vector<1x4xf32>
    %2 = vector.broadcast %1 : vector<1x4xf32> to vector<512x4xf32>
    %3 = arith.mulf %0, %2 : vector<512x4xf32>
    %c0_3 = arith.constant 0 : index
    %c0_4 = arith.constant 0 : index
    %4 = vector.load %arg3[%c0_3, %c0_4] : memref<1x4xf32, #tpu.memory_space<vmem>>, vector<1x4xf32>
    %5 = vector.broadcast %4 : vector<1x4xf32> to vector<512x4xf32>
    %6 = arith.addf %3, %5 : vector<512x4xf32>
    %cst = arith.constant 0.000000e+00 : f32
    %7 = vector.broadcast %cst : f32 to vector<512x4xf32>
    %8 = arith.maximumf %6, %7 : vector<512x4xf32>
    %c0_5 = arith.constant 0 : index
    %c0_6 = arith.constant 0 : index
    %9 = vector.load %arg4[%c0_5, %c0_6] : memref<512x4xf32, #tpu.memory_space<vmem>>, vector<512x4xf32>
    %c0_7 = arith.constant 0 : index
    %c0_8 = arith.constant 0 : index
    %10 = vector.load %arg5[%c0_7, %c0_8] : memref<1x4xf32, #tpu.memory_space<vmem>>, vector<1x4xf32>
    %11 = vector.broadcast %10 : vector<1x4xf32> to vector<512x4xf32>
    %12 = arith.mulf %9, %11 : vector<512x4xf32>
    %c0_9 = arith.constant 0 : index
    %c0_10 = arith.constant 0 : index
    %13 = vector.load %arg6[%c0_9, %c0_10] : memref<1x4xf32, #tpu.memory_space<vmem>>, vector<1x4xf32>
    %14 = vector.broadcast %13 : vector<1x4xf32> to vector<512x4xf32>
    %15 = arith.addf %12, %14 : vector<512x4xf32>
    %16 = arith.addf %8, %15 : vector<512x4xf32>
    %cst_11 = arith.constant 0.000000e+00 : f32
    %17 = vector.broadcast %cst_11 : f32 to vector<512x4xf32>
    %18 = arith.maximumf %16, %17 : vector<512x4xf32>
    %c0_12 = arith.constant 0 : index
    %c0_13 = arith.constant 0 : index
    %19 = vector.load %arg7[%c0_12, %c0_13] : memref<512x4xf32, #tpu.memory_space<vmem>>, vector<512x4xf32>
    tpu.vector_store %arg7[%c0_12, %c0_13], %18 {strides = array<i32>} : memref<512x4xf32, #tpu.memory_space<vmem>>, vector<512x4xf32>,
    return
  }
  func.func @transform_0(%arg0: i32) -> (i32, i32) {
    %c0_i32 = arith.constant 0 : i32
    %c0_i32_0 = arith.constant 0 : i32
    return %arg0, %c0_i32 : i32, i32
  }
  func.func @transform_1(%arg0: i32) -> (i32, i32) {
    %c0_i32 = arith.constant 0 : i32
    %c0_i32_0 = arith.constant 0 : i32
    %c0_i32_1 = arith.constant 0 : i32
    return %c0_i32, %c0_i32_0 : i32, i32
  }
  func.func @transform_2(%arg0: i32) -> (i32, i32) {
    %c0_i32 = arith.constant 0 : i32
    %c0_i32_0 = arith.constant 0 : i32
    %c0_i32_1 = arith.constant 0 : i32
    return %c0_i32, %c0_i32_0 : i32, i32
  }
  func.func @transform_3(%arg0: i32) -> (i32, i32) {
    %c0_i32 = arith.constant 0 : i32
    %c0_i32_0 = arith.constant 0 : i32
    return %arg0, %c0_i32 : i32, i32
  }
  func.func @transform_4(%arg0: i32) -> (i32, i32) {
    %c0_i32 = arith.constant 0 : i32
    %c0_i32_0 = arith.constant 0 : i32
    %c0_i32_1 = arith.constant 0 : i32
    return %c0_i32, %c0_i32_0 : i32, i32
  }
  func.func @transform_5(%arg0: i32) -> (i32, i32) {
    %c0_i32 = arith.constant 0 : i32
    %c0_i32_0 = arith.constant 0 : i32
    %c0_i32_1 = arith.constant 0 : i32
    return %c0_i32, %c0_i32_0 : i32, i32
  }
  func.func @transform_6(%arg0: i32) -> (i32, i32) {
    %c0_i32 = arith.constant 0 : i32
    %c0_i32_0 = arith.constant 0 : i32
    return %arg0, %c0_i32 : i32, i32
  }
}

module attributes {stable_mosaic.version = 11 : i64} {
  func.func @_convT_kernel(%arg0: i32, %arg1: memref<784x4xf32, #tpu.memory_space<vmem>>, %arg2: memref<1x4x4xbf16, #tpu.memory_space<vmem>>, %arg3: memref<1x4xf32, #tpu.memory_space<vmem>>, %arg4: memref<128x1xf32, #tpu.memory_space<vmem>>, %arg5: memref<128x4xf32, #tpu.memory_space<vmem>>, %arg6: memref<1x1x4xf32, #tpu.memory_space<vmem>>, %arg7: memref<1x1x4xf32, #tpu.memory_space<vmem>>) attributes {dimension_semantics = [#tpu.dimension_semantics<parallel>], iteration_bounds = array<i64: 6>, scalar_prefetch = 0 : i64, scratch_operands = 0 : i64, tpu.core_type = #tpu.core_type<tc>, window_params = [{pipeline_mode = #tpu.pipeline_mode<synchronous>, transform_indices = @transform_0, window_bounds = array<i64: 784, 4>}, {pipeline_mode = #tpu.pipeline_mode<synchronous>, transform_indices = @transform_1, window_bounds = array<i64: 1, 4, 4>}, {pipeline_mode = #tpu.pipeline_mode<synchronous>, transform_indices = @transform_2, window_bounds = array<i64: 1, 4>}, {transform_indices = @transform_3, window_bounds = array<i64: 128, 1>}, {transform_indices = @transform_4, window_bounds = array<i64: 128, 4>}, {transform_indices = @transform_5, window_bounds = array<i64: 1, 1, 4>}, {transform_indices = @transform_6, window_bounds = array<i64: 1, 1, 4>}]} {
    %cst = arith.constant 0.000000e+00 : f32
    %0 = vector.broadcast %cst : f32 to vector<128x4xf32>
    %c128_i32 = arith.constant 128 : i32
    %1 = arith.muli %arg0, %c128_i32 : i32
    %c0_i32 = arith.constant 0 : i32
    %2 = arith.addi %1, %c0_i32 : i32
    %3 = tpu.assume_multiple %2, 8 : i32
    %4 = arith.index_cast %3 : i32 to index
    %c0 = arith.constant 0 : index
    %5 = vector.load %arg1[%4, %c0] : memref<784x4xf32, #tpu.memory_space<vmem>>, vector<136x4xf32>
    %6 = vector.extract_strided_slice %5 {offsets = [0, 0], sizes = [128, 4], strides = [1, 1]} : vector<136x4xf32> to vector<128x4xf32>
    %7 = arith.truncf %6 : vector<128x4xf32> to vector<128x4xbf16>
    %c0_0 = arith.constant 0 : index
    %c0_1 = arith.constant 0 : index
    %c0_2 = arith.constant 0 : index
    %8 = vector.load %arg2[%c0_0, %c0_1, %c0_2] : memref<1x4x4xbf16, #tpu.memory_space<vmem>>, vector<1x4x4xbf16>
    %9 = vector.shape_cast %8 : vector<1x4x4xbf16> to vector<4x4xbf16>
    %cst_3 = arith.constant dense<0.000000e+00> : vector<128x4xf32>
    %10 = tpu.matmul %7, %9, %cst_3 {dimension_numbers = #tpu.dot_dimension_numbers<[1], [0], [0], [1], [0, 0, 1, 1], [], []>} : vector<128x4xbf16>, vector<4x4xbf16>, vector<128x4xf32> -> vector<128x4xf32>
    %11 = arith.addf %0, %10 : vector<128x4xf32>
    %c0_4 = arith.constant 0 : index
    %c0_5 = arith.constant 0 : index
    %12 = vector.load %arg3[%c0_4, %c0_5] : memref<1x4xf32, #tpu.memory_space<vmem>>, vector<1x4xf32>
    %13 = vector.broadcast %12 : vector<1x4xf32> to vector<128x4xf32>
    %14 = arith.addf %11, %13 : vector<128x4xf32>
    %c0_6 = arith.constant 0 : index
    %c0_7 = arith.constant 0 : index
    %15 = vector.load %arg5[%c0_6, %c0_7] : memref<128x4xf32, #tpu.memory_space<vmem>>, vector<128x4xf32>
    tpu.vector_store %arg5[%c0_6, %c0_7], %14 {strides = array<i32>} : memref<128x4xf32, #tpu.memory_space<vmem>>, vector<128x4xf32>,
    %c0_8 = arith.constant 0 : index
    %c0_9 = arith.constant 0 : index
    %16 = vector.load %arg4[%c0_8, %c0_9] : memref<128x1xf32, #tpu.memory_space<vmem>>, vector<128x1xf32>
    %17 = vector.broadcast %16 : vector<128x1xf32> to vector<128x4xf32>
    %18 = arith.mulf %14, %17 : vector<128x4xf32>
    %cst_10 = arith.constant dense<0.000000e+00> : vector<4xf32>
    %19 = vector.multi_reduction <add>, %18, %cst_10 [0] : vector<128x4xf32> to vector<4xf32>
    %20 = vector.shape_cast %19 : vector<4xf32> to vector<1x4xf32>
    %21 = vector.shape_cast %20 : vector<1x4xf32> to vector<1x1x4xf32>
    %c0_11 = arith.constant 0 : index
    %c0_12 = arith.constant 0 : index
    %c0_13 = arith.constant 0 : index
    %22 = vector.load %arg6[%c0_11, %c0_12, %c0_13] : memref<1x1x4xf32, #tpu.memory_space<vmem>>, vector<1x1x4xf32>
    tpu.vector_store %arg6[%c0_11, %c0_12, %c0_13], %21 {strides = array<i32>} : memref<1x1x4xf32, #tpu.memory_space<vmem>>, vector<1x1x4xf32>,
    %23 = arith.mulf %18, %14 : vector<128x4xf32>
    %cst_14 = arith.constant dense<0.000000e+00> : vector<4xf32>
    %24 = vector.multi_reduction <add>, %23, %cst_14 [0] : vector<128x4xf32> to vector<4xf32>
    %25 = vector.shape_cast %24 : vector<4xf32> to vector<1x4xf32>
    %26 = vector.shape_cast %25 : vector<1x4xf32> to vector<1x1x4xf32>
    %c0_15 = arith.constant 0 : index
    %c0_16 = arith.constant 0 : index
    %c0_17 = arith.constant 0 : index
    %27 = vector.load %arg7[%c0_15, %c0_16, %c0_17] : memref<1x1x4xf32, #tpu.memory_space<vmem>>, vector<1x1x4xf32>
    tpu.vector_store %arg7[%c0_15, %c0_16, %c0_17], %26 {strides = array<i32>} : memref<1x1x4xf32, #tpu.memory_space<vmem>>, vector<1x1x4xf32>,
    return
  }
  func.func @transform_0(%arg0: i32) -> (i32, i32) {
    %c0_i32 = arith.constant 0 : i32
    %c0_i32_0 = arith.constant 0 : i32
    %c0_i32_1 = arith.constant 0 : i32
    return %c0_i32, %c0_i32_0 : i32, i32
  }
  func.func @transform_1(%arg0: i32) -> (i32, i32, i32) {
    %c0_i32 = arith.constant 0 : i32
    %c0_i32_0 = arith.constant 0 : i32
    %c0_i32_1 = arith.constant 0 : i32
    %c0_i32_2 = arith.constant 0 : i32
    return %c0_i32, %c0_i32_0, %c0_i32_1 : i32, i32, i32
  }
  func.func @transform_2(%arg0: i32) -> (i32, i32) {
    %c0_i32 = arith.constant 0 : i32
    %c0_i32_0 = arith.constant 0 : i32
    %c0_i32_1 = arith.constant 0 : i32
    return %c0_i32, %c0_i32_0 : i32, i32
  }
  func.func @transform_3(%arg0: i32) -> (i32, i32) {
    %c0_i32 = arith.constant 0 : i32
    %c0_i32_0 = arith.constant 0 : i32
    return %arg0, %c0_i32 : i32, i32
  }
  func.func @transform_4(%arg0: i32) -> (i32, i32) {
    %c0_i32 = arith.constant 0 : i32
    %c0_i32_0 = arith.constant 0 : i32
    return %arg0, %c0_i32 : i32, i32
  }
  func.func @transform_5(%arg0: i32) -> (i32, i32, i32) {
    %c0_i32 = arith.constant 0 : i32
    %c0_i32_0 = arith.constant 0 : i32
    %c0_i32_1 = arith.constant 0 : i32
    return %arg0, %c0_i32, %c0_i32_0 : i32, i32, i32
  }
  func.func @transform_6(%arg0: i32) -> (i32, i32, i32) {
    %c0_i32 = arith.constant 0 : i32
    %c0_i32_0 = arith.constant 0 : i32
    %c0_i32_1 = arith.constant 0 : i32
    return %arg0, %c0_i32, %c0_i32_0 : i32, i32, i32
  }
}

</mosaic_0001>

<llo_original>
// kernel: deconv_block_forward.6
$region0: #{deconv_block_forward.6}
  #allocation0 [shape = 'u32[]', space=smem, size = 0x4, offset = 0x4, fixed_abs, tag = 'smem constant byte address 0x4 - core index']
  #allocation1 [shape = 'u32[144,128]{1,0:T(1,128)}', space=vmem, size = 0x12000, scoped, tag = 'internal scratch']
  %s0 = inlined_call_operand.vmem [shape: f32[1024,4], index: 0, kind: input, shape index: {}]
  %s1 = inlined_call_operand.vmem [shape: f32[1,4], index: 1, kind: input, shape index: {}]
  %s2 = inlined_call_operand.vmem [shape: f32[1,4], index: 2, kind: input, shape index: {}]
  %s3 = inlined_call_operand.vmem [shape: f32[1024,4], index: 3, kind: output, shape index: {}]
  %s4 = sld [smem:[#allocation0]]
  $region45: #{deconv_block_forward.6} parent=0
    _
  %s6 = ssub.s32 1, %s4
  %s7 = scalar_select 0, %s6, %s4
  loop: start=0, step=1, limit=4
  $region2: #{deconv_block_forward.6} parent=0 // loop_pre_header
    _
  $region3: #{deconv_block_forward.6} parent=0 // loop_header
    %s9 = sphi 0, %s13
    %p10 = scmp.ge.s32.totalorder %s9, 4
    %s19 = sphi 0, %s21
    %s22 = sphi 0, %s19
    %s23 = sphi 0, %s22
    %s39 = sphi 0, %s23
    %s43 = sphi 0, %s43
    %s45 = sphi 0, %s43
    %s46 = sphi 0, %s45
    %s60 = sphi 0, %s46
    %s64 = sphi 0, %s64
    %s66 = sphi 0, %s64
    %s67 = sphi 0, %s66
    %s81 = sphi 0, %s67
    %s87 = sphi 0, %s89
    %s90 = sphi 0, %s87
    %s91 = sphi 0, %s90
    %s107 = sphi 0, %s91
  $region4: #{deconv_block_forward.6} parent=0 // loop_header_branch
    %12 = sbr.rel (%p10) target = $region8
  $region5: #{deconv_block_forward.6} parent=0 // loop_body
    %s14 = ssub.s32 %s9, 1
    %s15 = ssub.s32 %s9, 2
    %s16 = sadd.s32 %s9, 1
    %s17 = ssub.s32 %s9, %s16
    %p18 = scmp.eq.s32.totalorder %s17, 0
    %s20 = sadd.s32 %s19, 1
    %s21 = scalar_select %p18, %s19, %s20
    %p24 = pneg %p18
    %p25 = scmp.eq.s32.totalorder %s9, 1
    %p26 = por %p24, %p25
    %p27 = scmp.ne.s32.totalorder %s19, %s22
    %p28 = scmp.eq.s32.totalorder %s9, 0
    %p29 = por %p27, %p28
    %p30 = scmp.ne.s32.totalorder %s19, %s22
    %p31 = scmp.eq.s32.totalorder %s14, 1
    %p32 = por %p30, %p31
    %p33 = scmp.ne.s32.totalorder %s22, %s23
    %p34 = scmp.eq.s32.totalorder %s14, 0
    %p35 = por %p33, %p34
    %p36 = scmp.ne.s32.totalorder %s22, %s23
    %p37 = scmp.eq.s32.totalorder %s15, 1
    %p38 = por %p36, %p37
    %p40 = scmp.ne.s32.totalorder %s23, %s39
    %p41 = scmp.eq.s32.totalorder %s15, 0
    %p42 = por %p40, %p41
    %s44 = sadd.s32 %s43, 1
    %p47 = scmp.eq.s32.totalorder %s9, 1
    %p48 = scmp.ne.s32.totalorder %s43, %s45
    %p49 = scmp.eq.s32.totalorder %s9, 0
    %p50 = por %p48, %p49
    %p51 = scmp.ne.s32.totalorder %s43, %s45
    %p52 = scmp.eq.s32.totalorder %s14, 1
    %p53 = por %p51, %p52
    %p54 = scmp.ne.s32.totalorder %s45, %s46
    %p55 = scmp.eq.s32.totalorder %s14, 0
    %p56 = por %p54, %p55
    %p57 = scmp.ne.s32.totalorder %s45, %s46
    %p58 = scmp.eq.s32.totalorder %s15, 1
    %p59 = por %p57, %p58
    %p61 = scmp.ne.s32.totalorder %s46, %s60
    %p62 = scmp.eq.s32.totalorder %s15, 0
    %p63 = por %p61, %p62
    %s65 = sadd.s32 %s64, 1
    %p68 = scmp.eq.s32.totalorder %s9, 1
    %p69 = scmp.ne.s32.totalorder %s64, %s66
    %p70 = scmp.eq.s32.totalorder %s9, 0
    %p71 = por %p69, %p70
    %p72 = scmp.ne.s32.totalorder %s64, %s66
    %p73 = scmp.eq.s32.totalorder %s14, 1
    %p74 = por %p72, %p73
    %p75 = scmp.ne.s32.totalorder %s66, %s67
    %p76 = scmp.eq.s32.totalorder %s14, 0
    %p77 = por %p75, %p76
    %p78 = scmp.ne.s32.totalorder %s66, %s67
    %p79 = scmp.eq.s32.totalorder %s15, 1
    %p80 = por %p78, %p79
    %p82 = scmp.ne.s32.totalorder %s67, %s81
    %p83 = scmp.eq.s32.totalorder %s15, 0
    %p84 = por %p82, %p83
    %s85 = ssub.s32 %s9, %s16
    %p86 = scmp.eq.s32.totalorder %s85, 0
    %s88 = sadd.s32 %s87, 1
    %s89 = scalar_select %p86, %s87, %s88
    %p92 = pneg %p86
    %p93 = scmp.eq.s32.totalorder %s9, 1
    %p94 = por %p92, %p93
    %p95 = scmp.ne.s32.totalorder %s87, %s90
    %p96 = scmp.eq.s32.totalorder %s9, 0
    %p97 = por %p95, %p96
    %p98 = scmp.ne.s32.totalorder %s87, %s90
    %p99 = scmp.eq.s32.totalorder %s14, 1
    %p100 = por %p98, %p99
    %p101 = scmp.ne.s32.totalorder %s90, %s91
    %p102 = scmp.eq.s32.totalorder %s14, 0
    %p103 = por %p101, %p102
    %p104 = scmp.ne.s32.totalorder %s90, %s91
    %p105 = scmp.eq.s32.totalorder %s15, 1
    %p106 = por %p104, %p105
    %p108 = scmp.ne.s32.totalorder %s91, %s107
    %p109 = scmp.eq.s32.totalorder %s15, 0
    %p110 = por %p108, %p109
    %p111 = scmp.le.s32.totalorder 1, %s9
    %p112 = scmp.lt.s32.totalorder %s9, 3
    %p113 = pnand %p111, %p112
    %p114 = pneg %p113
    // Predicated region
    $region9: #{deconv_block_forward.6} parent=5 // pred_check
      _
    $region10: #{deconv_block_forward.6} parent=5 // pred_check_branch
      %116 = sbr.rel (%p113) target = $region12
    $region11: #{deconv_block_forward.6} parent=5 // pred_region
      %s117 = ssub.s32 %s9, 1
      // Predicated region
      $region13: #{deconv_block_forward.6} parent=11 // pred_check
        %p118 = pneg %p56
      $region14: #{deconv_block_forward.6} parent=11 // pred_check_branch
        %120 = sbr.rel (%p118) target = $region16
      $region15: #{deconv_block_forward.6} parent=11 // pred_region
        _
      $region16: #{deconv_block_forward.6} parent=11 // pred_fallthru
        _
      // Predicated region
      $region17: #{deconv_block_forward.6} parent=11 // pred_check
        %p121 = pneg %p77
      $region18: #{deconv_block_forward.6} parent=11 // pred_check_branch
        %123 = sbr.rel (%p121) target = $region20
      $region19: #{deconv_block_forward.6} parent=11 // pred_region
        _
      $region20: #{deconv_block_forward.6} parent=11 // pred_fallthru
        _
    $region12: #{deconv_block_forward.6} parent=5 // pred_fallthru
      _
    %p124 = scmp.lt.s32.totalorder %s9, 2
    // Predicated region
    $region21: #{deconv_block_forward.6} parent=5 // pred_check
      %p125 = pneg %p124
    $region22: #{deconv_block_forward.6} parent=5 // pred_check_branch
      %127 = sbr.rel (%p125) target = $region24
    $region23: #{deconv_block_forward.6} parent=5 // pred_region
      // Predicated region
      $region25: #{deconv_block_forward.6} parent=23 // pred_check
        %p128 = pneg %p29
      $region26: #{deconv_block_forward.6} parent=23 // pred_check_branch
        %130 = sbr.rel (%p128) target = $region28
      $region27: #{deconv_block_forward.6} parent=23 // pred_region
        %s131 = smul.u32 64, %s9
        %p132 = scmp.lt.s32.totalorder %s131, 127
        %s133 = scalar_select %p132, %s131, 127
        %s134 = smul.addr %s133, 8
        %s135 = scalar_lea.vmem %s0, %s134
        %s136 = smul.u32 64, %s9
      $region28: #{deconv_block_forward.6} parent=23 // pred_fallthru
        _
    $region24: #{deconv_block_forward.6} parent=5 // pred_fallthru
      _
    %p137 = scmp.le.s32.totalorder 1, %s9
    %p138 = scmp.lt.s32.totalorder %s9, 3
    %p139 = pnand %p137, %p138
    %p140 = pneg %p139
    // Predicated region
    $region29: #{deconv_block_forward.6} parent=5 // pred_check
      _
    $region30: #{deconv_block_forward.6} parent=5 // pred_check_branch
      %142 = sbr.rel (%p139) target = $region32
    $region31: #{deconv_block_forward.6} parent=5 // pred_region
      %s143 = ssub.s32 %s9, 1
      %s144 = smul.u32 64, %s14
      %p145 = scmp.lt.s32.totalorder %s144, 127
      %s146 = scalar_select %p145, %s144, 127
      %s147 = smul.addr %s146, 8
      %s148 = scalar_lea.vmem %s0, %s147
      %p149 = pneg %p35
      %p150 = pneg %p32
      %p151 = pneg %p56
      %p152 = pneg %p53
      %p153 = pneg %p77
      %p154 = pneg %p74
      %p155 = pneg %p103
      %p156 = pneg %p100
      %s157 = smul.u32 64, %s14
      %p158 = scmp.lt.s32.totalorder %s157, 127
      %s159 = scalar_select %p158, %s157, 127
      %s160 = smul.addr %s159, 8
      %s161 = scalar_lea.vmem %s3, %s160
      %s162 = smul.u32 64, %s14
      %p163 = scmp.lt.s32.totalorder %s162, 127
      %s164 = scalar_select %p163, %s162, 127
      %s165 = smul.addr %s164, 8
      %s166 = scalar_lea.vmem %s0, %s165
      %s167 = smul.u32 64, %s14
      %s168 = smul.u32 64, %s14
      %p169 = scmp.lt.s32.totalorder %s168, 127
      %s170 = scalar_select %p169, %s168, 127
      %s171 = smul.addr %s170, 8
      %s172 = scalar_lea.vmem %s3, %s171
      %s173 = smul.u32 64, %s14
      %v174 = vld [vmem:[%s166] sm:$0xff]
      %v175 = vld [vmem:[%s166 + $0x8] sm:$0xff]
      %v176 = vld [vmem:[%s166 + $0x10] sm:$0xff]
      %v177 = vld [vmem:[%s166 + $0x18] sm:$0xff]
      %v178 = vld [vmem:[%s166 + $0x20] sm:$0xff]
      %v179 = vld [vmem:[%s166 + $0x28] sm:$0xff]
      %v180 = vld [vmem:[%s166 + $0x30] sm:$0xff]
      %v181 = vld [vmem:[%s166 + $0x38] sm:$0xff]
      %v182 = vld [vmem:[%s166 + $0x40] sm:$0xff]
      %v183 = vld [vmem:[%s166 + $0x48] sm:$0xff]
      %v184 = vld [vmem:[%s166 + $0x50] sm:$0xff]
      %v185 = vld [vmem:[%s166 + $0x58] sm:$0xff]
      %v186 = vld [vmem:[%s166 + $0x60] sm:$0xff]
      %v187 = vld [vmem:[%s166 + $0x68] sm:$0xff]
      %v188 = vld [vmem:[%s166 + $0x70] sm:$0xff]
      %v189 = vld [vmem:[%s166 + $0x78] sm:$0xff]
      %v190 = vld [vmem:[%s166 + $0x80] sm:$0xff]
      %v191 = vld [vmem:[%s166 + $0x88] sm:$0xff]
      %v192 = vld [vmem:[%s166 + $0x90] sm:$0xff]
      %v193 = vld [vmem:[%s166 + $0x98] sm:$0xff]
      %v194 = vld [vmem:[%s166 + $0xa0] sm:$0xff]
      %v195 = vld [vmem:[%s166 + $0xa8] sm:$0xff]
      %v196 = vld [vmem:[%s166 + $0xb0] sm:$0xff]
      %v197 = vld [vmem:[%s166 + $0xb8] sm:$0xff]
      %v198 = vld [vmem:[%s166 + $0xc0] sm:$0xff]
      %v199 = vld [vmem:[%s166 + $0xc8] sm:$0xff]
      %v200 = vld [vmem:[%s166 + $0xd0] sm:$0xff]
      %v201 = vld [vmem:[%s166 + $0xd8] sm:$0xff]
      %v202 = vld [vmem:[%s166 + $0xe0] sm:$0xff]
      %v203 = vld [vmem:[%s166 + $0xe8] sm:$0xff]
      %v204 = vld [vmem:[%s166 + $0xf0] sm:$0xff]
      %v205 = vld [vmem:[%s166 + $0xf8] sm:$0xff]
      %v206 = vld [vmem:[%s166 + $0x100] sm:$0xff]
      %v207 = vld [vmem:[%s166 + $0x108] sm:$0xff]
      %v208 = vld [vmem:[%s166 + $0x110] sm:$0xff]
      %v209 = vld [vmem:[%s166 + $0x118] sm:$0xff]
      %v210 = vld [vmem:[%s166 + $0x120] sm:$0xff]
      %v211 = vld [vmem:[%s166 + $0x128] sm:$0xff]
      %v212 = vld [vmem:[%s166 + $0x130] sm:$0xff]
      %v213 = vld [vmem:[%s166 + $0x138] sm:$0xff]
      %v214 = vld [vmem:[%s166 + $0x140] sm:$0xff]
      %v215 = vld [vmem:[%s166 + $0x148] sm:$0xff]
      %v216 = vld [vmem:[%s166 + $0x150] sm:$0xff]
      %v217 = vld [vmem:[%s166 + $0x158] sm:$0xff]
      %v218 = vld [vmem:[%s166 + $0x160] sm:$0xff]
      %v219 = vld [vmem:[%s166 + $0x168] sm:$0xff]
      %v220 = vld [vmem:[%s166 + $0x170] sm:$0xff]
      %v221 = vld [vmem:[%s166 + $0x178] sm:$0xff]
      %v222 = vld [vmem:[%s166 + $0x180] sm:$0xff]
      %v223 = vld [vmem:[%s166 + $0x188] sm:$0xff]
      %v224 = vld [vmem:[%s166 + $0x190] sm:$0xff]
      %v225 = vld [vmem:[%s166 + $0x198] sm:$0xff]
      %v226 = vld [vmem:[%s166 + $0x1a0] sm:$0xff]
      %v227 = vld [vmem:[%s166 + $0x1a8] sm:$0xff]
      %v228 = vld [vmem:[%s166 + $0x1b0] sm:$0xff]
      %v229 = vld [vmem:[%s166 + $0x1b8] sm:$0xff]
      %v230 = vld [vmem:[%s166 + $0x1c0] sm:$0xff]
      %v231 = vld [vmem:[%s166 + $0x1c8] sm:$0xff]
      %v232 = vld [vmem:[%s166 + $0x1d0] sm:$0xff]
      %v233 = vld [vmem:[%s166 + $0x1d8] sm:$0xff]
      %v234 = vld [vmem:[%s166 + $0x1e0] sm:$0xff]
      %v235 = vld [vmem:[%s166 + $0x1e8] sm:$0xff]
      %v236 = vld [vmem:[%s166 + $0x1f0] sm:$0xff]
      %v237 = vld [vmem:[%s166 + $0x1f8] sm:$0xff]
      %v238 = vld [vmem:[%s1] sm:$0x1]
      %v240 = vlaneseq
      %v241 = vshrl.u32 %v240, 7
      %v242 = vsub.s32 0, %v241
      %v243 = vrot.slane %v238, %v242
      %v245 = vmul.f32 %v174, %v243
      %v246 = vmul.f32 %v175, %v243
      %v247 = vmul.f32 %v176, %v243
      %v248 = vmul.f32 %v177, %v243
      %v249 = vmul.f32 %v178, %v243
      %v250 = vmul.f32 %v179, %v243
      %v251 = vmul.f32 %v180, %v243
      %v252 = vmul.f32 %v181, %v243
      %v253 = vmul.f32 %v182, %v243
      %v254 = vmul.f32 %v183, %v243
      %v255 = vmul.f32 %v184, %v243
      %v256 = vmul.f32 %v185, %v243
      %v257 = vmul.f32 %v186, %v243
      %v258 = vmul.f32 %v187, %v243
      %v259 = vmul.f32 %v188, %v243
      %v260 = vmul.f32 %v189, %v243
      %v261 = vmul.f32 %v190, %v243
      %v262 = vmul.f32 %v191, %v243
      %v263 = vmul.f32 %v192, %v243
      %v264 = vmul.f32 %v193, %v243
      %v265 = vmul.f32 %v194, %v243
      %v266 = vmul.f32 %v195, %v243
      %v267 = vmul.f32 %v196, %v243
      %v268 = vmul.f32 %v197, %v243
      %v269 = vmul.f32 %v198, %v243
      %v270 = vmul.f32 %v199, %v243
      %v271 = vmul.f32 %v200, %v243
      %v272 = vmul.f32 %v201, %v243
      %v273 = vmul.f32 %v202, %v243
      %v274 = vmul.f32 %v203, %v243
      %v275 = vmul.f32 %v204, %v243
      %v276 = vmul.f32 %v205, %v243
      %v277 = vmul.f32 %v206, %v243
      %v278 = vmul.f32 %v207, %v243
      %v279 = vmul.f32 %v208, %v243
      %v280 = vmul.f32 %v209, %v243
      %v281 = vmul.f32 %v210, %v243
      %v282 = vmul.f32 %v211, %v243
      %v283 = vmul.f32 %v212, %v243
      %v284 = vmul.f32 %v213, %v243
      %v285 = vmul.f32 %v214, %v243
      %v286 = vmul.f32 %v215, %v243
      %v287 = vmul.f32 %v216, %v243
      %v288 = vmul.f32 %v217, %v243
      %v289 = vmul.f32 %v218, %v243
      %v290 = vmul.f32 %v219, %v243
      %v291 = vmul.f32 %v220, %v243
      %v292 = vmul.f32 %v221, %v243
      %v293 = vmul.f32 %v222, %v243
      %v294 = vmul.f32 %v223, %v243
      %v295 = vmul.f32 %v224, %v243
      %v296 = vmul.f32 %v225, %v243
      %v297 = vmul.f32 %v226, %v243
      %v298 = vmul.f32 %v227, %v243
      %v299 = vmul.f32 %v228, %v243
      %v300 = vmul.f32 %v229, %v243
      %v301 = vmul.f32 %v230, %v243
      %v302 = vmul.f32 %v231, %v243
      %v303 = vmul.f32 %v232, %v243
      %v304 = vmul.f32 %v233, %v243
      %v305 = vmul.f32 %v234, %v243
      %v306 = vmul.f32 %v235, %v243
      %v307 = vmul.f32 %v236, %v243
      %v308 = vmul.f32 %v237, %v243
      %v309 = vld [vmem:[%s2] sm:$0x1]
      %v311 = vlaneseq
      %v312 = vshrl.u32 %v311, 7
      %v313 = vsub.s32 0, %v312
      %v314 = vrot.slane %v309, %v313
      %v316 = vadd.f32 %v245, %v314
      %v317 = vadd.f32 %v246, %v314
      %v318 = vadd.f32 %v247, %v314
      %v319 = vadd.f32 %v248, %v314
      %v320 = vadd.f32 %v249, %v314
      %v321 = vadd.f32 %v250, %v314
      %v322 = vadd.f32 %v251, %v314
      %v323 = vadd.f32 %v252, %v314
      %v324 = vadd.f32 %v253, %v314
      %v325 = vadd.f32 %v254, %v314
      %v326 = vadd.f32 %v255, %v314
      %v327 = vadd.f32 %v256, %v314
      %v328 = vadd.f32 %v257, %v314
      %v329 = vadd.f32 %v258, %v314
      %v330 = vadd.f32 %v259, %v314
      %v331 = vadd.f32 %v260, %v314
      %v332 = vadd.f32 %v261, %v314
      %v333 = vadd.f32 %v262, %v314
      %v334 = vadd.f32 %v263, %v314
      %v335 = vadd.f32 %v264, %v314
      %v336 = vadd.f32 %v265, %v314
      %v337 = vadd.f32 %v266, %v314
      %v338 = vadd.f32 %v267, %v314
      %v339 = vadd.f32 %v268, %v314
      %v340 = vadd.f32 %v269, %v314
      %v341 = vadd.f32 %v270, %v314
      %v342 = vadd.f32 %v271, %v314
      %v343 = vadd.f32 %v272, %v314
      %v344 = vadd.f32 %v273, %v314
      %v345 = vadd.f32 %v274, %v314
      %v346 = vadd.f32 %v275, %v314
      %v347 = vadd.f32 %v276, %v314
      %v348 = vadd.f32 %v277, %v314
      %v349 = vadd.f32 %v278, %v314
      %v350 = vadd.f32 %v279, %v314
      %v351 = vadd.f32 %v280, %v314
      %v352 = vadd.f32 %v281, %v314
      %v353 = vadd.f32 %v282, %v314
      %v354 = vadd.f32 %v283, %v314
      %v355 = vadd.f32 %v284, %v314
      %v356 = vadd.f32 %v285, %v314
      %v357 = vadd.f32 %v286, %v314
      %v358 = vadd.f32 %v287, %v314
      %v359 = vadd.f32 %v288, %v314
      %v360 = vadd.f32 %v289, %v314
      %v361 = vadd.f32 %v290, %v314
      %v362 = vadd.f32 %v291, %v314
      %v363 = vadd.f32 %v292, %v314
      %v364 = vadd.f32 %v293, %v314
      %v365 = vadd.f32 %v294, %v314
      %v366 = vadd.f32 %v295, %v314
      %v367 = vadd.f32 %v296, %v314
      %v368 = vadd.f32 %v297, %v314
      %v369 = vadd.f32 %v298, %v314
      %v370 = vadd.f32 %v299, %v314
      %v371 = vadd.f32 %v300, %v314
      %v372 = vadd.f32 %v301, %v314
      %v373 = vadd.f32 %v302, %v314
      %v374 = vadd.f32 %v303, %v314
      %v375 = vadd.f32 %v304, %v314
      %v376 = vadd.f32 %v305, %v314
      %v377 = vadd.f32 %v306, %v314
      %v378 = vadd.f32 %v307, %v314
      %v379 = vadd.f32 %v308, %v314
      %v380 = vmax.f32 %v316, 0.0
      %v381 = vmax.f32 %v317, 0.0
      %v382 = vmax.f32 %v318, 0.0
      %v383 = vmax.f32 %v319, 0.0
      %v384 = vmax.f32 %v320, 0.0
      %v385 = vmax.f32 %v321, 0.0
      %v386 = vmax.f32 %v322, 0.0
      %v387 = vmax.f32 %v323, 0.0
      %v388 = vmax.f32 %v324, 0.0
      %v389 = vmax.f32 %v325, 0.0
      %v390 = vmax.f32 %v326, 0.0
      %v391 = vmax.f32 %v327, 0.0
      %v392 = vmax.f32 %v328, 0.0
      %v393 = vmax.f32 %v329, 0.0
      %v394 = vmax.f32 %v330, 0.0
      %v395 = vmax.f32 %v331, 0.0
      %v396 = vmax.f32 %v332, 0.0
      %v397 = vmax.f32 %v333, 0.0
      %v398 = vmax.f32 %v334, 0.0
      %v399 = vmax.f32 %v335, 0.0
      %v400 = vmax.f32 %v336, 0.0
      %v401 = vmax.f32 %v337, 0.0
      %v402 = vmax.f32 %v338, 0.0
      %v403 = vmax.f32 %v339, 0.0
      %v404 = vmax.f32 %v340, 0.0
      %v405 = vmax.f32 %v341, 0.0
      %v406 = vmax.f32 %v342, 0.0
      %v407 = vmax.f32 %v343, 0.0
      %v408 = vmax.f32 %v344, 0.0
      %v409 = vmax.f32 %v345, 0.0
      %v410 = vmax.f32 %v346, 0.0
      %v411 = vmax.f32 %v347, 0.0
      %v412 = vmax.f32 %v348, 0.0
      %v413 = vmax.f32 %v349, 0.0
      %v414 = vmax.f32 %v350, 0.0
      %v415 = vmax.f32 %v351, 0.0
      %v416 = vmax.f32 %v352, 0.0
      %v417 = vmax.f32 %v353, 0.0
      %v418 = vmax.f32 %v354, 0.0
      %v419 = vmax.f32 %v355, 0.0
      %v420 = vmax.f32 %v356, 0.0
      %v421 = vmax.f32 %v357, 0.0
      %v422 = vmax.f32 %v358, 0.0
      %v423 = vmax.f32 %v359, 0.0
      %v424 = vmax.f32 %v360, 0.0
      %v425 = vmax.f32 %v361, 0.0
      %v426 = vmax.f32 %v362, 0.0
      %v427 = vmax.f32 %v363, 0.0
      %v428 = vmax.f32 %v364, 0.0
      %v429 = vmax.f32 %v365, 0.0
      %v430 = vmax.f32 %v366, 0.0
      %v431 = vmax.f32 %v367, 0.0
      %v432 = vmax.f32 %v368, 0.0
      %v433 = vmax.f32 %v369, 0.0
      %v434 = vmax.f32 %v370, 0.0
      %v435 = vmax.f32 %v371, 0.0
      %v436 = vmax.f32 %v372, 0.0
      %v437 = vmax.f32 %v373, 0.0
      %v438 = vmax.f32 %v374, 0.0
      %v439 = vmax.f32 %v375, 0.0
      %v440 = vmax.f32 %v376, 0.0
      %v441 = vmax.f32 %v377, 0.0
      %v442 = vmax.f32 %v378, 0.0
      %v443 = vmax.f32 %v379, 0.0
      %vm444 = vcmask 31744
      %445 = vst.msk [vmem:[%s172] sm:$0xff] %vm444, %v380
      %446 = vst.msk [vmem:[%s172 + $0x8] sm:$0xff] %vm444, %v381
      %447 = vst.msk [vmem:[%s172 + $0x10] sm:$0xff] %vm444, %v382
      %448 = vst.msk [vmem:[%s172 + $0x18] sm:$0xff] %vm444, %v383
      %449 = vst.msk [vmem:[%s172 + $0x20] sm:$0xff] %vm444, %v384
      %450 = vst.msk [vmem:[%s172 + $0x28] sm:$0xff] %vm444, %v385
      %451 = vst.msk [vmem:[%s172 + $0x30] sm:$0xff] %vm444, %v386
      %452 = vst.msk [vmem:[%s172 + $0x38] sm:$0xff] %vm444, %v387
      %453 = vst.msk [vmem:[%s172 + $0x40] sm:$0xff] %vm444, %v388
      %454 = vst.msk [vmem:[%s172 + $0x48] sm:$0xff] %vm444, %v389
      %455 = vst.msk [vmem:[%s172 + $0x50] sm:$0xff] %vm444, %v390
      %456 = vst.msk [vmem:[%s172 + $0x58] sm:$0xff] %vm444, %v391
      %457 = vst.msk [vmem:[%s172 + $0x60] sm:$0xff] %vm444, %v392
      %458 = vst.msk [vmem:[%s172 + $0x68] sm:$0xff] %vm444, %v393
      %459 = vst.msk [vmem:[%s172 + $0x70] sm:$0xff] %vm444, %v394
      %460 = vst.msk [vmem:[%s172 + $0x78] sm:$0xff] %vm444, %v395
      %461 = vst.msk [vmem:[%s172 + $0x80] sm:$0xff] %vm444, %v396
      %462 = vst.msk [vmem:[%s172 + $0x88] sm:$0xff] %vm444, %v397
      %463 = vst.msk [vmem:[%s172 + $0x90] sm:$0xff] %vm444, %v398
      %464 = vst.msk [vmem:[%s172 + $0x98] sm:$0xff] %vm444, %v399
      %465 = vst.msk [vmem:[%s172 + $0xa0] sm:$0xff] %vm444, %v400
      %466 = vst.msk [vmem:[%s172 + $0xa8] sm:$0xff] %vm444, %v401
      %467 = vst.msk [vmem:[%s172 + $0xb0] sm:$0xff] %vm444, %v402
      %468 = vst.msk [vmem:[%s172 + $0xb8] sm:$0xff] %vm444, %v403
      %469 = vst.msk [vmem:[%s172 + $0xc0] sm:$0xff] %vm444, %v404
      %470 = vst.msk [vmem:[%s172 + $0xc8] sm:$0xff] %vm444, %v405
      %471 = vst.msk [vmem:[%s172 + $0xd0] sm:$0xff] %vm444, %v406
      %472 = vst.msk [vmem:[%s172 + $0xd8] sm:$0xff] %vm444, %v407
      %473 = vst.msk [vmem:[%s172 + $0xe0] sm:$0xff] %vm444, %v408
      %474 = vst.msk [vmem:[%s172 + $0xe8] sm:$0xff] %vm444, %v409
      %475 = vst.msk [vmem:[%s172 + $0xf0] sm:$0xff] %vm444, %v410
      %476 = vst.msk [vmem:[%s172 + $0xf8] sm:$0xff] %vm444, %v411
      %477 = vst.msk [vmem:[%s172 + $0x100] sm:$0xff] %vm444, %v412
      %478 = vst.msk [vmem:[%s172 + $0x108] sm:$0xff] %vm444, %v413
      %479 = vst.msk [vmem:[%s172 + $0x110] sm:$0xff] %vm444, %v414
      %480 = vst.msk [vmem:[%s172 + $0x118] sm:$0xff] %vm444, %v415
      %481 = vst.msk [vmem:[%s172 + $0x120] sm:$0xff] %vm444, %v416
      %482 = vst.msk [vmem:[%s172 + $0x128] sm:$0xff] %vm444, %v417
      %483 = vst.msk [vmem:[%s172 + $0x130] sm:$0xff] %vm444, %v418
      %484 = vst.msk [vmem:[%s172 + $0x138] sm:$0xff] %vm444, %v419
      %485 = vst.msk [vmem:[%s172 + $0x140] sm:$0xff] %vm444, %v420
      %486 = vst.msk [vmem:[%s172 + $0x148] sm:$0xff] %vm444, %v421
      %487 = vst.msk [vmem:[%s172 + $0x150] sm:$0xff] %vm444, %v422
      %488 = vst.msk [vmem:[%s172 + $0x158] sm:$0xff] %vm444, %v423
      %489 = vst.msk [vmem:[%s172 + $0x160] sm:$0xff] %vm444, %v424
      %490 = vst.msk [vmem:[%s172 + $0x168] sm:$0xff] %vm444, %v425
      %491 = vst.msk [vmem:[%s172 + $0x170] sm:$0xff] %vm444, %v426
      %492 = vst.msk [vmem:[%s172 + $0x178] sm:$0xff] %vm444, %v427
      %493 = vst.msk [vmem:[%s172 + $0x180] sm:$0xff] %vm444, %v428
      %494 = vst.msk [vmem:[%s172 + $0x188] sm:$0xff] %vm444, %v429
      %495 = vst.msk [vmem:[%s172 + $0x190] sm:$0xff] %vm444, %v430
      %496 = vst.msk [vmem:[%s172 + $0x198] sm:$0xff] %vm444, %v431
      %497 = vst.msk [vmem:[%s172 + $0x1a0] sm:$0xff] %vm444, %v432
      %498 = vst.msk [vmem:[%s172 + $0x1a8] sm:$0xff] %vm444, %v433
      %499 = vst.msk [vmem:[%s172 + $0x1b0] sm:$0xff] %vm444, %v434
      %500 = vst.msk [vmem:[%s172 + $0x1b8] sm:$0xff] %vm444, %v435
      %501 = vst.msk [vmem:[%s172 + $0x1c0] sm:$0xff] %vm444, %v436
      %502 = vst.msk [vmem:[%s172 + $0x1c8] sm:$0xff] %vm444, %v437
      %503 = vst.msk [vmem:[%s172 + $0x1d0] sm:$0xff] %vm444, %v438
      %504 = vst.msk [vmem:[%s172 + $0x1d8] sm:$0xff] %vm444, %v439
      %505 = vst.msk [vmem:[%s172 + $0x1e0] sm:$0xff] %vm444, %v440
      %506 = vst.msk [vmem:[%s172 + $0x1e8] sm:$0xff] %vm444, %v441
      %507 = vst.msk [vmem:[%s172 + $0x1f0] sm:$0xff] %vm444, %v442
      %508 = vst.msk [vmem:[%s172 + $0x1f8] sm:$0xff] %vm444, %v443
      %s509 = smul.u32 64, %s14
      %p510 = scmp.lt.s32.totalorder %s509, 127
      %s511 = scalar_select %p510, %s509, 127
      %s512 = smul.addr %s511, 8
      %s513 = scalar_lea.vmem %s3, %s512
      // Predicated region
      $region33: #{deconv_block_forward.6} parent=31 // pred_check
        %p514 = pneg %p100
      $region34: #{deconv_block_forward.6} parent=31 // pred_check_branch
        %516 = sbr.rel (%p514) target = $region36
      $region35: #{deconv_block_forward.6} parent=31 // pred_region
        %s517 = smul.u32 64, %s14
      $region36: #{deconv_block_forward.6} parent=31 // pred_fallthru
        _
    $region32: #{deconv_block_forward.6} parent=5 // pred_fallthru
      _
    %p518 = scmp.le.s32.totalorder 2, %s9
    // Predicated region
    $region37: #{deconv_block_forward.6} parent=5 // pred_check
      %p519 = pneg %p518
    $region38: #{deconv_block_forward.6} parent=5 // pred_check_branch
      %521 = sbr.rel (%p519) target = $region40
    $region39: #{deconv_block_forward.6} parent=5 // pred_region
      %s522 = ssub.s32 %s9, 2
      // Predicated region
      $region41: #{deconv_block_forward.6} parent=39 // pred_check
        %p523 = pneg %p106
      $region42: #{deconv_block_forward.6} parent=39 // pred_check_branch
        %525 = sbr.rel (%p523) target = $region44
      $region43: #{deconv_block_forward.6} parent=39 // pred_region
        %s526 = smul.u32 64, %s15
        %p527 = scmp.lt.s32.totalorder %s526, 127
        %s528 = scalar_select %p527, %s526, 127
        %s529 = smul.addr %s528, 8
        %s530 = scalar_lea.vmem %s3, %s529
      $region44: #{deconv_block_forward.6} parent=39 // pred_fallthru
        _
    $region40: #{deconv_block_forward.6} parent=5 // pred_fallthru
      _
  $region6: #{deconv_block_forward.6} parent=0 // loop_footer
    %s13 = sadd.s32 1, %s9
  $region7: #{deconv_block_forward.6} parent=0 // loop_footer_branch
    %8 = sbr.rel target = $region3
  $region8: #{deconv_block_forward.6} parent=0 // loop_exit
    _

// kernel: deconv_block_forward.5
$region0: #{deconv_block_forward.5}
  #allocation0 [shape = 'u32[]', space=smem, size = 0x4, offset = 0x4, fixed_abs, tag = 'smem constant byte address 0x4 - core index']
  #allocation1 [shape = 'u32[144,128]{1,0:T(1,128)}', space=vmem, size = 0x12000, scoped, tag = 'internal scratch']
  %s0 = inlined_call_operand.vmem [shape: f32[1728,4], index: 0, kind: input, shape index: {}]
  %s1 = inlined_call_operand.vmem [shape: bf16[27,4,4], index: 1, kind: input, shape index: {}]
  %s2 = inlined_call_operand.vmem [shape: f32[1,4], index: 2, kind: input, shape index: {}]
  %s3 = inlined_call_operand.vmem [shape: f32[1536,1], index: 3, kind: input, shape index: {}]
  %s4 = inlined_call_operand.vmem [shape: f32[1536,4], index: 4, kind: output, shape index: {0}]
  %s5 = inlined_call_operand.vmem [shape: f32[12,1,4], index: 5, kind: output, shape index: {1}]
  %s6 = inlined_call_operand.vmem [shape: f32[12,1,4], index: 6, kind: output, shape index: {2}]
  %7 = xla_tuple %s4, %s5, %s6
  %s8 = sld [smem:[#allocation0]]
  $region65: #{deconv_block_forward.5} parent=0
    _
  %s10 = ssub.s32 1, %s8
  %s11 = scalar_select 0, %s10, %s8
  loop: start=0, step=1, limit=14
  $region2: #{deconv_block_forward.5} parent=0 // loop_pre_header
    _
  $region3: #{deconv_block_forward.5} parent=0 // loop_header
    %s13 = sphi 0, %s17
    %p14 = scmp.ge.s32.totalorder %s13, 14
    %s21 = sphi 0, %s21
    %s23 = sphi 0, %s21
    %s24 = sphi 0, %s23
    %s38 = sphi 0, %s24
    %s42 = sphi 0, %s42
    %s44 = sphi 0, %s42
    %s45 = sphi 0, %s44
    %s59 = sphi 0, %s45
    %s63 = sphi 0, %s63
    %s65 = sphi 0, %s63
    %s66 = sphi 0, %s65
    %s80 = sphi 0, %s66
    %s86 = sphi 0, %s88
    %s89 = sphi 0, %s86
    %s90 = sphi 0, %s89
    %s106 = sphi 0, %s90
    %s112 = sphi 0, %s114
    %s115 = sphi 0, %s112
    %s116 = sphi 0, %s115
    %s132 = sphi 0, %s116
    %s138 = sphi 0, %s140
    %s141 = sphi 0, %s138
    %s142 = sphi 0, %s141
    %s158 = sphi 0, %s142
    %s164 = sphi 0, %s166
    %s167 = sphi 0, %s164
    %s168 = sphi 0, %s167
    %s184 = sphi 0, %s168
  $region4: #{deconv_block_forward.5} parent=0 // loop_header_branch
    %16 = sbr.rel (%p14) target = $region8
  $region5: #{deconv_block_forward.5} parent=0 // loop_body
    %s18 = ssub.s32 %s13, 1
    %s19 = ssub.s32 %s13, 2
    %s20 = sadd.s32 %s13, 1
    %s22 = sadd.s32 %s21, 1
    %p25 = scmp.eq.s32.totalorder %s13, 11
    %p26 = scmp.ne.s32.totalorder %s21, %s23
    %p27 = scmp.eq.s32.totalorder %s13, 0
    %p28 = por %p26, %p27
    %p29 = scmp.ne.s32.totalorder %s21, %s23
    %p30 = scmp.eq.s32.totalorder %s18, 11
    %p31 = por %p29, %p30
    %p32 = scmp.ne.s32.totalorder %s23, %s24
    %p33 = scmp.eq.s32.totalorder %s18, 0
    %p34 = por %p32, %p33
    %p35 = scmp.ne.s32.totalorder %s23, %s24
    %p36 = scmp.eq.s32.totalorder %s19, 11
    %p37 = por %p35, %p36
    %p39 = scmp.ne.s32.totalorder %s24, %s38
    %p40 = scmp.eq.s32.totalorder %s19, 0
    %p41 = por %p39, %p40
    %s43 = sadd.s32 %s42, 1
    %p46 = scmp.eq.s32.totalorder %s13, 11
    %p47 = scmp.ne.s32.totalorder %s42, %s44
    %p48 = scmp.eq.s32.totalorder %s13, 0
    %p49 = por %p47, %p48
    %p50 = scmp.ne.s32.totalorder %s42, %s44
    %p51 = scmp.eq.s32.totalorder %s18, 11
    %p52 = por %p50, %p51
    %p53 = scmp.ne.s32.totalorder %s44, %s45
    %p54 = scmp.eq.s32.totalorder %s18, 0
    %p55 = por %p53, %p54
    %p56 = scmp.ne.s32.totalorder %s44, %s45
    %p57 = scmp.eq.s32.totalorder %s19, 11
    %p58 = por %p56, %p57
    %p60 = scmp.ne.s32.totalorder %s45, %s59
    %p61 = scmp.eq.s32.totalorder %s19, 0
    %p62 = por %p60, %p61
    %s64 = sadd.s32 %s63, 1
    %p67 = scmp.eq.s32.totalorder %s13, 11
    %p68 = scmp.ne.s32.totalorder %s63, %s65
    %p69 = scmp.eq.s32.totalorder %s13, 0
    %p70 = por %p68, %p69
    %p71 = scmp.ne.s32.totalorder %s63, %s65
    %p72 = scmp.eq.s32.totalorder %s18, 11
    %p73 = por %p71, %p72
    %p74 = scmp.ne.s32.totalorder %s65, %s66
    %p75 = scmp.eq.s32.totalorder %s18, 0
    %p76 = por %p74, %p75
    %p77 = scmp.ne.s32.totalorder %s65, %s66
    %p78 = scmp.eq.s32.totalorder %s19, 11
    %p79 = por %p77, %p78
    %p81 = scmp.ne.s32.totalorder %s66, %s80
    %p82 = scmp.eq.s32.totalorder %s19, 0
    %p83 = por %p81, %p82
    %s84 = ssub.s32 %s13, %s20
    %p85 = scmp.eq.s32.totalorder %s84, 0
    %s87 = sadd.s32 %s86, 1
    %s88 = scalar_select %p85, %s86, %s87
    %p91 = pneg %p85
    %p92 = scmp.eq.s32.totalorder %s13, 11
    %p93 = por %p91, %p92
    %p94 = scmp.ne.s32.totalorder %s86, %s89
    %p95 = scmp.eq.s32.totalorder %s13, 0
    %p96 = por %p94, %p95
    %p97 = scmp.ne.s32.totalorder %s86, %s89
    %p98 = scmp.eq.s32.totalorder %s18, 11
    %p99 = por %p97, %p98
    %p100 = scmp.ne.s32.totalorder %s89, %s90
    %p101 = scmp.eq.s32.totalorder %s18, 0
    %p102 = por %p100, %p101
    %p103 = scmp.ne.s32.totalorder %s89, %s90
    %p104 = scmp.eq.s32.totalorder %s19, 11
    %p105 = por %p103, %p104
    %p107 = scmp.ne.s32.totalorder %s90, %s106
    %p108 = scmp.eq.s32.totalorder %s19, 0
    %p109 = por %p107, %p108
    %s110 = ssub.s32 %s13, %s20
    %p111 = scmp.eq.s32.totalorder %s110, 0
    %s113 = sadd.s32 %s112, 1
    %s114 = scalar_select %p111, %s112, %s113
    %p117 = pneg %p111
    %p118 = scmp.eq.s32.totalorder %s13, 11
    %p119 = por %p117, %p118
    %p120 = scmp.ne.s32.totalorder %s112, %s115
    %p121 = scmp.eq.s32.totalorder %s13, 0
    %p122 = por %p120, %p121
    %p123 = scmp.ne.s32.totalorder %s112, %s115
    %p124 = scmp.eq.s32.totalorder %s18, 11
    %p125 = por %p123, %p124
    %p126 = scmp.ne.s32.totalorder %s115, %s116
    %p127 = scmp.eq.s32.totalorder %s18, 0
    %p128 = por %p126, %p127
    %p129 = scmp.ne.s32.totalorder %s115, %s116
    %p130 = scmp.eq.s32.totalorder %s19, 11
    %p131 = por %p129, %p130
    %p133 = scmp.ne.s32.totalorder %s116, %s132
    %p134 = scmp.eq.s32.totalorder %s19, 0
    %p135 = por %p133, %p134
    %s136 = ssub.s32 %s13, %s20
    %p137 = scmp.eq.s32.totalorder %s136, 0
    %s139 = sadd.s32 %s138, 1
    %s140 = scalar_select %p137, %s138, %s139
    %p143 = pneg %p137
    %p144 = scmp.eq.s32.totalorder %s13, 11
    %p145 = por %p143, %p144
    %p146 = scmp.ne.s32.totalorder %s138, %s141
    %p147 = scmp.eq.s32.totalorder %s13, 0
    %p148 = por %p146, %p147
    %p149 = scmp.ne.s32.totalorder %s138, %s141
    %p150 = scmp.eq.s32.totalorder %s18, 11
    %p151 = por %p149, %p150
    %p152 = scmp.ne.s32.totalorder %s141, %s142
    %p153 = scmp.eq.s32.totalorder %s18, 0
    %p154 = por %p152, %p153
    %p155 = scmp.ne.s32.totalorder %s141, %s142
    %p156 = scmp.eq.s32.totalorder %s19, 11
    %p157 = por %p155, %p156
    %p159 = scmp.ne.s32.totalorder %s142, %s158
    %p160 = scmp.eq.s32.totalorder %s19, 0
    %p161 = por %p159, %p160
    %s162 = ssub.s32 %s13, %s20
    %p163 = scmp.eq.s32.totalorder %s162, 0
    %s165 = sadd.s32 %s164, 1
    %s166 = scalar_select %p163, %s164, %s165
    %p169 = pneg %p163
    %p170 = scmp.eq.s32.totalorder %s13, 11
    %p171 = por %p169, %p170
    %p172 = scmp.ne.s32.totalorder %s164, %s167
    %p173 = scmp.eq.s32.totalorder %s13, 0
    %p174 = por %p172, %p173
    %p175 = scmp.ne.s32.totalorder %s164, %s167
    %p176 = scmp.eq.s32.totalorder %s18, 11
    %p177 = por %p175, %p176
    %p178 = scmp.ne.s32.totalorder %s167, %s168
    %p179 = scmp.eq.s32.totalorder %s18, 0
    %p180 = por %p178, %p179
    %p181 = scmp.ne.s32.totalorder %s167, %s168
    %p182 = scmp.eq.s32.totalorder %s19, 11
    %p183 = por %p181, %p182
    %p185 = scmp.ne.s32.totalorder %s168, %s184
    %p186 = scmp.eq.s32.totalorder %s19, 0
    %p187 = por %p185, %p186
    %p188 = scmp.le.s32.totalorder 1, %s13
    %p189 = scmp.lt.s32.totalorder %s13, 13
    %p190 = pnand %p188, %p189
    %p191 = pneg %p190
    // Predicated region
    $region9: #{deconv_block_forward.5} parent=5 // pred_check
      _
    $region10: #{deconv_block_forward.5} parent=5 // pred_check_branch
      %193 = sbr.rel (%p190) target = $region12
    $region11: #{deconv_block_forward.5} parent=5 // pred_region
      %s194 = ssub.s32 %s13, 1
      // Predicated region
      $region13: #{deconv_block_forward.5} parent=11 // pred_check
        %p195 = pneg %p34
      $region14: #{deconv_block_forward.5} parent=11 // pred_check_branch
        %197 = sbr.rel (%p195) target = $region16
      $region15: #{deconv_block_forward.5} parent=11 // pred_region
        _
      $region16: #{deconv_block_forward.5} parent=11 // pred_fallthru
        _
      // Predicated region
      $region17: #{deconv_block_forward.5} parent=11 // pred_check
        %p198 = pneg %p55
      $region18: #{deconv_block_forward.5} parent=11 // pred_check_branch
        %200 = sbr.rel (%p198) target = $region20
      $region19: #{deconv_block_forward.5} parent=11 // pred_region
        _
      $region20: #{deconv_block_forward.5} parent=11 // pred_fallthru
        _
      // Predicated region
      $region21: #{deconv_block_forward.5} parent=11 // pred_check
        %p201 = pneg %p76
      $region22: #{deconv_block_forward.5} parent=11 // pred_check_branch
        %203 = sbr.rel (%p201) target = $region24
      $region23: #{deconv_block_forward.5} parent=11 // pred_region
        _
      $region24: #{deconv_block_forward.5} parent=11 // pred_fallthru
        _
    $region12: #{deconv_block_forward.5} parent=5 // pred_fallthru
      _
    %p204 = scmp.lt.s32.totalorder %s13, 12
    // Predicated region
    $region25: #{deconv_block_forward.5} parent=5 // pred_check
      %p205 = pneg %p204
    $region26: #{deconv_block_forward.5} parent=5 // pred_check_branch
      %207 = sbr.rel (%p205) target = $region28
    $region27: #{deconv_block_forward.5} parent=5 // pred_region
      // Predicated region
      $region29: #{deconv_block_forward.5} parent=27 // pred_check
        %p208 = pneg %p96
      $region30: #{deconv_block_forward.5} parent=27 // pred_check_branch
        %210 = sbr.rel (%p208) target = $region32
      $region31: #{deconv_block_forward.5} parent=27 // pred_region
        %s211 = smul.u32 16, %s13
        %p212 = scmp.lt.s32.totalorder %s211, 191
        %s213 = scalar_select %p212, %s211, 191
        %s214 = smul.addr %s213, 8
        %s215 = scalar_lea.vmem %s3, %s214
        %s216 = smul.u32 16, %s13
      $region32: #{deconv_block_forward.5} parent=27 // pred_fallthru
        _
    $region28: #{deconv_block_forward.5} parent=5 // pred_fallthru
      _
    %p217 = scmp.le.s32.totalorder 1, %s13
    %p218 = scmp.lt.s32.totalorder %s13, 13
    %p219 = pnand %p217, %p218
    %p220 = pneg %p219
    // Predicated region
    $region33: #{deconv_block_forward.5} parent=5 // pred_check
      _
    $region34: #{deconv_block_forward.5} parent=5 // pred_check_branch
      %222 = sbr.rel (%p219) target = $region36
    $region35: #{deconv_block_forward.5} parent=5 // pred_region
      %s223 = ssub.s32 %s13, 1
      %p224 = pneg %p34
      %p225 = pneg %p31
      %p226 = pneg %p55
      %p227 = pneg %p52
      %p228 = pneg %p76
      %p229 = pneg %p73
      %s230 = smul.u32 16, %s18
      %p231 = scmp.lt.s32.totalorder %s230, 191
      %s232 = scalar_select %p231, %s230, 191
      %s233 = smul.addr %s232, 8
      %s234 = scalar_lea.vmem %s3, %s233
      %p235 = pneg %p102
      %p236 = pneg %p99
      %p237 = pneg %p128
      %p238 = pneg %p125
      %s239 = smul.u32 16, %s18
      %p240 = scmp.lt.s32.totalorder %s239, 191
      %s241 = scalar_select %p240, %s239, 191
      %s242 = smul.addr %s241, 8
      %s243 = scalar_lea.vmem %s4, %s242
      %p244 = pneg %p154
      %p245 = pneg %p151
      %p246 = scmp.lt.s32.totalorder %s18, 11
      %s247 = scalar_select %p246, %s18, 11
      %s248 = scalar_lea.vmem %s5, %s247
      %p249 = pneg %p180
      %p250 = pneg %p177
      %p251 = scmp.lt.s32.totalorder %s18, 11
      %s252 = scalar_select %p251, %s18, 11
      %s253 = scalar_lea.vmem %s6, %s252
      %s254 = smul.u32 16, %s18
      %p255 = scmp.lt.s32.totalorder %s254, 191
      %s256 = scalar_select %p255, %s254, 191
      %s257 = smul.addr %s256, 8
      %s258 = scalar_lea.vmem %s3, %s257
      %s259 = smul.u32 16, %s18
      %s260 = smul.u32 16, %s18
      %p261 = scmp.lt.s32.totalorder %s260, 191
      %s262 = scalar_select %p261, %s260, 191
      %s263 = smul.addr %s262, 8
      %s264 = scalar_lea.vmem %s4, %s263
      %s265 = smul.u32 16, %s18
      %p266 = scmp.lt.s32.totalorder %s18, 11
      %s267 = scalar_select %p266, %s18, 11
      %s268 = scalar_lea.vmem %s5, %s267
      %p269 = scmp.lt.s32.totalorder %s18, 11
      %s270 = scalar_select %p269, %s18, 11
      %s271 = scalar_lea.vmem %s6, %s270
      %s273 = smul.u32 %s18, 128
      %s274 = scalar_lea.vmem %s0, %s273
      %v275 = vld [vmem:[%s274] sm:$0xff]
      %v276 = vld [vmem:[%s274 + $0x8] sm:$0xff]
      %v277 = vld [vmem:[%s274 + $0x10] sm:$0xff]
      %v278 = vld [vmem:[%s274 + $0x18] sm:$0xff]
      %v279 = vld [vmem:[%s274 + $0x20] sm:$0xff]
      %v280 = vld [vmem:[%s274 + $0x28] sm:$0xff]
      %v281 = vld [vmem:[%s274 + $0x30] sm:$0xff]
      %v282 = vld [vmem:[%s274 + $0x38] sm:$0xff]
      %v283 = vld [vmem:[%s274 + $0x40] sm:$0xff]
      %v284 = vld [vmem:[%s274 + $0x48] sm:$0xff]
      %v285 = vld [vmem:[%s274 + $0x50] sm:$0xff]
      %v286 = vld [vmem:[%s274 + $0x58] sm:$0xff]
      %v287 = vld [vmem:[%s274 + $0x60] sm:$0xff]
      %v288 = vld [vmem:[%s274 + $0x68] sm:$0xff]
      %v289 = vld [vmem:[%s274 + $0x70] sm:$0xff]
      %v290 = vld [vmem:[%s274 + $0x78] sm:$0xff]
      %v291 = vld [vmem:[%s274 + $0x80] sm:$0xff]
      %v292 = vpack.c.bf16 %v276, %v275
      %v293 = vpack.c.bf16 %v278, %v277
      %v294 = vpack.c.bf16 %v280, %v279
      %v295 = vpack.c.bf16 %v282, %v281
      %v296 = vpack.c.bf16 %v284, %v283
      %v297 = vpack.c.bf16 %v286, %v285
      %v298 = vpack.c.bf16 %v288, %v287
      %v299 = vpack.c.bf16 %v290, %v289
      %v300 = vld [vmem:[%s1] sm:$0x3]
      %v301 = vpack.c.bf16 %v291, %v291
      %s302 = scalar_lea.vmem %s1, 2
      %v303 = vld [vmem:[%s302] sm:$0x3]
      %vm304 = vsmask.f32 7424
      %v306 = vshrl.u32 %v292, 16
      %v308 = vshll.u32 %v292, 16
      %v310 = vrot.slane %v308, 1
      %v311 = vor.u32 %v306, %v310
      %v313 = vshll.u32 %v293, 16
      %v315 = vrot.slane %v313, 1
      %v316 = vsel %vm304, %v311, %v315
      %v317 = vshrl.u32 %v293, 16
      %v319 = vor.u32 %v317, %v315
      %v321 = vshll.u32 %v294, 16
      %v323 = vrot.slane %v321, 1
      %v324 = vsel %vm304, %v319, %v323
      %v325 = vshrl.u32 %v294, 16
      %v327 = vor.u32 %v325, %v323
      %v329 = vshll.u32 %v295, 16
      %v331 = vrot.slane %v329, 1
      %v332 = vsel %vm304, %v327, %v331
      %v333 = vshrl.u32 %v295, 16
      %v335 = vor.u32 %v333, %v331
      %v337 = vshll.u32 %v296, 16
      %v339 = vrot.slane %v337, 1
      %v340 = vsel %vm304, %v335, %v339
      %v341 = vshrl.u32 %v296, 16
      %v343 = vor.u32 %v341, %v339
      %v345 = vshll.u32 %v297, 16
      %v347 = vrot.slane %v345, 1
      %v348 = vsel %vm304, %v343, %v347
      %v349 = vshrl.u32 %v297, 16
      %v351 = vor.u32 %v349, %v347
      %v353 = vshll.u32 %v298, 16
      %v355 = vrot.slane %v353, 1
      %v356 = vsel %vm304, %v351, %v355
      %v357 = vshrl.u32 %v298, 16
      %v359 = vor.u32 %v357, %v355
      %v361 = vshll.u32 %v299, 16
      %v363 = vrot.slane %v361, 1
      %v364 = vsel %vm304, %v359, %v363
      %v365 = vshrl.u32 %v299, 16
      %v367 = vor.u32 %v365, %v363
      %v369 = vshll.u32 %v301, 16
      %v371 = vrot.slane %v369, 1
      %v372 = vsel %vm304, %v367, %v371
      %vm373 = vcmask 31744
      %v375 = vsel %vm373, %v316, 0
      %v378 = vsel %vm373, %v324, 0
      %v381 = vsel %vm373, %v332, 0
      %v384 = vsel %vm373, %v340, 0
      %v387 = vsel %vm373, %v348, 0
      %v390 = vsel %vm373, %v356, 0
      %v393 = vsel %vm373, %v364, 0
      %v396 = vsel %vm373, %v372, 0
      %vm398 = vcmask 1041408
      %v400 = vsel %vm398, %v303, 0
      %402 = vmatprep.subr.bf16.mxu0 0
      %403 = vmatpush1.bf16.msra.mxu0 %v400
      %404 = vmatprep.subr.bf16.mxu0 0
      %405 = vmatpush1.bf16.msra.mxu0 0
      %406 = vmatprep.subr.bf16.mxu0 0
      %407 = vmatpush1.bf16.msra.mxu0 0
      %408 = vmatprep.subr.bf16.mxu0 0
      %409 = vmatpush1.bf16.msra.mxu0 0
      %410 = vmatprep.subr.bf16.mxu0 0
      %411 = vmatpush1.bf16.msra.mxu0 0
      %412 = vmatprep.subr.bf16.mxu0 0
      %413 = vmatpush1.bf16.msra.mxu0 0
      %414 = vmatprep.subr.bf16.mxu0 0
      %415 = vmatpush1.bf16.msra.mxu0 0
      %416 = vmatprep.subr.bf16.mxu0 0
      %417 = vmatpush1.bf16.msra.mxu0 0
      %418 = vmatprep.subr.bf16.mxu0 0
      %419 = vmatpush1.bf16.msra.mxu0 0
      %420 = vmatprep.subr.bf16.mxu0 0
      %421 = vmatpush1.bf16.msra.mxu0 0
      %422 = vmatprep.subr.bf16.mxu0 0
      %423 = vmatpush1.bf16.msra.mxu0 0
      %424 = vmatprep.subr.bf16.mxu0 0
      %425 = vmatpush1.bf16.msra.mxu0 0
      %426 = vmatprep.subr.bf16.mxu0 0
      %427 = vmatpush1.bf16.msra.mxu0 0
      %428 = vmatprep.subr.bf16.mxu0 0
      %429 = vmatpush1.bf16.msra.mxu0 0
      %430 = vmatprep.subr.bf16.mxu0 0
      %431 = vmatpush1.bf16.msra.mxu0 0
      %432 = vmatprep.subr.bf16.mxu0 0
      %433 = vmatpush1.bf16.msra.mxu0 0
      %434 = vmatprep.mubr.bf16.mxu0 0
      %435 = vmatmul.mubr.bf16.gmra.mrb[0].mxu0 %v375
      %v436 = vpop.f32.mrb[0].mxu0
      %v437 = vadd.f32 0.0, %v436
      %v438 = vpop.f32.mrb[0].mxu0
      %v439 = vpop.f32.mrb[0].mxu0
      %v440 = vadd.f32 0.0, %v439
      %v441 = vpop.f32.mrb[0].mxu0
      %442 = vmatprep.mubr.bf16.mxu0 0
      %443 = vmatmul.mubr.bf16.gmra.mrb[0].mxu0 %v378
      %v444 = vpop.f32.mrb[0].mxu0
      %v445 = vadd.f32 0.0, %v444
      %v446 = vpop.f32.mrb[0].mxu0
      %v447 = vpop.f32.mrb[0].mxu0
      %v448 = vadd.f32 0.0, %v447
      %v449 = vpop.f32.mrb[0].mxu0
      %450 = vmatprep.mubr.bf16.mxu0 0
      %451 = vmatmul.mubr.bf16.gmra.mrb[0].mxu0 %v381
      %v452 = vpop.f32.mrb[0].mxu0
      %v453 = vadd.f32 0.0, %v452
      %v454 = vpop.f32.mrb[0].mxu0
      %v455 = vpop.f32.mrb[0].mxu0
      %v456 = vadd.f32 0.0, %v455
      %v457 = vpop.f32.mrb[0].mxu0
      %458 = vmatprep.mubr.bf16.mxu0 0
      %459 = vmatmul.mubr.bf16.gmra.mrb[0].mxu0 %v384
      %v460 = vpop.f32.mrb[0].mxu0
      %v461 = vadd.f32 0.0, %v460
      %v462 = vpop.f32.mrb[0].mxu0
      %v463 = vpop.f32.mrb[0].mxu0
      %v464 = vadd.f32 0.0, %v463
      %v465 = vpop.f32.mrb[0].mxu0
      %466 = vmatprep.mubr.bf16.mxu0 0
      %467 = vmatmul.mubr.bf16.gmra.mrb[0].mxu0 %v387
      %v468 = vpop.f32.mrb[0].mxu0
      %v469 = vadd.f32 0.0, %v468
      %v470 = vpop.f32.mrb[0].mxu0
      %v471 = vpop.f32.mrb[0].mxu0
      %v472 = vadd.f32 0.0, %v471
      %v473 = vpop.f32.mrb[0].mxu0
      %474 = vmatprep.mubr.bf16.mxu0 0
      %475 = vmatmul.mubr.bf16.gmra.mrb[0].mxu0 %v390
      %v476 = vpop.f32.mrb[0].mxu0
      %v477 = vadd.f32 0.0, %v476
      %v478 = vpop.f32.mrb[0].mxu0
      %v479 = vpop.f32.mrb[0].mxu0
      %v480 = vadd.f32 0.0, %v479
      %v481 = vpop.f32.mrb[0].mxu0
      %482 = vmatprep.mubr.bf16.mxu0 0
      %483 = vmatmul.mubr.bf16.gmra.mrb[0].mxu0 %v393
      %v484 = vpop.f32.mrb[0].mxu0
      %v485 = vadd.f32 0.0, %v484
      %v486 = vpop.f32.mrb[0].mxu0
      %v487 = vpop.f32.mrb[0].mxu0
      %v488 = vadd.f32 0.0, %v487
      %v489 = vpop.f32.mrb[0].mxu0
      %490 = vmatprep.mubr.bf16.mxu0 0
      %491 = vmatmul.mubr.bf16.gmra.mrb[0].mxu0 %v396
      %v492 = vpop.f32.mrb[0].mxu0
      %v493 = vadd.f32 0.0, %v492
      %v494 = vpop.f32.mrb[0].mxu0
      %v495 = vpop.f32.mrb[0].mxu0
      %v496 = vadd.f32 0.0, %v495
      %v497 = vpop.f32.mrb[0].mxu0
      %498 = vdwg.mxu0
      %v499 = vsel %vm373, %v292, 0
      %v501 = vsel %vm373, %v293, 0
      %v503 = vsel %vm373, %v294, 0
      %v505 = vsel %vm373, %v295, 0
      %v507 = vsel %vm373, %v296, 0
      %v509 = vsel %vm373, %v297, 0
      %v511 = vsel %vm373, %v298, 0
      %v513 = vsel %vm373, %v299, 0
      %v516 = vsel %vm398, %v300, 0
      %518 = vmatprep.subr.bf16.mxu0 0
      %519 = vmatpush1.bf16.msra.mxu0 %v516
      %520 = vmatprep.subr.bf16.mxu0 0
      %521 = vmatpush1.bf16.msra.mxu0 0
      %522 = vmatprep.subr.bf16.mxu0 0
      %523 = vmatpush1.bf16.msra.mxu0 0
      %524 = vmatprep.subr.bf16.mxu0 0
      %525 = vmatpush1.bf16.msra.mxu0 0
      %526 = vmatprep.subr.bf16.mxu0 0
      %527 = vmatpush1.bf16.msra.mxu0 0
      %528 = vmatprep.subr.bf16.mxu0 0
      %529 = vmatpush1.bf16.msra.mxu0 0
      %530 = vmatprep.subr.bf16.mxu0 0
      %531 = vmatpush1.bf16.msra.mxu0 0
      %532 = vmatprep.subr.bf16.mxu0 0
      %533 = vmatpush1.bf16.msra.mxu0 0
      %534 = vmatprep.subr.bf16.mxu0 0
      %535 = vmatpush1.bf16.msra.mxu0 0
      %536 = vmatprep.subr.bf16.mxu0 0
      %537 = vmatpush1.bf16.msra.mxu0 0
      %538 = vmatprep.subr.bf16.mxu0 0
      %539 = vmatpush1.bf16.msra.mxu0 0
      %540 = vmatprep.subr.bf16.mxu0 0
      %541 = vmatpush1.bf16.msra.mxu0 0
      %542 = vmatprep.subr.bf16.mxu0 0
      %543 = vmatpush1.bf16.msra.mxu0 0
      %544 = vmatprep.subr.bf16.mxu0 0
      %545 = vmatpush1.bf16.msra.mxu0 0
      %546 = vmatprep.subr.bf16.mxu0 0
      %547 = vmatpush1.bf16.msra.mxu0 0
      %548 = vmatprep.subr.bf16.mxu0 0
      %549 = vmatpush1.bf16.msra.mxu0 0
      %550 = vmatprep.mubr.bf16.mxu0 0
      %551 = vmatmul.mubr.bf16.gmra.mrb[0].mxu0 %v499
      %v552 = vpop.f32.mrb[0].mxu0
      %v553 = vadd.f32 %v437, %v552
      %v554 = vpop.f32.mrb[0].mxu0
      %v555 = vpop.f32.mrb[0].mxu0
      %v556 = vadd.f32 %v440, %v555
      %v557 = vpop.f32.mrb[0].mxu0
      %558 = vmatprep.mubr.bf16.mxu0 0
      %559 = vmatmul.mubr.bf16.gmra.mrb[0].mxu0 %v501
      %v560 = vpop.f32.mrb[0].mxu0
      %v561 = vadd.f32 %v445, %v560
      %v562 = vpop.f32.mrb[0].mxu0
      %v563 = vpop.f32.mrb[0].mxu0
      %v564 = vadd.f32 %v448, %v563
      %v565 = vpop.f32.mrb[0].mxu0
      %566 = vmatprep.mubr.bf16.mxu0 0
      %567 = vmatmul.mubr.bf16.gmra.mrb[0].mxu0 %v503
      %v568 = vpop.f32.mrb[0].mxu0
      %v569 = vadd.f32 %v453, %v568
      %v570 = vpop.f32.mrb[0].mxu0
      %v571 = vpop.f32.mrb[0].mxu0
      %v572 = vadd.f32 %v456, %v571
      %v573 = vpop.f32.mrb[0].mxu0
      %574 = vmatprep.mubr.bf16.mxu0 0
      %575 = vmatmul.mubr.bf16.gmra.mrb[0].mxu0 %v505
      %v576 = vpop.f32.mrb[0].mxu0
      %v577 = vadd.f32 %v461, %v576
      %v578 = vpop.f32.mrb[0].mxu0
      %v579 = vpop.f32.mrb[0].mxu0
      %v580 = vadd.f32 %v464, %v579
      %v581 = vpop.f32.mrb[0].mxu0
      %582 = vmatprep.mubr.bf16.mxu0 0
      %583 = vmatmul.mubr.bf16.gmra.mrb[0].mxu0 %v507
      %v584 = vpop.f32.mrb[0].mxu0
      %v585 = vadd.f32 %v469, %v584
      %v586 = vpop.f32.mrb[0].mxu0
      %v587 = vpop.f32.mrb[0].mxu0
      %v588 = vadd.f32 %v472, %v587
      %v589 = vpop.f32.mrb[0].mxu0
      %590 = vmatprep.mubr.bf16.mxu0 0
      %591 = vmatmul.mubr.bf16.gmra.mrb[0].mxu0 %v509
      %v592 = vpop.f32.mrb[0].mxu0
      %v593 = vadd.f32 %v477, %v592
      %v594 = vpop.f32.mrb[0].mxu0
      %v595 = vpop.f32.mrb[0].mxu0
      %v596 = vadd.f32 %v480, %v595
      %v597 = vpop.f32.mrb[0].mxu0
      %598 = vmatprep.mubr.bf16.mxu0 0
      %599 = vmatmul.mubr.bf16.gmra.mrb[0].mxu0 %v511
      %v600 = vpop.f32.mrb[0].mxu0
      %v601 = vadd.f32 %v485, %v600
      %v602 = vpop.f32.mrb[0].mxu0
      %v603 = vpop.f32.mrb[0].mxu0
      %v604 = vadd.f32 %v488, %v603
      %v605 = vpop.f32.mrb[0].mxu0
      %606 = vmatprep.mubr.bf16.mxu0 0
      %607 = vmatmul.mubr.bf16.gmra.mrb[0].mxu0 %v513
      %v608 = vpop.f32.mrb[0].mxu0
      %v609 = vadd.f32 %v493, %v608
      %v610 = vpop.f32.mrb[0].mxu0
      %v611 = vpop.f32.mrb[0].mxu0
      %v612 = vadd.f32 %v496, %v611
      %v613 = vpop.f32.mrb[0].mxu0
      %614 = vdwg.mxu0
      %s615 = scalar_lea.vmem %s1, 4
      %v616 = vld [vmem:[%s615] sm:$0x3]
      %vm626 = vcmask 1046528
      %v627 = vrot.slane %v292, 1
      %v628 = vrot.slane %v293, 1
      %v629 = vsel %vm626, %v627, %v628
      %v630 = vrot.slane %v294, 1
      %v631 = vsel %vm626, %v628, %v630
      %v632 = vrot.slane %v295, 1
      %v633 = vsel %vm626, %v630, %v632
      %v634 = vrot.slane %v296, 1
      %v635 = vsel %vm626, %v632, %v634
      %v636 = vrot.slane %v297, 1
      %v637 = vsel %vm626, %v634, %v636
      %v638 = vrot.slane %v298, 1
      %v639 = vsel %vm626, %v636, %v638
      %v640 = vrot.slane %v299, 1
      %v641 = vsel %vm626, %v638, %v640
      %v642 = vrot.slane %v301, 1
      %v643 = vsel %vm626, %v640, %v642
      %v645 = vsel %vm373, %v629, 0
      %v648 = vsel %vm373, %v631, 0
      %v651 = vsel %vm373, %v633, 0
      %v654 = vsel %vm373, %v635, 0
      %v657 = vsel %vm373, %v637, 0
      %v660 = vsel %vm373, %v639, 0
      %v663 = vsel %vm373, %v641, 0
      %v666 = vsel %vm373, %v643, 0
      %v669 = vsel %vm398, %v616, 0
      %671 = vmatprep.subr.bf16.mxu0 0
      %672 = vmatpush1.bf16.msra.mxu0 %v669
      %673 = vmatprep.subr.bf16.mxu0 0
      %674 = vmatpush1.bf16.msra.mxu0 0
      %675 = vmatprep.subr.bf16.mxu0 0
      %676 = vmatpush1.bf16.msra.mxu0 0
      %677 = vmatprep.subr.bf16.mxu0 0
      %678 = vmatpush1.bf16.msra.mxu0 0
      %679 = vmatprep.subr.bf16.mxu0 0
      %680 = vmatpush1.bf16.msra.mxu0 0
      %681 = vmatprep.subr.bf16.mxu0 0
      %682 = vmatpush1.bf16.msra.mxu0 0
      %683 = vmatprep.subr.bf16.mxu0 0
      %684 = vmatpush1.bf16.msra.mxu0 0
      %685 = vmatprep.subr.bf16.mxu0 0
      %686 = vmatpush1.bf16.msra.mxu0 0
      %687 = vmatprep.subr.bf16.mxu0 0
      %688 = vmatpush1.bf16.msra.mxu0 0
      %689 = vmatprep.subr.bf16.mxu0 0
      %690 = vmatpush1.bf16.msra.mxu0 0
      %691 = vmatprep.subr.bf16.mxu0 0
      %692 = vmatpush1.bf16.msra.mxu0 0
      %693 = vmatprep.subr.bf16.mxu0 0
      %694 = vmatpush1.bf16.msra.mxu0 0
      %695 = vmatprep.subr.bf16.mxu0 0
      %696 = vmatpush1.bf16.msra.mxu0 0
      %697 = vmatprep.subr.bf16.mxu0 0
      %698 = vmatpush1.bf16.msra.mxu0 0
      %699 = vmatprep.subr.bf16.mxu0 0
      %700 = vmatpush1.bf16.msra.mxu0 0
      %701 = vmatprep.subr.bf16.mxu0 0
      %702 = vmatpush1.bf16.msra.mxu0 0
      %703 = vmatprep.mubr.bf16.mxu0 0
      %704 = vmatmul.mubr.bf16.gmra.mrb[0].mxu0 %v645
      %v705 = vpop.f32.mrb[0].mxu0
      %v706 = vadd.f32 0.0, %v705
      %v707 = vpop.f32.mrb[0].mxu0
      %v708 = vpop.f32.mrb[0].mxu0
      %v709 = vadd.f32 0.0, %v708
      %v710 = vpop.f32.mrb[0].mxu0
      %711 = vmatprep.mubr.bf16.mxu0 0
      %712 = vmatmul.mubr.bf16.gmra.mrb[0].mxu0 %v648
      %v713 = vpop.f32.mrb[0].mxu0
      %v714 = vadd.f32 0.0, %v713
      %v715 = vpop.f32.mrb[0].mxu0
      %v716 = vpop.f32.mrb[0].mxu0
      %v717 = vadd.f32 0.0, %v716
      %v718 = vpop.f32.mrb[0].mxu0
      %719 = vmatprep.mubr.bf16.mxu0 0
      %720 = vmatmul.mubr.bf16.gmra.mrb[0].mxu0 %v651
      %v721 = vpop.f32.mrb[0].mxu0
      %v722 = vadd.f32 0.0, %v721
      %v723 = vpop.f32.mrb[0].mxu0
      %v724 = vpop.f32.mrb[0].mxu0
      %v725 = vadd.f32 0.0, %v724
      %v726 = vpop.f32.mrb[0].mxu0
      %727 = vmatprep.mubr.bf16.mxu0 0
      %728 = vmatmul.mubr.bf16.gmra.mrb[0].mxu0 %v654
      %v729 = vpop.f32.mrb[0].mxu0
      %v730 = vadd.f32 0.0, %v729
      %v731 = vpop.f32.mrb[0].mxu0
      %v732 = vpop.f32.mrb[0].mxu0
      %v733 = vadd.f32 0.0, %v732
      %v734 = vpop.f32.mrb[0].mxu0
      %735 = vmatprep.mubr.bf16.mxu0 0
      %736 = vmatmul.mubr.bf16.gmra.mrb[0].mxu0 %v657
      %v737 = vpop.f32.mrb[0].mxu0
      %v738 = vadd.f32 0.0, %v737
      %v739 = vpop.f32.mrb[0].mxu0
      %v740 = vpop.f32.mrb[0].mxu0
      %v741 = vadd.f32 0.0, %v740
      %v742 = vpop.f32.mrb[0].mxu0
      %743 = vmatprep.mubr.bf16.mxu0 0
      %744 = vmatmul.mubr.bf16.gmra.mrb[0].mxu0 %v660
      %v745 = vpop.f32.mrb[0].mxu0
      %v746 = vadd.f32 0.0, %v745
      %v747 = vpop.f32.mrb[0].mxu0
      %v748 = vpop.f32.mrb[0].mxu0
      %v749 = vadd.f32 0.0, %v748
      %v750 = vpop.f32.mrb[0].mxu0
      %751 = vmatprep.mubr.bf16.mxu0 0
      %752 = vmatmul.mubr.bf16.gmra.mrb[0].mxu0 %v663
      %v753 = vpop.f32.mrb[0].mxu0
      %v754 = vadd.f32 0.0, %v753
      %v755 = vpop.f32.mrb[0].mxu0
      %v756 = vpop.f32.mrb[0].mxu0
      %v757 = vadd.f32 0.0, %v756
      %v758 = vpop.f32.mrb[0].mxu0
      %759 = vmatprep.mubr.bf16.mxu0 0
      %760 = vmatmul.mubr.bf16.gmra.mrb[0].mxu0 %v666
      %v761 = vpop.f32.mrb[0].mxu0
      %v762 = vadd.f32 0.0, %v761
      %v763 = vpop.f32.mrb[0].mxu0
      %v764 = vpop.f32.mrb[0].mxu0
      %v765 = vadd.f32 0.0, %v764
      %v766 = vpop.f32.mrb[0].mxu0
      %767 = vdwg.mxu0
      %v768 = vadd.f32 %v553, %v706
      %v769 = vadd.f32 %v556, %v709
      %v770 = vadd.f32 %v561, %v714
      %v771 = vadd.f32 %v564, %v717
      %v772 = vadd.f32 %v569, %v722
      %v773 = vadd.f32 %v572, %v725
      %v774 = vadd.f32 %v577, %v730
      %v775 = vadd.f32 %v580, %v733
      %v776 = vadd.f32 %v585, %v738
      %v777 = vadd.f32 %v588, %v741
      %v778 = vadd.f32 %v593, %v746
      %v779 = vadd.f32 %v596, %v749
      %v780 = vadd.f32 %v601, %v754
      %v781 = vadd.f32 %v604, %v757
      %v782 = vadd.f32 %v609, %v762
      %v783 = vadd.f32 %v612, %v765
      %s784 = sadd.s32 %s273, 8
      %s785 = scalar_lea.vmem %s0, %s784
      %v786 = vld [vmem:[%s785] sm:$0xff]
      %v787 = vld [vmem:[%s785 + $0x8] sm:$0xff]
      %v788 = vld [vmem:[%s785 + $0x10] sm:$0xff]
      %v789 = vld [vmem:[%s785 + $0x18] sm:$0xff]
      %v790 = vld [vmem:[%s785 + $0x20] sm:$0xff]
      %v791 = vld [vmem:[%s785 + $0x28] sm:$0xff]
      %v792 = vld [vmem:[%s785 + $0x30] sm:$0xff]
      %v793 = vld [vmem:[%s785 + $0x38] sm:$0xff]
      %v794 = vld [vmem:[%s785 + $0x40] sm:$0xff]
      %v795 = vld [vmem:[%s785 + $0x48] sm:$0xff]
      %v796 = vld [vmem:[%s785 + $0x50] sm:$0xff]
      %v797 = vld [vmem:[%s785 + $0x58] sm:$0xff]
      %v798 = vld [vmem:[%s785 + $0x60] sm:$0xff]
      %v799 = vld [vmem:[%s785 + $0x68] sm:$0xff]
      %v800 = vld [vmem:[%s785 + $0x70] sm:$0xff]
      %v801 = vld [vmem:[%s785 + $0x78] sm:$0xff]
      %v802 = vld [vmem:[%s785 + $0x80] sm:$0xff]
      %v803 = vpack.c.bf16 %v787, %v786
      %v804 = vpack.c.bf16 %v789, %v788
      %v805 = vpack.c.bf16 %v791, %v790
      %v806 = vpack.c.bf16 %v793, %v792
      %v807 = vpack.c.bf16 %v795, %v794
      %v808 = vpack.c.bf16 %v797, %v796
      %v809 = vpack.c.bf16 %v799, %v798
      %v810 = vpack.c.bf16 %v801, %v800
      %v811 = vpack.c.bf16 %v802, %v802
      %s812 = scalar_lea.vmem %s1, 6
      %v813 = vld [vmem:[%s812] sm:$0x3]
      %v815 = vshrl.u32 %v803, 16
      %v817 = vshll.u32 %v803, 16
      %v819 = vrot.slane %v817, 1
      %v820 = vor.u32 %v815, %v819
      %v822 = vshll.u32 %v804, 16
      %v824 = vrot.slane %v822, 1
      %v825 = vsel %vm304, %v820, %v824
      %v826 = vshrl.u32 %v804, 16
      %v828 = vor.u32 %v826, %v824
      %v830 = vshll.u32 %v805, 16
      %v832 = vrot.slane %v830, 1
      %v833 = vsel %vm304, %v828, %v832
      %v834 = vshrl.u32 %v805, 16
      %v836 = vor.u32 %v834, %v832
      %v838 = vshll.u32 %v806, 16
      %v840 = vrot.slane %v838, 1
      %v841 = vsel %vm304, %v836, %v840
      %v842 = vshrl.u32 %v806, 16
      %v844 = vor.u32 %v842, %v840
      %v846 = vshll.u32 %v807, 16
      %v848 = vrot.slane %v846, 1
      %v849 = vsel %vm304, %v844, %v848
      %v850 = vshrl.u32 %v807, 16
      %v852 = vor.u32 %v850, %v848
      %v854 = vshll.u32 %v808, 16
      %v856 = vrot.slane %v854, 1
      %v857 = vsel %vm304, %v852, %v856
      %v858 = vshrl.u32 %v808, 16
      %v860 = vor.u32 %v858, %v856
      %v862 = vshll.u32 %v809, 16
      %v864 = vrot.slane %v862, 1
      %v865 = vsel %vm304, %v860, %v864
      %v866 = vshrl.u32 %v809, 16
      %v868 = vor.u32 %v866, %v864
      %v870 = vshll.u32 %v810, 16
      %v872 = vrot.slane %v870, 1
      %v873 = vsel %vm304, %v868, %v872
      %v874 = vshrl.u32 %v810, 16
      %v876 = vor.u32 %v874, %v872
      %v878 = vshll.u32 %v811, 16
      %v880 = vrot.slane %v878, 1
      %v881 = vsel %vm304, %v876, %v880
      %v883 = vsel %vm373, %v825, 0
      %v886 = vsel %vm373, %v833, 0
      %v889 = vsel %vm373, %v841, 0
      %v892 = vsel %vm373, %v849, 0
      %v895 = vsel %vm373, %v857, 0
      %v898 = vsel %vm373, %v865, 0
      %v901 = vsel %vm373, %v873, 0
      %v904 = vsel %vm373, %v881, 0
      %v907 = vsel %vm398, %v813, 0
      %909 = vmatprep.subr.bf16.mxu0 0
      %910 = vmatpush1.bf16.msra.mxu0 %v907
      %911 = vmatprep.subr.bf16.mxu0 0
      %912 = vmatpush1.bf16.msra.mxu0 0
      %913 = vmatprep.subr.bf16.mxu0 0
      %914 = vmatpush1.bf16.msra.mxu0 0
      %915 = vmatprep.subr.bf16.mxu0 0
      %916 = vmatpush1.bf16.msra.mxu0 0
      %917 = vmatprep.subr.bf16.mxu0 0
      %918 = vmatpush1.bf16.msra.mxu0 0
      %919 = vmatprep.subr.bf16.mxu0 0
      %920 = vmatpush1.bf16.msra.mxu0 0
      %921 = vmatprep.subr.bf16.mxu0 0
      %922 = vmatpush1.bf16.msra.mxu0 0
      %923 = vmatprep.subr.bf16.mxu0 0
      %924 = vmatpush1.bf16.msra.mxu0 0
      %925 = vmatprep.subr.bf16.mxu0 0
      %926 = vmatpush1.bf16.msra.mxu0 0
      %927 = vmatprep.subr.bf16.mxu0 0
      %928 = vmatpush1.bf16.msra.mxu0 0
      %929 = vmatprep.subr.bf16.mxu0 0
      %930 = vmatpush1.bf16.msra.mxu0 0
      %931 = vmatprep.subr.bf16.mxu0 0
      %932 = vmatpush1.bf16.msra.mxu0 0
      %933 = vmatprep.subr.bf16.mxu0 0
      %934 = vmatpush1.bf16.msra.mxu0 0
      %935 = vmatprep.subr.bf16.mxu0 0
      %936 = vmatpush1.bf16.msra.mxu0 0
      %937 = vmatprep.subr.bf16.mxu0 0
      %938 = vmatpush1.bf16.msra.mxu0 0
      %939 = vmatprep.subr.bf16.mxu0 0
      %940 = vmatpush1.bf16.msra.mxu0 0
      %941 = vmatprep.mubr.bf16.mxu0 0
      %942 = vmatmul.mubr.bf16.gmra.mrb[0].mxu0 %v883
      %v943 = vpop.f32.mrb[0].mxu0
      %v944 = vadd.f32 0.0, %v943
      %v945 = vpop.f32.mrb[0].mxu0
      %v946 = vpop.f32.mrb[0].mxu0
      %v947 = vadd.f32 0.0, %v946
      %v948 = vpop.f32.mrb[0].mxu0
      %949 = vmatprep.mubr.bf16.mxu0 0
      %950 = vmatmul.mubr.bf16.gmra.mrb[0].mxu0 %v886
      %v951 = vpop.f32.mrb[0].mxu0
      %v952 = vadd.f32 0.0, %v951
      %v953 = vpop.f32.mrb[0].mxu0
      %v954 = vpop.f32.mrb[0].mxu0
      %v955 = vadd.f32 0.0, %v954
      %v956 = vpop.f32.mrb[0].mxu0
      %957 = vmatprep.mubr.bf16.mxu0 0
      %958 = vmatmul.mubr.bf16.gmra.mrb[0].mxu0 %v889
      %v959 = vpop.f32.mrb[0].mxu0
      %v960 = vadd.f32 0.0, %v959
      %v961 = vpop.f32.mrb[0].mxu0
      %v962 = vpop.f32.mrb[0].mxu0
      %v963 = vadd.f32 0.0, %v962
      %v964 = vpop.f32.mrb[0].mxu0
      %965 = vmatprep.mubr.bf16.mxu0 0
      %966 = vmatmul.mubr.bf16.gmra.mrb[0].mxu0 %v892
      %v967 = vpop.f32.mrb[0].mxu0
      %v968 = vadd.f32 0.0, %v967
      %v969 = vpop.f32.mrb[0].mxu0
      %v970 = vpop.f32.mrb[0].mxu0
      %v971 = vadd.f32 0.0, %v970
      %v972 = vpop.f32.mrb[0].mxu0
      %973 = vmatprep.mubr.bf16.mxu0 0
      %974 = vmatmul.mubr.bf16.gmra.mrb[0].mxu0 %v895
      %v975 = vpop.f32.mrb[0].mxu0
      %v976 = vadd.f32 0.0, %v975
      %v977 = vpop.f32.mrb[0].mxu0
      %v978 = vpop.f32.mrb[0].mxu0
      %v979 = vadd.f32 0.0, %v978
      %v980 = vpop.f32.mrb[0].mxu0
      %981 = vmatprep.mubr.bf16.mxu0 0
      %982 = vmatmul.mubr.bf16.gmra.mrb[0].mxu0 %v898
      %v983 = vpop.f32.mrb[0].mxu0
      %v984 = vadd.f32 0.0, %v983
      %v985 = vpop.f32.mrb[0].mxu0
      %v986 = vpop.f32.mrb[0].mxu0
      %v987 = vadd.f32 0.0, %v986
      %v988 = vpop.f32.mrb[0].mxu0
      %989 = vmatprep.mubr.bf16.mxu0 0
      %990 = vmatmul.mubr.bf16.gmra.mrb[0].mxu0 %v901
      %v991 = vpop.f32.mrb[0].mxu0
      %v992 = vadd.f32 0.0, %v991
      %v993 = vpop.f32.mrb[0].mxu0
      %v994 = vpop.f32.mrb[0].mxu0
      %v995 = vadd.f32 0.0, %v994
      %v996 = vpop.f32.mrb[0].mxu0
      %997 = vmatprep.mubr.bf16.mxu0 0
      %998 = vmatmul.mubr.bf16.gmra.mrb[0].mxu0 %v904
      %v999 = vpop.f32.mrb[0].mxu0
      %v1000 = vadd.f32 0.0, %v999
      %v1001 = vpop.f32.mrb[0].mxu0
      %v1002 = vpop.f32.mrb[0].mxu0
      %v1003 = vadd.f32 0.0, %v1002
      %v1004 = vpop.f32.mrb[0].mxu0
      %1005 = vdwg.mxu0
      %v1006 = vadd.f32 %v768, %v944
      %v1007 = vadd.f32 %v769, %v947
      %v1008 = vadd.f32 %v770, %v952
      %v1009 = vadd.f32 %v771, %v955
      %v1010 = vadd.f32 %v772, %v960
      %v1011 = vadd.f32 %v773, %v963
      %v1012 = vadd.f32 %v774, %v968
      %v1013 = vadd.f32 %v775, %v971
      %v1014 = vadd.f32 %v776, %v976
      %v1015 = vadd.f32 %v777, %v979
      %v1016 = vadd.f32 %v778, %v984
      %v1017 = vadd.f32 %v779, %v987
      %v1018 = vadd.f32 %v780, %v992
      %v1019 = vadd.f32 %v781, %v995
      %v1020 = vadd.f32 %v782, %v1000
      %v1021 = vadd.f32 %v783, %v1003
      %s1022 = scalar_lea.vmem %s1, 8
      %v1023 = vld [vmem:[%s1022] sm:$0x3]
      %v1033 = vrot.slane %v803, 1
      %v1034 = vrot.slane %v804, 1
      %v1035 = vsel %vm626, %v1033, %v1034
      %v1036 = vrot.slane %v805, 1
      %v1037 = vsel %vm626, %v1034, %v1036
      %v1038 = vrot.slane %v806, 1
      %v1039 = vsel %vm626, %v1036, %v1038
      %v1040 = vrot.slane %v807, 1
      %v1041 = vsel %vm626, %v1038, %v1040
      %v1042 = vrot.slane %v808, 1
      %v1043 = vsel %vm626, %v1040, %v1042
      %v1044 = vrot.slane %v809, 1
      %v1045 = vsel %vm626, %v1042, %v1044
      %v1046 = vrot.slane %v810, 1
      %v1047 = vsel %vm626, %v1044, %v1046
      %v1048 = vrot.slane %v811, 1
      %v1049 = vsel %vm626, %v1046, %v1048
      %v1051 = vsel %vm373, %v1035, 0
      %v1054 = vsel %vm373, %v1037, 0
      %v1057 = vsel %vm373, %v1039, 0
      %v1060 = vsel %vm373, %v1041, 0
      %v1063 = vsel %vm373, %v1043, 0
      %v1066 = vsel %vm373, %v1045, 0
      %v1069 = vsel %vm373, %v1047, 0
      %v1072 = vsel %vm373, %v1049, 0
      %v1075 = vsel %vm398, %v1023, 0
      %1077 = vmatprep.subr.bf16.mxu0 0
      %1078 = vmatpush1.bf16.msra.mxu0 %v1075
      %1079 = vmatprep.subr.bf16.mxu0 0
      %1080 = vmatpush1.bf16.msra.mxu0 0
      %1081 = vmatprep.subr.bf16.mxu0 0
      %1082 = vmatpush1.bf16.msra.mxu0 0
      %1083 = vmatprep.subr.bf16.mxu0 0
      %1084 = vmatpush1.bf16.msra.mxu0 0
      %1085 = vmatprep.subr.bf16.mxu0 0
      %1086 = vmatpush1.bf16.msra.mxu0 0
      %1087 = vmatprep.subr.bf16.mxu0 0
      %1088 = vmatpush1.bf16.msra.mxu0 0
      %1089 = vmatprep.subr.bf16.mxu0 0
      %1090 = vmatpush1.bf16.msra.mxu0 0
      %1091 = vmatprep.subr.bf16.mxu0 0
      %1092 = vmatpush1.bf16.msra.mxu0 0
      %1093 = vmatprep.subr.bf16.mxu0 0
      %1094 = vmatpush1.bf16.msra.mxu0 0
      %1095 = vmatprep.subr.bf16.mxu0 0
      %1096 = vmatpush1.bf16.msra.mxu0 0
      %1097 = vmatprep.subr.bf16.mxu0 0
      %1098 = vmatpush1.bf16.msra.mxu0 0
      %1099 = vmatprep.subr.bf16.mxu0 0
      %1100 = vmatpush1.bf16.msra.mxu0 0
      %1101 = vmatprep.subr.bf16.mxu0 0
      %1102 = vmatpush1.bf16.msra.mxu0 0
      %1103 = vmatprep.subr.bf16.mxu0 0
      %1104 = vmatpush1.bf16.msra.mxu0 0
      %1105 = vmatprep.subr.bf16.mxu0 0
      %1106 = vmatpush1.bf16.msra.mxu0 0
      %1107 = vmatprep.subr.bf16.mxu0 0
      %1108 = vmatpush1.bf16.msra.mxu0 0
      %1109 = vmatprep.mubr.bf16.mxu0 0
      %1110 = vmatmul.mubr.bf16.gmra.mrb[0].mxu0 %v1051
      %v1111 = vpop.f32.mrb[0].mxu0
      %v1112 = vadd.f32 0.0, %v1111
      %v1113 = vpop.f32.mrb[0].mxu0
      %v1114 = vpop.f32.mrb[0].mxu0
      %v1115 = vadd.f32 0.0, %v1114
      %v1116 = vpop.f32.mrb[0].mxu0
      %1117 = vmatprep.mubr.bf16.mxu0 0
      %1118 = vmatmul.mubr.bf16.gmra.mrb[0].mxu0 %v1054
      %v1119 = vpop.f32.mrb[0].mxu0
      %v1120 = vadd.f32 0.0, %v1119
      %v1121 = vpop.f32.mrb[0].mxu0
      %v1122 = vpop.f32.mrb[0].mxu0
      %v1123 = vadd.f32 0.0, %v1122
      %v1124 = vpop.f32.mrb[0].mxu0
      %1125 = vmatprep.mubr.bf16.mxu0 0
      %1126 = vmatmul.mubr.bf16.gmra.mrb[0].mxu0 %v1057
      %v1127 = vpop.f32.mrb[0].mxu0
      %v1128 = vadd.f32 0.0, %v1127
      %v1129 = vpop.f32.mrb[0].mxu0
      %v1130 = vpop.f32.mrb[0].mxu0
      %v1131 = vadd.f32 0.0, %v1130
      %v1132 = vpop.f32.mrb[0].mxu0
      %1133 = vmatprep.mubr.bf16.mxu0 0
      %1134 = vmatmul.mubr.bf16.gmra.mrb[0].mxu0 %v1060
      %v1135 = vpop.f32.mrb[0].mxu0
      %v1136 = vadd.f32 0.0, %v1135
      %v1137 = vpop.f32.mrb[0].mxu0
      %v1138 = vpop.f32.mrb[0].mxu0
      %v1139 = vadd.f32 0.0, %v1138
      %v1140 = vpop.f32.mrb[0].mxu0
      %1141 = vmatprep.mubr.bf16.mxu0 0
      %1142 = vmatmul.mubr.bf16.gmra.mrb[0].mxu0 %v1063
      %v1143 = vpop.f32.mrb[0].mxu0
      %v1144 = vadd.f32 0.0, %v1143
      %v1145 = vpop.f32.mrb[0].mxu0
      %v1146 = vpop.f32.mrb[0].mxu0
      %v1147 = vadd.f32 0.0, %v1146
      %v1148 = vpop.f32.mrb[0].mxu0
      %1149 = vmatprep.mubr.bf16.mxu0 0
      %1150 = vmatmul.mubr.bf16.gmra.mrb[0].mxu0 %v1066
      %v1151 = vpop.f32.mrb[0].mxu0
      %v1152 = vadd.f32 0.0, %v1151
      %v1153 = vpop.f32.mrb[0].mxu0
      %v1154 = vpop.f32.mrb[0].mxu0
      %v1155 = vadd.f32 0.0, %v1154
      %v1156 = vpop.f32.mrb[0].mxu0
      %1157 = vmatprep.mubr.bf16.mxu0 0
      %1158 = vmatmul.mubr.bf16.gmra.mrb[0].mxu0 %v1069
      %v1159 = vpop.f32.mrb[0].mxu0
      %v1160 = vadd.f32 0.0, %v1159
      %v1161 = vpop.f32.mrb[0].mxu0
      %v1162 = vpop.f32.mrb[0].mxu0
      %v1163 = vadd.f32 0.0, %v1162
      %v1164 = vpop.f32.mrb[0].mxu0
      %1165 = vmatprep.mubr.bf16.mxu0 0
      %1166 = vmatmul.mubr.bf16.gmra.mrb[0].mxu0 %v1072
      %v1167 = vpop.f32.mrb[0].mxu0
      %v1168 = vadd.f32 0.0, %v1167
      %v1169 = vpop.f32.mrb[0].mxu0
      %v1170 = vpop.f32.mrb[0].mxu0
      %v1171 = vadd.f32 0.0, %v1170
      %v1172 = vpop.f32.mrb[0].mxu0
      %1173 = vdwg.mxu0
      %v1174 = vadd.f32 %v1006, %v1112
      %v1175 = vadd.f32 %v1007, %v1115
      %v1176 = vadd.f32 %v1008, %v1120
      %v1177 = vadd.f32 %v1009, %v1123
      %v1178 = vadd.f32 %v1010, %v1128
      %v1179 = vadd.f32 %v1011, %v1131
      %v1180 = vadd.f32 %v1012, %v1136
      %v1181 = vadd.f32 %v1013, %v1139
      %v1182 = vadd.f32 %v1014, %v1144
      %v1183 = vadd.f32 %v1015, %v1147
      %v1184 = vadd.f32 %v1016, %v1152
      %v1185 = vadd.f32 %v1017, %v1155
      %v1186 = vadd.f32 %v1018, %v1160
      %v1187 = vadd.f32 %v1019, %v1163
      %v1188 = vadd.f32 %v1020, %v1168
      %v1189 = vadd.f32 %v1021, %v1171
      %s1190 = scalar_lea.vmem %s1, 10
      %v1191 = vld [vmem:[%s1190] sm:$0x3]
      %vm1192 = vsmask.f32 6400
      %v1193 = vrot.slane %v815, 1
      %v1194 = vrot.slane %v817, 2
      %v1195 = vor.u32 %v1193, %v1194
      %v1196 = vrot.slane %v826, 1
      %v1197 = vrot.slane %v822, 2
      %v1198 = vor.u32 %v1196, %v1197
      %v1199 = vsel %vm1192, %v1195, %v1198
      %v1200 = vrot.slane %v834, 1
      %v1201 = vrot.slane %v830, 2
      %v1202 = vor.u32 %v1200, %v1201
      %v1203 = vsel %vm1192, %v1198, %v1202
      %v1204 = vrot.slane %v842, 1
      %v1205 = vrot.slane %v838, 2
      %v1206 = vor.u32 %v1204, %v1205
      %v1207 = vsel %vm1192, %v1202, %v1206
      %v1208 = vrot.slane %v850, 1
      %v1209 = vrot.slane %v846, 2
      %v1210 = vor.u32 %v1208, %v1209
      %v1211 = vsel %vm1192, %v1206, %v1210
      %v1212 = vrot.slane %v858, 1
      %v1213 = vrot.slane %v854, 2
      %v1214 = vor.u32 %v1212, %v1213
      %v1215 = vsel %vm1192, %v1210, %v1214
      %v1216 = vrot.slane %v866, 1
      %v1217 = vrot.slane %v862, 2
      %v1218 = vor.u32 %v1216, %v1217
      %v1219 = vsel %vm1192, %v1214, %v1218
      %v1220 = vrot.slane %v874, 1
      %v1221 = vrot.slane %v870, 2
      %v1222 = vor.u32 %v1220, %v1221
      %v1223 = vsel %vm1192, %v1218, %v1222
      %v1224 = vshrl.u32 %v811, 16
      %v1226 = vrot.slane %v1224, 1
      %v1227 = vrot.slane %v878, 2
      %v1228 = vor.u32 %v1226, %v1227
      %v1229 = vsel %vm1192, %v1222, %v1228
      %v1231 = vsel %vm373, %v1199, 0
      %v1234 = vsel %vm373, %v1203, 0
      %v1237 = vsel %vm373, %v1207, 0
      %v1240 = vsel %vm373, %v1211, 0
      %v1243 = vsel %vm373, %v1215, 0
      %v1246 = vsel %vm373, %v1219, 0
      %v1249 = vsel %vm373, %v1223, 0
      %v1252 = vsel %vm373, %v1229, 0
      %v1255 = vsel %vm398, %v1191, 0
      %1257 = vmatprep.subr.bf16.mxu0 0
      %1258 = vmatpush1.bf16.msra.mxu0 %v1255
      %1259 = vmatprep.subr.bf16.mxu0 0
      %1260 = vmatpush1.bf16.msra.mxu0 0
      %1261 = vmatprep.subr.bf16.mxu0 0
      %1262 = vmatpush1.bf16.msra.mxu0 0
      %1263 = vmatprep.subr.bf16.mxu0 0
      %1264 = vmatpush1.bf16.msra.mxu0 0
      %1265 = vmatprep.subr.bf16.mxu0 0
      %1266 = vmatpush1.bf16.msra.mxu0 0
      %1267 = vmatprep.subr.bf16.mxu0 0
      %1268 = vmatpush1.bf16.msra.mxu0 0
      %1269 = vmatprep.subr.bf16.mxu0 0
      %1270 = vmatpush1.bf16.msra.mxu0 0
      %1271 = vmatprep.subr.bf16.mxu0 0
      %1272 = vmatpush1.bf16.msra.mxu0 0
      %1273 = vmatprep.subr.bf16.mxu0 0
      %1274 = vmatpush1.bf16.msra.mxu0 0
      %1275 = vmatprep.subr.bf16.mxu0 0
      %1276 = vmatpush1.bf16.msra.mxu0 0
      %1277 = vmatprep.subr.bf16.mxu0 0
      %1278 = vmatpush1.bf16.msra.mxu0 0
      %1279 = vmatprep.subr.bf16.mxu0 0
      %1280 = vmatpush1.bf16.msra.mxu0 0
      %1281 = vmatprep.subr.bf16.mxu0 0
      %1282 = vmatpush1.bf16.msra.mxu0 0
      %1283 = vmatprep.subr.bf16.mxu0 0
      %1284 = vmatpush1.bf16.msra.mxu0 0
      %1285 = vmatprep.subr.bf16.mxu0 0
      %1286 = vmatpush1.bf16.msra.mxu0 0
      %1287 = vmatprep.subr.bf16.mxu0 0
      %1288 = vmatpush1.bf16.msra.mxu0 0
      %1289 = vmatprep.mubr.bf16.mxu0 0
      %1290 = vmatmul.mubr.bf16.gmra.mrb[0].mxu0 %v1231
      %v1291 = vpop.f32.mrb[0].mxu0
      %v1292 = vadd.f32 0.0, %v1291
      %v1293 = vpop.f32.mrb[0].mxu0
      %v1294 = vpop.f32.mrb[0].mxu0
      %v1295 = vadd.f32 0.0, %v1294
      %v1296 = vpop.f32.mrb[0].mxu0
      %1297 = vmatprep.mubr.bf16.mxu0 0
      %1298 = vmatmul.mubr.bf16.gmra.mrb[0].mxu0 %v1234
      %v1299 = vpop.f32.mrb[0].mxu0
      %v1300 = vadd.f32 0.0, %v1299
      %v1301 = vpop.f32.mrb[0].mxu0
      %v1302 = vpop.f32.mrb[0].mxu0
      %v1303 = vadd.f32 0.0, %v1302
      %v1304 = vpop.f32.mrb[0].mxu0
      %1305 = vmatprep.mubr.bf16.mxu0 0
      %1306 = vmatmul.mubr.bf16.gmra.mrb[0].mxu0 %v1237
      %v1307 = vpop.f32.mrb[0].mxu0
      %v1308 = vadd.f32 0.0, %v1307
      %v1309 = vpop.f32.mrb[0].mxu0
      %v1310 = vpop.f32.mrb[0].mxu0
      %v1311 = vadd.f32 0.0, %v1310
      %v1312 = vpop.f32.mrb[0].mxu0
      %1313 = vmatprep.mubr.bf16.mxu0 0
      %1314 = vmatmul.mubr.bf16.gmra.mrb[0].mxu0 %v1240
      %v1315 = vpop.f32.mrb[0].mxu0
      %v1316 = vadd.f32 0.0, %v1315
      %v1317 = vpop.f32.mrb[0].mxu0
      %v1318 = vpop.f32.mrb[0].mxu0
      %v1319 = vadd.f32 0.0, %v1318
      %v1320 = vpop.f32.mrb[0].mxu0
      %1321 = vmatprep.mubr.bf16.mxu0 0
      %1322 = vmatmul.mubr.bf16.gmra.mrb[0].mxu0 %v1243
      %v1323 = vpop.f32.mrb[0].mxu0
      %v1324 = vadd.f32 0.0, %v1323
      %v1325 = vpop.f32.mrb[0].mxu0
      %v1326 = vpop.f32.mrb[0].mxu0
      %v1327 = vadd.f32 0.0, %v1326
      %v1328 = vpop.f32.mrb[0].mxu0
      %1329 = vmatprep.mubr.bf16.mxu0 0
      %1330 = vmatmul.mubr.bf16.gmra.mrb[0].mxu0 %v1246
      %v1331 = vpop.f32.mrb[0].mxu0
      %v1332 = vadd.f32 0.0, %v1331
      %v1333 = vpop.f32.mrb[0].mxu0
      %v1334 = vpop.f32.mrb[0].mxu0
      %v1335 = vadd.f32 0.0, %v1334
      %v1336 = vpop.f32.mrb[0].mxu0
      %1337 = vmatprep.mubr.bf16.mxu0 0
      %1338 = vmatmul.mubr.bf16.gmra.mrb[0].mxu0 %v1249
      %v1339 = vpop.f32.mrb[0].mxu0
      %v1340 = vadd.f32 0.0, %v1339
      %v1341 = vpop.f32.mrb[0].mxu0
      %v1342 = vpop.f32.mrb[0].mxu0
      %v1343 = vadd.f32 0.0, %v1342
      %v1344 = vpop.f32.mrb[0].mxu0
      %1345 = vmatprep.mubr.bf16.mxu0 0
      %1346 = vmatmul.mubr.bf16.gmra.mrb[0].mxu0 %v1252
      %v1347 = vpop.f32.mrb[0].mxu0
      %v1348 = vadd.f32 0.0, %v1347
      %v1349 = vpop.f32.mrb[0].mxu0
      %v1350 = vpop.f32.mrb[0].mxu0
      %v1351 = vadd.f32 0.0, %v1350
      %v1352 = vpop.f32.mrb[0].mxu0
      %1353 = vdwg.mxu0
      %v1354 = vadd.f32 %v1174, %v1292
      %v1355 = vadd.f32 %v1175, %v1295
      %v1356 = vadd.f32 %v1176, %v1300
      %v1357 = vadd.f32 %v1177, %v1303
      %v1358 = vadd.f32 %v1178, %v1308
      %v1359 = vadd.f32 %v1179, %v1311
      %v1360 = vadd.f32 %v1180, %v1316
      %v1361 = vadd.f32 %v1181, %v1319
      %v1362 = vadd.f32 %v1182, %v1324
      %v1363 = vadd.f32 %v1183, %v1327
      %v1364 = vadd.f32 %v1184, %v1332
      %v1365 = vadd.f32 %v1185, %v1335
      %v1366 = vadd.f32 %v1186, %v1340
      %v1367 = vadd.f32 %v1187, %v1343
      %v1368 = vadd.f32 %v1188, %v1348
      %v1369 = vadd.f32 %v1189, %v1351
      %s1370 = sadd.s32 %s273, 16
      %s1371 = scalar_lea.vmem %s0, %s1370
      %v1372 = vld [vmem:[%s1371] sm:$0xff]
      %v1373 = vld [vmem:[%s1371 + $0x8] sm:$0xff]
      %v1374 = vld [vmem:[%s1371 + $0x10] sm:$0xff]
      %v1375 = vld [vmem:[%s1371 + $0x18] sm:$0xff]
      %v1376 = vld [vmem:[%s1371 + $0x20] sm:$0xff]
      %v1377 = vld [vmem:[%s1371 + $0x28] sm:$0xff]
      %v1378 = vld [vmem:[%s1371 + $0x30] sm:$0xff]
      %v1379 = vld [vmem:[%s1371 + $0x38] sm:$0xff]
      %v1380 = vld [vmem:[%s1371 + $0x40] sm:$0xff]
      %v1381 = vld [vmem:[%s1371 + $0x48] sm:$0xff]
      %v1382 = vld [vmem:[%s1371 + $0x50] sm:$0xff]
      %v1383 = vld [vmem:[%s1371 + $0x58] sm:$0xff]
      %v1384 = vld [vmem:[%s1371 + $0x60] sm:$0xff]
      %v1385 = vld [vmem:[%s1371 + $0x68] sm:$0xff]
      %v1386 = vld [vmem:[%s1371 + $0x70] sm:$0xff]
      %v1387 = vld [vmem:[%s1371 + $0x78] sm:$0xff]
      %v1388 = vld [vmem:[%s1371 + $0x80] sm:$0xff]
      %v1389 = vpack.c.bf16 %v1373, %v1372
      %v1390 = vpack.c.bf16 %v1375, %v1374
      %v1391 = vpack.c.bf16 %v1377, %v1376
      %v1392 = vpack.c.bf16 %v1379, %v1378
      %v1393 = vpack.c.bf16 %v1381, %v1380
      %v1394 = vpack.c.bf16 %v1383, %v1382
      %v1395 = vpack.c.bf16 %v1385, %v1384
      %v1396 = vpack.c.bf16 %v1387, %v1386
      %v1397 = vpack.c.bf16 %v1388, %v1388
      %s1398 = scalar_lea.vmem %s1, 12
      %v1399 = vld [vmem:[%s1398] sm:$0x3]
      %v1409 = vrot.slane %v1389, 1
      %v1410 = vrot.slane %v1390, 1
      %v1411 = vsel %vm626, %v1409, %v1410
      %v1412 = vrot.slane %v1391, 1
      %v1413 = vsel %vm626, %v1410, %v1412
      %v1414 = vrot.slane %v1392, 1
      %v1415 = vsel %vm626, %v1412, %v1414
      %v1416 = vrot.slane %v1393, 1
      %v1417 = vsel %vm626, %v1414, %v1416
      %v1418 = vrot.slane %v1394, 1
      %v1419 = vsel %vm626, %v1416, %v1418
      %v1420 = vrot.slane %v1395, 1
      %v1421 = vsel %vm626, %v1418, %v1420
      %v1422 = vrot.slane %v1396, 1
      %v1423 = vsel %vm626, %v1420, %v1422
      %v1424 = vrot.slane %v1397, 1
      %v1425 = vsel %vm626, %v1422, %v1424
      %v1427 = vsel %vm373, %v1411, 0
      %v1430 = vsel %vm373, %v1413, 0
      %v1433 = vsel %vm373, %v1415, 0
      %v1436 = vsel %vm373, %v1417, 0
      %v1439 = vsel %vm373, %v1419, 0
      %v1442 = vsel %vm373, %v1421, 0
      %v1445 = vsel %vm373, %v1423, 0
      %v1448 = vsel %vm373, %v1425, 0
      %v1451 = vsel %vm398, %v1399, 0
      %1453 = vmatprep.subr.bf16.mxu0 0
      %1454 = vmatpush1.bf16.msra.mxu0 %v1451
      %1455 = vmatprep.subr.bf16.mxu0 0
      %1456 = vmatpush1.bf16.msra.mxu0 0
      %1457 = vmatprep.subr.bf16.mxu0 0
      %1458 = vmatpush1.bf16.msra.mxu0 0
      %1459 = vmatprep.subr.bf16.mxu0 0
      %1460 = vmatpush1.bf16.msra.mxu0 0
      %1461 = vmatprep.subr.bf16.mxu0 0
      %1462 = vmatpush1.bf16.msra.mxu0 0
      %1463 = vmatprep.subr.bf16.mxu0 0
      %1464 = vmatpush1.bf16.msra.mxu0 0
      %1465 = vmatprep.subr.bf16.mxu0 0
      %1466 = vmatpush1.bf16.msra.mxu0 0
      %1467 = vmatprep.subr.bf16.mxu0 0
      %1468 = vmatpush1.bf16.msra.mxu0 0
      %1469 = vmatprep.subr.bf16.mxu0 0
      %1470 = vmatpush1.bf16.msra.mxu0 0
      %1471 = vmatprep.subr.bf16.mxu0 0
      %1472 = vmatpush1.bf16.msra.mxu0 0
      %1473 = vmatprep.subr.bf16.mxu0 0
      %1474 = vmatpush1.bf16.msra.mxu0 0
      %1475 = vmatprep.subr.bf16.mxu0 0
      %1476 = vmatpush1.bf16.msra.mxu0 0
      %1477 = vmatprep.subr.bf16.mxu0 0
      %1478 = vmatpush1.bf16.msra.mxu0 0
      %1479 = vmatprep.subr.bf16.mxu0 0
      %1480 = vmatpush1.bf16.msra.mxu0 0
      %1481 = vmatprep.subr.bf16.mxu0 0
      %1482 = vmatpush1.bf16.msra.mxu0 0
      %1483 = vmatprep.subr.bf16.mxu0 0
      %1484 = vmatpush1.bf16.msra.mxu0 0
      %1485 = vmatprep.mubr.bf16.mxu0 0
      %1486 = vmatmul.mubr.bf16.gmra.mrb[0].mxu0 %v1427
      %v1487 = vpop.f32.mrb[0].mxu0
      %v1488 = vadd.f32 0.0, %v1487
      %v1489 = vpop.f32.mrb[0].mxu0
      %v1490 = vpop.f32.mrb[0].mxu0
      %v1491 = vadd.f32 0.0, %v1490
      %v1492 = vpop.f32.mrb[0].mxu0
      %1493 = vmatprep.mubr.bf16.mxu0 0
      %1494 = vmatmul.mubr.bf16.gmra.mrb[0].mxu0 %v1430
      %v1495 = vpop.f32.mrb[0].mxu0
      %v1496 = vadd.f32 0.0, %v1495
      %v1497 = vpop.f32.mrb[0].mxu0
      %v1498 = vpop.f32.mrb[0].mxu0
      %v1499 = vadd.f32 0.0, %v1498
      %v1500 = vpop.f32.mrb[0].mxu0
      %1501 = vmatprep.mubr.bf16.mxu0 0
      %1502 = vmatmul.mubr.bf16.gmra.mrb[0].mxu0 %v1433
      %v1503 = vpop.f32.mrb[0].mxu0
      %v1504 = vadd.f32 0.0, %v1503
      %v1505 = vpop.f32.mrb[0].mxu0
      %v1506 = vpop.f32.mrb[0].mxu0
      %v1507 = vadd.f32 0.0, %v1506
      %v1508 = vpop.f32.mrb[0].mxu0
      %1509 = vmatprep.mubr.bf16.mxu0 0
      %1510 = vmatmul.mubr.bf16.gmra.mrb[0].mxu0 %v1436
      %v1511 = vpop.f32.mrb[0].mxu0
      %v1512 = vadd.f32 0.0, %v1511
      %v1513 = vpop.f32.mrb[0].mxu0
      %v1514 = vpop.f32.mrb[0].mxu0
      %v1515 = vadd.f32 0.0, %v1514
      %v1516 = vpop.f32.mrb[0].mxu0
      %1517 = vmatprep.mubr.bf16.mxu0 0
      %1518 = vmatmul.mubr.bf16.gmra.mrb[0].mxu0 %v1439
      %v1519 = vpop.f32.mrb[0].mxu0
      %v1520 = vadd.f32 0.0, %v1519
      %v1521 = vpop.f32.mrb[0].mxu0
      %v1522 = vpop.f32.mrb[0].mxu0
      %v1523 = vadd.f32 0.0, %v1522
      %v1524 = vpop.f32.mrb[0].mxu0
      %1525 = vmatprep.mubr.bf16.mxu0 0
      %1526 = vmatmul.mubr.bf16.gmra.mrb[0].mxu0 %v1442
      %v1527 = vpop.f32.mrb[0].mxu0
      %v1528 = vadd.f32 0.0, %v1527
      %v1529 = vpop.f32.mrb[0].mxu0
      %v1530 = vpop.f32.mrb[0].mxu0
      %v1531 = vadd.f32 0.0, %v1530
      %v1532 = vpop.f32.mrb[0].mxu0
      %1533 = vmatprep.mubr.bf16.mxu0 0
      %1534 = vmatmul.mubr.bf16.gmra.mrb[0].mxu0 %v1445
      %v1535 = vpop.f32.mrb[0].mxu0
      %v1536 = vadd.f32 0.0, %v1535
      %v1537 = vpop.f32.mrb[0].mxu0
      %v1538 = vpop.f32.mrb[0].mxu0
      %v1539 = vadd.f32 0.0, %v1538
      %v1540 = vpop.f32.mrb[0].mxu0
      %1541 = vmatprep.mubr.bf16.mxu0 0
      %1542 = vmatmul.mubr.bf16.gmra.mrb[0].mxu0 %v1448
      %v1543 = vpop.f32.mrb[0].mxu0
      %v1544 = vadd.f32 0.0, %v1543
      %v1545 = vpop.f32.mrb[0].mxu0
      %v1546 = vpop.f32.mrb[0].mxu0
      %v1547 = vadd.f32 0.0, %v1546
      %v1548 = vpop.f32.mrb[0].mxu0
      %1549 = vdwg.mxu0
      %v1550 = vadd.f32 %v1354, %v1488
      %v1551 = vadd.f32 %v1355, %v1491
      %v1552 = vadd.f32 %v1356, %v1496
      %v1553 = vadd.f32 %v1357, %v1499
      %v1554 = vadd.f32 %v1358, %v1504
      %v1555 = vadd.f32 %v1359, %v1507
      %v1556 = vadd.f32 %v1360, %v1512
      %v1557 = vadd.f32 %v1361, %v1515
      %v1558 = vadd.f32 %v1362, %v1520
      %v1559 = vadd.f32 %v1363, %v1523
      %v1560 = vadd.f32 %v1364, %v1528
      %v1561 = vadd.f32 %v1365, %v1531
      %v1562 = vadd.f32 %v1366, %v1536
      %v1563 = vadd.f32 %v1367, %v1539
      %v1564 = vadd.f32 %v1368, %v1544
      %v1565 = vadd.f32 %v1369, %v1547
      %s1566 = scalar_lea.vmem %s1, 14
      %v1567 = vld [vmem:[%s1566] sm:$0x3]
      %v1569 = vshrl.u32 %v1389, 16
      %v1571 = vrot.slane %v1569, 1
      %v1572 = vshll.u32 %v1389, 16
      %v1574 = vrot.slane %v1572, 2
      %v1575 = vor.u32 %v1571, %v1574
      %v1577 = vshrl.u32 %v1390, 16
      %v1579 = vrot.slane %v1577, 1
      %v1580 = vshll.u32 %v1390, 16
      %v1582 = vrot.slane %v1580, 2
      %v1583 = vor.u32 %v1579, %v1582
      %v1584 = vsel %vm1192, %v1575, %v1583
      %v1586 = vshrl.u32 %v1391, 16
      %v1588 = vrot.slane %v1586, 1
      %v1589 = vshll.u32 %v1391, 16
      %v1591 = vrot.slane %v1589, 2
      %v1592 = vor.u32 %v1588, %v1591
      %v1593 = vsel %vm1192, %v1583, %v1592
      %v1595 = vshrl.u32 %v1392, 16
      %v1597 = vrot.slane %v1595, 1
      %v1598 = vshll.u32 %v1392, 16
      %v1600 = vrot.slane %v1598, 2
      %v1601 = vor.u32 %v1597, %v1600
      %v1602 = vsel %vm1192, %v1592, %v1601
      %v1604 = vshrl.u32 %v1393, 16
      %v1606 = vrot.slane %v1604, 1
      %v1607 = vshll.u32 %v1393, 16
      %v1609 = vrot.slane %v1607, 2
      %v1610 = vor.u32 %v1606, %v1609
      %v1611 = vsel %vm1192, %v1601, %v1610
      %v1613 = vshrl.u32 %v1394, 16
      %v1615 = vrot.slane %v1613, 1
      %v1616 = vshll.u32 %v1394, 16
      %v1618 = vrot.slane %v1616, 2
      %v1619 = vor.u32 %v1615, %v1618
      %v1620 = vsel %vm1192, %v1610, %v1619
      %v1622 = vshrl.u32 %v1395, 16
      %v1624 = vrot.slane %v1622, 1
      %v1625 = vshll.u32 %v1395, 16
      %v1627 = vrot.slane %v1625, 2
      %v1628 = vor.u32 %v1624, %v1627
      %v1629 = vsel %vm1192, %v1619, %v1628
      %v1631 = vshrl.u32 %v1396, 16
      %v1633 = vrot.slane %v1631, 1
      %v1634 = vshll.u32 %v1396, 16
      %v1636 = vrot.slane %v1634, 2
      %v1637 = vor.u32 %v1633, %v1636
      %v1638 = vsel %vm1192, %v1628, %v1637
      %v1640 = vshrl.u32 %v1397, 16
      %v1642 = vrot.slane %v1640, 1
      %v1643 = vshll.u32 %v1397, 16
      %v1645 = vrot.slane %v1643, 2
      %v1646 = vor.u32 %v1642, %v1645
      %v1647 = vsel %vm1192, %v1637, %v1646
      %v1649 = vsel %vm373, %v1584, 0
      %v1652 = vsel %vm373, %v1593, 0
      %v1655 = vsel %vm373, %v1602, 0
      %v1658 = vsel %vm373, %v1611, 0
      %v1661 = vsel %vm373, %v1620, 0
      %v1664 = vsel %vm373, %v1629, 0
      %v1667 = vsel %vm373, %v1638, 0
      %v1670 = vsel %vm373, %v1647, 0
      %v1673 = vsel %vm398, %v1567, 0
      %1675 = vmatprep.subr.bf16.mxu0 0
      %1676 = vmatpush1.bf16.msra.mxu0 %v1673
      %1677 = vmatprep.subr.bf16.mxu0 0
      %1678 = vmatpush1.bf16.msra.mxu0 0
      %1679 = vmatprep.subr.bf16.mxu0 0
      %1680 = vmatpush1.bf16.msra.mxu0 0
      %1681 = vmatprep.subr.bf16.mxu0 0
      %1682 = vmatpush1.bf16.msra.mxu0 0
      %1683 = vmatprep.subr.bf16.mxu0 0
      %1684 = vmatpush1.bf16.msra.mxu0 0
      %1685 = vmatprep.subr.bf16.mxu0 0
      %1686 = vmatpush1.bf16.msra.mxu0 0
      %1687 = vmatprep.subr.bf16.mxu0 0
      %1688 = vmatpush1.bf16.msra.mxu0 0
      %1689 = vmatprep.subr.bf16.mxu0 0
      %1690 = vmatpush1.bf16.msra.mxu0 0
      %1691 = vmatprep.subr.bf16.mxu0 0
      %1692 = vmatpush1.bf16.msra.mxu0 0
      %1693 = vmatprep.subr.bf16.mxu0 0
      %1694 = vmatpush1.bf16.msra.mxu0 0
      %1695 = vmatprep.subr.bf16.mxu0 0
      %1696 = vmatpush1.bf16.msra.mxu0 0
      %1697 = vmatprep.subr.bf16.mxu0 0
      %1698 = vmatpush1.bf16.msra.mxu0 0
      %1699 = vmatprep.subr.bf16.mxu0 0
      %1700 = vmatpush1.bf16.msra.mxu0 0
      %1701 = vmatprep.subr.bf16.mxu0 0
      %1702 = vmatpush1.bf16.msra.mxu0 0
      %1703 = vmatprep.subr.bf16.mxu0 0
      %1704 = vmatpush1.bf16.msra.mxu0 0
      %1705 = vmatprep.subr.bf16.mxu0 0
      %1706 = vmatpush1.bf16.msra.mxu0 0
      %1707 = vmatprep.mubr.bf16.mxu0 0
      %1708 = vmatmul.mubr.bf16.gmra.mrb[0].mxu0 %v1649
      %v1709 = vpop.f32.mrb[0].mxu0
      %v1710 = vadd.f32 0.0, %v1709
      %v1711 = vpop.f32.mrb[0].mxu0
      %v1712 = vpop.f32.mrb[0].mxu0
      %v1713 = vadd.f32 0.0, %v1712
      %v1714 = vpop.f32.mrb[0].mxu0
      %1715 = vmatprep.mubr.bf16.mxu0 0
      %1716 = vmatmul.mubr.bf16.gmra.mrb[0].mxu0 %v1652
      %v1717 = vpop.f32.mrb[0].mxu0
      %v1718 = vadd.f32 0.0, %v1717
      %v1719 = vpop.f32.mrb[0].mxu0
      %v1720 = vpop.f32.mrb[0].mxu0
      %v1721 = vadd.f32 0.0, %v1720
      %v1722 = vpop.f32.mrb[0].mxu0
      %1723 = vmatprep.mubr.bf16.mxu0 0
      %1724 = vmatmul.mubr.bf16.gmra.mrb[0].mxu0 %v1655
      %v1725 = vpop.f32.mrb[0].mxu0
      %v1726 = vadd.f32 0.0, %v1725
      %v1727 = vpop.f32.mrb[0].mxu0
      %v1728 = vpop.f32.mrb[0].mxu0
      %v1729 = vadd.f32 0.0, %v1728
      %v1730 = vpop.f32.mrb[0].mxu0
      %1731 = vmatprep.mubr.bf16.mxu0 0
      %1732 = vmatmul.mubr.bf16.gmra.mrb[0].mxu0 %v1658
      %v1733 = vpop.f32.mrb[0].mxu0
      %v1734 = vadd.f32 0.0, %v1733
      %v1735 = vpop.f32.mrb[0].mxu0
      %v1736 = vpop.f32.mrb[0].mxu0
      %v1737 = vadd.f32 0.0, %v1736
      %v1738 = vpop.f32.mrb[0].mxu0
      %1739 = vmatprep.mubr.bf16.mxu0 0
      %1740 = vmatmul.mubr.bf16.gmra.mrb[0].mxu0 %v1661
      %v1741 = vpop.f32.mrb[0].mxu0
      %v1742 = vadd.f32 0.0, %v1741
      %v1743 = vpop.f32.mrb[0].mxu0
      %v1744 = vpop.f32.mrb[0].mxu0
      %v1745 = vadd.f32 0.0, %v1744
      %v1746 = vpop.f32.mrb[0].mxu0
      %1747 = vmatprep.mubr.bf16.mxu0 0
      %1748 = vmatmul.mubr.bf16.gmra.mrb[0].mxu0 %v1664
      %v1749 = vpop.f32.mrb[0].mxu0
      %v1750 = vadd.f32 0.0, %v1749
      %v1751 = vpop.f32.mrb[0].mxu0
      %v1752 = vpop.f32.mrb[0].mxu0
      %v1753 = vadd.f32 0.0, %v1752
      %v1754 = vpop.f32.mrb[0].mxu0
      %1755 = vmatprep.mubr.bf16.mxu0 0
      %1756 = vmatmul.mubr.bf16.gmra.mrb[0].mxu0 %v1667
      %v1757 = vpop.f32.mrb[0].mxu0
      %v1758 = vadd.f32 0.0, %v1757
      %v1759 = vpop.f32.mrb[0].mxu0
      %v1760 = vpop.f32.mrb[0].mxu0
      %v1761 = vadd.f32 0.0, %v1760
      %v1762 = vpop.f32.mrb[0].mxu0
      %1763 = vmatprep.mubr.bf16.mxu0 0
      %1764 = vmatmul.mubr.bf16.gmra.mrb[0].mxu0 %v1670
      %v1765 = vpop.f32.mrb[0].mxu0
      %v1766 = vadd.f32 0.0, %v1765
      %v1767 = vpop.f32.mrb[0].mxu0
      %v1768 = vpop.f32.mrb[0].mxu0
      %v1769 = vadd.f32 0.0, %v1768
      %v1770 = vpop.f32.mrb[0].mxu0
      %1771 = vdwg.mxu0
      %v1772 = vadd.f32 %v1550, %v1710
      %v1773 = vadd.f32 %v1551, %v1713
      %v1774 = vadd.f32 %v1552, %v1718
      %v1775 = vadd.f32 %v1553, %v1721
      %v1776 = vadd.f32 %v1554, %v1726
      %v1777 = vadd.f32 %v1555, %v1729
      %v1778 = vadd.f32 %v1556, %v1734
      %v1779 = vadd.f32 %v1557, %v1737
      %v1780 = vadd.f32 %v1558, %v1742
      %v1781 = vadd.f32 %v1559, %v1745
      %v1782 = vadd.f32 %v1560, %v1750
      %v1783 = vadd.f32 %v1561, %v1753
      %v1784 = vadd.f32 %v1562, %v1758
      %v1785 = vadd.f32 %v1563, %v1761
      %v1786 = vadd.f32 %v1564, %v1766
      %v1787 = vadd.f32 %v1565, %v1769
      %s1788 = scalar_lea.vmem %s1, 16
      %v1789 = vld [vmem:[%s1788] sm:$0x3]
      %vm1790 = vcmask 1045504
      %v1791 = vrot.slane %v1389, 2
      %v1792 = vrot.slane %v1390, 2
      %v1793 = vsel %vm1790, %v1791, %v1792
      %v1794 = vrot.slane %v1391, 2
      %v1795 = vsel %vm1790, %v1792, %v1794
      %v1796 = vrot.slane %v1392, 2
      %v1797 = vsel %vm1790, %v1794, %v1796
      %v1798 = vrot.slane %v1393, 2
      %v1799 = vsel %vm1790, %v1796, %v1798
      %v1800 = vrot.slane %v1394, 2
      %v1801 = vsel %vm1790, %v1798, %v1800
      %v1802 = vrot.slane %v1395, 2
      %v1803 = vsel %vm1790, %v1800, %v1802
      %v1804 = vrot.slane %v1396, 2
      %v1805 = vsel %vm1790, %v1802, %v1804
      %v1806 = vrot.slane %v1397, 2
      %v1807 = vsel %vm1790, %v1804, %v1806
      %v1809 = vsel %vm373, %v1793, 0
      %v1812 = vsel %vm373, %v1795, 0
      %v1815 = vsel %vm373, %v1797, 0
      %v1818 = vsel %vm373, %v1799, 0
      %v1821 = vsel %vm373, %v1801, 0
      %v1824 = vsel %vm373, %v1803, 0
      %v1827 = vsel %vm373, %v1805, 0
      %v1830 = vsel %vm373, %v1807, 0
      %v1833 = vsel %vm398, %v1789, 0
      %1835 = vmatprep.subr.bf16.mxu0 0
      %1836 = vmatpush1.bf16.msra.mxu0 %v1833
      %1837 = vmatprep.subr.bf16.mxu0 0
      %1838 = vmatpush1.bf16.msra.mxu0 0
      %1839 = vmatprep.subr.bf16.mxu0 0
      %1840 = vmatpush1.bf16.msra.mxu0 0
      %1841 = vmatprep.subr.bf16.mxu0 0
      %1842 = vmatpush1.bf16.msra.mxu0 0
      %1843 = vmatprep.subr.bf16.mxu0 0
      %1844 = vmatpush1.bf16.msra.mxu0 0
      %1845 = vmatprep.subr.bf16.mxu0 0
      %1846 = vmatpush1.bf16.msra.mxu0 0
      %1847 = vmatprep.subr.bf16.mxu0 0
      %1848 = vmatpush1.bf16.msra.mxu0 0
      %1849 = vmatprep.subr.bf16.mxu0 0
      %1850 = vmatpush1.bf16.msra.mxu0 0
      %1851 = vmatprep.subr.bf16.mxu0 0
      %1852 = vmatpush1.bf16.msra.mxu0 0
      %1853 = vmatprep.subr.bf16.mxu0 0
      %1854 = vmatpush1.bf16.msra.mxu0 0
      %1855 = vmatprep.subr.bf16.mxu0 0
      %1856 = vmatpush1.bf16.msra.mxu0 0
      %1857 = vmatprep.subr.bf16.mxu0 0
      %1858 = vmatpush1.bf16.msra.mxu0 0
      %1859 = vmatprep.subr.bf16.mxu0 0
      %1860 = vmatpush1.bf16.msra.mxu0 0
      %1861 = vmatprep.subr.bf16.mxu0 0
      %1862 = vmatpush1.bf16.msra.mxu0 0
      %1863 = vmatprep.subr.bf16.mxu0 0
      %1864 = vmatpush1.bf16.msra.mxu0 0
      %1865 = vmatprep.subr.bf16.mxu0 0
      %1866 = vmatpush1.bf16.msra.mxu0 0
      %1867 = vmatprep.mubr.bf16.mxu0 0
      %1868 = vmatmul.mubr.bf16.gmra.mrb[0].mxu0 %v1809
      %v1869 = vpop.f32.mrb[0].mxu0
      %v1870 = vadd.f32 0.0, %v1869
      %v1871 = vpop.f32.mrb[0].mxu0
      %v1872 = vpop.f32.mrb[0].mxu0
      %v1873 = vadd.f32 0.0, %v1872
      %v1874 = vpop.f32.mrb[0].mxu0
      %1875 = vmatprep.mubr.bf16.mxu0 0
      %1876 = vmatmul.mubr.bf16.gmra.mrb[0].mxu0 %v1812
      %v1877 = vpop.f32.mrb[0].mxu0
      %v1878 = vadd.f32 0.0, %v1877
      %v1879 = vpop.f32.mrb[0].mxu0
      %v1880 = vpop.f32.mrb[0].mxu0
      %v1881 = vadd.f32 0.0, %v1880
      %v1882 = vpop.f32.mrb[0].mxu0
      %1883 = vmatprep.mubr.bf16.mxu0 0
      %1884 = vmatmul.mubr.bf16.gmra.mrb[0].mxu0 %v1815
      %v1885 = vpop.f32.mrb[0].mxu0
      %v1886 = vadd.f32 0.0, %v1885
      %v1887 = vpop.f32.mrb[0].mxu0
      %v1888 = vpop.f32.mrb[0].mxu0
      %v1889 = vadd.f32 0.0, %v1888
      %v1890 = vpop.f32.mrb[0].mxu0
      %1891 = vmatprep.mubr.bf16.mxu0 0
      %1892 = vmatmul.mubr.bf16.gmra.mrb[0].mxu0 %v1818
      %v1893 = vpop.f32.mrb[0].mxu0
      %v1894 = vadd.f32 0.0, %v1893
      %v1895 = vpop.f32.mrb[0].mxu0
      %v1896 = vpop.f32.mrb[0].mxu0
      %v1897 = vadd.f32 0.0, %v1896
      %v1898 = vpop.f32.mrb[0].mxu0
      %1899 = vmatprep.mubr.bf16.mxu0 0
      %1900 = vmatmul.mubr.bf16.gmra.mrb[0].mxu0 %v1821
      %v1901 = vpop.f32.mrb[0].mxu0
      %v1902 = vadd.f32 0.0, %v1901
      %v1903 = vpop.f32.mrb[0].mxu0
      %v1904 = vpop.f32.mrb[0].mxu0
      %v1905 = vadd.f32 0.0, %v1904
      %v1906 = vpop.f32.mrb[0].mxu0
      %1907 = vmatprep.mubr.bf16.mxu0 0
      %1908 = vmatmul.mubr.bf16.gmra.mrb[0].mxu0 %v1824
      %v1909 = vpop.f32.mrb[0].mxu0
      %v1910 = vadd.f32 0.0, %v1909
      %v1911 = vpop.f32.mrb[0].mxu0
      %v1912 = vpop.f32.mrb[0].mxu0
      %v1913 = vadd.f32 0.0, %v1912
      %v1914 = vpop.f32.mrb[0].mxu0
      %1915 = vmatprep.mubr.bf16.mxu0 0
      %1916 = vmatmul.mubr.bf16.gmra.mrb[0].mxu0 %v1827
      %v1917 = vpop.f32.mrb[0].mxu0
      %v1918 = vadd.f32 0.0, %v1917
      %v1919 = vpop.f32.mrb[0].mxu0
      %v1920 = vpop.f32.mrb[0].mxu0
      %v1921 = vadd.f32 0.0, %v1920
      %v1922 = vpop.f32.mrb[0].mxu0
      %1923 = vmatprep.mubr.bf16.mxu0 0
      %1924 = vmatmul.mubr.bf16.gmra.mrb[0].mxu0 %v1830
      %v1925 = vpop.f32.mrb[0].mxu0
      %v1926 = vadd.f32 0.0, %v1925
      %v1927 = vpop.f32.mrb[0].mxu0
      %v1928 = vpop.f32.mrb[0].mxu0
      %v1929 = vadd.f32 0.0, %v1928
      %v1930 = vpop.f32.mrb[0].mxu0
      %1931 = vdwg.mxu0
      %v1932 = vadd.f32 %v1772, %v1870
      %v1933 = vadd.f32 %v1773, %v1873
      %v1934 = vadd.f32 %v1774, %v1878
      %v1935 = vadd.f32 %v1775, %v1881
      %v1936 = vadd.f32 %v1776, %v1886
      %v1937 = vadd.f32 %v1777, %v1889
      %v1938 = vadd.f32 %v1778, %v1894
      %v1939 = vadd.f32 %v1779, %v1897
      %v1940 = vadd.f32 %v1780, %v1902
      %v1941 = vadd.f32 %v1781, %v1905
      %v1942 = vadd.f32 %v1782, %v1910
      %v1943 = vadd.f32 %v1783, %v1913
      %v1944 = vadd.f32 %v1784, %v1918
      %v1945 = vadd.f32 %v1785, %v1921
      %v1946 = vadd.f32 %v1786, %v1926
      %v1947 = vadd.f32 %v1787, %v1929
      %s1948 = sadd.s32 %s273, 80
      %s1949 = scalar_lea.vmem %s0, %s1948
      %v1950 = vld [vmem:[%s1949] sm:$0xff]
      %v1951 = vld [vmem:[%s1949 + $0x8] sm:$0xff]
      %v1952 = vld [vmem:[%s1949 + $0x10] sm:$0xff]
      %v1953 = vld [vmem:[%s1949 + $0x18] sm:$0xff]
      %v1954 = vld [vmem:[%s1949 + $0x20] sm:$0xff]
      %v1955 = vld [vmem:[%s1949 + $0x28] sm:$0xff]
      %v1956 = vld [vmem:[%s1949 + $0x30] sm:$0xff]
      %v1957 = vld [vmem:[%s1949 + $0x38] sm:$0xff]
      %v1958 = vld [vmem:[%s1949 + $0x40] sm:$0xff]
      %v1959 = vld [vmem:[%s1949 + $0x48] sm:$0xff]
      %v1960 = vld [vmem:[%s1949 + $0x50] sm:$0xff]
      %v1961 = vld [vmem:[%s1949 + $0x58] sm:$0xff]
      %v1962 = vld [vmem:[%s1949 + $0x60] sm:$0xff]
      %v1963 = vld [vmem:[%s1949 + $0x68] sm:$0xff]
      %v1964 = vld [vmem:[%s1949 + $0x70] sm:$0xff]
      %v1965 = vld [vmem:[%s1949 + $0x78] sm:$0xff]
      %v1966 = vld [vmem:[%s1949 + $0x80] sm:$0xff]
      %v1967 = vpack.c.bf16 %v1951, %v1950
      %v1968 = vpack.c.bf16 %v1953, %v1952
      %v1969 = vpack.c.bf16 %v1955, %v1954
      %v1970 = vpack.c.bf16 %v1957, %v1956
      %v1971 = vpack.c.bf16 %v1959, %v1958
      %v1972 = vpack.c.bf16 %v1961, %v1960
      %v1973 = vpack.c.bf16 %v1963, %v1962
      %v1974 = vpack.c.bf16 %v1965, %v1964
      %v1975 = vpack.c.bf16 %v1966, %v1966
      %s1976 = scalar_lea.vmem %s1, 18
      %v1977 = vld [vmem:[%s1976] sm:$0x3]
      %v1979 = vshrl.u32 %v1967, 16
      %v1981 = vshll.u32 %v1967, 16
      %v1983 = vrot.slane %v1981, 1
      %v1984 = vor.u32 %v1979, %v1983
      %v1986 = vshll.u32 %v1968, 16
      %v1988 = vrot.slane %v1986, 1
      %v1989 = vsel %vm304, %v1984, %v1988
      %v1990 = vshrl.u32 %v1968, 16
      %v1992 = vor.u32 %v1990, %v1988
      %v1994 = vshll.u32 %v1969, 16
      %v1996 = vrot.slane %v1994, 1
      %v1997 = vsel %vm304, %v1992, %v1996
      %v1998 = vshrl.u32 %v1969, 16
      %v2000 = vor.u32 %v1998, %v1996
      %v2002 = vshll.u32 %v1970, 16
      %v2004 = vrot.slane %v2002, 1
      %v2005 = vsel %vm304, %v2000, %v2004
      %v2006 = vshrl.u32 %v1970, 16
      %v2008 = vor.u32 %v2006, %v2004
      %v2010 = vshll.u32 %v1971, 16
      %v2012 = vrot.slane %v2010, 1
      %v2013 = vsel %vm304, %v2008, %v2012
      %v2014 = vshrl.u32 %v1971, 16
      %v2016 = vor.u32 %v2014, %v2012
      %v2018 = vshll.u32 %v1972, 16
      %v2020 = vrot.slane %v2018, 1
      %v2021 = vsel %vm304, %v2016, %v2020
      %v2022 = vshrl.u32 %v1972, 16
      %v2024 = vor.u32 %v2022, %v2020
      %v2026 = vshll.u32 %v1973, 16
      %v2028 = vrot.slane %v2026, 1
      %v2029 = vsel %vm304, %v2024, %v2028
      %v2030 = vshrl.u32 %v1973, 16
      %v2032 = vor.u32 %v2030, %v2028
      %v2034 = vshll.u32 %v1974, 16
      %v2036 = vrot.slane %v2034, 1
      %v2037 = vsel %vm304, %v2032, %v2036
      %v2038 = vshrl.u32 %v1974, 16
      %v2040 = vor.u32 %v2038, %v2036
      %v2042 = vshll.u32 %v1975, 16
      %v2044 = vrot.slane %v2042, 1
      %v2045 = vsel %vm304, %v2040, %v2044
      %v2047 = vsel %vm373, %v1989, 0
      %v2050 = vsel %vm373, %v1997, 0
      %v2053 = vsel %vm373, %v2005, 0
      %v2056 = vsel %vm373, %v2013, 0
      %v2059 = vsel %vm373, %v2021, 0
      %v2062 = vsel %vm373, %v2029, 0
      %v2065 = vsel %vm373, %v2037, 0
      %v2068 = vsel %vm373, %v2045, 0
      %v2071 = vsel %vm398, %v1977, 0
      %2073 = vmatprep.subr.bf16.mxu0 0
      %2074 = vmatpush1.bf16.msra.mxu0 %v2071
      %2075 = vmatprep.subr.bf16.mxu0 0
      %2076 = vmatpush1.bf16.msra.mxu0 0
      %2077 = vmatprep.subr.bf16.mxu0 0
      %2078 = vmatpush1.bf16.msra.mxu0 0
      %2079 = vmatprep.subr.bf16.mxu0 0
      %2080 = vmatpush1.bf16.msra.mxu0 0
      %2081 = vmatprep.subr.bf16.mxu0 0
      %2082 = vmatpush1.bf16.msra.mxu0 0
      %2083 = vmatprep.subr.bf16.mxu0 0
      %2084 = vmatpush1.bf16.msra.mxu0 0
      %2085 = vmatprep.subr.bf16.mxu0 0
      %2086 = vmatpush1.bf16.msra.mxu0 0
      %2087 = vmatprep.subr.bf16.mxu0 0
      %2088 = vmatpush1.bf16.msra.mxu0 0
      %2089 = vmatprep.subr.bf16.mxu0 0
      %2090 = vmatpush1.bf16.msra.mxu0 0
      %2091 = vmatprep.subr.bf16.mxu0 0
      %2092 = vmatpush1.bf16.msra.mxu0 0
      %2093 = vmatprep.subr.bf16.mxu0 0
      %2094 = vmatpush1.bf16.msra.mxu0 0
      %2095 = vmatprep.subr.bf16.mxu0 0
      %2096 = vmatpush1.bf16.msra.mxu0 0
      %2097 = vmatprep.subr.bf16.mxu0 0
      %2098 = vmatpush1.bf16.msra.mxu0 0
      %2099 = vmatprep.subr.bf16.mxu0 0
      %2100 = vmatpush1.bf16.msra.mxu0 0
      %2101 = vmatprep.subr.bf16.mxu0 0
      %2102 = vmatpush1.bf16.msra.mxu0 0
      %2103 = vmatprep.subr.bf16.mxu0 0
      %2104 = vmatpush1.bf16.msra.mxu0 0
      %2105 = vmatprep.mubr.bf16.mxu0 0
      %2106 = vmatmul.mubr.bf16.gmra.mrb[0].mxu0 %v2047
      %v2107 = vpop.f32.mrb[0].mxu0
      %v2108 = vadd.f32 0.0, %v2107
      %v2109 = vpop.f32.mrb[0].mxu0
      %v2110 = vpop.f32.mrb[0].mxu0
      %v2111 = vadd.f32 0.0, %v2110
      %v2112 = vpop.f32.mrb[0].mxu0
      %2113 = vmatprep.mubr.bf16.mxu0 0
      %2114 = vmatmul.mubr.bf16.gmra.mrb[0].mxu0 %v2050
      %v2115 = vpop.f32.mrb[0].mxu0
      %v2116 = vadd.f32 0.0, %v2115
      %v2117 = vpop.f32.mrb[0].mxu0
      %v2118 = vpop.f32.mrb[0].mxu0
      %v2119 = vadd.f32 0.0, %v2118
      %v2120 = vpop.f32.mrb[0].mxu0
      %2121 = vmatprep.mubr.bf16.mxu0 0
      %2122 = vmatmul.mubr.bf16.gmra.mrb[0].mxu0 %v2053
      %v2123 = vpop.f32.mrb[0].mxu0
      %v2124 = vadd.f32 0.0, %v2123
      %v2125 = vpop.f32.mrb[0].mxu0
      %v2126 = vpop.f32.mrb[0].mxu0
      %v2127 = vadd.f32 0.0, %v2126
      %v2128 = vpop.f32.mrb[0].mxu0
      %2129 = vmatprep.mubr.bf16.mxu0 0
      %2130 = vmatmul.mubr.bf16.gmra.mrb[0].mxu0 %v2056
      %v2131 = vpop.f32.mrb[0].mxu0
      %v2132 = vadd.f32 0.0, %v2131
      %v2133 = vpop.f32.mrb[0].mxu0
      %v2134 = vpop.f32.mrb[0].mxu0
      %v2135 = vadd.f32 0.0, %v2134
      %v2136 = vpop.f32.mrb[0].mxu0
      %2137 = vmatprep.mubr.bf16.mxu0 0
      %2138 = vmatmul.mubr.bf16.gmra.mrb[0].mxu0 %v2059
      %v2139 = vpop.f32.mrb[0].mxu0
      %v2140 = vadd.f32 0.0, %v2139
      %v2141 = vpop.f32.mrb[0].mxu0
      %v2142 = vpop.f32.mrb[0].mxu0
      %v2143 = vadd.f32 0.0, %v2142
      %v2144 = vpop.f32.mrb[0].mxu0
      %2145 = vmatprep.mubr.bf16.mxu0 0
      %2146 = vmatmul.mubr.bf16.gmra.mrb[0].mxu0 %v2062
      %v2147 = vpop.f32.mrb[0].mxu0
      %v2148 = vadd.f32 0.0, %v2147
      %v2149 = vpop.f32.mrb[0].mxu0
      %v2150 = vpop.f32.mrb[0].mxu0
      %v2151 = vadd.f32 0.0, %v2150
      %v2152 = vpop.f32.mrb[0].mxu0
      %2153 = vmatprep.mubr.bf16.mxu0 0
      %2154 = vmatmul.mubr.bf16.gmra.mrb[0].mxu0 %v2065
      %v2155 = vpop.f32.mrb[0].mxu0
      %v2156 = vadd.f32 0.0, %v2155
      %v2157 = vpop.f32.mrb[0].mxu0
      %v2158 = vpop.f32.mrb[0].mxu0
      %v2159 = vadd.f32 0.0, %v2158
      %v2160 = vpop.f32.mrb[0].mxu0
      %2161 = vmatprep.mubr.bf16.mxu0 0
      %2162 = vmatmul.mubr.bf16.gmra.mrb[0].mxu0 %v2068
      %v2163 = vpop.f32.mrb[0].mxu0
      %v2164 = vadd.f32 0.0, %v2163
      %v2165 = vpop.f32.mrb[0].mxu0
      %v2166 = vpop.f32.mrb[0].mxu0
      %v2167 = vadd.f32 0.0, %v2166
      %v2168 = vpop.f32.mrb[0].mxu0
      %2169 = vdwg.mxu0
      %v2170 = vadd.f32 %v1932, %v2108
      %v2171 = vadd.f32 %v1933, %v2111
      %v2172 = vadd.f32 %v1934, %v2116
      %v2173 = vadd.f32 %v1935, %v2119
      %v2174 = vadd.f32 %v1936, %v2124
      %v2175 = vadd.f32 %v1937, %v2127
      %v2176 = vadd.f32 %v1938, %v2132
      %v2177 = vadd.f32 %v1939, %v2135
      %v2178 = vadd.f32 %v1940, %v2140
      %v2179 = vadd.f32 %v1941, %v2143
      %v2180 = vadd.f32 %v1942, %v2148
      %v2181 = vadd.f32 %v1943, %v2151
      %v2182 = vadd.f32 %v1944, %v2156
      %v2183 = vadd.f32 %v1945, %v2159
      %v2184 = vadd.f32 %v1946, %v2164
      %v2185 = vadd.f32 %v1947, %v2167
      %s2186 = scalar_lea.vmem %s1, 20
      %v2187 = vld [vmem:[%s2186] sm:$0x3]
      %v2197 = vrot.slane %v1967, 1
      %v2198 = vrot.slane %v1968, 1
      %v2199 = vsel %vm626, %v2197, %v2198
      %v2200 = vrot.slane %v1969, 1
      %v2201 = vsel %vm626, %v2198, %v2200
      %v2202 = vrot.slane %v1970, 1
      %v2203 = vsel %vm626, %v2200, %v2202
      %v2204 = vrot.slane %v1971, 1
      %v2205 = vsel %vm626, %v2202, %v2204
      %v2206 = vrot.slane %v1972, 1
      %v2207 = vsel %vm626, %v2204, %v2206
      %v2208 = vrot.slane %v1973, 1
      %v2209 = vsel %vm626, %v2206, %v2208
      %v2210 = vrot.slane %v1974, 1
      %v2211 = vsel %vm626, %v2208, %v2210
      %v2212 = vrot.slane %v1975, 1
      %v2213 = vsel %vm626, %v2210, %v2212
      %v2215 = vsel %vm373, %v2199, 0
      %v2218 = vsel %vm373, %v2201, 0
      %v2221 = vsel %vm373, %v2203, 0
      %v2224 = vsel %vm373, %v2205, 0
      %v2227 = vsel %vm373, %v2207, 0
      %v2230 = vsel %vm373, %v2209, 0
      %v2233 = vsel %vm373, %v2211, 0
      %v2236 = vsel %vm373, %v2213, 0
      %v2239 = vsel %vm398, %v2187, 0
      %2241 = vmatprep.subr.bf16.mxu0 0
      %2242 = vmatpush1.bf16.msra.mxu0 %v2239
      %2243 = vmatprep.subr.bf16.mxu0 0
      %2244 = vmatpush1.bf16.msra.mxu0 0
      %2245 = vmatprep.subr.bf16.mxu0 0
      %2246 = vmatpush1.bf16.msra.mxu0 0
      %2247 = vmatprep.subr.bf16.mxu0 0
      %2248 = vmatpush1.bf16.msra.mxu0 0
      %2249 = vmatprep.subr.bf16.mxu0 0
      %2250 = vmatpush1.bf16.msra.mxu0 0
      %2251 = vmatprep.subr.bf16.mxu0 0
      %2252 = vmatpush1.bf16.msra.mxu0 0
      %2253 = vmatprep.subr.bf16.mxu0 0
      %2254 = vmatpush1.bf16.msra.mxu0 0
      %2255 = vmatprep.subr.bf16.mxu0 0
      %2256 = vmatpush1.bf16.msra.mxu0 0
      %2257 = vmatprep.subr.bf16.mxu0 0
      %2258 = vmatpush1.bf16.msra.mxu0 0
      %2259 = vmatprep.subr.bf16.mxu0 0
      %2260 = vmatpush1.bf16.msra.mxu0 0
      %2261 = vmatprep.subr.bf16.mxu0 0
      %2262 = vmatpush1.bf16.msra.mxu0 0
      %2263 = vmatprep.subr.bf16.mxu0 0
      %2264 = vmatpush1.bf16.msra.mxu0 0
      %2265 = vmatprep.subr.bf16.mxu0 0
      %2266 = vmatpush1.bf16.msra.mxu0 0
      %2267 = vmatprep.subr.bf16.mxu0 0
      %2268 = vmatpush1.bf16.msra.mxu0 0
      %2269 = vmatprep.subr.bf16.mxu0 0
      %2270 = vmatpush1.bf16.msra.mxu0 0
      %2271 = vmatprep.subr.bf16.mxu0 0
      %2272 = vmatpush1.bf16.msra.mxu0 0
      %2273 = vmatprep.mubr.bf16.mxu0 0
      %2274 = vmatmul.mubr.bf16.gmra.mrb[0].mxu0 %v2215
      %v2275 = vpop.f32.mrb[0].mxu0
      %v2276 = vadd.f32 0.0, %v2275
      %v2277 = vpop.f32.mrb[0].mxu0
      %v2278 = vpop.f32.mrb[0].mxu0
      %v2279 = vadd.f32 0.0, %v2278
      %v2280 = vpop.f32.mrb[0].mxu0
      %2281 = vmatprep.mubr.bf16.mxu0 0
      %2282 = vmatmul.mubr.bf16.gmra.mrb[0].mxu0 %v2218
      %v2283 = vpop.f32.mrb[0].mxu0
      %v2284 = vadd.f32 0.0, %v2283
      %v2285 = vpop.f32.mrb[0].mxu0
      %v2286 = vpop.f32.mrb[0].mxu0
      %v2287 = vadd.f32 0.0, %v2286
      %v2288 = vpop.f32.mrb[0].mxu0
      %2289 = vmatprep.mubr.bf16.mxu0 0
      %2290 = vmatmul.mubr.bf16.gmra.mrb[0].mxu0 %v2221
      %v2291 = vpop.f32.mrb[0].mxu0
      %v2292 = vadd.f32 0.0, %v2291
      %v2293 = vpop.f32.mrb[0].mxu0
      %v2294 = vpop.f32.mrb[0].mxu0
      %v2295 = vadd.f32 0.0, %v2294
      %v2296 = vpop.f32.mrb[0].mxu0
      %2297 = vmatprep.mubr.bf16.mxu0 0
      %2298 = vmatmul.mubr.bf16.gmra.mrb[0].mxu0 %v2224
      %v2299 = vpop.f32.mrb[0].mxu0
      %v2300 = vadd.f32 0.0, %v2299
      %v2301 = vpop.f32.mrb[0].mxu0
      %v2302 = vpop.f32.mrb[0].mxu0
      %v2303 = vadd.f32 0.0, %v2302
      %v2304 = vpop.f32.mrb[0].mxu0
      %2305 = vmatprep.mubr.bf16.mxu0 0
      %2306 = vmatmul.mubr.bf16.gmra.mrb[0].mxu0 %v2227
      %v2307 = vpop.f32.mrb[0].mxu0
      %v2308 = vadd.f32 0.0, %v2307
      %v2309 = vpop.f32.mrb[0].mxu0
      %v2310 = vpop.f32.mrb[0].mxu0
      %v2311 = vadd.f32 0.0, %v2310
      %v2312 = vpop.f32.mrb[0].mxu0
      %2313 = vmatprep.mubr.bf16.mxu0 0
      %2314 = vmatmul.mubr.bf16.gmra.mrb[0].mxu0 %v2230
      %v2315 = vpop.f32.mrb[0].mxu0
      %v2316 = vadd.f32 0.0, %v2315
      %v2317 = vpop.f32.mrb[0].mxu0
      %v2318 = vpop.f32.mrb[0].mxu0
      %v2319 = vadd.f32 0.0, %v2318
      %v2320 = vpop.f32.mrb[0].mxu0
      %2321 = vmatprep.mubr.bf16.mxu0 0
      %2322 = vmatmul.mubr.bf16.gmra.mrb[0].mxu0 %v2233
      %v2323 = vpop.f32.mrb[0].mxu0
      %v2324 = vadd.f32 0.0, %v2323
      %v2325 = vpop.f32.mrb[0].mxu0
      %v2326 = vpop.f32.mrb[0].mxu0
      %v2327 = vadd.f32 0.0, %v2326
      %v2328 = vpop.f32.mrb[0].mxu0
      %2329 = vmatprep.mubr.bf16.mxu0 0
      %2330 = vmatmul.mubr.bf16.gmra.mrb[0].mxu0 %v2236
      %v2331 = vpop.f32.mrb[0].mxu0
      %v2332 = vadd.f32 0.0, %v2331
      %v2333 = vpop.f32.mrb[0].mxu0
      %v2334 = vpop.f32.mrb[0].mxu0
      %v2335 = vadd.f32 0.0, %v2334
      %v2336 = vpop.f32.mrb[0].mxu0
      %2337 = vdwg.mxu0
      %v2338 = vadd.f32 %v2170, %v2276
      %v2339 = vadd.f32 %v2171, %v2279
      %v2340 = vadd.f32 %v2172, %v2284
      %v2341 = vadd.f32 %v2173, %v2287
      %v2342 = vadd.f32 %v2174, %v2292
      %v2343 = vadd.f32 %v2175, %v2295
      %v2344 = vadd.f32 %v2176, %v2300
      %v2345 = vadd.f32 %v2177, %v2303
      %v2346 = vadd.f32 %v2178, %v2308
      %v2347 = vadd.f32 %v2179, %v2311
      %v2348 = vadd.f32 %v2180, %v2316
      %v2349 = vadd.f32 %v2181, %v2319
      %v2350 = vadd.f32 %v2182, %v2324
      %v2351 = vadd.f32 %v2183, %v2327
      %v2352 = vadd.f32 %v2184, %v2332
      %v2353 = vadd.f32 %v2185, %v2335
      %s2354 = scalar_lea.vmem %s1, 22
      %v2355 = vld [vmem:[%s2354] sm:$0x3]
      %v2356 = vrot.slane %v1979, 1
      %v2357 = vrot.slane %v1981, 2
      %v2358 = vor.u32 %v2356, %v2357
      %v2359 = vrot.slane %v1990, 1
      %v2360 = vrot.slane %v1986, 2
      %v2361 = vor.u32 %v2359, %v2360
      %v2362 = vsel %vm1192, %v2358, %v2361
      %v2363 = vrot.slane %v1998, 1
      %v2364 = vrot.slane %v1994, 2
      %v2365 = vor.u32 %v2363, %v2364
      %v2366 = vsel %vm1192, %v2361, %v2365
      %v2367 = vrot.slane %v2006, 1
      %v2368 = vrot.slane %v2002, 2
      %v2369 = vor.u32 %v2367, %v2368
      %v2370 = vsel %vm1192, %v2365, %v2369
      %v2371 = vrot.slane %v2014, 1
      %v2372 = vrot.slane %v2010, 2
      %v2373 = vor.u32 %v2371, %v2372
      %v2374 = vsel %vm1192, %v2369, %v2373
      %v2375 = vrot.slane %v2022, 1
      %v2376 = vrot.slane %v2018, 2
      %v2377 = vor.u32 %v2375, %v2376
      %v2378 = vsel %vm1192, %v2373, %v2377
      %v2379 = vrot.slane %v2030, 1
      %v2380 = vrot.slane %v2026, 2
      %v2381 = vor.u32 %v2379, %v2380
      %v2382 = vsel %vm1192, %v2377, %v2381
      %v2383 = vrot.slane %v2038, 1
      %v2384 = vrot.slane %v2034, 2
      %v2385 = vor.u32 %v2383, %v2384
      %v2386 = vsel %vm1192, %v2381, %v2385
      %v2387 = vshrl.u32 %v1975, 16
      %v2389 = vrot.slane %v2387, 1
      %v2390 = vrot.slane %v2042, 2
      %v2391 = vor.u32 %v2389, %v2390
      %v2392 = vsel %vm1192, %v2385, %v2391
      %v2394 = vsel %vm373, %v2362, 0
      %v2397 = vsel %vm373, %v2366, 0
      %v2400 = vsel %vm373, %v2370, 0
      %v2403 = vsel %vm373, %v2374, 0
      %v2406 = vsel %vm373, %v2378, 0
      %v2409 = vsel %vm373, %v2382, 0
      %v2412 = vsel %vm373, %v2386, 0
      %v2415 = vsel %vm373, %v2392, 0
      %v2418 = vsel %vm398, %v2355, 0
      %2420 = vmatprep.subr.bf16.mxu0 0
      %2421 = vmatpush1.bf16.msra.mxu0 %v2418
      %2422 = vmatprep.subr.bf16.mxu0 0
      %2423 = vmatpush1.bf16.msra.mxu0 0
      %2424 = vmatprep.subr.bf16.mxu0 0
      %2425 = vmatpush1.bf16.msra.mxu0 0
      %2426 = vmatprep.subr.bf16.mxu0 0
      %2427 = vmatpush1.bf16.msra.mxu0 0
      %2428 = vmatprep.subr.bf16.mxu0 0
      %2429 = vmatpush1.bf16.msra.mxu0 0
      %2430 = vmatprep.subr.bf16.mxu0 0
      %2431 = vmatpush1.bf16.msra.mxu0 0
      %2432 = vmatprep.subr.bf16.mxu0 0
      %2433 = vmatpush1.bf16.msra.mxu0 0
      %2434 = vmatprep.subr.bf16.mxu0 0
      %2435 = vmatpush1.bf16.msra.mxu0 0
      %2436 = vmatprep.subr.bf16.mxu0 0
      %2437 = vmatpush1.bf16.msra.mxu0 0
      %2438 = vmatprep.subr.bf16.mxu0 0
      %2439 = vmatpush1.bf16.msra.mxu0 0
      %2440 = vmatprep.subr.bf16.mxu0 0
      %2441 = vmatpush1.bf16.msra.mxu0 0
      %2442 = vmatprep.subr.bf16.mxu0 0
      %2443 = vmatpush1.bf16.msra.mxu0 0
      %2444 = vmatprep.subr.bf16.mxu0 0
      %2445 = vmatpush1.bf16.msra.mxu0 0
      %2446 = vmatprep.subr.bf16.mxu0 0
      %2447 = vmatpush1.bf16.msra.mxu0 0
      %2448 = vmatprep.subr.bf16.mxu0 0
      %2449 = vmatpush1.bf16.msra.mxu0 0
      %2450 = vmatprep.subr.bf16.mxu0 0
      %2451 = vmatpush1.bf16.msra.mxu0 0
      %2452 = vmatprep.mubr.bf16.mxu0 0
      %2453 = vmatmul.mubr.bf16.gmra.mrb[0].mxu0 %v2394
      %v2454 = vpop.f32.mrb[0].mxu0
      %v2455 = vadd.f32 0.0, %v2454
      %v2456 = vpop.f32.mrb[0].mxu0
      %v2457 = vpop.f32.mrb[0].mxu0
      %v2458 = vadd.f32 0.0, %v2457
      %v2459 = vpop.f32.mrb[0].mxu0
      %2460 = vmatprep.mubr.bf16.mxu0 0
      %2461 = vmatmul.mubr.bf16.gmra.mrb[0].mxu0 %v2397
      %v2462 = vpop.f32.mrb[0].mxu0
      %v2463 = vadd.f32 0.0, %v2462
      %v2464 = vpop.f32.mrb[0].mxu0
      %v2465 = vpop.f32.mrb[0].mxu0
      %v2466 = vadd.f32 0.0, %v2465
      %v2467 = vpop.f32.mrb[0].mxu0
      %2468 = vmatprep.mubr.bf16.mxu0 0
      %2469 = vmatmul.mubr.bf16.gmra.mrb[0].mxu0 %v2400
      %v2470 = vpop.f32.mrb[0].mxu0
      %v2471 = vadd.f32 0.0, %v2470
      %v2472 = vpop.f32.mrb[0].mxu0
      %v2473 = vpop.f32.mrb[0].mxu0
      %v2474 = vadd.f32 0.0, %v2473
      %v2475 = vpop.f32.mrb[0].mxu0
      %2476 = vmatprep.mubr.bf16.mxu0 0
      %2477 = vmatmul.mubr.bf16.gmra.mrb[0].mxu0 %v2403
      %v2478 = vpop.f32.mrb[0].mxu0
      %v2479 = vadd.f32 0.0, %v2478
      %v2480 = vpop.f32.mrb[0].mxu0
      %v2481 = vpop.f32.mrb[0].mxu0
      %v2482 = vadd.f32 0.0, %v2481
      %v2483 = vpop.f32.mrb[0].mxu0
      %2484 = vmatprep.mubr.bf16.mxu0 0
      %2485 = vmatmul.mubr.bf16.gmra.mrb[0].mxu0 %v2406
      %v2486 = vpop.f32.mrb[0].mxu0
      %v2487 = vadd.f32 0.0, %v2486
      %v2488 = vpop.f32.mrb[0].mxu0
      %v2489 = vpop.f32.mrb[0].mxu0
      %v2490 = vadd.f32 0.0, %v2489
      %v2491 = vpop.f32.mrb[0].mxu0
      %2492 = vmatprep.mubr.bf16.mxu0 0
      %2493 = vmatmul.mubr.bf16.gmra.mrb[0].mxu0 %v2409
      %v2494 = vpop.f32.mrb[0].mxu0
      %v2495 = vadd.f32 0.0, %v2494
      %v2496 = vpop.f32.mrb[0].mxu0
      %v2497 = vpop.f32.mrb[0].mxu0
      %v2498 = vadd.f32 0.0, %v2497
      %v2499 = vpop.f32.mrb[0].mxu0
      %2500 = vmatprep.mubr.bf16.mxu0 0
      %2501 = vmatmul.mubr.bf16.gmra.mrb[0].mxu0 %v2412
      %v2502 = vpop.f32.mrb[0].mxu0
      %v2503 = vadd.f32 0.0, %v2502
      %v2504 = vpop.f32.mrb[0].mxu0
      %v2505 = vpop.f32.mrb[0].mxu0
      %v2506 = vadd.f32 0.0, %v2505
      %v2507 = vpop.f32.mrb[0].mxu0
      %2508 = vmatprep.mubr.bf16.mxu0 0
      %2509 = vmatmul.mubr.bf16.gmra.mrb[0].mxu0 %v2415
      %v2510 = vpop.f32.mrb[0].mxu0
      %v2511 = vadd.f32 0.0, %v2510
      %v2512 = vpop.f32.mrb[0].mxu0
      %v2513 = vpop.f32.mrb[0].mxu0
      %v2514 = vadd.f32 0.0, %v2513
      %v2515 = vpop.f32.mrb[0].mxu0
      %2516 = vdwg.mxu0
      %v2517 = vadd.f32 %v2338, %v2455
      %v2518 = vadd.f32 %v2339, %v2458
      %v2519 = vadd.f32 %v2340, %v2463
      %v2520 = vadd.f32 %v2341, %v2466
      %v2521 = vadd.f32 %v2342, %v2471
      %v2522 = vadd.f32 %v2343, %v2474
      %v2523 = vadd.f32 %v2344, %v2479
      %v2524 = vadd.f32 %v2345, %v2482
      %v2525 = vadd.f32 %v2346, %v2487
      %v2526 = vadd.f32 %v2347, %v2490
      %v2527 = vadd.f32 %v2348, %v2495
      %v2528 = vadd.f32 %v2349, %v2498
      %v2529 = vadd.f32 %v2350, %v2503
      %v2530 = vadd.f32 %v2351, %v2506
      %v2531 = vadd.f32 %v2352, %v2511
      %v2532 = vadd.f32 %v2353, %v2514
      %s2533 = sadd.s32 %s273, 88
      %s2534 = scalar_lea.vmem %s0, %s2533
      %v2535 = vld [vmem:[%s2534] sm:$0xff]
      %v2536 = vld [vmem:[%s2534 + $0x8] sm:$0xff]
      %v2537 = vld [vmem:[%s2534 + $0x10] sm:$0xff]
      %v2538 = vld [vmem:[%s2534 + $0x18] sm:$0xff]
      %v2539 = vld [vmem:[%s2534 + $0x20] sm:$0xff]
      %v2540 = vld [vmem:[%s2534 + $0x28] sm:$0xff]
      %v2541 = vld [vmem:[%s2534 + $0x30] sm:$0xff]
      %v2542 = vld [vmem:[%s2534 + $0x38] sm:$0xff]
      %v2543 = vld [vmem:[%s2534 + $0x40] sm:$0xff]
      %v2544 = vld [vmem:[%s2534 + $0x48] sm:$0xff]
      %v2545 = vld [vmem:[%s2534 + $0x50] sm:$0xff]
      %v2546 = vld [vmem:[%s2534 + $0x58] sm:$0xff]
      %v2547 = vld [vmem:[%s2534 + $0x60] sm:$0xff]
      %v2548 = vld [vmem:[%s2534 + $0x68] sm:$0xff]
      %v2549 = vld [vmem:[%s2534 + $0x70] sm:$0xff]
      %v2550 = vld [vmem:[%s2534 + $0x78] sm:$0xff]
      %v2551 = vld [vmem:[%s2534 + $0x80] sm:$0xff]
      %v2552 = vpack.c.bf16 %v2536, %v2535
      %v2553 = vpack.c.bf16 %v2538, %v2537
      %v2554 = vpack.c.bf16 %v2540, %v2539
      %v2555 = vpack.c.bf16 %v2542, %v2541
      %v2556 = vpack.c.bf16 %v2544, %v2543
      %v2557 = vpack.c.bf16 %v2546, %v2545
      %v2558 = vpack.c.bf16 %v2548, %v2547
      %v2559 = vpack.c.bf16 %v2550, %v2549
      %v2560 = vpack.c.bf16 %v2551, %v2551
      %s2561 = scalar_lea.vmem %s1, 24
      %v2562 = vld [vmem:[%s2561] sm:$0x3]
      %v2572 = vrot.slane %v2552, 1
      %v2573 = vrot.slane %v2553, 1
      %v2574 = vsel %vm626, %v2572, %v2573
      %v2575 = vrot.slane %v2554, 1
      %v2576 = vsel %vm626, %v2573, %v2575
      %v2577 = vrot.slane %v2555, 1
      %v2578 = vsel %vm626, %v2575, %v2577
      %v2579 = vrot.slane %v2556, 1
      %v2580 = vsel %vm626, %v2577, %v2579
      %v2581 = vrot.slane %v2557, 1
      %v2582 = vsel %vm626, %v2579, %v2581
      %v2583 = vrot.slane %v2558, 1
      %v2584 = vsel %vm626, %v2581, %v2583
      %v2585 = vrot.slane %v2559, 1
      %v2586 = vsel %vm626, %v2583, %v2585
      %v2587 = vrot.slane %v2560, 1
      %v2588 = vsel %vm626, %v2585, %v2587
      %v2590 = vsel %vm373, %v2574, 0
      %v2593 = vsel %vm373, %v2576, 0
      %v2596 = vsel %vm373, %v2578, 0
      %v2599 = vsel %vm373, %v2580, 0
      %v2602 = vsel %vm373, %v2582, 0
      %v2605 = vsel %vm373, %v2584, 0
      %v2608 = vsel %vm373, %v2586, 0
      %v2611 = vsel %vm373, %v2588, 0
      %v2614 = vsel %vm398, %v2562, 0
      %2616 = vmatprep.subr.bf16.mxu0 0
      %2617 = vmatpush1.bf16.msra.mxu0 %v2614
      %2618 = vmatprep.subr.bf16.mxu0 0
      %2619 = vmatpush1.bf16.msra.mxu0 0
      %2620 = vmatprep.subr.bf16.mxu0 0
      %2621 = vmatpush1.bf16.msra.mxu0 0
      %2622 = vmatprep.subr.bf16.mxu0 0
      %2623 = vmatpush1.bf16.msra.mxu0 0
      %2624 = vmatprep.subr.bf16.mxu0 0
      %2625 = vmatpush1.bf16.msra.mxu0 0
      %2626 = vmatprep.subr.bf16.mxu0 0
      %2627 = vmatpush1.bf16.msra.mxu0 0
      %2628 = vmatprep.subr.bf16.mxu0 0
      %2629 = vmatpush1.bf16.msra.mxu0 0
      %2630 = vmatprep.subr.bf16.mxu0 0
      %2631 = vmatpush1.bf16.msra.mxu0 0
      %2632 = vmatprep.subr.bf16.mxu0 0
      %2633 = vmatpush1.bf16.msra.mxu0 0
      %2634 = vmatprep.subr.bf16.mxu0 0
      %2635 = vmatpush1.bf16.msra.mxu0 0
      %2636 = vmatprep.subr.bf16.mxu0 0
      %2637 = vmatpush1.bf16.msra.mxu0 0
      %2638 = vmatprep.subr.bf16.mxu0 0
      %2639 = vmatpush1.bf16.msra.mxu0 0
      %2640 = vmatprep.subr.bf16.mxu0 0
      %2641 = vmatpush1.bf16.msra.mxu0 0
      %2642 = vmatprep.subr.bf16.mxu0 0
      %2643 = vmatpush1.bf16.msra.mxu0 0
      %2644 = vmatprep.subr.bf16.mxu0 0
      %2645 = vmatpush1.bf16.msra.mxu0 0
      %2646 = vmatprep.subr.bf16.mxu0 0
      %2647 = vmatpush1.bf16.msra.mxu0 0
      %2648 = vmatprep.mubr.bf16.mxu0 0
      %2649 = vmatmul.mubr.bf16.gmra.mrb[0].mxu0 %v2590
      %v2650 = vpop.f32.mrb[0].mxu0
      %v2651 = vadd.f32 0.0, %v2650
      %v2652 = vpop.f32.mrb[0].mxu0
      %v2653 = vpop.f32.mrb[0].mxu0
      %v2654 = vadd.f32 0.0, %v2653
      %v2655 = vpop.f32.mrb[0].mxu0
      %2656 = vmatprep.mubr.bf16.mxu0 0
      %2657 = vmatmul.mubr.bf16.gmra.mrb[0].mxu0 %v2593
      %v2658 = vpop.f32.mrb[0].mxu0
      %v2659 = vadd.f32 0.0, %v2658
      %v2660 = vpop.f32.mrb[0].mxu0
      %v2661 = vpop.f32.mrb[0].mxu0
      %v2662 = vadd.f32 0.0, %v2661
      %v2663 = vpop.f32.mrb[0].mxu0
      %2664 = vmatprep.mubr.bf16.mxu0 0
      %2665 = vmatmul.mubr.bf16.gmra.mrb[0].mxu0 %v2596
      %v2666 = vpop.f32.mrb[0].mxu0
      %v2667 = vadd.f32 0.0, %v2666
      %v2668 = vpop.f32.mrb[0].mxu0
      %v2669 = vpop.f32.mrb[0].mxu0
      %v2670 = vadd.f32 0.0, %v2669
      %v2671 = vpop.f32.mrb[0].mxu0
      %2672 = vmatprep.mubr.bf16.mxu0 0
      %2673 = vmatmul.mubr.bf16.gmra.mrb[0].mxu0 %v2599
      %v2674 = vpop.f32.mrb[0].mxu0
      %v2675 = vadd.f32 0.0, %v2674
      %v2676 = vpop.f32.mrb[0].mxu0
      %v2677 = vpop.f32.mrb[0].mxu0
      %v2678 = vadd.f32 0.0, %v2677
      %v2679 = vpop.f32.mrb[0].mxu0
      %2680 = vmatprep.mubr.bf16.mxu0 0
      %2681 = vmatmul.mubr.bf16.gmra.mrb[0].mxu0 %v2602
      %v2682 = vpop.f32.mrb[0].mxu0
      %v2683 = vadd.f32 0.0, %v2682
      %v2684 = vpop.f32.mrb[0].mxu0
      %v2685 = vpop.f32.mrb[0].mxu0
      %v2686 = vadd.f32 0.0, %v2685
      %v2687 = vpop.f32.mrb[0].mxu0
      %2688 = vmatprep.mubr.bf16.mxu0 0
      %2689 = vmatmul.mubr.bf16.gmra.mrb[0].mxu0 %v2605
      %v2690 = vpop.f32.mrb[0].mxu0
      %v2691 = vadd.f32 0.0, %v2690
      %v2692 = vpop.f32.mrb[0].mxu0
      %v2693 = vpop.f32.mrb[0].mxu0
      %v2694 = vadd.f32 0.0, %v2693
      %v2695 = vpop.f32.mrb[0].mxu0
      %2696 = vmatprep.mubr.bf16.mxu0 0
      %2697 = vmatmul.mubr.bf16.gmra.mrb[0].mxu0 %v2608
      %v2698 = vpop.f32.mrb[0].mxu0
      %v2699 = vadd.f32 0.0, %v2698
      %v2700 = vpop.f32.mrb[0].mxu0
      %v2701 = vpop.f32.mrb[0].mxu0
      %v2702 = vadd.f32 0.0, %v2701
      %v2703 = vpop.f32.mrb[0].mxu0
      %2704 = vmatprep.mubr.bf16.mxu0 0
      %2705 = vmatmul.mubr.bf16.gmra.mrb[0].mxu0 %v2611
      %v2706 = vpop.f32.mrb[0].mxu0
      %v2707 = vadd.f32 0.0, %v2706
      %v2708 = vpop.f32.mrb[0].mxu0
      %v2709 = vpop.f32.mrb[0].mxu0
      %v2710 = vadd.f32 0.0, %v2709
      %v2711 = vpop.f32.mrb[0].mxu0
      %2712 = vdwg.mxu0
      %v2713 = vadd.f32 %v2517, %v2651
      %v2714 = vadd.f32 %v2518, %v2654
      %v2715 = vadd.f32 %v2519, %v2659
      %v2716 = vadd.f32 %v2520, %v2662
      %v2717 = vadd.f32 %v2521, %v2667
      %v2718 = vadd.f32 %v2522, %v2670
      %v2719 = vadd.f32 %v2523, %v2675
      %v2720 = vadd.f32 %v2524, %v2678
      %v2721 = vadd.f32 %v2525, %v2683
      %v2722 = vadd.f32 %v2526, %v2686
      %v2723 = vadd.f32 %v2527, %v2691
      %v2724 = vadd.f32 %v2528, %v2694
      %v2725 = vadd.f32 %v2529, %v2699
      %v2726 = vadd.f32 %v2530, %v2702
      %v2727 = vadd.f32 %v2531, %v2707
      %v2728 = vadd.f32 %v2532, %v2710
      %s2729 = scalar_lea.vmem %s1, 26
      %v2730 = vld [vmem:[%s2729] sm:$0x3]
      %v2732 = vshrl.u32 %v2552, 16
      %v2734 = vrot.slane %v2732, 1
      %v2735 = vshll.u32 %v2552, 16
      %v2737 = vrot.slane %v2735, 2
      %v2738 = vor.u32 %v2734, %v2737
      %v2740 = vshrl.u32 %v2553, 16
      %v2742 = vrot.slane %v2740, 1
      %v2743 = vshll.u32 %v2553, 16
      %v2745 = vrot.slane %v2743, 2
      %v2746 = vor.u32 %v2742, %v2745
      %v2747 = vsel %vm1192, %v2738, %v2746
      %v2749 = vshrl.u32 %v2554, 16
      %v2751 = vrot.slane %v2749, 1
      %v2752 = vshll.u32 %v2554, 16
      %v2754 = vrot.slane %v2752, 2
      %v2755 = vor.u32 %v2751, %v2754
      %v2756 = vsel %vm1192, %v2746, %v2755
      %v2758 = vshrl.u32 %v2555, 16
      %v2760 = vrot.slane %v2758, 1
      %v2761 = vshll.u32 %v2555, 16
      %v2763 = vrot.slane %v2761, 2
      %v2764 = vor.u32 %v2760, %v2763
      %v2765 = vsel %vm1192, %v2755, %v2764
      %v2767 = vshrl.u32 %v2556, 16
      %v2769 = vrot.slane %v2767, 1
      %v2770 = vshll.u32 %v2556, 16
      %v2772 = vrot.slane %v2770, 2
      %v2773 = vor.u32 %v2769, %v2772
      %v2774 = vsel %vm1192, %v2764, %v2773
      %v2776 = vshrl.u32 %v2557, 16
      %v2778 = vrot.slane %v2776, 1
      %v2779 = vshll.u32 %v2557, 16
      %v2781 = vrot.slane %v2779, 2
      %v2782 = vor.u32 %v2778, %v2781
      %v2783 = vsel %vm1192, %v2773, %v2782
      %v2785 = vshrl.u32 %v2558, 16
      %v2787 = vrot.slane %v2785, 1
      %v2788 = vshll.u32 %v2558, 16
      %v2790 = vrot.slane %v2788, 2
      %v2791 = vor.u32 %v2787, %v2790
      %v2792 = vsel %vm1192, %v2782, %v2791
      %v2794 = vshrl.u32 %v2559, 16
      %v2796 = vrot.slane %v2794, 1
      %v2797 = vshll.u32 %v2559, 16
      %v2799 = vrot.slane %v2797, 2
      %v2800 = vor.u32 %v2796, %v2799
      %v2801 = vsel %vm1192, %v2791, %v2800
      %v2803 = vshrl.u32 %v2560, 16
      %v2805 = vrot.slane %v2803, 1
      %v2806 = vshll.u32 %v2560, 16
      %v2808 = vrot.slane %v2806, 2
      %v2809 = vor.u32 %v2805, %v2808
      %v2810 = vsel %vm1192, %v2800, %v2809
      %v2812 = vsel %vm373, %v2747, 0
      %v2815 = vsel %vm373, %v2756, 0
      %v2818 = vsel %vm373, %v2765, 0
      %v2821 = vsel %vm373, %v2774, 0
      %v2824 = vsel %vm373, %v2783, 0
      %v2827 = vsel %vm373, %v2792, 0
      %v2830 = vsel %vm373, %v2801, 0
      %v2833 = vsel %vm373, %v2810, 0
      %v2836 = vsel %vm398, %v2730, 0
      %2838 = vmatprep.subr.bf16.mxu0 0
      %2839 = vmatpush1.bf16.msra.mxu0 %v2836
      %2840 = vmatprep.subr.bf16.mxu0 0
      %2841 = vmatpush1.bf16.msra.mxu0 0
      %2842 = vmatprep.subr.bf16.mxu0 0
      %2843 = vmatpush1.bf16.msra.mxu0 0
      %2844 = vmatprep.subr.bf16.mxu0 0
      %2845 = vmatpush1.bf16.msra.mxu0 0
      %2846 = vmatprep.subr.bf16.mxu0 0
      %2847 = vmatpush1.bf16.msra.mxu0 0
      %2848 = vmatprep.subr.bf16.mxu0 0
      %2849 = vmatpush1.bf16.msra.mxu0 0
      %2850 = vmatprep.subr.bf16.mxu0 0
      %2851 = vmatpush1.bf16.msra.mxu0 0
      %2852 = vmatprep.subr.bf16.mxu0 0
      %2853 = vmatpush1.bf16.msra.mxu0 0
      %2854 = vmatprep.subr.bf16.mxu0 0
      %2855 = vmatpush1.bf16.msra.mxu0 0
      %2856 = vmatprep.subr.bf16.mxu0 0
      %2857 = vmatpush1.bf16.msra.mxu0 0
      %2858 = vmatprep.subr.bf16.mxu0 0
      %2859 = vmatpush1.bf16.msra.mxu0 0
      %2860 = vmatprep.subr.bf16.mxu0 0
      %2861 = vmatpush1.bf16.msra.mxu0 0
      %2862 = vmatprep.subr.bf16.mxu0 0
      %2863 = vmatpush1.bf16.msra.mxu0 0
      %2864 = vmatprep.subr.bf16.mxu0 0
      %2865 = vmatpush1.bf16.msra.mxu0 0
      %2866 = vmatprep.subr.bf16.mxu0 0
      %2867 = vmatpush1.bf16.msra.mxu0 0
      %2868 = vmatprep.subr.bf16.mxu0 0
      %2869 = vmatpush1.bf16.msra.mxu0 0
      %2870 = vmatprep.mubr.bf16.mxu0 0
      %2871 = vmatmul.mubr.bf16.gmra.mrb[0].mxu0 %v2812
      %v2872 = vpop.f32.mrb[0].mxu0
      %v2873 = vadd.f32 0.0, %v2872
      %v2874 = vpop.f32.mrb[0].mxu0
      %v2875 = vpop.f32.mrb[0].mxu0
      %v2876 = vadd.f32 0.0, %v2875
      %v2877 = vpop.f32.mrb[0].mxu0
      %2878 = vmatprep.mubr.bf16.mxu0 0
      %2879 = vmatmul.mubr.bf16.gmra.mrb[0].mxu0 %v2815
      %v2880 = vpop.f32.mrb[0].mxu0
      %v2881 = vadd.f32 0.0, %v2880
      %v2882 = vpop.f32.mrb[0].mxu0
      %v2883 = vpop.f32.mrb[0].mxu0
      %v2884 = vadd.f32 0.0, %v2883
      %v2885 = vpop.f32.mrb[0].mxu0
      %2886 = vmatprep.mubr.bf16.mxu0 0
      %2887 = vmatmul.mubr.bf16.gmra.mrb[0].mxu0 %v2818
      %v2888 = vpop.f32.mrb[0].mxu0
      %v2889 = vadd.f32 0.0, %v2888
      %v2890 = vpop.f32.mrb[0].mxu0
      %v2891 = vpop.f32.mrb[0].mxu0
      %v2892 = vadd.f32 0.0, %v2891
      %v2893 = vpop.f32.mrb[0].mxu0
      %2894 = vmatprep.mubr.bf16.mxu0 0
      %2895 = vmatmul.mubr.bf16.gmra.mrb[0].mxu0 %v2821
      %v2896 = vpop.f32.mrb[0].mxu0
      %v2897 = vadd.f32 0.0, %v2896
      %v2898 = vpop.f32.mrb[0].mxu0
      %v2899 = vpop.f32.mrb[0].mxu0
      %v2900 = vadd.f32 0.0, %v2899
      %v2901 = vpop.f32.mrb[0].mxu0
      %2902 = vmatprep.mubr.bf16.mxu0 0
      %2903 = vmatmul.mubr.bf16.gmra.mrb[0].mxu0 %v2824
      %v2904 = vpop.f32.mrb[0].mxu0
      %v2905 = vadd.f32 0.0, %v2904
      %v2906 = vpop.f32.mrb[0].mxu0
      %v2907 = vpop.f32.mrb[0].mxu0
      %v2908 = vadd.f32 0.0, %v2907
      %v2909 = vpop.f32.mrb[0].mxu0
      %2910 = vmatprep.mubr.bf16.mxu0 0
      %2911 = vmatmul.mubr.bf16.gmra.mrb[0].mxu0 %v2827
      %v2912 = vpop.f32.mrb[0].mxu0
      %v2913 = vadd.f32 0.0, %v2912
      %v2914 = vpop.f32.mrb[0].mxu0
      %v2915 = vpop.f32.mrb[0].mxu0
      %v2916 = vadd.f32 0.0, %v2915
      %v2917 = vpop.f32.mrb[0].mxu0
      %2918 = vmatprep.mubr.bf16.mxu0 0
      %2919 = vmatmul.mubr.bf16.gmra.mrb[0].mxu0 %v2830
      %v2920 = vpop.f32.mrb[0].mxu0
      %v2921 = vadd.f32 0.0, %v2920
      %v2922 = vpop.f32.mrb[0].mxu0
      %v2923 = vpop.f32.mrb[0].mxu0
      %v2924 = vadd.f32 0.0, %v2923
      %v2925 = vpop.f32.mrb[0].mxu0
      %2926 = vmatprep.mubr.bf16.mxu0 0
      %2927 = vmatmul.mubr.bf16.gmra.mrb[0].mxu0 %v2833
      %v2928 = vpop.f32.mrb[0].mxu0
      %v2929 = vadd.f32 0.0, %v2928
      %v2930 = vpop.f32.mrb[0].mxu0
      %v2931 = vpop.f32.mrb[0].mxu0
      %v2932 = vadd.f32 0.0, %v2931
      %v2933 = vpop.f32.mrb[0].mxu0
      %2934 = vdwg.mxu0
      %v2935 = vadd.f32 %v2713, %v2873
      %v2936 = vadd.f32 %v2714, %v2876
      %v2937 = vadd.f32 %v2715, %v2881
      %v2938 = vadd.f32 %v2716, %v2884
      %v2939 = vadd.f32 %v2717, %v2889
      %v2940 = vadd.f32 %v2718, %v2892
      %v2941 = vadd.f32 %v2719, %v2897
      %v2942 = vadd.f32 %v2720, %v2900
      %v2943 = vadd.f32 %v2721, %v2905
      %v2944 = vadd.f32 %v2722, %v2908
      %v2945 = vadd.f32 %v2723, %v2913
      %v2946 = vadd.f32 %v2724, %v2916
      %v2947 = vadd.f32 %v2725, %v2921
      %v2948 = vadd.f32 %v2726, %v2924
      %v2949 = vadd.f32 %v2727, %v2929
      %v2950 = vadd.f32 %v2728, %v2932
      %s2951 = scalar_lea.vmem %s1, 28
      %v2952 = vld [vmem:[%s2951] sm:$0x3]
      %v2953 = vrot.slane %v2552, 2
      %v2954 = vrot.slane %v2553, 2
      %v2955 = vsel %vm1790, %v2953, %v2954
      %v2956 = vrot.slane %v2554, 2
      %v2957 = vsel %vm1790, %v2954, %v2956
      %v2958 = vrot.slane %v2555, 2
      %v2959 = vsel %vm1790, %v2956, %v2958
      %v2960 = vrot.slane %v2556, 2
      %v2961 = vsel %vm1790, %v2958, %v2960
      %v2962 = vrot.slane %v2557, 2
      %v2963 = vsel %vm1790, %v2960, %v2962
      %v2964 = vrot.slane %v2558, 2
      %v2965 = vsel %vm1790, %v2962, %v2964
      %v2966 = vrot.slane %v2559, 2
      %v2967 = vsel %vm1790, %v2964, %v2966
      %v2968 = vrot.slane %v2560, 2
      %v2969 = vsel %vm1790, %v2966, %v2968
      %v2971 = vsel %vm373, %v2955, 0
      %v2974 = vsel %vm373, %v2957, 0
      %v2977 = vsel %vm373, %v2959, 0
      %v2980 = vsel %vm373, %v2961, 0
      %v2983 = vsel %vm373, %v2963, 0
      %v2986 = vsel %vm373, %v2965, 0
      %v2989 = vsel %vm373, %v2967, 0
      %v2992 = vsel %vm373, %v2969, 0
      %v2995 = vsel %vm398, %v2952, 0
      %2997 = vmatprep.subr.bf16.mxu0 0
      %2998 = vmatpush1.bf16.msra.mxu0 %v2995
      %2999 = vmatprep.subr.bf16.mxu0 0
      %3000 = vmatpush1.bf16.msra.mxu0 0
      %3001 = vmatprep.subr.bf16.mxu0 0
      %3002 = vmatpush1.bf16.msra.mxu0 0
      %3003 = vmatprep.subr.bf16.mxu0 0
      %3004 = vmatpush1.bf16.msra.mxu0 0
      %3005 = vmatprep.subr.bf16.mxu0 0
      %3006 = vmatpush1.bf16.msra.mxu0 0
      %3007 = vmatprep.subr.bf16.mxu0 0
      %3008 = vmatpush1.bf16.msra.mxu0 0
      %3009 = vmatprep.subr.bf16.mxu0 0
      %3010 = vmatpush1.bf16.msra.mxu0 0
      %3011 = vmatprep.subr.bf16.mxu0 0
      %3012 = vmatpush1.bf16.msra.mxu0 0
      %3013 = vmatprep.subr.bf16.mxu0 0
      %3014 = vmatpush1.bf16.msra.mxu0 0
      %3015 = vmatprep.subr.bf16.mxu0 0
      %3016 = vmatpush1.bf16.msra.mxu0 0
      %3017 = vmatprep.subr.bf16.mxu0 0
      %3018 = vmatpush1.bf16.msra.mxu0 0
      %3019 = vmatprep.subr.bf16.mxu0 0
      %3020 = vmatpush1.bf16.msra.mxu0 0
      %3021 = vmatprep.subr.bf16.mxu0 0
      %3022 = vmatpush1.bf16.msra.mxu0 0
      %3023 = vmatprep.subr.bf16.mxu0 0
      %3024 = vmatpush1.bf16.msra.mxu0 0
      %3025 = vmatprep.subr.bf16.mxu0 0
      %3026 = vmatpush1.bf16.msra.mxu0 0
      %3027 = vmatprep.subr.bf16.mxu0 0
      %3028 = vmatpush1.bf16.msra.mxu0 0
      %3029 = vmatprep.mubr.bf16.mxu0 0
      %3030 = vmatmul.mubr.bf16.gmra.mrb[0].mxu0 %v2971
      %v3031 = vpop.f32.mrb[0].mxu0
      %v3032 = vadd.f32 0.0, %v3031
      %v3033 = vpop.f32.mrb[0].mxu0
      %v3034 = vpop.f32.mrb[0].mxu0
      %v3035 = vadd.f32 0.0, %v3034
      %v3036 = vpop.f32.mrb[0].mxu0
      %3037 = vmatprep.mubr.bf16.mxu0 0
      %3038 = vmatmul.mubr.bf16.gmra.mrb[0].mxu0 %v2974
      %v3039 = vpop.f32.mrb[0].mxu0
      %v3040 = vadd.f32 0.0, %v3039
      %v3041 = vpop.f32.mrb[0].mxu0
      %v3042 = vpop.f32.mrb[0].mxu0
      %v3043 = vadd.f32 0.0, %v3042
      %v3044 = vpop.f32.mrb[0].mxu0
      %3045 = vmatprep.mubr.bf16.mxu0 0
      %3046 = vmatmul.mubr.bf16.gmra.mrb[0].mxu0 %v2977
      %v3047 = vpop.f32.mrb[0].mxu0
      %v3048 = vadd.f32 0.0, %v3047
      %v3049 = vpop.f32.mrb[0].mxu0
      %v3050 = vpop.f32.mrb[0].mxu0
      %v3051 = vadd.f32 0.0, %v3050
      %v3052 = vpop.f32.mrb[0].mxu0
      %3053 = vmatprep.mubr.bf16.mxu0 0
      %3054 = vmatmul.mubr.bf16.gmra.mrb[0].mxu0 %v2980
      %v3055 = vpop.f32.mrb[0].mxu0
      %v3056 = vadd.f32 0.0, %v3055
      %v3057 = vpop.f32.mrb[0].mxu0
      %v3058 = vpop.f32.mrb[0].mxu0
      %v3059 = vadd.f32 0.0, %v3058
      %v3060 = vpop.f32.mrb[0].mxu0
      %3061 = vmatprep.mubr.bf16.mxu0 0
      %3062 = vmatmul.mubr.bf16.gmra.mrb[0].mxu0 %v2983
      %v3063 = vpop.f32.mrb[0].mxu0
      %v3064 = vadd.f32 0.0, %v3063
      %v3065 = vpop.f32.mrb[0].mxu0
      %v3066 = vpop.f32.mrb[0].mxu0
      %v3067 = vadd.f32 0.0, %v3066
      %v3068 = vpop.f32.mrb[0].mxu0
      %3069 = vmatprep.mubr.bf16.mxu0 0
      %3070 = vmatmul.mubr.bf16.gmra.mrb[0].mxu0 %v2986
      %v3071 = vpop.f32.mrb[0].mxu0
      %v3072 = vadd.f32 0.0, %v3071
      %v3073 = vpop.f32.mrb[0].mxu0
      %v3074 = vpop.f32.mrb[0].mxu0
      %v3075 = vadd.f32 0.0, %v3074
      %v3076 = vpop.f32.mrb[0].mxu0
      %3077 = vmatprep.mubr.bf16.mxu0 0
      %3078 = vmatmul.mubr.bf16.gmra.mrb[0].mxu0 %v2989
      %v3079 = vpop.f32.mrb[0].mxu0
      %v3080 = vadd.f32 0.0, %v3079
      %v3081 = vpop.f32.mrb[0].mxu0
      %v3082 = vpop.f32.mrb[0].mxu0
      %v3083 = vadd.f32 0.0, %v3082
      %v3084 = vpop.f32.mrb[0].mxu0
      %3085 = vmatprep.mubr.bf16.mxu0 0
      %3086 = vmatmul.mubr.bf16.gmra.mrb[0].mxu0 %v2992
      %v3087 = vpop.f32.mrb[0].mxu0
      %v3088 = vadd.f32 0.0, %v3087
      %v3089 = vpop.f32.mrb[0].mxu0
      %v3090 = vpop.f32.mrb[0].mxu0
      %v3091 = vadd.f32 0.0, %v3090
      %v3092 = vpop.f32.mrb[0].mxu0
      %3093 = vdwg.mxu0
      %v3094 = vadd.f32 %v2935, %v3032
      %v3095 = vadd.f32 %v2936, %v3035
      %v3096 = vadd.f32 %v2937, %v3040
      %v3097 = vadd.f32 %v2938, %v3043
      %v3098 = vadd.f32 %v2939, %v3048
      %v3099 = vadd.f32 %v2940, %v3051
      %v3100 = vadd.f32 %v2941, %v3056
      %v3101 = vadd.f32 %v2942, %v3059
      %v3102 = vadd.f32 %v2943, %v3064
      %v3103 = vadd.f32 %v2944, %v3067
      %v3104 = vadd.f32 %v2945, %v3072
      %v3105 = vadd.f32 %v2946, %v3075
      %v3106 = vadd.f32 %v2947, %v3080
      %v3107 = vadd.f32 %v2948, %v3083
      %v3108 = vadd.f32 %v2949, %v3088
      %v3109 = vadd.f32 %v2950, %v3091
      %s3110 = sadd.s32 %s273, 96
      %s3111 = scalar_lea.vmem %s0, %s3110
      %v3112 = vld [vmem:[%s3111] sm:$0xff]
      %v3113 = vld [vmem:[%s3111 + $0x8] sm:$0xff]
      %v3114 = vld [vmem:[%s3111 + $0x10] sm:$0xff]
      %v3115 = vld [vmem:[%s3111 + $0x18] sm:$0xff]
      %v3116 = vld [vmem:[%s3111 + $0x20] sm:$0xff]
      %v3117 = vld [vmem:[%s3111 + $0x28] sm:$0xff]
      %v3118 = vld [vmem:[%s3111 + $0x30] sm:$0xff]
      %v3119 = vld [vmem:[%s3111 + $0x38] sm:$0xff]
      %v3120 = vld [vmem:[%s3111 + $0x40] sm:$0xff]
      %v3121 = vld [vmem:[%s3111 + $0x48] sm:$0xff]
      %v3122 = vld [vmem:[%s3111 + $0x50] sm:$0xff]
      %v3123 = vld [vmem:[%s3111 + $0x58] sm:$0xff]
      %v3124 = vld [vmem:[%s3111 + $0x60] sm:$0xff]
      %v3125 = vld [vmem:[%s3111 + $0x68] sm:$0xff]
      %v3126 = vld [vmem:[%s3111 + $0x70] sm:$0xff]
      %v3127 = vld [vmem:[%s3111 + $0x78] sm:$0xff]
      %v3128 = vld [vmem:[%s3111 + $0x80] sm:$0xff]
      %v3129 = vpack.c.bf16 %v3113, %v3112
      %v3130 = vpack.c.bf16 %v3115, %v3114
      %v3131 = vpack.c.bf16 %v3117, %v3116
      %v3132 = vpack.c.bf16 %v3119, %v3118
      %v3133 = vpack.c.bf16 %v3121, %v3120
      %v3134 = vpack.c.bf16 %v3123, %v3122
      %v3135 = vpack.c.bf16 %v3125, %v3124
      %v3136 = vpack.c.bf16 %v3127, %v3126
      %v3137 = vpack.c.bf16 %v3128, %v3128
      %s3138 = scalar_lea.vmem %s1, 30
      %v3139 = vld [vmem:[%s3138] sm:$0x3]
      %v3141 = vshrl.u32 %v3129, 16
      %v3143 = vrot.slane %v3141, 1
      %v3144 = vshll.u32 %v3129, 16
      %v3146 = vrot.slane %v3144, 2
      %v3147 = vor.u32 %v3143, %v3146
      %v3149 = vshrl.u32 %v3130, 16
      %v3151 = vrot.slane %v3149, 1
      %v3152 = vshll.u32 %v3130, 16
      %v3154 = vrot.slane %v3152, 2
      %v3155 = vor.u32 %v3151, %v3154
      %v3156 = vsel %vm1192, %v3147, %v3155
      %v3158 = vshrl.u32 %v3131, 16
      %v3160 = vrot.slane %v3158, 1
      %v3161 = vshll.u32 %v3131, 16
      %v3163 = vrot.slane %v3161, 2
      %v3164 = vor.u32 %v3160, %v3163
      %v3165 = vsel %vm1192, %v3155, %v3164
      %v3167 = vshrl.u32 %v3132, 16
      %v3169 = vrot.slane %v3167, 1
      %v3170 = vshll.u32 %v3132, 16
      %v3172 = vrot.slane %v3170, 2
      %v3173 = vor.u32 %v3169, %v3172
      %v3174 = vsel %vm1192, %v3164, %v3173
      %v3176 = vshrl.u32 %v3133, 16
      %v3178 = vrot.slane %v3176, 1
      %v3179 = vshll.u32 %v3133, 16
      %v3181 = vrot.slane %v3179, 2
      %v3182 = vor.u32 %v3178, %v3181
      %v3183 = vsel %vm1192, %v3173, %v3182
      %v3185 = vshrl.u32 %v3134, 16
      %v3187 = vrot.slane %v3185, 1
      %v3188 = vshll.u32 %v3134, 16
      %v3190 = vrot.slane %v3188, 2
      %v3191 = vor.u32 %v3187, %v3190
      %v3192 = vsel %vm1192, %v3182, %v3191
      %v3194 = vshrl.u32 %v3135, 16
      %v3196 = vrot.slane %v3194, 1
      %v3197 = vshll.u32 %v3135, 16
      %v3199 = vrot.slane %v3197, 2
      %v3200 = vor.u32 %v3196, %v3199
      %v3201 = vsel %vm1192, %v3191, %v3200
      %v3203 = vshrl.u32 %v3136, 16
      %v3205 = vrot.slane %v3203, 1
      %v3206 = vshll.u32 %v3136, 16
      %v3208 = vrot.slane %v3206, 2
      %v3209 = vor.u32 %v3205, %v3208
      %v3210 = vsel %vm1192, %v3200, %v3209
      %v3212 = vshrl.u32 %v3137, 16
      %v3214 = vrot.slane %v3212, 1
      %v3215 = vshll.u32 %v3137, 16
      %v3217 = vrot.slane %v3215, 2
      %v3218 = vor.u32 %v3214, %v3217
      %v3219 = vsel %vm1192, %v3209, %v3218
      %v3221 = vsel %vm373, %v3156, 0
      %v3224 = vsel %vm373, %v3165, 0
      %v3227 = vsel %vm373, %v3174, 0
      %v3230 = vsel %vm373, %v3183, 0
      %v3233 = vsel %vm373, %v3192, 0
      %v3236 = vsel %vm373, %v3201, 0
      %v3239 = vsel %vm373, %v3210, 0
      %v3242 = vsel %vm373, %v3219, 0
      %v3245 = vsel %vm398, %v3139, 0
      %3247 = vmatprep.subr.bf16.mxu0 0
      %3248 = vmatpush1.bf16.msra.mxu0 %v3245
      %3249 = vmatprep.subr.bf16.mxu0 0
      %3250 = vmatpush1.bf16.msra.mxu0 0
      %3251 = vmatprep.subr.bf16.mxu0 0
      %3252 = vmatpush1.bf16.msra.mxu0 0
      %3253 = vmatprep.subr.bf16.mxu0 0
      %3254 = vmatpush1.bf16.msra.mxu0 0
      %3255 = vmatprep.subr.bf16.mxu0 0
      %3256 = vmatpush1.bf16.msra.mxu0 0
      %3257 = vmatprep.subr.bf16.mxu0 0
      %3258 = vmatpush1.bf16.msra.mxu0 0
      %3259 = vmatprep.subr.bf16.mxu0 0
      %3260 = vmatpush1.bf16.msra.mxu0 0
      %3261 = vmatprep.subr.bf16.mxu0 0
      %3262 = vmatpush1.bf16.msra.mxu0 0
      %3263 = vmatprep.subr.bf16.mxu0 0
      %3264 = vmatpush1.bf16.msra.mxu0 0
      %3265 = vmatprep.subr.bf16.mxu0 0
      %3266 = vmatpush1.bf16.msra.mxu0 0
      %3267 = vmatprep.subr.bf16.mxu0 0
      %3268 = vmatpush1.bf16.msra.mxu0 0
      %3269 = vmatprep.subr.bf16.mxu0 0
      %3270 = vmatpush1.bf16.msra.mxu0 0
      %3271 = vmatprep.subr.bf16.mxu0 0
      %3272 = vmatpush1.bf16.msra.mxu0 0
      %3273 = vmatprep.subr.bf16.mxu0 0
      %3274 = vmatpush1.bf16.msra.mxu0 0
      %3275 = vmatprep.subr.bf16.mxu0 0
      %3276 = vmatpush1.bf16.msra.mxu0 0
      %3277 = vmatprep.subr.bf16.mxu0 0
      %3278 = vmatpush1.bf16.msra.mxu0 0
      %3279 = vmatprep.mubr.bf16.mxu0 0
      %3280 = vmatmul.mubr.bf16.gmra.mrb[0].mxu0 %v3221
      %v3281 = vpop.f32.mrb[0].mxu0
      %v3282 = vadd.f32 0.0, %v3281
      %v3283 = vpop.f32.mrb[0].mxu0
      %v3284 = vpop.f32.mrb[0].mxu0
      %v3285 = vadd.f32 0.0, %v3284
      %v3286 = vpop.f32.mrb[0].mxu0
      %3287 = vmatprep.mubr.bf16.mxu0 0
      %3288 = vmatmul.mubr.bf16.gmra.mrb[0].mxu0 %v3224
      %v3289 = vpop.f32.mrb[0].mxu0
      %v3290 = vadd.f32 0.0, %v3289
      %v3291 = vpop.f32.mrb[0].mxu0
      %v3292 = vpop.f32.mrb[0].mxu0
      %v3293 = vadd.f32 0.0, %v3292
      %v3294 = vpop.f32.mrb[0].mxu0
      %3295 = vmatprep.mubr.bf16.mxu0 0
      %3296 = vmatmul.mubr.bf16.gmra.mrb[0].mxu0 %v3227
      %v3297 = vpop.f32.mrb[0].mxu0
      %v3298 = vadd.f32 0.0, %v3297
      %v3299 = vpop.f32.mrb[0].mxu0
      %v3300 = vpop.f32.mrb[0].mxu0
      %v3301 = vadd.f32 0.0, %v3300
      %v3302 = vpop.f32.mrb[0].mxu0
      %3303 = vmatprep.mubr.bf16.mxu0 0
      %3304 = vmatmul.mubr.bf16.gmra.mrb[0].mxu0 %v3230
      %v3305 = vpop.f32.mrb[0].mxu0
      %v3306 = vadd.f32 0.0, %v3305
      %v3307 = vpop.f32.mrb[0].mxu0
      %v3308 = vpop.f32.mrb[0].mxu0
      %v3309 = vadd.f32 0.0, %v3308
      %v3310 = vpop.f32.mrb[0].mxu0
      %3311 = vmatprep.mubr.bf16.mxu0 0
      %3312 = vmatmul.mubr.bf16.gmra.mrb[0].mxu0 %v3233
      %v3313 = vpop.f32.mrb[0].mxu0
      %v3314 = vadd.f32 0.0, %v3313
      %v3315 = vpop.f32.mrb[0].mxu0
      %v3316 = vpop.f32.mrb[0].mxu0
      %v3317 = vadd.f32 0.0, %v3316
      %v3318 = vpop.f32.mrb[0].mxu0
      %3319 = vmatprep.mubr.bf16.mxu0 0
      %3320 = vmatmul.mubr.bf16.gmra.mrb[0].mxu0 %v3236
      %v3321 = vpop.f32.mrb[0].mxu0
      %v3322 = vadd.f32 0.0, %v3321
      %v3323 = vpop.f32.mrb[0].mxu0
      %v3324 = vpop.f32.mrb[0].mxu0
      %v3325 = vadd.f32 0.0, %v3324
      %v3326 = vpop.f32.mrb[0].mxu0
      %3327 = vmatprep.mubr.bf16.mxu0 0
      %3328 = vmatmul.mubr.bf16.gmra.mrb[0].mxu0 %v3239
      %v3329 = vpop.f32.mrb[0].mxu0
      %v3330 = vadd.f32 0.0, %v3329
      %v3331 = vpop.f32.mrb[0].mxu0
      %v3332 = vpop.f32.mrb[0].mxu0
      %v3333 = vadd.f32 0.0, %v3332
      %v3334 = vpop.f32.mrb[0].mxu0
      %3335 = vmatprep.mubr.bf16.mxu0 0
      %3336 = vmatmul.mubr.bf16.gmra.mrb[0].mxu0 %v3242
      %v3337 = vpop.f32.mrb[0].mxu0
      %v3338 = vadd.f32 0.0, %v3337
      %v3339 = vpop.f32.mrb[0].mxu0
      %v3340 = vpop.f32.mrb[0].mxu0
      %v3341 = vadd.f32 0.0, %v3340
      %v3342 = vpop.f32.mrb[0].mxu0
      %3343 = vdwg.mxu0
      %v3344 = vadd.f32 %v3094, %v3282
      %v3345 = vadd.f32 %v3095, %v3285
      %v3346 = vadd.f32 %v3096, %v3290
      %v3347 = vadd.f32 %v3097, %v3293
      %v3348 = vadd.f32 %v3098, %v3298
      %v3349 = vadd.f32 %v3099, %v3301
      %v3350 = vadd.f32 %v3100, %v3306
      %v3351 = vadd.f32 %v3101, %v3309
      %v3352 = vadd.f32 %v3102, %v3314
      %v3353 = vadd.f32 %v3103, %v3317
      %v3354 = vadd.f32 %v3104, %v3322
      %v3355 = vadd.f32 %v3105, %v3325
      %v3356 = vadd.f32 %v3106, %v3330
      %v3357 = vadd.f32 %v3107, %v3333
      %v3358 = vadd.f32 %v3108, %v3338
      %v3359 = vadd.f32 %v3109, %v3341
      %s3360 = scalar_lea.vmem %s1, 32
      %v3361 = vld [vmem:[%s3360] sm:$0x3]
      %v3371 = vrot.slane %v3129, 2
      %v3372 = vrot.slane %v3130, 2
      %v3373 = vsel %vm1790, %v3371, %v3372
      %v3374 = vrot.slane %v3131, 2
      %v3375 = vsel %vm1790, %v3372, %v3374
      %v3376 = vrot.slane %v3132, 2
      %v3377 = vsel %vm1790, %v3374, %v3376
      %v3378 = vrot.slane %v3133, 2
      %v3379 = vsel %vm1790, %v3376, %v3378
      %v3380 = vrot.slane %v3134, 2
      %v3381 = vsel %vm1790, %v3378, %v3380
      %v3382 = vrot.slane %v3135, 2
      %v3383 = vsel %vm1790, %v3380, %v3382
      %v3384 = vrot.slane %v3136, 2
      %v3385 = vsel %vm1790, %v3382, %v3384
      %v3386 = vrot.slane %v3137, 2
      %v3387 = vsel %vm1790, %v3384, %v3386
      %v3389 = vsel %vm373, %v3373, 0
      %v3392 = vsel %vm373, %v3375, 0
      %v3395 = vsel %vm373, %v3377, 0
      %v3398 = vsel %vm373, %v3379, 0
      %v3401 = vsel %vm373, %v3381, 0
      %v3404 = vsel %vm373, %v3383, 0
      %v3407 = vsel %vm373, %v3385, 0
      %v3410 = vsel %vm373, %v3387, 0
      %v3413 = vsel %vm398, %v3361, 0
      %3415 = vmatprep.subr.bf16.mxu0 0
      %3416 = vmatpush1.bf16.msra.mxu0 %v3413
      %3417 = vmatprep.subr.bf16.mxu0 0
      %3418 = vmatpush1.bf16.msra.mxu0 0
      %3419 = vmatprep.subr.bf16.mxu0 0
      %3420 = vmatpush1.bf16.msra.mxu0 0
      %3421 = vmatprep.subr.bf16.mxu0 0
      %3422 = vmatpush1.bf16.msra.mxu0 0
      %3423 = vmatprep.subr.bf16.mxu0 0
      %3424 = vmatpush1.bf16.msra.mxu0 0
      %3425 = vmatprep.subr.bf16.mxu0 0
      %3426 = vmatpush1.bf16.msra.mxu0 0
      %3427 = vmatprep.subr.bf16.mxu0 0
      %3428 = vmatpush1.bf16.msra.mxu0 0
      %3429 = vmatprep.subr.bf16.mxu0 0
      %3430 = vmatpush1.bf16.msra.mxu0 0
      %3431 = vmatprep.subr.bf16.mxu0 0
      %3432 = vmatpush1.bf16.msra.mxu0 0
      %3433 = vmatprep.subr.bf16.mxu0 0
      %3434 = vmatpush1.bf16.msra.mxu0 0
      %3435 = vmatprep.subr.bf16.mxu0 0
      %3436 = vmatpush1.bf16.msra.mxu0 0
      %3437 = vmatprep.subr.bf16.mxu0 0
      %3438 = vmatpush1.bf16.msra.mxu0 0
      %3439 = vmatprep.subr.bf16.mxu0 0
      %3440 = vmatpush1.bf16.msra.mxu0 0
      %3441 = vmatprep.subr.bf16.mxu0 0
      %3442 = vmatpush1.bf16.msra.mxu0 0
      %3443 = vmatprep.subr.bf16.mxu0 0
      %3444 = vmatpush1.bf16.msra.mxu0 0
      %3445 = vmatprep.subr.bf16.mxu0 0
      %3446 = vmatpush1.bf16.msra.mxu0 0
      %3447 = vmatprep.mubr.bf16.mxu0 0
      %3448 = vmatmul.mubr.bf16.gmra.mrb[0].mxu0 %v3389
      %v3449 = vpop.f32.mrb[0].mxu0
      %v3450 = vadd.f32 0.0, %v3449
      %v3451 = vpop.f32.mrb[0].mxu0
      %v3452 = vpop.f32.mrb[0].mxu0
      %v3453 = vadd.f32 0.0, %v3452
      %v3454 = vpop.f32.mrb[0].mxu0
      %3455 = vmatprep.mubr.bf16.mxu0 0
      %3456 = vmatmul.mubr.bf16.gmra.mrb[0].mxu0 %v3392
      %v3457 = vpop.f32.mrb[0].mxu0
      %v3458 = vadd.f32 0.0, %v3457
      %v3459 = vpop.f32.mrb[0].mxu0
      %v3460 = vpop.f32.mrb[0].mxu0
      %v3461 = vadd.f32 0.0, %v3460
      %v3462 = vpop.f32.mrb[0].mxu0
      %3463 = vmatprep.mubr.bf16.mxu0 0
      %3464 = vmatmul.mubr.bf16.gmra.mrb[0].mxu0 %v3395
      %v3465 = vpop.f32.mrb[0].mxu0
      %v3466 = vadd.f32 0.0, %v3465
      %v3467 = vpop.f32.mrb[0].mxu0
      %v3468 = vpop.f32.mrb[0].mxu0
      %v3469 = vadd.f32 0.0, %v3468
      %v3470 = vpop.f32.mrb[0].mxu0
      %3471 = vmatprep.mubr.bf16.mxu0 0
      %3472 = vmatmul.mubr.bf16.gmra.mrb[0].mxu0 %v3398
      %v3473 = vpop.f32.mrb[0].mxu0
      %v3474 = vadd.f32 0.0, %v3473
      %v3475 = vpop.f32.mrb[0].mxu0
      %v3476 = vpop.f32.mrb[0].mxu0
      %v3477 = vadd.f32 0.0, %v3476
      %v3478 = vpop.f32.mrb[0].mxu0
      %3479 = vmatprep.mubr.bf16.mxu0 0
      %3480 = vmatmul.mubr.bf16.gmra.mrb[0].mxu0 %v3401
      %v3481 = vpop.f32.mrb[0].mxu0
      %v3482 = vadd.f32 0.0, %v3481
      %v3483 = vpop.f32.mrb[0].mxu0
      %v3484 = vpop.f32.mrb[0].mxu0
      %v3485 = vadd.f32 0.0, %v3484
      %v3486 = vpop.f32.mrb[0].mxu0
      %3487 = vmatprep.mubr.bf16.mxu0 0
      %3488 = vmatmul.mubr.bf16.gmra.mrb[0].mxu0 %v3404
      %v3489 = vpop.f32.mrb[0].mxu0
      %v3490 = vadd.f32 0.0, %v3489
      %v3491 = vpop.f32.mrb[0].mxu0
      %v3492 = vpop.f32.mrb[0].mxu0
      %v3493 = vadd.f32 0.0, %v3492
      %v3494 = vpop.f32.mrb[0].mxu0
      %3495 = vmatprep.mubr.bf16.mxu0 0
      %3496 = vmatmul.mubr.bf16.gmra.mrb[0].mxu0 %v3407
      %v3497 = vpop.f32.mrb[0].mxu0
      %v3498 = vadd.f32 0.0, %v3497
      %v3499 = vpop.f32.mrb[0].mxu0
      %v3500 = vpop.f32.mrb[0].mxu0
      %v3501 = vadd.f32 0.0, %v3500
      %v3502 = vpop.f32.mrb[0].mxu0
      %3503 = vmatprep.mubr.bf16.mxu0 0
      %3504 = vmatmul.mubr.bf16.gmra.mrb[0].mxu0 %v3410
      %v3505 = vpop.f32.mrb[0].mxu0
      %v3506 = vadd.f32 0.0, %v3505
      %v3507 = vpop.f32.mrb[0].mxu0
      %v3508 = vpop.f32.mrb[0].mxu0
      %v3509 = vadd.f32 0.0, %v3508
      %v3510 = vpop.f32.mrb[0].mxu0
      %3511 = vdwg.mxu0
      %v3512 = vadd.f32 %v3344, %v3450
      %v3513 = vadd.f32 %v3345, %v3453
      %v3514 = vadd.f32 %v3346, %v3458
      %v3515 = vadd.f32 %v3347, %v3461
      %v3516 = vadd.f32 %v3348, %v3466
      %v3517 = vadd.f32 %v3349, %v3469
      %v3518 = vadd.f32 %v3350, %v3474
      %v3519 = vadd.f32 %v3351, %v3477
      %v3520 = vadd.f32 %v3352, %v3482
      %v3521 = vadd.f32 %v3353, %v3485
      %v3522 = vadd.f32 %v3354, %v3490
      %v3523 = vadd.f32 %v3355, %v3493
      %v3524 = vadd.f32 %v3356, %v3498
      %v3525 = vadd.f32 %v3357, %v3501
      %v3526 = vadd.f32 %v3358, %v3506
      %v3527 = vadd.f32 %v3359, %v3509
      %s3528 = scalar_lea.vmem %s1, 34
      %v3529 = vld [vmem:[%s3528] sm:$0x3]
      %vm3530 = vsmask.f32 5376
      %v3531 = vrot.slane %v3141, 2
      %v3532 = vrot.slane %v3144, 3
      %v3533 = vor.u32 %v3531, %v3532
      %v3534 = vrot.slane %v3149, 2
      %v3535 = vrot.slane %v3152, 3
      %v3536 = vor.u32 %v3534, %v3535
      %v3537 = vsel %vm3530, %v3533, %v3536
      %v3538 = vrot.slane %v3158, 2
      %v3539 = vrot.slane %v3161, 3
      %v3540 = vor.u32 %v3538, %v3539
      %v3541 = vsel %vm3530, %v3536, %v3540
      %v3542 = vrot.slane %v3167, 2
      %v3543 = vrot.slane %v3170, 3
      %v3544 = vor.u32 %v3542, %v3543
      %v3545 = vsel %vm3530, %v3540, %v3544
      %v3546 = vrot.slane %v3176, 2
      %v3547 = vrot.slane %v3179, 3
      %v3548 = vor.u32 %v3546, %v3547
      %v3549 = vsel %vm3530, %v3544, %v3548
      %v3550 = vrot.slane %v3185, 2
      %v3551 = vrot.slane %v3188, 3
      %v3552 = vor.u32 %v3550, %v3551
      %v3553 = vsel %vm3530, %v3548, %v3552
      %v3554 = vrot.slane %v3194, 2
      %v3555 = vrot.slane %v3197, 3
      %v3556 = vor.u32 %v3554, %v3555
      %v3557 = vsel %vm3530, %v3552, %v3556
      %v3558 = vrot.slane %v3203, 2
      %v3559 = vrot.slane %v3206, 3
      %v3560 = vor.u32 %v3558, %v3559
      %v3561 = vsel %vm3530, %v3556, %v3560
      %v3562 = vrot.slane %v3212, 2
      %v3563 = vrot.slane %v3215, 3
      %v3564 = vor.u32 %v3562, %v3563
      %v3565 = vsel %vm3530, %v3560, %v3564
      %v3567 = vsel %vm373, %v3537, 0
      %v3570 = vsel %vm373, %v3541, 0
      %v3573 = vsel %vm373, %v3545, 0
      %v3576 = vsel %vm373, %v3549, 0
      %v3579 = vsel %vm373, %v3553, 0
      %v3582 = vsel %vm373, %v3557, 0
      %v3585 = vsel %vm373, %v3561, 0
      %v3588 = vsel %vm373, %v3565, 0
      %v3591 = vsel %vm398, %v3529, 0
      %3593 = vmatprep.subr.bf16.mxu0 0
      %3594 = vmatpush1.bf16.msra.mxu0 %v3591
      %3595 = vmatprep.subr.bf16.mxu0 0
      %3596 = vmatpush1.bf16.msra.mxu0 0
      %3597 = vmatprep.subr.bf16.mxu0 0
      %3598 = vmatpush1.bf16.msra.mxu0 0
      %3599 = vmatprep.subr.bf16.mxu0 0
      %3600 = vmatpush1.bf16.msra.mxu0 0
      %3601 = vmatprep.subr.bf16.mxu0 0
      %3602 = vmatpush1.bf16.msra.mxu0 0
      %3603 = vmatprep.subr.bf16.mxu0 0
      %3604 = vmatpush1.bf16.msra.mxu0 0
      %3605 = vmatprep.subr.bf16.mxu0 0
      %3606 = vmatpush1.bf16.msra.mxu0 0
      %3607 = vmatprep.subr.bf16.mxu0 0
      %3608 = vmatpush1.bf16.msra.mxu0 0
      %3609 = vmatprep.subr.bf16.mxu0 0
      %3610 = vmatpush1.bf16.msra.mxu0 0
      %3611 = vmatprep.subr.bf16.mxu0 0
      %3612 = vmatpush1.bf16.msra.mxu0 0
      %3613 = vmatprep.subr.bf16.mxu0 0
      %3614 = vmatpush1.bf16.msra.mxu0 0
      %3615 = vmatprep.subr.bf16.mxu0 0
      %3616 = vmatpush1.bf16.msra.mxu0 0
      %3617 = vmatprep.subr.bf16.mxu0 0
      %3618 = vmatpush1.bf16.msra.mxu0 0
      %3619 = vmatprep.subr.bf16.mxu0 0
      %3620 = vmatpush1.bf16.msra.mxu0 0
      %3621 = vmatprep.subr.bf16.mxu0 0
      %3622 = vmatpush1.bf16.msra.mxu0 0
      %3623 = vmatprep.subr.bf16.mxu0 0
      %3624 = vmatpush1.bf16.msra.mxu0 0
      %3625 = vmatprep.mubr.bf16.mxu0 0
      %3626 = vmatmul.mubr.bf16.gmra.mrb[0].mxu0 %v3567
      %v3627 = vpop.f32.mrb[0].mxu0
      %v3628 = vadd.f32 0.0, %v3627
      %v3629 = vpop.f32.mrb[0].mxu0
      %v3630 = vpop.f32.mrb[0].mxu0
      %v3631 = vadd.f32 0.0, %v3630
      %v3632 = vpop.f32.mrb[0].mxu0
      %3633 = vmatprep.mubr.bf16.mxu0 0
      %3634 = vmatmul.mubr.bf16.gmra.mrb[0].mxu0 %v3570
      %v3635 = vpop.f32.mrb[0].mxu0
      %v3636 = vadd.f32 0.0, %v3635
      %v3637 = vpop.f32.mrb[0].mxu0
      %v3638 = vpop.f32.mrb[0].mxu0
      %v3639 = vadd.f32 0.0, %v3638
      %v3640 = vpop.f32.mrb[0].mxu0
      %3641 = vmatprep.mubr.bf16.mxu0 0
      %3642 = vmatmul.mubr.bf16.gmra.mrb[0].mxu0 %v3573
      %v3643 = vpop.f32.mrb[0].mxu0
      %v3644 = vadd.f32 0.0, %v3643
      %v3645 = vpop.f32.mrb[0].mxu0
      %v3646 = vpop.f32.mrb[0].mxu0
      %v3647 = vadd.f32 0.0, %v3646
      %v3648 = vpop.f32.mrb[0].mxu0
      %3649 = vmatprep.mubr.bf16.mxu0 0
      %3650 = vmatmul.mubr.bf16.gmra.mrb[0].mxu0 %v3576
      %v3651 = vpop.f32.mrb[0].mxu0
      %v3652 = vadd.f32 0.0, %v3651
      %v3653 = vpop.f32.mrb[0].mxu0
      %v3654 = vpop.f32.mrb[0].mxu0
      %v3655 = vadd.f32 0.0, %v3654
      %v3656 = vpop.f32.mrb[0].mxu0
      %3657 = vmatprep.mubr.bf16.mxu0 0
      %3658 = vmatmul.mubr.bf16.gmra.mrb[0].mxu0 %v3579
      %v3659 = vpop.f32.mrb[0].mxu0
      %v3660 = vadd.f32 0.0, %v3659
      %v3661 = vpop.f32.mrb[0].mxu0
      %v3662 = vpop.f32.mrb[0].mxu0
      %v3663 = vadd.f32 0.0, %v3662
      %v3664 = vpop.f32.mrb[0].mxu0
      %3665 = vmatprep.mubr.bf16.mxu0 0
      %3666 = vmatmul.mubr.bf16.gmra.mrb[0].mxu0 %v3582
      %v3667 = vpop.f32.mrb[0].mxu0
      %v3668 = vadd.f32 0.0, %v3667
      %v3669 = vpop.f32.mrb[0].mxu0
      %v3670 = vpop.f32.mrb[0].mxu0
      %v3671 = vadd.f32 0.0, %v3670
      %v3672 = vpop.f32.mrb[0].mxu0
      %3673 = vmatprep.mubr.bf16.mxu0 0
      %3674 = vmatmul.mubr.bf16.gmra.mrb[0].mxu0 %v3585
      %v3675 = vpop.f32.mrb[0].mxu0
      %v3676 = vadd.f32 0.0, %v3675
      %v3677 = vpop.f32.mrb[0].mxu0
      %v3678 = vpop.f32.mrb[0].mxu0
      %v3679 = vadd.f32 0.0, %v3678
      %v3680 = vpop.f32.mrb[0].mxu0
      %3681 = vmatprep.mubr.bf16.mxu0 0
      %3682 = vmatmul.mubr.bf16.gmra.mrb[0].mxu0 %v3588
      %v3683 = vpop.f32.mrb[0].mxu0
      %v3684 = vadd.f32 0.0, %v3683
      %v3685 = vpop.f32.mrb[0].mxu0
      %v3686 = vpop.f32.mrb[0].mxu0
      %v3687 = vadd.f32 0.0, %v3686
      %v3688 = vpop.f32.mrb[0].mxu0
      %3689 = vdwg.mxu0
      %v3690 = vadd.f32 %v3512, %v3628
      %v3691 = vadd.f32 %v3513, %v3631
      %v3692 = vadd.f32 %v3514, %v3636
      %v3693 = vadd.f32 %v3515, %v3639
      %v3694 = vadd.f32 %v3516, %v3644
      %v3695 = vadd.f32 %v3517, %v3647
      %v3696 = vadd.f32 %v3518, %v3652
      %v3697 = vadd.f32 %v3519, %v3655
      %v3698 = vadd.f32 %v3520, %v3660
      %v3699 = vadd.f32 %v3521, %v3663
      %v3700 = vadd.f32 %v3522, %v3668
      %v3701 = vadd.f32 %v3523, %v3671
      %v3702 = vadd.f32 %v3524, %v3676
      %v3703 = vadd.f32 %v3525, %v3679
      %v3704 = vadd.f32 %v3526, %v3684
      %v3705 = vadd.f32 %v3527, %v3687
      %s3706 = sadd.s32 %s273, 160
      %s3707 = scalar_lea.vmem %s0, %s3706
      %v3708 = vld [vmem:[%s3707] sm:$0xff]
      %v3709 = vld [vmem:[%s3707 + $0x8] sm:$0xff]
      %v3710 = vld [vmem:[%s3707 + $0x10] sm:$0xff]
      %v3711 = vld [vmem:[%s3707 + $0x18] sm:$0xff]
      %v3712 = vld [vmem:[%s3707 + $0x20] sm:$0xff]
      %v3713 = vld [vmem:[%s3707 + $0x28] sm:$0xff]
      %v3714 = vld [vmem:[%s3707 + $0x30] sm:$0xff]
      %v3715 = vld [vmem:[%s3707 + $0x38] sm:$0xff]
      %v3716 = vld [vmem:[%s3707 + $0x40] sm:$0xff]
      %v3717 = vld [vmem:[%s3707 + $0x48] sm:$0xff]
      %v3718 = vld [vmem:[%s3707 + $0x50] sm:$0xff]
      %v3719 = vld [vmem:[%s3707 + $0x58] sm:$0xff]
      %v3720 = vld [vmem:[%s3707 + $0x60] sm:$0xff]
      %v3721 = vld [vmem:[%s3707 + $0x68] sm:$0xff]
      %v3722 = vld [vmem:[%s3707 + $0x70] sm:$0xff]
      %v3723 = vld [vmem:[%s3707 + $0x78] sm:$0xff]
      %v3724 = vld [vmem:[%s3707 + $0x80] sm:$0xff]
      %v3725 = vpack.c.bf16 %v3709, %v3708
      %v3726 = vpack.c.bf16 %v3711, %v3710
      %v3727 = vpack.c.bf16 %v3713, %v3712
      %v3728 = vpack.c.bf16 %v3715, %v3714
      %v3729 = vpack.c.bf16 %v3717, %v3716
      %v3730 = vpack.c.bf16 %v3719, %v3718
      %v3731 = vpack.c.bf16 %v3721, %v3720
      %v3732 = vpack.c.bf16 %v3723, %v3722
      %v3733 = vpack.c.bf16 %v3724, %v3724
      %s3734 = scalar_lea.vmem %s1, 36
      %v3735 = vld [vmem:[%s3734] sm:$0x3]
      %v3745 = vrot.slane %v3725, 1
      %v3746 = vrot.slane %v3726, 1
      %v3747 = vsel %vm626, %v3745, %v3746
      %v3748 = vrot.slane %v3727, 1
      %v3749 = vsel %vm626, %v3746, %v3748
      %v3750 = vrot.slane %v3728, 1
      %v3751 = vsel %vm626, %v3748, %v3750
      %v3752 = vrot.slane %v3729, 1
      %v3753 = vsel %vm626, %v3750, %v3752
      %v3754 = vrot.slane %v3730, 1
      %v3755 = vsel %vm626, %v3752, %v3754
      %v3756 = vrot.slane %v3731, 1
      %v3757 = vsel %vm626, %v3754, %v3756
      %v3758 = vrot.slane %v3732, 1
      %v3759 = vsel %vm626, %v3756, %v3758
      %v3760 = vrot.slane %v3733, 1
      %v3761 = vsel %vm626, %v3758, %v3760
      %v3763 = vsel %vm373, %v3747, 0
      %v3766 = vsel %vm373, %v3749, 0
      %v3769 = vsel %vm373, %v3751, 0
      %v3772 = vsel %vm373, %v3753, 0
      %v3775 = vsel %vm373, %v3755, 0
      %v3778 = vsel %vm373, %v3757, 0
      %v3781 = vsel %vm373, %v3759, 0
      %v3784 = vsel %vm373, %v3761, 0
      %v3787 = vsel %vm398, %v3735, 0
      %3789 = vmatprep.subr.bf16.mxu0 0
      %3790 = vmatpush1.bf16.msra.mxu0 %v3787
      %3791 = vmatprep.subr.bf16.mxu0 0
      %3792 = vmatpush1.bf16.msra.mxu0 0
      %3793 = vmatprep.subr.bf16.mxu0 0
      %3794 = vmatpush1.bf16.msra.mxu0 0
      %3795 = vmatprep.subr.bf16.mxu0 0
      %3796 = vmatpush1.bf16.msra.mxu0 0
      %3797 = vmatprep.subr.bf16.mxu0 0
      %3798 = vmatpush1.bf16.msra.mxu0 0
      %3799 = vmatprep.subr.bf16.mxu0 0
      %3800 = vmatpush1.bf16.msra.mxu0 0
      %3801 = vmatprep.subr.bf16.mxu0 0
      %3802 = vmatpush1.bf16.msra.mxu0 0
      %3803 = vmatprep.subr.bf16.mxu0 0
      %3804 = vmatpush1.bf16.msra.mxu0 0
      %3805 = vmatprep.subr.bf16.mxu0 0
      %3806 = vmatpush1.bf16.msra.mxu0 0
      %3807 = vmatprep.subr.bf16.mxu0 0
      %3808 = vmatpush1.bf16.msra.mxu0 0
      %3809 = vmatprep.subr.bf16.mxu0 0
      %3810 = vmatpush1.bf16.msra.mxu0 0
      %3811 = vmatprep.subr.bf16.mxu0 0
      %3812 = vmatpush1.bf16.msra.mxu0 0
      %3813 = vmatprep.subr.bf16.mxu0 0
      %3814 = vmatpush1.bf16.msra.mxu0 0
      %3815 = vmatprep.subr.bf16.mxu0 0
      %3816 = vmatpush1.bf16.msra.mxu0 0
      %3817 = vmatprep.subr.bf16.mxu0 0
      %3818 = vmatpush1.bf16.msra.mxu0 0
      %3819 = vmatprep.subr.bf16.mxu0 0
      %3820 = vmatpush1.bf16.msra.mxu0 0
      %3821 = vmatprep.mubr.bf16.mxu0 0
      %3822 = vmatmul.mubr.bf16.gmra.mrb[0].mxu0 %v3763
      %v3823 = vpop.f32.mrb[0].mxu0
      %v3824 = vadd.f32 0.0, %v3823
      %v3825 = vpop.f32.mrb[0].mxu0
      %v3826 = vpop.f32.mrb[0].mxu0
      %v3827 = vadd.f32 0.0, %v3826
      %v3828 = vpop.f32.mrb[0].mxu0
      %3829 = vmatprep.mubr.bf16.mxu0 0
      %3830 = vmatmul.mubr.bf16.gmra.mrb[0].mxu0 %v3766
      %v3831 = vpop.f32.mrb[0].mxu0
      %v3832 = vadd.f32 0.0, %v3831
      %v3833 = vpop.f32.mrb[0].mxu0
      %v3834 = vpop.f32.mrb[0].mxu0
      %v3835 = vadd.f32 0.0, %v3834
      %v3836 = vpop.f32.mrb[0].mxu0
      %3837 = vmatprep.mubr.bf16.mxu0 0
      %3838 = vmatmul.mubr.bf16.gmra.mrb[0].mxu0 %v3769
      %v3839 = vpop.f32.mrb[0].mxu0
      %v3840 = vadd.f32 0.0, %v3839
      %v3841 = vpop.f32.mrb[0].mxu0
      %v3842 = vpop.f32.mrb[0].mxu0
      %v3843 = vadd.f32 0.0, %v3842
      %v3844 = vpop.f32.mrb[0].mxu0
      %3845 = vmatprep.mubr.bf16.mxu0 0
      %3846 = vmatmul.mubr.bf16.gmra.mrb[0].mxu0 %v3772
      %v3847 = vpop.f32.mrb[0].mxu0
      %v3848 = vadd.f32 0.0, %v3847
      %v3849 = vpop.f32.mrb[0].mxu0
      %v3850 = vpop.f32.mrb[0].mxu0
      %v3851 = vadd.f32 0.0, %v3850
      %v3852 = vpop.f32.mrb[0].mxu0
      %3853 = vmatprep.mubr.bf16.mxu0 0
      %3854 = vmatmul.mubr.bf16.gmra.mrb[0].mxu0 %v3775
      %v3855 = vpop.f32.mrb[0].mxu0
      %v3856 = vadd.f32 0.0, %v3855
      %v3857 = vpop.f32.mrb[0].mxu0
      %v3858 = vpop.f32.mrb[0].mxu0
      %v3859 = vadd.f32 0.0, %v3858
      %v3860 = vpop.f32.mrb[0].mxu0
      %3861 = vmatprep.mubr.bf16.mxu0 0
      %3862 = vmatmul.mubr.bf16.gmra.mrb[0].mxu0 %v3778
      %v3863 = vpop.f32.mrb[0].mxu0
      %v3864 = vadd.f32 0.0, %v3863
      %v3865 = vpop.f32.mrb[0].mxu0
      %v3866 = vpop.f32.mrb[0].mxu0
      %v3867 = vadd.f32 0.0, %v3866
      %v3868 = vpop.f32.mrb[0].mxu0
      %3869 = vmatprep.mubr.bf16.mxu0 0
      %3870 = vmatmul.mubr.bf16.gmra.mrb[0].mxu0 %v3781
      %v3871 = vpop.f32.mrb[0].mxu0
      %v3872 = vadd.f32 0.0, %v3871
      %v3873 = vpop.f32.mrb[0].mxu0
      %v3874 = vpop.f32.mrb[0].mxu0
      %v3875 = vadd.f32 0.0, %v3874
      %v3876 = vpop.f32.mrb[0].mxu0
      %3877 = vmatprep.mubr.bf16.mxu0 0
      %3878 = vmatmul.mubr.bf16.gmra.mrb[0].mxu0 %v3784
      %v3879 = vpop.f32.mrb[0].mxu0
      %v3880 = vadd.f32 0.0, %v3879
      %v3881 = vpop.f32.mrb[0].mxu0
      %v3882 = vpop.f32.mrb[0].mxu0
      %v3883 = vadd.f32 0.0, %v3882
      %v3884 = vpop.f32.mrb[0].mxu0
      %3885 = vdwg.mxu0
      %v3886 = vadd.f32 %v3690, %v3824
      %v3887 = vadd.f32 %v3691, %v3827
      %v3888 = vadd.f32 %v3692, %v3832
      %v3889 = vadd.f32 %v3693, %v3835
      %v3890 = vadd.f32 %v3694, %v3840
      %v3891 = vadd.f32 %v3695, %v3843
      %v3892 = vadd.f32 %v3696, %v3848
      %v3893 = vadd.f32 %v3697, %v3851
      %v3894 = vadd.f32 %v3698, %v3856
      %v3895 = vadd.f32 %v3699, %v3859
      %v3896 = vadd.f32 %v3700, %v3864
      %v3897 = vadd.f32 %v3701, %v3867
      %v3898 = vadd.f32 %v3702, %v3872
      %v3899 = vadd.f32 %v3703, %v3875
      %v3900 = vadd.f32 %v3704, %v3880
      %v3901 = vadd.f32 %v3705, %v3883
      %s3902 = scalar_lea.vmem %s1, 38
      %v3903 = vld [vmem:[%s3902] sm:$0x3]
      %v3905 = vshrl.u32 %v3725, 16
      %v3907 = vrot.slane %v3905, 1
      %v3908 = vshll.u32 %v3725, 16
      %v3910 = vrot.slane %v3908, 2
      %v3911 = vor.u32 %v3907, %v3910
      %v3913 = vshrl.u32 %v3726, 16
      %v3915 = vrot.slane %v3913, 1
      %v3916 = vshll.u32 %v3726, 16
      %v3918 = vrot.slane %v3916, 2
      %v3919 = vor.u32 %v3915, %v3918
      %v3920 = vsel %vm1192, %v3911, %v3919
      %v3922 = vshrl.u32 %v3727, 16
      %v3924 = vrot.slane %v3922, 1
      %v3925 = vshll.u32 %v3727, 16
      %v3927 = vrot.slane %v3925, 2
      %v3928 = vor.u32 %v3924, %v3927
      %v3929 = vsel %vm1192, %v3919, %v3928
      %v3931 = vshrl.u32 %v3728, 16
      %v3933 = vrot.slane %v3931, 1
      %v3934 = vshll.u32 %v3728, 16
      %v3936 = vrot.slane %v3934, 2
      %v3937 = vor.u32 %v3933, %v3936
      %v3938 = vsel %vm1192, %v3928, %v3937
      %v3940 = vshrl.u32 %v3729, 16
      %v3942 = vrot.slane %v3940, 1
      %v3943 = vshll.u32 %v3729, 16
      %v3945 = vrot.slane %v3943, 2
      %v3946 = vor.u32 %v3942, %v3945
      %v3947 = vsel %vm1192, %v3937, %v3946
      %v3949 = vshrl.u32 %v3730, 16
      %v3951 = vrot.slane %v3949, 1
      %v3952 = vshll.u32 %v3730, 16
      %v3954 = vrot.slane %v3952, 2
      %v3955 = vor.u32 %v3951, %v3954
      %v3956 = vsel %vm1192, %v3946, %v3955
      %v3958 = vshrl.u32 %v3731, 16
      %v3960 = vrot.slane %v3958, 1
      %v3961 = vshll.u32 %v3731, 16
      %v3963 = vrot.slane %v3961, 2
      %v3964 = vor.u32 %v3960, %v3963
      %v3965 = vsel %vm1192, %v3955, %v3964
      %v3967 = vshrl.u32 %v3732, 16
      %v3969 = vrot.slane %v3967, 1
      %v3970 = vshll.u32 %v3732, 16
      %v3972 = vrot.slane %v3970, 2
      %v3973 = vor.u32 %v3969, %v3972
      %v3974 = vsel %vm1192, %v3964, %v3973
      %v3976 = vshrl.u32 %v3733, 16
      %v3978 = vrot.slane %v3976, 1
      %v3979 = vshll.u32 %v3733, 16
      %v3981 = vrot.slane %v3979, 2
      %v3982 = vor.u32 %v3978, %v3981
      %v3983 = vsel %vm1192, %v3973, %v3982
      %v3985 = vsel %vm373, %v3920, 0
      %v3988 = vsel %vm373, %v3929, 0
      %v3991 = vsel %vm373, %v3938, 0
      %v3994 = vsel %vm373, %v3947, 0
      %v3997 = vsel %vm373, %v3956, 0
      %v4000 = vsel %vm373, %v3965, 0
      %v4003 = vsel %vm373, %v3974, 0
      %v4006 = vsel %vm373, %v3983, 0
      %v4009 = vsel %vm398, %v3903, 0
      %4011 = vmatprep.subr.bf16.mxu0 0
      %4012 = vmatpush1.bf16.msra.mxu0 %v4009
      %4013 = vmatprep.subr.bf16.mxu0 0
      %4014 = vmatpush1.bf16.msra.mxu0 0
      %4015 = vmatprep.subr.bf16.mxu0 0
      %4016 = vmatpush1.bf16.msra.mxu0 0
      %4017 = vmatprep.subr.bf16.mxu0 0
      %4018 = vmatpush1.bf16.msra.mxu0 0
      %4019 = vmatprep.subr.bf16.mxu0 0
      %4020 = vmatpush1.bf16.msra.mxu0 0
      %4021 = vmatprep.subr.bf16.mxu0 0
      %4022 = vmatpush1.bf16.msra.mxu0 0
      %4023 = vmatprep.subr.bf16.mxu0 0
      %4024 = vmatpush1.bf16.msra.mxu0 0
      %4025 = vmatprep.subr.bf16.mxu0 0
      %4026 = vmatpush1.bf16.msra.mxu0 0
      %4027 = vmatprep.subr.bf16.mxu0 0
      %4028 = vmatpush1.bf16.msra.mxu0 0
      %4029 = vmatprep.subr.bf16.mxu0 0
      %4030 = vmatpush1.bf16.msra.mxu0 0
      %4031 = vmatprep.subr.bf16.mxu0 0
      %4032 = vmatpush1.bf16.msra.mxu0 0
      %4033 = vmatprep.subr.bf16.mxu0 0
      %4034 = vmatpush1.bf16.msra.mxu0 0
      %4035 = vmatprep.subr.bf16.mxu0 0
      %4036 = vmatpush1.bf16.msra.mxu0 0
      %4037 = vmatprep.subr.bf16.mxu0 0
      %4038 = vmatpush1.bf16.msra.mxu0 0
      %4039 = vmatprep.subr.bf16.mxu0 0
      %4040 = vmatpush1.bf16.msra.mxu0 0
      %4041 = vmatprep.subr.bf16.mxu0 0
      %4042 = vmatpush1.bf16.msra.mxu0 0
      %4043 = vmatprep.mubr.bf16.mxu0 0
      %4044 = vmatmul.mubr.bf16.gmra.mrb[0].mxu0 %v3985
      %v4045 = vpop.f32.mrb[0].mxu0
      %v4046 = vadd.f32 0.0, %v4045
      %v4047 = vpop.f32.mrb[0].mxu0
      %v4048 = vpop.f32.mrb[0].mxu0
      %v4049 = vadd.f32 0.0, %v4048
      %v4050 = vpop.f32.mrb[0].mxu0
      %4051 = vmatprep.mubr.bf16.mxu0 0
      %4052 = vmatmul.mubr.bf16.gmra.mrb[0].mxu0 %v3988
      %v4053 = vpop.f32.mrb[0].mxu0
      %v4054 = vadd.f32 0.0, %v4053
      %v4055 = vpop.f32.mrb[0].mxu0
      %v4056 = vpop.f32.mrb[0].mxu0
      %v4057 = vadd.f32 0.0, %v4056
      %v4058 = vpop.f32.mrb[0].mxu0
      %4059 = vmatprep.mubr.bf16.mxu0 0
      %4060 = vmatmul.mubr.bf16.gmra.mrb[0].mxu0 %v3991
      %v4061 = vpop.f32.mrb[0].mxu0
      %v4062 = vadd.f32 0.0, %v4061
      %v4063 = vpop.f32.mrb[0].mxu0
      %v4064 = vpop.f32.mrb[0].mxu0
      %v4065 = vadd.f32 0.0, %v4064
      %v4066 = vpop.f32.mrb[0].mxu0
      %4067 = vmatprep.mubr.bf16.mxu0 0
      %4068 = vmatmul.mubr.bf16.gmra.mrb[0].mxu0 %v3994
      %v4069 = vpop.f32.mrb[0].mxu0
      %v4070 = vadd.f32 0.0, %v4069
      %v4071 = vpop.f32.mrb[0].mxu0
      %v4072 = vpop.f32.mrb[0].mxu0
      %v4073 = vadd.f32 0.0, %v4072
      %v4074 = vpop.f32.mrb[0].mxu0
      %4075 = vmatprep.mubr.bf16.mxu0 0
      %4076 = vmatmul.mubr.bf16.gmra.mrb[0].mxu0 %v3997
      %v4077 = vpop.f32.mrb[0].mxu0
      %v4078 = vadd.f32 0.0, %v4077
      %v4079 = vpop.f32.mrb[0].mxu0
      %v4080 = vpop.f32.mrb[0].mxu0
      %v4081 = vadd.f32 0.0, %v4080
      %v4082 = vpop.f32.mrb[0].mxu0
      %4083 = vmatprep.mubr.bf16.mxu0 0
      %4084 = vmatmul.mubr.bf16.gmra.mrb[0].mxu0 %v4000
      %v4085 = vpop.f32.mrb[0].mxu0
      %v4086 = vadd.f32 0.0, %v4085
      %v4087 = vpop.f32.mrb[0].mxu0
      %v4088 = vpop.f32.mrb[0].mxu0
      %v4089 = vadd.f32 0.0, %v4088
      %v4090 = vpop.f32.mrb[0].mxu0
      %4091 = vmatprep.mubr.bf16.mxu0 0
      %4092 = vmatmul.mubr.bf16.gmra.mrb[0].mxu0 %v4003
      %v4093 = vpop.f32.mrb[0].mxu0
      %v4094 = vadd.f32 0.0, %v4093
      %v4095 = vpop.f32.mrb[0].mxu0
      %v4096 = vpop.f32.mrb[0].mxu0
      %v4097 = vadd.f32 0.0, %v4096
      %v4098 = vpop.f32.mrb[0].mxu0
      %4099 = vmatprep.mubr.bf16.mxu0 0
      %4100 = vmatmul.mubr.bf16.gmra.mrb[0].mxu0 %v4006
      %v4101 = vpop.f32.mrb[0].mxu0
      %v4102 = vadd.f32 0.0, %v4101
      %v4103 = vpop.f32.mrb[0].mxu0
      %v4104 = vpop.f32.mrb[0].mxu0
      %v4105 = vadd.f32 0.0, %v4104
      %v4106 = vpop.f32.mrb[0].mxu0
      %4107 = vdwg.mxu0
      %v4108 = vadd.f32 %v3886, %v4046
      %v4109 = vadd.f32 %v3887, %v4049
      %v4110 = vadd.f32 %v3888, %v4054
      %v4111 = vadd.f32 %v3889, %v4057
      %v4112 = vadd.f32 %v3890, %v4062
      %v4113 = vadd.f32 %v3891, %v4065
      %v4114 = vadd.f32 %v3892, %v4070
      %v4115 = vadd.f32 %v3893, %v4073
      %v4116 = vadd.f32 %v3894, %v4078
      %v4117 = vadd.f32 %v3895, %v4081
      %v4118 = vadd.f32 %v3896, %v4086
      %v4119 = vadd.f32 %v3897, %v4089
      %v4120 = vadd.f32 %v3898, %v4094
      %v4121 = vadd.f32 %v3899, %v4097
      %v4122 = vadd.f32 %v3900, %v4102
      %v4123 = vadd.f32 %v3901, %v4105
      %s4124 = scalar_lea.vmem %s1, 40
      %v4125 = vld [vmem:[%s4124] sm:$0x3]
      %v4126 = vrot.slane %v3725, 2
      %v4127 = vrot.slane %v3726, 2
      %v4128 = vsel %vm1790, %v4126, %v4127
      %v4129 = vrot.slane %v3727, 2
      %v4130 = vsel %vm1790, %v4127, %v4129
      %v4131 = vrot.slane %v3728, 2
      %v4132 = vsel %vm1790, %v4129, %v4131
      %v4133 = vrot.slane %v3729, 2
      %v4134 = vsel %vm1790, %v4131, %v4133
      %v4135 = vrot.slane %v3730, 2
      %v4136 = vsel %vm1790, %v4133, %v4135
      %v4137 = vrot.slane %v3731, 2
      %v4138 = vsel %vm1790, %v4135, %v4137
      %v4139 = vrot.slane %v3732, 2
      %v4140 = vsel %vm1790, %v4137, %v4139
      %v4141 = vrot.slane %v3733, 2
      %v4142 = vsel %vm1790, %v4139, %v4141
      %v4144 = vsel %vm373, %v4128, 0
      %v4147 = vsel %vm373, %v4130, 0
      %v4150 = vsel %vm373, %v4132, 0
      %v4153 = vsel %vm373, %v4134, 0
      %v4156 = vsel %vm373, %v4136, 0
      %v4159 = vsel %vm373, %v4138, 0
      %v4162 = vsel %vm373, %v4140, 0
      %v4165 = vsel %vm373, %v4142, 0
      %v4168 = vsel %vm398, %v4125, 0
      %4170 = vmatprep.subr.bf16.mxu0 0
      %4171 = vmatpush1.bf16.msra.mxu0 %v4168
      %4172 = vmatprep.subr.bf16.mxu0 0
      %4173 = vmatpush1.bf16.msra.mxu0 0
      %4174 = vmatprep.subr.bf16.mxu0 0
      %4175 = vmatpush1.bf16.msra.mxu0 0
      %4176 = vmatprep.subr.bf16.mxu0 0
      %4177 = vmatpush1.bf16.msra.mxu0 0
      %4178 = vmatprep.subr.bf16.mxu0 0
      %4179 = vmatpush1.bf16.msra.mxu0 0
      %4180 = vmatprep.subr.bf16.mxu0 0
      %4181 = vmatpush1.bf16.msra.mxu0 0
      %4182 = vmatprep.subr.bf16.mxu0 0
      %4183 = vmatpush1.bf16.msra.mxu0 0
      %4184 = vmatprep.subr.bf16.mxu0 0
      %4185 = vmatpush1.bf16.msra.mxu0 0
      %4186 = vmatprep.subr.bf16.mxu0 0
      %4187 = vmatpush1.bf16.msra.mxu0 0
      %4188 = vmatprep.subr.bf16.mxu0 0
      %4189 = vmatpush1.bf16.msra.mxu0 0
      %4190 = vmatprep.subr.bf16.mxu0 0
      %4191 = vmatpush1.bf16.msra.mxu0 0
      %4192 = vmatprep.subr.bf16.mxu0 0
      %4193 = vmatpush1.bf16.msra.mxu0 0
      %4194 = vmatprep.subr.bf16.mxu0 0
      %4195 = vmatpush1.bf16.msra.mxu0 0
      %4196 = vmatprep.subr.bf16.mxu0 0
      %4197 = vmatpush1.bf16.msra.mxu0 0
      %4198 = vmatprep.subr.bf16.mxu0 0
      %4199 = vmatpush1.bf16.msra.mxu0 0
      %4200 = vmatprep.subr.bf16.mxu0 0
      %4201 = vmatpush1.bf16.msra.mxu0 0
      %4202 = vmatprep.mubr.bf16.mxu0 0
      %4203 = vmatmul.mubr.bf16.gmra.mrb[0].mxu0 %v4144
      %v4204 = vpop.f32.mrb[0].mxu0
      %v4205 = vadd.f32 0.0, %v4204
      %v4206 = vpop.f32.mrb[0].mxu0
      %v4207 = vpop.f32.mrb[0].mxu0
      %v4208 = vadd.f32 0.0, %v4207
      %v4209 = vpop.f32.mrb[0].mxu0
      %4210 = vmatprep.mubr.bf16.mxu0 0
      %4211 = vmatmul.mubr.bf16.gmra.mrb[0].mxu0 %v4147
      %v4212 = vpop.f32.mrb[0].mxu0
      %v4213 = vadd.f32 0.0, %v4212
      %v4214 = vpop.f32.mrb[0].mxu0
      %v4215 = vpop.f32.mrb[0].mxu0
      %v4216 = vadd.f32 0.0, %v4215
      %v4217 = vpop.f32.mrb[0].mxu0
      %4218 = vmatprep.mubr.bf16.mxu0 0
      %4219 = vmatmul.mubr.bf16.gmra.mrb[0].mxu0 %v4150
      %v4220 = vpop.f32.mrb[0].mxu0
      %v4221 = vadd.f32 0.0, %v4220
      %v4222 = vpop.f32.mrb[0].mxu0
      %v4223 = vpop.f32.mrb[0].mxu0
      %v4224 = vadd.f32 0.0, %v4223
      %v4225 = vpop.f32.mrb[0].mxu0
      %4226 = vmatprep.mubr.bf16.mxu0 0
      %4227 = vmatmul.mubr.bf16.gmra.mrb[0].mxu0 %v4153
      %v4228 = vpop.f32.mrb[0].mxu0
      %v4229 = vadd.f32 0.0, %v4228
      %v4230 = vpop.f32.mrb[0].mxu0
      %v4231 = vpop.f32.mrb[0].mxu0
      %v4232 = vadd.f32 0.0, %v4231
      %v4233 = vpop.f32.mrb[0].mxu0
      %4234 = vmatprep.mubr.bf16.mxu0 0
      %4235 = vmatmul.mubr.bf16.gmra.mrb[0].mxu0 %v4156
      %v4236 = vpop.f32.mrb[0].mxu0
      %v4237 = vadd.f32 0.0, %v4236
      %v4238 = vpop.f32.mrb[0].mxu0
      %v4239 = vpop.f32.mrb[0].mxu0
      %v4240 = vadd.f32 0.0, %v4239
      %v4241 = vpop.f32.mrb[0].mxu0
      %4242 = vmatprep.mubr.bf16.mxu0 0
      %4243 = vmatmul.mubr.bf16.gmra.mrb[0].mxu0 %v4159
      %v4244 = vpop.f32.mrb[0].mxu0
      %v4245 = vadd.f32 0.0, %v4244
      %v4246 = vpop.f32.mrb[0].mxu0
      %v4247 = vpop.f32.mrb[0].mxu0
      %v4248 = vadd.f32 0.0, %v4247
      %v4249 = vpop.f32.mrb[0].mxu0
      %4250 = vmatprep.mubr.bf16.mxu0 0
      %4251 = vmatmul.mubr.bf16.gmra.mrb[0].mxu0 %v4162
      %v4252 = vpop.f32.mrb[0].mxu0
      %v4253 = vadd.f32 0.0, %v4252
      %v4254 = vpop.f32.mrb[0].mxu0
      %v4255 = vpop.f32.mrb[0].mxu0
      %v4256 = vadd.f32 0.0, %v4255
      %v4257 = vpop.f32.mrb[0].mxu0
      %4258 = vmatprep.mubr.bf16.mxu0 0
      %4259 = vmatmul.mubr.bf16.gmra.mrb[0].mxu0 %v4165
      %v4260 = vpop.f32.mrb[0].mxu0
      %v4261 = vadd.f32 0.0, %v4260
      %v4262 = vpop.f32.mrb[0].mxu0
      %v4263 = vpop.f32.mrb[0].mxu0
      %v4264 = vadd.f32 0.0, %v4263
      %v4265 = vpop.f32.mrb[0].mxu0
      %4266 = vdwg.mxu0
      %v4267 = vadd.f32 %v4108, %v4205
      %v4268 = vadd.f32 %v4109, %v4208
      %v4269 = vadd.f32 %v4110, %v4213
      %v4270 = vadd.f32 %v4111, %v4216
      %v4271 = vadd.f32 %v4112, %v4221
      %v4272 = vadd.f32 %v4113, %v4224
      %v4273 = vadd.f32 %v4114, %v4229
      %v4274 = vadd.f32 %v4115, %v4232
      %v4275 = vadd.f32 %v4116, %v4237
      %v4276 = vadd.f32 %v4117, %v4240
      %v4277 = vadd.f32 %v4118, %v4245
      %v4278 = vadd.f32 %v4119, %v4248
      %v4279 = vadd.f32 %v4120, %v4253
      %v4280 = vadd.f32 %v4121, %v4256
      %v4281 = vadd.f32 %v4122, %v4261
      %v4282 = vadd.f32 %v4123, %v4264
      %s4283 = sadd.s32 %s273, 168
      %s4284 = scalar_lea.vmem %s0, %s4283
      %v4285 = vld [vmem:[%s4284] sm:$0xff]
      %v4286 = vld [vmem:[%s4284 + $0x8] sm:$0xff]
      %v4287 = vld [vmem:[%s4284 + $0x10] sm:$0xff]
      %v4288 = vld [vmem:[%s4284 + $0x18] sm:$0xff]
      %v4289 = vld [vmem:[%s4284 + $0x20] sm:$0xff]
      %v4290 = vld [vmem:[%s4284 + $0x28] sm:$0xff]
      %v4291 = vld [vmem:[%s4284 + $0x30] sm:$0xff]
      %v4292 = vld [vmem:[%s4284 + $0x38] sm:$0xff]
      %v4293 = vld [vmem:[%s4284 + $0x40] sm:$0xff]
      %v4294 = vld [vmem:[%s4284 + $0x48] sm:$0xff]
      %v4295 = vld [vmem:[%s4284 + $0x50] sm:$0xff]
      %v4296 = vld [vmem:[%s4284 + $0x58] sm:$0xff]
      %v4297 = vld [vmem:[%s4284 + $0x60] sm:$0xff]
      %v4298 = vld [vmem:[%s4284 + $0x68] sm:$0xff]
      %v4299 = vld [vmem:[%s4284 + $0x70] sm:$0xff]
      %v4300 = vld [vmem:[%s4284 + $0x78] sm:$0xff]
      %v4301 = vld [vmem:[%s4284 + $0x80] sm:$0xff]
      %v4302 = vpack.c.bf16 %v4286, %v4285
      %v4303 = vpack.c.bf16 %v4288, %v4287
      %v4304 = vpack.c.bf16 %v4290, %v4289
      %v4305 = vpack.c.bf16 %v4292, %v4291
      %v4306 = vpack.c.bf16 %v4294, %v4293
      %v4307 = vpack.c.bf16 %v4296, %v4295
      %v4308 = vpack.c.bf16 %v4298, %v4297
      %v4309 = vpack.c.bf16 %v4300, %v4299
      %v4310 = vpack.c.bf16 %v4301, %v4301
      %s4311 = scalar_lea.vmem %s1, 42
      %v4312 = vld [vmem:[%s4311] sm:$0x3]
      %v4314 = vshrl.u32 %v4302, 16
      %v4316 = vrot.slane %v4314, 1
      %v4317 = vshll.u32 %v4302, 16
      %v4319 = vrot.slane %v4317, 2
      %v4320 = vor.u32 %v4316, %v4319
      %v4322 = vshrl.u32 %v4303, 16
      %v4324 = vrot.slane %v4322, 1
      %v4325 = vshll.u32 %v4303, 16
      %v4327 = vrot.slane %v4325, 2
      %v4328 = vor.u32 %v4324, %v4327
      %v4329 = vsel %vm1192, %v4320, %v4328
      %v4331 = vshrl.u32 %v4304, 16
      %v4333 = vrot.slane %v4331, 1
      %v4334 = vshll.u32 %v4304, 16
      %v4336 = vrot.slane %v4334, 2
      %v4337 = vor.u32 %v4333, %v4336
      %v4338 = vsel %vm1192, %v4328, %v4337
      %v4340 = vshrl.u32 %v4305, 16
      %v4342 = vrot.slane %v4340, 1
      %v4343 = vshll.u32 %v4305, 16
      %v4345 = vrot.slane %v4343, 2
      %v4346 = vor.u32 %v4342, %v4345
      %v4347 = vsel %vm1192, %v4337, %v4346
      %v4349 = vshrl.u32 %v4306, 16
      %v4351 = vrot.slane %v4349, 1
      %v4352 = vshll.u32 %v4306, 16
      %v4354 = vrot.slane %v4352, 2
      %v4355 = vor.u32 %v4351, %v4354
      %v4356 = vsel %vm1192, %v4346, %v4355
      %v4358 = vshrl.u32 %v4307, 16
      %v4360 = vrot.slane %v4358, 1
      %v4361 = vshll.u32 %v4307, 16
      %v4363 = vrot.slane %v4361, 2
      %v4364 = vor.u32 %v4360, %v4363
      %v4365 = vsel %vm1192, %v4355, %v4364
      %v4367 = vshrl.u32 %v4308, 16
      %v4369 = vrot.slane %v4367, 1
      %v4370 = vshll.u32 %v4308, 16
      %v4372 = vrot.slane %v4370, 2
      %v4373 = vor.u32 %v4369, %v4372
      %v4374 = vsel %vm1192, %v4364, %v4373
      %v4376 = vshrl.u32 %v4309, 16
      %v4378 = vrot.slane %v4376, 1
      %v4379 = vshll.u32 %v4309, 16
      %v4381 = vrot.slane %v4379, 2
      %v4382 = vor.u32 %v4378, %v4381
      %v4383 = vsel %vm1192, %v4373, %v4382
      %v4385 = vshrl.u32 %v4310, 16
      %v4387 = vrot.slane %v4385, 1
      %v4388 = vshll.u32 %v4310, 16
      %v4390 = vrot.slane %v4388, 2
      %v4391 = vor.u32 %v4387, %v4390
      %v4392 = vsel %vm1192, %v4382, %v4391
      %v4394 = vsel %vm373, %v4329, 0
      %v4397 = vsel %vm373, %v4338, 0
      %v4400 = vsel %vm373, %v4347, 0
      %v4403 = vsel %vm373, %v4356, 0
      %v4406 = vsel %vm373, %v4365, 0
      %v4409 = vsel %vm373, %v4374, 0
      %v4412 = vsel %vm373, %v4383, 0
      %v4415 = vsel %vm373, %v4392, 0
      %v4418 = vsel %vm398, %v4312, 0
      %4420 = vmatprep.subr.bf16.mxu0 0
      %4421 = vmatpush1.bf16.msra.mxu0 %v4418
      %4422 = vmatprep.subr.bf16.mxu0 0
      %4423 = vmatpush1.bf16.msra.mxu0 0
      %4424 = vmatprep.subr.bf16.mxu0 0
      %4425 = vmatpush1.bf16.msra.mxu0 0
      %4426 = vmatprep.subr.bf16.mxu0 0
      %4427 = vmatpush1.bf16.msra.mxu0 0
      %4428 = vmatprep.subr.bf16.mxu0 0
      %4429 = vmatpush1.bf16.msra.mxu0 0
      %4430 = vmatprep.subr.bf16.mxu0 0
      %4431 = vmatpush1.bf16.msra.mxu0 0
      %4432 = vmatprep.subr.bf16.mxu0 0
      %4433 = vmatpush1.bf16.msra.mxu0 0
      %4434 = vmatprep.subr.bf16.mxu0 0
      %4435 = vmatpush1.bf16.msra.mxu0 0
      %4436 = vmatprep.subr.bf16.mxu0 0
      %4437 = vmatpush1.bf16.msra.mxu0 0
      %4438 = vmatprep.subr.bf16.mxu0 0
      %4439 = vmatpush1.bf16.msra.mxu0 0
      %4440 = vmatprep.subr.bf16.mxu0 0
      %4441 = vmatpush1.bf16.msra.mxu0 0
      %4442 = vmatprep.subr.bf16.mxu0 0
      %4443 = vmatpush1.bf16.msra.mxu0 0
      %4444 = vmatprep.subr.bf16.mxu0 0
      %4445 = vmatpush1.bf16.msra.mxu0 0
      %4446 = vmatprep.subr.bf16.mxu0 0
      %4447 = vmatpush1.bf16.msra.mxu0 0
      %4448 = vmatprep.subr.bf16.mxu0 0
      %4449 = vmatpush1.bf16.msra.mxu0 0
      %4450 = vmatprep.subr.bf16.mxu0 0
      %4451 = vmatpush1.bf16.msra.mxu0 0
      %4452 = vmatprep.mubr.bf16.mxu0 0
      %4453 = vmatmul.mubr.bf16.gmra.mrb[0].mxu0 %v4394
      %v4454 = vpop.f32.mrb[0].mxu0
      %v4455 = vadd.f32 0.0, %v4454
      %v4456 = vpop.f32.mrb[0].mxu0
      %v4457 = vpop.f32.mrb[0].mxu0
      %v4458 = vadd.f32 0.0, %v4457
      %v4459 = vpop.f32.mrb[0].mxu0
      %4460 = vmatprep.mubr.bf16.mxu0 0
      %4461 = vmatmul.mubr.bf16.gmra.mrb[0].mxu0 %v4397
      %v4462 = vpop.f32.mrb[0].mxu0
      %v4463 = vadd.f32 0.0, %v4462
      %v4464 = vpop.f32.mrb[0].mxu0
      %v4465 = vpop.f32.mrb[0].mxu0
      %v4466 = vadd.f32 0.0, %v4465
      %v4467 = vpop.f32.mrb[0].mxu0
      %4468 = vmatprep.mubr.bf16.mxu0 0
      %4469 = vmatmul.mubr.bf16.gmra.mrb[0].mxu0 %v4400
      %v4470 = vpop.f32.mrb[0].mxu0
      %v4471 = vadd.f32 0.0, %v4470
      %v4472 = vpop.f32.mrb[0].mxu0
      %v4473 = vpop.f32.mrb[0].mxu0
      %v4474 = vadd.f32 0.0, %v4473
      %v4475 = vpop.f32.mrb[0].mxu0
      %4476 = vmatprep.mubr.bf16.mxu0 0
      %4477 = vmatmul.mubr.bf16.gmra.mrb[0].mxu0 %v4403
      %v4478 = vpop.f32.mrb[0].mxu0
      %v4479 = vadd.f32 0.0, %v4478
      %v4480 = vpop.f32.mrb[0].mxu0
      %v4481 = vpop.f32.mrb[0].mxu0
      %v4482 = vadd.f32 0.0, %v4481
      %v4483 = vpop.f32.mrb[0].mxu0
      %4484 = vmatprep.mubr.bf16.mxu0 0
      %4485 = vmatmul.mubr.bf16.gmra.mrb[0].mxu0 %v4406
      %v4486 = vpop.f32.mrb[0].mxu0
      %v4487 = vadd.f32 0.0, %v4486
      %v4488 = vpop.f32.mrb[0].mxu0
      %v4489 = vpop.f32.mrb[0].mxu0
      %v4490 = vadd.f32 0.0, %v4489
      %v4491 = vpop.f32.mrb[0].mxu0
      %4492 = vmatprep.mubr.bf16.mxu0 0
      %4493 = vmatmul.mubr.bf16.gmra.mrb[0].mxu0 %v4409
      %v4494 = vpop.f32.mrb[0].mxu0
      %v4495 = vadd.f32 0.0, %v4494
      %v4496 = vpop.f32.mrb[0].mxu0
      %v4497 = vpop.f32.mrb[0].mxu0
      %v4498 = vadd.f32 0.0, %v4497
      %v4499 = vpop.f32.mrb[0].mxu0
      %4500 = vmatprep.mubr.bf16.mxu0 0
      %4501 = vmatmul.mubr.bf16.gmra.mrb[0].mxu0 %v4412
      %v4502 = vpop.f32.mrb[0].mxu0
      %v4503 = vadd.f32 0.0, %v4502
      %v4504 = vpop.f32.mrb[0].mxu0
      %v4505 = vpop.f32.mrb[0].mxu0
      %v4506 = vadd.f32 0.0, %v4505
      %v4507 = vpop.f32.mrb[0].mxu0
      %4508 = vmatprep.mubr.bf16.mxu0 0
      %4509 = vmatmul.mubr.bf16.gmra.mrb[0].mxu0 %v4415
      %v4510 = vpop.f32.mrb[0].mxu0
      %v4511 = vadd.f32 0.0, %v4510
      %v4512 = vpop.f32.mrb[0].mxu0
      %v4513 = vpop.f32.mrb[0].mxu0
      %v4514 = vadd.f32 0.0, %v4513
      %v4515 = vpop.f32.mrb[0].mxu0
      %4516 = vdwg.mxu0
      %v4517 = vadd.f32 %v4267, %v4455
      %v4518 = vadd.f32 %v4268, %v4458
      %v4519 = vadd.f32 %v4269, %v4463
      %v4520 = vadd.f32 %v4270, %v4466
      %v4521 = vadd.f32 %v4271, %v4471
      %v4522 = vadd.f32 %v4272, %v4474
      %v4523 = vadd.f32 %v4273, %v4479
      %v4524 = vadd.f32 %v4274, %v4482
      %v4525 = vadd.f32 %v4275, %v4487
      %v4526 = vadd.f32 %v4276, %v4490
      %v4527 = vadd.f32 %v4277, %v4495
      %v4528 = vadd.f32 %v4278, %v4498
      %v4529 = vadd.f32 %v4279, %v4503
      %v4530 = vadd.f32 %v4280, %v4506
      %v4531 = vadd.f32 %v4281, %v4511
      %v4532 = vadd.f32 %v4282, %v4514
      %s4533 = scalar_lea.vmem %s1, 44
      %v4534 = vld [vmem:[%s4533] sm:$0x3]
      %v4544 = vrot.slane %v4302, 2
      %v4545 = vrot.slane %v4303, 2
      %v4546 = vsel %vm1790, %v4544, %v4545
      %v4547 = vrot.slane %v4304, 2
      %v4548 = vsel %vm1790, %v4545, %v4547
      %v4549 = vrot.slane %v4305, 2
      %v4550 = vsel %vm1790, %v4547, %v4549
      %v4551 = vrot.slane %v4306, 2
      %v4552 = vsel %vm1790, %v4549, %v4551
      %v4553 = vrot.slane %v4307, 2
      %v4554 = vsel %vm1790, %v4551, %v4553
      %v4555 = vrot.slane %v4308, 2
      %v4556 = vsel %vm1790, %v4553, %v4555
      %v4557 = vrot.slane %v4309, 2
      %v4558 = vsel %vm1790, %v4555, %v4557
      %v4559 = vrot.slane %v4310, 2
      %v4560 = vsel %vm1790, %v4557, %v4559
      %v4562 = vsel %vm373, %v4546, 0
      %v4565 = vsel %vm373, %v4548, 0
      %v4568 = vsel %vm373, %v4550, 0
      %v4571 = vsel %vm373, %v4552, 0
      %v4574 = vsel %vm373, %v4554, 0
      %v4577 = vsel %vm373, %v4556, 0
      %v4580 = vsel %vm373, %v4558, 0
      %v4583 = vsel %vm373, %v4560, 0
      %v4586 = vsel %vm398, %v4534, 0
      %4588 = vmatprep.subr.bf16.mxu0 0
      %4589 = vmatpush1.bf16.msra.mxu0 %v4586
      %4590 = vmatprep.subr.bf16.mxu0 0
      %4591 = vmatpush1.bf16.msra.mxu0 0
      %4592 = vmatprep.subr.bf16.mxu0 0
      %4593 = vmatpush1.bf16.msra.mxu0 0
      %4594 = vmatprep.subr.bf16.mxu0 0
      %4595 = vmatpush1.bf16.msra.mxu0 0
      %4596 = vmatprep.subr.bf16.mxu0 0
      %4597 = vmatpush1.bf16.msra.mxu0 0
      %4598 = vmatprep.subr.bf16.mxu0 0
      %4599 = vmatpush1.bf16.msra.mxu0 0
      %4600 = vmatprep.subr.bf16.mxu0 0
      %4601 = vmatpush1.bf16.msra.mxu0 0
      %4602 = vmatprep.subr.bf16.mxu0 0
      %4603 = vmatpush1.bf16.msra.mxu0 0
      %4604 = vmatprep.subr.bf16.mxu0 0
      %4605 = vmatpush1.bf16.msra.mxu0 0
      %4606 = vmatprep.subr.bf16.mxu0 0
      %4607 = vmatpush1.bf16.msra.mxu0 0
      %4608 = vmatprep.subr.bf16.mxu0 0
      %4609 = vmatpush1.bf16.msra.mxu0 0
      %4610 = vmatprep.subr.bf16.mxu0 0
      %4611 = vmatpush1.bf16.msra.mxu0 0
      %4612 = vmatprep.subr.bf16.mxu0 0
      %4613 = vmatpush1.bf16.msra.mxu0 0
      %4614 = vmatprep.subr.bf16.mxu0 0
      %4615 = vmatpush1.bf16.msra.mxu0 0
      %4616 = vmatprep.subr.bf16.mxu0 0
      %4617 = vmatpush1.bf16.msra.mxu0 0
      %4618 = vmatprep.subr.bf16.mxu0 0
      %4619 = vmatpush1.bf16.msra.mxu0 0
      %4620 = vmatprep.mubr.bf16.mxu0 0
      %4621 = vmatmul.mubr.bf16.gmra.mrb[0].mxu0 %v4562
      %v4622 = vpop.f32.mrb[0].mxu0
      %v4623 = vadd.f32 0.0, %v4622
      %v4624 = vpop.f32.mrb[0].mxu0
      %v4625 = vpop.f32.mrb[0].mxu0
      %v4626 = vadd.f32 0.0, %v4625
      %v4627 = vpop.f32.mrb[0].mxu0
      %4628 = vmatprep.mubr.bf16.mxu0 0
      %4629 = vmatmul.mubr.bf16.gmra.mrb[0].mxu0 %v4565
      %v4630 = vpop.f32.mrb[0].mxu0
      %v4631 = vadd.f32 0.0, %v4630
      %v4632 = vpop.f32.mrb[0].mxu0
      %v4633 = vpop.f32.mrb[0].mxu0
      %v4634 = vadd.f32 0.0, %v4633
      %v4635 = vpop.f32.mrb[0].mxu0
      %4636 = vmatprep.mubr.bf16.mxu0 0
      %4637 = vmatmul.mubr.bf16.gmra.mrb[0].mxu0 %v4568
      %v4638 = vpop.f32.mrb[0].mxu0
      %v4639 = vadd.f32 0.0, %v4638
      %v4640 = vpop.f32.mrb[0].mxu0
      %v4641 = vpop.f32.mrb[0].mxu0
      %v4642 = vadd.f32 0.0, %v4641
      %v4643 = vpop.f32.mrb[0].mxu0
      %4644 = vmatprep.mubr.bf16.mxu0 0
      %4645 = vmatmul.mubr.bf16.gmra.mrb[0].mxu0 %v4571
      %v4646 = vpop.f32.mrb[0].mxu0
      %v4647 = vadd.f32 0.0, %v4646
      %v4648 = vpop.f32.mrb[0].mxu0
      %v4649 = vpop.f32.mrb[0].mxu0
      %v4650 = vadd.f32 0.0, %v4649
      %v4651 = vpop.f32.mrb[0].mxu0
      %4652 = vmatprep.mubr.bf16.mxu0 0
      %4653 = vmatmul.mubr.bf16.gmra.mrb[0].mxu0 %v4574
      %v4654 = vpop.f32.mrb[0].mxu0
      %v4655 = vadd.f32 0.0, %v4654
      %v4656 = vpop.f32.mrb[0].mxu0
      %v4657 = vpop.f32.mrb[0].mxu0
      %v4658 = vadd.f32 0.0, %v4657
      %v4659 = vpop.f32.mrb[0].mxu0
      %4660 = vmatprep.mubr.bf16.mxu0 0
      %4661 = vmatmul.mubr.bf16.gmra.mrb[0].mxu0 %v4577
      %v4662 = vpop.f32.mrb[0].mxu0
      %v4663 = vadd.f32 0.0, %v4662
      %v4664 = vpop.f32.mrb[0].mxu0
      %v4665 = vpop.f32.mrb[0].mxu0
      %v4666 = vadd.f32 0.0, %v4665
      %v4667 = vpop.f32.mrb[0].mxu0
      %4668 = vmatprep.mubr.bf16.mxu0 0
      %4669 = vmatmul.mubr.bf16.gmra.mrb[0].mxu0 %v4580
      %v4670 = vpop.f32.mrb[0].mxu0
      %v4671 = vadd.f32 0.0, %v4670
      %v4672 = vpop.f32.mrb[0].mxu0
      %v4673 = vpop.f32.mrb[0].mxu0
      %v4674 = vadd.f32 0.0, %v4673
      %v4675 = vpop.f32.mrb[0].mxu0
      %4676 = vmatprep.mubr.bf16.mxu0 0
      %4677 = vmatmul.mubr.bf16.gmra.mrb[0].mxu0 %v4583
      %v4678 = vpop.f32.mrb[0].mxu0
      %v4679 = vadd.f32 0.0, %v4678
      %v4680 = vpop.f32.mrb[0].mxu0
      %v4681 = vpop.f32.mrb[0].mxu0
      %v4682 = vadd.f32 0.0, %v4681
      %v4683 = vpop.f32.mrb[0].mxu0
      %4684 = vdwg.mxu0
      %v4685 = vadd.f32 %v4517, %v4623
      %v4686 = vadd.f32 %v4518, %v4626
      %v4687 = vadd.f32 %v4519, %v4631
      %v4688 = vadd.f32 %v4520, %v4634
      %v4689 = vadd.f32 %v4521, %v4639
      %v4690 = vadd.f32 %v4522, %v4642
      %v4691 = vadd.f32 %v4523, %v4647
      %v4692 = vadd.f32 %v4524, %v4650
      %v4693 = vadd.f32 %v4525, %v4655
      %v4694 = vadd.f32 %v4526, %v4658
      %v4695 = vadd.f32 %v4527, %v4663
      %v4696 = vadd.f32 %v4528, %v4666
      %v4697 = vadd.f32 %v4529, %v4671
      %v4698 = vadd.f32 %v4530, %v4674
      %v4699 = vadd.f32 %v4531, %v4679
      %v4700 = vadd.f32 %v4532, %v4682
      %s4701 = scalar_lea.vmem %s1, 46
      %v4702 = vld [vmem:[%s4701] sm:$0x3]
      %v4703 = vrot.slane %v4314, 2
      %v4704 = vrot.slane %v4317, 3
      %v4705 = vor.u32 %v4703, %v4704
      %v4706 = vrot.slane %v4322, 2
      %v4707 = vrot.slane %v4325, 3
      %v4708 = vor.u32 %v4706, %v4707
      %v4709 = vsel %vm3530, %v4705, %v4708
      %v4710 = vrot.slane %v4331, 2
      %v4711 = vrot.slane %v4334, 3
      %v4712 = vor.u32 %v4710, %v4711
      %v4713 = vsel %vm3530, %v4708, %v4712
      %v4714 = vrot.slane %v4340, 2
      %v4715 = vrot.slane %v4343, 3
      %v4716 = vor.u32 %v4714, %v4715
      %v4717 = vsel %vm3530, %v4712, %v4716
      %v4718 = vrot.slane %v4349, 2
      %v4719 = vrot.slane %v4352, 3
      %v4720 = vor.u32 %v4718, %v4719
      %v4721 = vsel %vm3530, %v4716, %v4720
      %v4722 = vrot.slane %v4358, 2
      %v4723 = vrot.slane %v4361, 3
      %v4724 = vor.u32 %v4722, %v4723
      %v4725 = vsel %vm3530, %v4720, %v4724
      %v4726 = vrot.slane %v4367, 2
      %v4727 = vrot.slane %v4370, 3
      %v4728 = vor.u32 %v4726, %v4727
      %v4729 = vsel %vm3530, %v4724, %v4728
      %v4730 = vrot.slane %v4376, 2
      %v4731 = vrot.slane %v4379, 3
      %v4732 = vor.u32 %v4730, %v4731
      %v4733 = vsel %vm3530, %v4728, %v4732
      %v4734 = vrot.slane %v4385, 2
      %v4735 = vrot.slane %v4388, 3
      %v4736 = vor.u32 %v4734, %v4735
      %v4737 = vsel %vm3530, %v4732, %v4736
      %v4739 = vsel %vm373, %v4709, 0
      %v4742 = vsel %vm373, %v4713, 0
      %v4745 = vsel %vm373, %v4717, 0
      %v4748 = vsel %vm373, %v4721, 0
      %v4751 = vsel %vm373, %v4725, 0
      %v4754 = vsel %vm373, %v4729, 0
      %v4757 = vsel %vm373, %v4733, 0
      %v4760 = vsel %vm373, %v4737, 0
      %v4763 = vsel %vm398, %v4702, 0
      %4765 = vmatprep.subr.bf16.mxu0 0
      %4766 = vmatpush1.bf16.msra.mxu0 %v4763
      %4767 = vmatprep.subr.bf16.mxu0 0
      %4768 = vmatpush1.bf16.msra.mxu0 0
      %4769 = vmatprep.subr.bf16.mxu0 0
      %4770 = vmatpush1.bf16.msra.mxu0 0
      %4771 = vmatprep.subr.bf16.mxu0 0
      %4772 = vmatpush1.bf16.msra.mxu0 0
      %4773 = vmatprep.subr.bf16.mxu0 0
      %4774 = vmatpush1.bf16.msra.mxu0 0
      %4775 = vmatprep.subr.bf16.mxu0 0
      %4776 = vmatpush1.bf16.msra.mxu0 0
      %4777 = vmatprep.subr.bf16.mxu0 0
      %4778 = vmatpush1.bf16.msra.mxu0 0
      %4779 = vmatprep.subr.bf16.mxu0 0
      %4780 = vmatpush1.bf16.msra.mxu0 0
      %4781 = vmatprep.subr.bf16.mxu0 0
      %4782 = vmatpush1.bf16.msra.mxu0 0
      %4783 = vmatprep.subr.bf16.mxu0 0
      %4784 = vmatpush1.bf16.msra.mxu0 0
      %4785 = vmatprep.subr.bf16.mxu0 0
      %4786 = vmatpush1.bf16.msra.mxu0 0
      %4787 = vmatprep.subr.bf16.mxu0 0
      %4788 = vmatpush1.bf16.msra.mxu0 0
      %4789 = vmatprep.subr.bf16.mxu0 0
      %4790 = vmatpush1.bf16.msra.mxu0 0
      %4791 = vmatprep.subr.bf16.mxu0 0
      %4792 = vmatpush1.bf16.msra.mxu0 0
      %4793 = vmatprep.subr.bf16.mxu0 0
      %4794 = vmatpush1.bf16.msra.mxu0 0
      %4795 = vmatprep.subr.bf16.mxu0 0
      %4796 = vmatpush1.bf16.msra.mxu0 0
      %4797 = vmatprep.mubr.bf16.mxu0 0
      %4798 = vmatmul.mubr.bf16.gmra.mrb[0].mxu0 %v4739
      %v4799 = vpop.f32.mrb[0].mxu0
      %v4800 = vadd.f32 0.0, %v4799
      %v4801 = vpop.f32.mrb[0].mxu0
      %v4802 = vpop.f32.mrb[0].mxu0
      %v4803 = vadd.f32 0.0, %v4802
      %v4804 = vpop.f32.mrb[0].mxu0
      %4805 = vmatprep.mubr.bf16.mxu0 0
      %4806 = vmatmul.mubr.bf16.gmra.mrb[0].mxu0 %v4742
      %v4807 = vpop.f32.mrb[0].mxu0
      %v4808 = vadd.f32 0.0, %v4807
      %v4809 = vpop.f32.mrb[0].mxu0
      %v4810 = vpop.f32.mrb[0].mxu0
      %v4811 = vadd.f32 0.0, %v4810
      %v4812 = vpop.f32.mrb[0].mxu0
      %4813 = vmatprep.mubr.bf16.mxu0 0
      %4814 = vmatmul.mubr.bf16.gmra.mrb[0].mxu0 %v4745
      %v4815 = vpop.f32.mrb[0].mxu0
      %v4816 = vadd.f32 0.0, %v4815
      %v4817 = vpop.f32.mrb[0].mxu0
      %v4818 = vpop.f32.mrb[0].mxu0
      %v4819 = vadd.f32 0.0, %v4818
      %v4820 = vpop.f32.mrb[0].mxu0
      %4821 = vmatprep.mubr.bf16.mxu0 0
      %4822 = vmatmul.mubr.bf16.gmra.mrb[0].mxu0 %v4748
      %v4823 = vpop.f32.mrb[0].mxu0
      %v4824 = vadd.f32 0.0, %v4823
      %v4825 = vpop.f32.mrb[0].mxu0
      %v4826 = vpop.f32.mrb[0].mxu0
      %v4827 = vadd.f32 0.0, %v4826
      %v4828 = vpop.f32.mrb[0].mxu0
      %4829 = vmatprep.mubr.bf16.mxu0 0
      %4830 = vmatmul.mubr.bf16.gmra.mrb[0].mxu0 %v4751
      %v4831 = vpop.f32.mrb[0].mxu0
      %v4832 = vadd.f32 0.0, %v4831
      %v4833 = vpop.f32.mrb[0].mxu0
      %v4834 = vpop.f32.mrb[0].mxu0
      %v4835 = vadd.f32 0.0, %v4834
      %v4836 = vpop.f32.mrb[0].mxu0
      %4837 = vmatprep.mubr.bf16.mxu0 0
      %4838 = vmatmul.mubr.bf16.gmra.mrb[0].mxu0 %v4754
      %v4839 = vpop.f32.mrb[0].mxu0
      %v4840 = vadd.f32 0.0, %v4839
      %v4841 = vpop.f32.mrb[0].mxu0
      %v4842 = vpop.f32.mrb[0].mxu0
      %v4843 = vadd.f32 0.0, %v4842
      %v4844 = vpop.f32.mrb[0].mxu0
      %4845 = vmatprep.mubr.bf16.mxu0 0
      %4846 = vmatmul.mubr.bf16.gmra.mrb[0].mxu0 %v4757
      %v4847 = vpop.f32.mrb[0].mxu0
      %v4848 = vadd.f32 0.0, %v4847
      %v4849 = vpop.f32.mrb[0].mxu0
      %v4850 = vpop.f32.mrb[0].mxu0
      %v4851 = vadd.f32 0.0, %v4850
      %v4852 = vpop.f32.mrb[0].mxu0
      %4853 = vmatprep.mubr.bf16.mxu0 0
      %4854 = vmatmul.mubr.bf16.gmra.mrb[0].mxu0 %v4760
      %v4855 = vpop.f32.mrb[0].mxu0
      %v4856 = vadd.f32 0.0, %v4855
      %v4857 = vpop.f32.mrb[0].mxu0
      %v4858 = vpop.f32.mrb[0].mxu0
      %v4859 = vadd.f32 0.0, %v4858
      %v4860 = vpop.f32.mrb[0].mxu0
      %4861 = vdwg.mxu0
      %v4862 = vadd.f32 %v4685, %v4800
      %v4863 = vadd.f32 %v4686, %v4803
      %v4864 = vadd.f32 %v4687, %v4808
      %v4865 = vadd.f32 %v4688, %v4811
      %v4866 = vadd.f32 %v4689, %v4816
      %v4867 = vadd.f32 %v4690, %v4819
      %v4868 = vadd.f32 %v4691, %v4824
      %v4869 = vadd.f32 %v4692, %v4827
      %v4870 = vadd.f32 %v4693, %v4832
      %v4871 = vadd.f32 %v4694, %v4835
      %v4872 = vadd.f32 %v4695, %v4840
      %v4873 = vadd.f32 %v4696, %v4843
      %v4874 = vadd.f32 %v4697, %v4848
      %v4875 = vadd.f32 %v4698, %v4851
      %v4876 = vadd.f32 %v4699, %v4856
      %v4877 = vadd.f32 %v4700, %v4859
      %s4878 = sadd.s32 %s273, 176
      %s4879 = scalar_lea.vmem %s0, %s4878
      %v4880 = vld [vmem:[%s4879] sm:$0xff]
      %v4881 = vld [vmem:[%s4879 + $0x8] sm:$0xff]
      %v4882 = vld [vmem:[%s4879 + $0x10] sm:$0xff]
      %v4883 = vld [vmem:[%s4879 + $0x18] sm:$0xff]
      %v4884 = vld [vmem:[%s4879 + $0x20] sm:$0xff]
      %v4885 = vld [vmem:[%s4879 + $0x28] sm:$0xff]
      %v4886 = vld [vmem:[%s4879 + $0x30] sm:$0xff]
      %v4887 = vld [vmem:[%s4879 + $0x38] sm:$0xff]
      %v4888 = vld [vmem:[%s4879 + $0x40] sm:$0xff]
      %v4889 = vld [vmem:[%s4879 + $0x48] sm:$0xff]
      %v4890 = vld [vmem:[%s4879 + $0x50] sm:$0xff]
      %v4891 = vld [vmem:[%s4879 + $0x58] sm:$0xff]
      %v4892 = vld [vmem:[%s4879 + $0x60] sm:$0xff]
      %v4893 = vld [vmem:[%s4879 + $0x68] sm:$0xff]
      %v4894 = vld [vmem:[%s4879 + $0x70] sm:$0xff]
      %v4895 = vld [vmem:[%s4879 + $0x78] sm:$0xff]
      %v4896 = vld [vmem:[%s4879 + $0x80] sm:$0xff]
      %v4897 = vpack.c.bf16 %v4881, %v4880
      %v4898 = vpack.c.bf16 %v4883, %v4882
      %v4899 = vpack.c.bf16 %v4885, %v4884
      %v4900 = vpack.c.bf16 %v4887, %v4886
      %v4901 = vpack.c.bf16 %v4889, %v4888
      %v4902 = vpack.c.bf16 %v4891, %v4890
      %v4903 = vpack.c.bf16 %v4893, %v4892
      %v4904 = vpack.c.bf16 %v4895, %v4894
      %v4905 = vpack.c.bf16 %v4896, %v4896
      %s4906 = scalar_lea.vmem %s1, 48
      %v4907 = vld [vmem:[%s4906] sm:$0x3]
      %v4917 = vrot.slane %v4897, 2
      %v4918 = vrot.slane %v4898, 2
      %v4919 = vsel %vm1790, %v4917, %v4918
      %v4920 = vrot.slane %v4899, 2
      %v4921 = vsel %vm1790, %v4918, %v4920
      %v4922 = vrot.slane %v4900, 2
      %v4923 = vsel %vm1790, %v4920, %v4922
      %v4924 = vrot.slane %v4901, 2
      %v4925 = vsel %vm1790, %v4922, %v4924
      %v4926 = vrot.slane %v4902, 2
      %v4927 = vsel %vm1790, %v4924, %v4926
      %v4928 = vrot.slane %v4903, 2
      %v4929 = vsel %vm1790, %v4926, %v4928
      %v4930 = vrot.slane %v4904, 2
      %v4931 = vsel %vm1790, %v4928, %v4930
      %v4932 = vrot.slane %v4905, 2
      %v4933 = vsel %vm1790, %v4930, %v4932
      %v4935 = vsel %vm373, %v4919, 0
      %v4938 = vsel %vm373, %v4921, 0
      %v4941 = vsel %vm373, %v4923, 0
      %v4944 = vsel %vm373, %v4925, 0
      %v4947 = vsel %vm373, %v4927, 0
      %v4950 = vsel %vm373, %v4929, 0
      %v4953 = vsel %vm373, %v4931, 0
      %v4956 = vsel %vm373, %v4933, 0
      %v4959 = vsel %vm398, %v4907, 0
      %4961 = vmatprep.subr.bf16.mxu0 0
      %4962 = vmatpush1.bf16.msra.mxu0 %v4959
      %4963 = vmatprep.subr.bf16.mxu0 0
      %4964 = vmatpush1.bf16.msra.mxu0 0
      %4965 = vmatprep.subr.bf16.mxu0 0
      %4966 = vmatpush1.bf16.msra.mxu0 0
      %4967 = vmatprep.subr.bf16.mxu0 0
      %4968 = vmatpush1.bf16.msra.mxu0 0
      %4969 = vmatprep.subr.bf16.mxu0 0
      %4970 = vmatpush1.bf16.msra.mxu0 0
      %4971 = vmatprep.subr.bf16.mxu0 0
      %4972 = vmatpush1.bf16.msra.mxu0 0
      %4973 = vmatprep.subr.bf16.mxu0 0
      %4974 = vmatpush1.bf16.msra.mxu0 0
      %4975 = vmatprep.subr.bf16.mxu0 0
      %4976 = vmatpush1.bf16.msra.mxu0 0
      %4977 = vmatprep.subr.bf16.mxu0 0
      %4978 = vmatpush1.bf16.msra.mxu0 0
      %4979 = vmatprep.subr.bf16.mxu0 0
      %4980 = vmatpush1.bf16.msra.mxu0 0
      %4981 = vmatprep.subr.bf16.mxu0 0
      %4982 = vmatpush1.bf16.msra.mxu0 0
      %4983 = vmatprep.subr.bf16.mxu0 0
      %4984 = vmatpush1.bf16.msra.mxu0 0
      %4985 = vmatprep.subr.bf16.mxu0 0
      %4986 = vmatpush1.bf16.msra.mxu0 0
      %4987 = vmatprep.subr.bf16.mxu0 0
      %4988 = vmatpush1.bf16.msra.mxu0 0
      %4989 = vmatprep.subr.bf16.mxu0 0
      %4990 = vmatpush1.bf16.msra.mxu0 0
      %4991 = vmatprep.subr.bf16.mxu0 0
      %4992 = vmatpush1.bf16.msra.mxu0 0
      %4993 = vmatprep.mubr.bf16.mxu0 0
      %4994 = vmatmul.mubr.bf16.gmra.mrb[0].mxu0 %v4935
      %v4995 = vpop.f32.mrb[0].mxu0
      %v4996 = vadd.f32 0.0, %v4995
      %v4997 = vpop.f32.mrb[0].mxu0
      %v4998 = vpop.f32.mrb[0].mxu0
      %v4999 = vadd.f32 0.0, %v4998
      %v5000 = vpop.f32.mrb[0].mxu0
      %5001 = vmatprep.mubr.bf16.mxu0 0
      %5002 = vmatmul.mubr.bf16.gmra.mrb[0].mxu0 %v4938
      %v5003 = vpop.f32.mrb[0].mxu0
      %v5004 = vadd.f32 0.0, %v5003
      %v5005 = vpop.f32.mrb[0].mxu0
      %v5006 = vpop.f32.mrb[0].mxu0
      %v5007 = vadd.f32 0.0, %v5006
      %v5008 = vpop.f32.mrb[0].mxu0
      %5009 = vmatprep.mubr.bf16.mxu0 0
      %5010 = vmatmul.mubr.bf16.gmra.mrb[0].mxu0 %v4941
      %v5011 = vpop.f32.mrb[0].mxu0
      %v5012 = vadd.f32 0.0, %v5011
      %v5013 = vpop.f32.mrb[0].mxu0
      %v5014 = vpop.f32.mrb[0].mxu0
      %v5015 = vadd.f32 0.0, %v5014
      %v5016 = vpop.f32.mrb[0].mxu0
      %5017 = vmatprep.mubr.bf16.mxu0 0
      %5018 = vmatmul.mubr.bf16.gmra.mrb[0].mxu0 %v4944
      %v5019 = vpop.f32.mrb[0].mxu0
      %v5020 = vadd.f32 0.0, %v5019
      %v5021 = vpop.f32.mrb[0].mxu0
      %v5022 = vpop.f32.mrb[0].mxu0
      %v5023 = vadd.f32 0.0, %v5022
      %v5024 = vpop.f32.mrb[0].mxu0
      %5025 = vmatprep.mubr.bf16.mxu0 0
      %5026 = vmatmul.mubr.bf16.gmra.mrb[0].mxu0 %v4947
      %v5027 = vpop.f32.mrb[0].mxu0
      %v5028 = vadd.f32 0.0, %v5027
      %v5029 = vpop.f32.mrb[0].mxu0
      %v5030 = vpop.f32.mrb[0].mxu0
      %v5031 = vadd.f32 0.0, %v5030
      %v5032 = vpop.f32.mrb[0].mxu0
      %5033 = vmatprep.mubr.bf16.mxu0 0
      %5034 = vmatmul.mubr.bf16.gmra.mrb[0].mxu0 %v4950
      %v5035 = vpop.f32.mrb[0].mxu0
      %v5036 = vadd.f32 0.0, %v5035
      %v5037 = vpop.f32.mrb[0].mxu0
      %v5038 = vpop.f32.mrb[0].mxu0
      %v5039 = vadd.f32 0.0, %v5038
      %v5040 = vpop.f32.mrb[0].mxu0
      %5041 = vmatprep.mubr.bf16.mxu0 0
      %5042 = vmatmul.mubr.bf16.gmra.mrb[0].mxu0 %v4953
      %v5043 = vpop.f32.mrb[0].mxu0
      %v5044 = vadd.f32 0.0, %v5043
      %v5045 = vpop.f32.mrb[0].mxu0
      %v5046 = vpop.f32.mrb[0].mxu0
      %v5047 = vadd.f32 0.0, %v5046
      %v5048 = vpop.f32.mrb[0].mxu0
      %5049 = vmatprep.mubr.bf16.mxu0 0
      %5050 = vmatmul.mubr.bf16.gmra.mrb[0].mxu0 %v4956
      %v5051 = vpop.f32.mrb[0].mxu0
      %v5052 = vadd.f32 0.0, %v5051
      %v5053 = vpop.f32.mrb[0].mxu0
      %v5054 = vpop.f32.mrb[0].mxu0
      %v5055 = vadd.f32 0.0, %v5054
      %v5056 = vpop.f32.mrb[0].mxu0
      %5057 = vdwg.mxu0
      %v5058 = vadd.f32 %v4862, %v4996
      %v5059 = vadd.f32 %v4863, %v4999
      %v5060 = vadd.f32 %v4864, %v5004
      %v5061 = vadd.f32 %v4865, %v5007
      %v5062 = vadd.f32 %v4866, %v5012
      %v5063 = vadd.f32 %v4867, %v5015
      %v5064 = vadd.f32 %v4868, %v5020
      %v5065 = vadd.f32 %v4869, %v5023
      %v5066 = vadd.f32 %v4870, %v5028
      %v5067 = vadd.f32 %v4871, %v5031
      %v5068 = vadd.f32 %v4872, %v5036
      %v5069 = vadd.f32 %v4873, %v5039
      %v5070 = vadd.f32 %v4874, %v5044
      %v5071 = vadd.f32 %v4875, %v5047
      %v5072 = vadd.f32 %v4876, %v5052
      %v5073 = vadd.f32 %v4877, %v5055
      %s5074 = scalar_lea.vmem %s1, 50
      %v5075 = vld [vmem:[%s5074] sm:$0x3]
      %v5077 = vshrl.u32 %v4897, 16
      %v5079 = vrot.slane %v5077, 2
      %v5080 = vshll.u32 %v4897, 16
      %v5082 = vrot.slane %v5080, 3
      %v5083 = vor.u32 %v5079, %v5082
      %v5085 = vshrl.u32 %v4898, 16
      %v5087 = vrot.slane %v5085, 2
      %v5088 = vshll.u32 %v4898, 16
      %v5090 = vrot.slane %v5088, 3
      %v5091 = vor.u32 %v5087, %v5090
      %v5092 = vsel %vm3530, %v5083, %v5091
      %v5094 = vshrl.u32 %v4899, 16
      %v5096 = vrot.slane %v5094, 2
      %v5097 = vshll.u32 %v4899, 16
      %v5099 = vrot.slane %v5097, 3
      %v5100 = vor.u32 %v5096, %v5099
      %v5101 = vsel %vm3530, %v5091, %v5100
      %v5103 = vshrl.u32 %v4900, 16
      %v5105 = vrot.slane %v5103, 2
      %v5106 = vshll.u32 %v4900, 16
      %v5108 = vrot.slane %v5106, 3
      %v5109 = vor.u32 %v5105, %v5108
      %v5110 = vsel %vm3530, %v5100, %v5109
      %v5112 = vshrl.u32 %v4901, 16
      %v5114 = vrot.slane %v5112, 2
      %v5115 = vshll.u32 %v4901, 16
      %v5117 = vrot.slane %v5115, 3
      %v5118 = vor.u32 %v5114, %v5117
      %v5119 = vsel %vm3530, %v5109, %v5118
      %v5121 = vshrl.u32 %v4902, 16
      %v5123 = vrot.slane %v5121, 2
      %v5124 = vshll.u32 %v4902, 16
      %v5126 = vrot.slane %v5124, 3
      %v5127 = vor.u32 %v5123, %v5126
      %v5128 = vsel %vm3530, %v5118, %v5127
      %v5130 = vshrl.u32 %v4903, 16
      %v5132 = vrot.slane %v5130, 2
      %v5133 = vshll.u32 %v4903, 16
      %v5135 = vrot.slane %v5133, 3
      %v5136 = vor.u32 %v5132, %v5135
      %v5137 = vsel %vm3530, %v5127, %v5136
      %v5139 = vshrl.u32 %v4904, 16
      %v5141 = vrot.slane %v5139, 2
      %v5142 = vshll.u32 %v4904, 16
      %v5144 = vrot.slane %v5142, 3
      %v5145 = vor.u32 %v5141, %v5144
      %v5146 = vsel %vm3530, %v5136, %v5145
      %v5148 = vshrl.u32 %v4905, 16
      %v5150 = vrot.slane %v5148, 2
      %v5151 = vshll.u32 %v4905, 16
      %v5153 = vrot.slane %v5151, 3
      %v5154 = vor.u32 %v5150, %v5153
      %v5155 = vsel %vm3530, %v5145, %v5154
      %v5157 = vsel %vm373, %v5092, 0
      %v5160 = vsel %vm373, %v5101, 0
      %v5163 = vsel %vm373, %v5110, 0
      %v5166 = vsel %vm373, %v5119, 0
      %v5169 = vsel %vm373, %v5128, 0
      %v5172 = vsel %vm373, %v5137, 0
      %v5175 = vsel %vm373, %v5146, 0
      %v5178 = vsel %vm373, %v5155, 0
      %v5181 = vsel %vm398, %v5075, 0
      %5183 = vmatprep.subr.bf16.mxu0 0
      %5184 = vmatpush1.bf16.msra.mxu0 %v5181
      %5185 = vmatprep.subr.bf16.mxu0 0
      %5186 = vmatpush1.bf16.msra.mxu0 0
      %5187 = vmatprep.subr.bf16.mxu0 0
      %5188 = vmatpush1.bf16.msra.mxu0 0
      %5189 = vmatprep.subr.bf16.mxu0 0
      %5190 = vmatpush1.bf16.msra.mxu0 0
      %5191 = vmatprep.subr.bf16.mxu0 0
      %5192 = vmatpush1.bf16.msra.mxu0 0
      %5193 = vmatprep.subr.bf16.mxu0 0
      %5194 = vmatpush1.bf16.msra.mxu0 0
      %5195 = vmatprep.subr.bf16.mxu0 0
      %5196 = vmatpush1.bf16.msra.mxu0 0
      %5197 = vmatprep.subr.bf16.mxu0 0
      %5198 = vmatpush1.bf16.msra.mxu0 0
      %5199 = vmatprep.subr.bf16.mxu0 0
      %5200 = vmatpush1.bf16.msra.mxu0 0
      %5201 = vmatprep.subr.bf16.mxu0 0
      %5202 = vmatpush1.bf16.msra.mxu0 0
      %5203 = vmatprep.subr.bf16.mxu0 0
      %5204 = vmatpush1.bf16.msra.mxu0 0
      %5205 = vmatprep.subr.bf16.mxu0 0
      %5206 = vmatpush1.bf16.msra.mxu0 0
      %5207 = vmatprep.subr.bf16.mxu0 0
      %5208 = vmatpush1.bf16.msra.mxu0 0
      %5209 = vmatprep.subr.bf16.mxu0 0
      %5210 = vmatpush1.bf16.msra.mxu0 0
      %5211 = vmatprep.subr.bf16.mxu0 0
      %5212 = vmatpush1.bf16.msra.mxu0 0
      %5213 = vmatprep.subr.bf16.mxu0 0
      %5214 = vmatpush1.bf16.msra.mxu0 0
      %5215 = vmatprep.mubr.bf16.mxu0 0
      %5216 = vmatmul.mubr.bf16.gmra.mrb[0].mxu0 %v5157
      %v5217 = vpop.f32.mrb[0].mxu0
      %v5218 = vadd.f32 0.0, %v5217
      %v5219 = vpop.f32.mrb[0].mxu0
      %v5220 = vpop.f32.mrb[0].mxu0
      %v5221 = vadd.f32 0.0, %v5220
      %v5222 = vpop.f32.mrb[0].mxu0
      %5223 = vmatprep.mubr.bf16.mxu0 0
      %5224 = vmatmul.mubr.bf16.gmra.mrb[0].mxu0 %v5160
      %v5225 = vpop.f32.mrb[0].mxu0
      %v5226 = vadd.f32 0.0, %v5225
      %v5227 = vpop.f32.mrb[0].mxu0
      %v5228 = vpop.f32.mrb[0].mxu0
      %v5229 = vadd.f32 0.0, %v5228
      %v5230 = vpop.f32.mrb[0].mxu0
      %5231 = vmatprep.mubr.bf16.mxu0 0
      %5232 = vmatmul.mubr.bf16.gmra.mrb[0].mxu0 %v5163
      %v5233 = vpop.f32.mrb[0].mxu0
      %v5234 = vadd.f32 0.0, %v5233
      %v5235 = vpop.f32.mrb[0].mxu0
      %v5236 = vpop.f32.mrb[0].mxu0
      %v5237 = vadd.f32 0.0, %v5236
      %v5238 = vpop.f32.mrb[0].mxu0
      %5239 = vmatprep.mubr.bf16.mxu0 0
      %5240 = vmatmul.mubr.bf16.gmra.mrb[0].mxu0 %v5166
      %v5241 = vpop.f32.mrb[0].mxu0
      %v5242 = vadd.f32 0.0, %v5241
      %v5243 = vpop.f32.mrb[0].mxu0
      %v5244 = vpop.f32.mrb[0].mxu0
      %v5245 = vadd.f32 0.0, %v5244
      %v5246 = vpop.f32.mrb[0].mxu0
      %5247 = vmatprep.mubr.bf16.mxu0 0
      %5248 = vmatmul.mubr.bf16.gmra.mrb[0].mxu0 %v5169
      %v5249 = vpop.f32.mrb[0].mxu0
      %v5250 = vadd.f32 0.0, %v5249
      %v5251 = vpop.f32.mrb[0].mxu0
      %v5252 = vpop.f32.mrb[0].mxu0
      %v5253 = vadd.f32 0.0, %v5252
      %v5254 = vpop.f32.mrb[0].mxu0
      %5255 = vmatprep.mubr.bf16.mxu0 0
      %5256 = vmatmul.mubr.bf16.gmra.mrb[0].mxu0 %v5172
      %v5257 = vpop.f32.mrb[0].mxu0
      %v5258 = vadd.f32 0.0, %v5257
      %v5259 = vpop.f32.mrb[0].mxu0
      %v5260 = vpop.f32.mrb[0].mxu0
      %v5261 = vadd.f32 0.0, %v5260
      %v5262 = vpop.f32.mrb[0].mxu0
      %5263 = vmatprep.mubr.bf16.mxu0 0
      %5264 = vmatmul.mubr.bf16.gmra.mrb[0].mxu0 %v5175
      %v5265 = vpop.f32.mrb[0].mxu0
      %v5266 = vadd.f32 0.0, %v5265
      %v5267 = vpop.f32.mrb[0].mxu0
      %v5268 = vpop.f32.mrb[0].mxu0
      %v5269 = vadd.f32 0.0, %v5268
      %v5270 = vpop.f32.mrb[0].mxu0
      %5271 = vmatprep.mubr.bf16.mxu0 0
      %5272 = vmatmul.mubr.bf16.gmra.mrb[0].mxu0 %v5178
      %v5273 = vpop.f32.mrb[0].mxu0
      %v5274 = vadd.f32 0.0, %v5273
      %v5275 = vpop.f32.mrb[0].mxu0
      %v5276 = vpop.f32.mrb[0].mxu0
      %v5277 = vadd.f32 0.0, %v5276
      %v5278 = vpop.f32.mrb[0].mxu0
      %5279 = vdwg.mxu0
      %v5280 = vadd.f32 %v5058, %v5218
      %v5281 = vadd.f32 %v5059, %v5221
      %v5282 = vadd.f32 %v5060, %v5226
      %v5283 = vadd.f32 %v5061, %v5229
      %v5284 = vadd.f32 %v5062, %v5234
      %v5285 = vadd.f32 %v5063, %v5237
      %v5286 = vadd.f32 %v5064, %v5242
      %v5287 = vadd.f32 %v5065, %v5245
      %v5288 = vadd.f32 %v5066, %v5250
      %v5289 = vadd.f32 %v5067, %v5253
      %v5290 = vadd.f32 %v5068, %v5258
      %v5291 = vadd.f32 %v5069, %v5261
      %v5292 = vadd.f32 %v5070, %v5266
      %v5293 = vadd.f32 %v5071, %v5269
      %v5294 = vadd.f32 %v5072, %v5274
      %v5295 = vadd.f32 %v5073, %v5277
      %s5296 = scalar_lea.vmem %s1, 52
      %v5297 = vld [vmem:[%s5296] sm:$0x3]
      %vm5298 = vcmask 1044480
      %v5299 = vrot.slane %v4897, 3
      %v5300 = vrot.slane %v4898, 3
      %v5301 = vsel %vm5298, %v5299, %v5300
      %v5302 = vrot.slane %v4899, 3
      %v5303 = vsel %vm5298, %v5300, %v5302
      %v5304 = vrot.slane %v4900, 3
      %v5305 = vsel %vm5298, %v5302, %v5304
      %v5306 = vrot.slane %v4901, 3
      %v5307 = vsel %vm5298, %v5304, %v5306
      %v5308 = vrot.slane %v4902, 3
      %v5309 = vsel %vm5298, %v5306, %v5308
      %v5310 = vrot.slane %v4903, 3
      %v5311 = vsel %vm5298, %v5308, %v5310
      %v5312 = vrot.slane %v4904, 3
      %v5313 = vsel %vm5298, %v5310, %v5312
      %v5314 = vrot.slane %v4905, 3
      %v5315 = vsel %vm5298, %v5312, %v5314
      %v5317 = vsel %vm373, %v5301, 0
      %v5320 = vsel %vm373, %v5303, 0
      %v5323 = vsel %vm373, %v5305, 0
      %v5326 = vsel %vm373, %v5307, 0
      %v5329 = vsel %vm373, %v5309, 0
      %v5332 = vsel %vm373, %v5311, 0
      %v5335 = vsel %vm373, %v5313, 0
      %v5338 = vsel %vm373, %v5315, 0
      %v5341 = vsel %vm398, %v5297, 0
      %5343 = vmatprep.subr.bf16.mxu0 0
      %5344 = vmatpush1.bf16.msra.mxu0 %v5341
      %5345 = vmatprep.subr.bf16.mxu0 0
      %5346 = vmatpush1.bf16.msra.mxu0 0
      %5347 = vmatprep.subr.bf16.mxu0 0
      %5348 = vmatpush1.bf16.msra.mxu0 0
      %5349 = vmatprep.subr.bf16.mxu0 0
      %5350 = vmatpush1.bf16.msra.mxu0 0
      %5351 = vmatprep.subr.bf16.mxu0 0
      %5352 = vmatpush1.bf16.msra.mxu0 0
      %5353 = vmatprep.subr.bf16.mxu0 0
      %5354 = vmatpush1.bf16.msra.mxu0 0
      %5355 = vmatprep.subr.bf16.mxu0 0
      %5356 = vmatpush1.bf16.msra.mxu0 0
      %5357 = vmatprep.subr.bf16.mxu0 0
      %5358 = vmatpush1.bf16.msra.mxu0 0
      %5359 = vmatprep.subr.bf16.mxu0 0
      %5360 = vmatpush1.bf16.msra.mxu0 0
      %5361 = vmatprep.subr.bf16.mxu0 0
      %5362 = vmatpush1.bf16.msra.mxu0 0
      %5363 = vmatprep.subr.bf16.mxu0 0
      %5364 = vmatpush1.bf16.msra.mxu0 0
      %5365 = vmatprep.subr.bf16.mxu0 0
      %5366 = vmatpush1.bf16.msra.mxu0 0
      %5367 = vmatprep.subr.bf16.mxu0 0
      %5368 = vmatpush1.bf16.msra.mxu0 0
      %5369 = vmatprep.subr.bf16.mxu0 0
      %5370 = vmatpush1.bf16.msra.mxu0 0
      %5371 = vmatprep.subr.bf16.mxu0 0
      %5372 = vmatpush1.bf16.msra.mxu0 0
      %5373 = vmatprep.subr.bf16.mxu0 0
      %5374 = vmatpush1.bf16.msra.mxu0 0
      %5375 = vmatprep.mubr.bf16.mxu0 0
      %5376 = vmatmul.mubr.bf16.gmra.mrb[0].mxu0 %v5317
      %v5377 = vpop.f32.mrb[0].mxu0
      %v5378 = vadd.f32 0.0, %v5377
      %v5379 = vpop.f32.mrb[0].mxu0
      %v5380 = vpop.f32.mrb[0].mxu0
      %v5381 = vadd.f32 0.0, %v5380
      %v5382 = vpop.f32.mrb[0].mxu0
      %5383 = vmatprep.mubr.bf16.mxu0 0
      %5384 = vmatmul.mubr.bf16.gmra.mrb[0].mxu0 %v5320
      %v5385 = vpop.f32.mrb[0].mxu0
      %v5386 = vadd.f32 0.0, %v5385
      %v5387 = vpop.f32.mrb[0].mxu0
      %v5388 = vpop.f32.mrb[0].mxu0
      %v5389 = vadd.f32 0.0, %v5388
      %v5390 = vpop.f32.mrb[0].mxu0
      %5391 = vmatprep.mubr.bf16.mxu0 0
      %5392 = vmatmul.mubr.bf16.gmra.mrb[0].mxu0 %v5323
      %v5393 = vpop.f32.mrb[0].mxu0
      %v5394 = vadd.f32 0.0, %v5393
      %v5395 = vpop.f32.mrb[0].mxu0
      %v5396 = vpop.f32.mrb[0].mxu0
      %v5397 = vadd.f32 0.0, %v5396
      %v5398 = vpop.f32.mrb[0].mxu0
      %5399 = vmatprep.mubr.bf16.mxu0 0
      %5400 = vmatmul.mubr.bf16.gmra.mrb[0].mxu0 %v5326
      %v5401 = vpop.f32.mrb[0].mxu0
      %v5402 = vadd.f32 0.0, %v5401
      %v5403 = vpop.f32.mrb[0].mxu0
      %v5404 = vpop.f32.mrb[0].mxu0
      %v5405 = vadd.f32 0.0, %v5404
      %v5406 = vpop.f32.mrb[0].mxu0
      %5407 = vmatprep.mubr.bf16.mxu0 0
      %5408 = vmatmul.mubr.bf16.gmra.mrb[0].mxu0 %v5329
      %v5409 = vpop.f32.mrb[0].mxu0
      %v5410 = vadd.f32 0.0, %v5409
      %v5411 = vpop.f32.mrb[0].mxu0
      %v5412 = vpop.f32.mrb[0].mxu0
      %v5413 = vadd.f32 0.0, %v5412
      %v5414 = vpop.f32.mrb[0].mxu0
      %5415 = vmatprep.mubr.bf16.mxu0 0
      %5416 = vmatmul.mubr.bf16.gmra.mrb[0].mxu0 %v5332
      %v5417 = vpop.f32.mrb[0].mxu0
      %v5418 = vadd.f32 0.0, %v5417
      %v5419 = vpop.f32.mrb[0].mxu0
      %v5420 = vpop.f32.mrb[0].mxu0
      %v5421 = vadd.f32 0.0, %v5420
      %v5422 = vpop.f32.mrb[0].mxu0
      %5423 = vmatprep.mubr.bf16.mxu0 0
      %5424 = vmatmul.mubr.bf16.gmra.mrb[0].mxu0 %v5335
      %v5425 = vpop.f32.mrb[0].mxu0
      %v5426 = vadd.f32 0.0, %v5425
      %v5427 = vpop.f32.mrb[0].mxu0
      %v5428 = vpop.f32.mrb[0].mxu0
      %v5429 = vadd.f32 0.0, %v5428
      %v5430 = vpop.f32.mrb[0].mxu0
      %5431 = vmatprep.mubr.bf16.mxu0 0
      %5432 = vmatmul.mubr.bf16.gmra.mrb[0].mxu0 %v5338
      %v5433 = vpop.f32.mrb[0].mxu0
      %v5434 = vadd.f32 0.0, %v5433
      %v5435 = vpop.f32.mrb[0].mxu0
      %v5436 = vpop.f32.mrb[0].mxu0
      %v5437 = vadd.f32 0.0, %v5436
      %v5438 = vpop.f32.mrb[0].mxu0
      %5439 = vdwg.mxu0
      %v5440 = vadd.f32 %v5280, %v5378
      %v5441 = vadd.f32 %v5281, %v5381
      %v5442 = vadd.f32 %v5282, %v5386
      %v5443 = vadd.f32 %v5283, %v5389
      %v5444 = vadd.f32 %v5284, %v5394
      %v5445 = vadd.f32 %v5285, %v5397
      %v5446 = vadd.f32 %v5286, %v5402
      %v5447 = vadd.f32 %v5287, %v5405
      %v5448 = vadd.f32 %v5288, %v5410
      %v5449 = vadd.f32 %v5289, %v5413
      %v5450 = vadd.f32 %v5290, %v5418
      %v5451 = vadd.f32 %v5291, %v5421
      %v5452 = vadd.f32 %v5292, %v5426
      %v5453 = vadd.f32 %v5293, %v5429
      %v5454 = vadd.f32 %v5294, %v5434
      %v5455 = vadd.f32 %v5295, %v5437
      %v5456 = vld [vmem:[%s2] sm:$0x1]
      %v5458 = vlaneseq
      %v5459 = vshrl.u32 %v5458, 7
      %v5460 = vsub.s32 0, %v5459
      %v5461 = vrot.slane %v5456, %v5460
      %v5463 = vadd.f32 %v5440, %v5461
      %v5464 = vadd.f32 %v5441, %v5461
      %v5465 = vadd.f32 %v5442, %v5461
      %v5466 = vadd.f32 %v5443, %v5461
      %v5467 = vadd.f32 %v5444, %v5461
      %v5468 = vadd.f32 %v5445, %v5461
      %v5469 = vadd.f32 %v5446, %v5461
      %v5470 = vadd.f32 %v5447, %v5461
      %v5471 = vadd.f32 %v5448, %v5461
      %v5472 = vadd.f32 %v5449, %v5461
      %v5473 = vadd.f32 %v5450, %v5461
      %v5474 = vadd.f32 %v5451, %v5461
      %v5475 = vadd.f32 %v5452, %v5461
      %v5476 = vadd.f32 %v5453, %v5461
      %v5477 = vadd.f32 %v5454, %v5461
      %v5478 = vadd.f32 %v5455, %v5461
      %5479 = vst.msk [vmem:[%s264] sm:$0xff] %vm373, %v5463
      %5480 = vst.msk [vmem:[%s264 + $0x8] sm:$0xff] %vm373, %v5464
      %5481 = vst.msk [vmem:[%s264 + $0x10] sm:$0xff] %vm373, %v5465
      %5482 = vst.msk [vmem:[%s264 + $0x18] sm:$0xff] %vm373, %v5466
      %5483 = vst.msk [vmem:[%s264 + $0x20] sm:$0xff] %vm373, %v5467
      %5484 = vst.msk [vmem:[%s264 + $0x28] sm:$0xff] %vm373, %v5468
      %5485 = vst.msk [vmem:[%s264 + $0x30] sm:$0xff] %vm373, %v5469
      %5486 = vst.msk [vmem:[%s264 + $0x38] sm:$0xff] %vm373, %v5470
      %5487 = vst.msk [vmem:[%s264 + $0x40] sm:$0xff] %vm373, %v5471
      %5488 = vst.msk [vmem:[%s264 + $0x48] sm:$0xff] %vm373, %v5472
      %5489 = vst.msk [vmem:[%s264 + $0x50] sm:$0xff] %vm373, %v5473
      %5490 = vst.msk [vmem:[%s264 + $0x58] sm:$0xff] %vm373, %v5474
      %5491 = vst.msk [vmem:[%s264 + $0x60] sm:$0xff] %vm373, %v5475
      %5492 = vst.msk [vmem:[%s264 + $0x68] sm:$0xff] %vm373, %v5476
      %5493 = vst.msk [vmem:[%s264 + $0x70] sm:$0xff] %vm373, %v5477
      %5494 = vst.msk [vmem:[%s264 + $0x78] sm:$0xff] %vm373, %v5478
      %v5495 = vld [vmem:[%s258] sm:$0xff]
      %v5496 = vld [vmem:[%s258 + $0x8] sm:$0xff]
      %v5497 = vld [vmem:[%s258 + $0x10] sm:$0xff]
      %v5498 = vld [vmem:[%s258 + $0x18] sm:$0xff]
      %v5499 = vld [vmem:[%s258 + $0x20] sm:$0xff]
      %v5500 = vld [vmem:[%s258 + $0x28] sm:$0xff]
      %v5501 = vld [vmem:[%s258 + $0x30] sm:$0xff]
      %v5502 = vld [vmem:[%s258 + $0x38] sm:$0xff]
      %v5503 = vld [vmem:[%s258 + $0x40] sm:$0xff]
      %v5504 = vld [vmem:[%s258 + $0x48] sm:$0xff]
      %v5505 = vld [vmem:[%s258 + $0x50] sm:$0xff]
      %v5506 = vld [vmem:[%s258 + $0x58] sm:$0xff]
      %v5507 = vld [vmem:[%s258 + $0x60] sm:$0xff]
      %v5508 = vld [vmem:[%s258 + $0x68] sm:$0xff]
      %v5509 = vld [vmem:[%s258 + $0x70] sm:$0xff]
      %v5510 = vld [vmem:[%s258 + $0x78] sm:$0xff]
      %5512 = vset.pattern.permute.xlu0 0
      %5513 = vperm.xlu0 %5512, %v5495
      %v5514 = vpop.permute.xlu0 %5513
      %5517 = vset.pattern.permute.xlu0 0
      %5518 = vperm.xlu0 %5517, %v5496
      %v5519 = vpop.permute.xlu0 %5518
      %5522 = vset.pattern.permute.xlu0 0
      %5523 = vperm.xlu0 %5522, %v5497
      %v5524 = vpop.permute.xlu0 %5523
      %5527 = vset.pattern.permute.xlu0 0
      %5528 = vperm.xlu0 %5527, %v5498
      %v5529 = vpop.permute.xlu0 %5528
      %5532 = vset.pattern.permute.xlu0 0
      %5533 = vperm.xlu0 %5532, %v5499
      %v5534 = vpop.permute.xlu0 %5533
      %5537 = vset.pattern.permute.xlu0 0
      %5538 = vperm.xlu0 %5537, %v5500
      %v5539 = vpop.permute.xlu0 %5538
      %5542 = vset.pattern.permute.xlu0 0
      %5543 = vperm.xlu0 %5542, %v5501
      %v5544 = vpop.permute.xlu0 %5543
      %5547 = vset.pattern.permute.xlu0 0
      %5548 = vperm.xlu0 %5547, %v5502
      %v5549 = vpop.permute.xlu0 %5548
      %5552 = vset.pattern.permute.xlu0 0
      %5553 = vperm.xlu0 %5552, %v5503
      %v5554 = vpop.permute.xlu0 %5553
      %5557 = vset.pattern.permute.xlu0 0
      %5558 = vperm.xlu0 %5557, %v5504
      %v5559 = vpop.permute.xlu0 %5558
      %5562 = vset.pattern.permute.xlu0 0
      %5563 = vperm.xlu0 %5562, %v5505
      %v5564 = vpop.permute.xlu0 %5563
      %5567 = vset.pattern.permute.xlu0 0
      %5568 = vperm.xlu0 %5567, %v5506
      %v5569 = vpop.permute.xlu0 %5568
      %5572 = vset.pattern.permute.xlu0 0
      %5573 = vperm.xlu0 %5572, %v5507
      %v5574 = vpop.permute.xlu0 %5573
      %5577 = vset.pattern.permute.xlu0 0
      %5578 = vperm.xlu0 %5577, %v5508
      %v5579 = vpop.permute.xlu0 %5578
      %5582 = vset.pattern.permute.xlu0 0
      %5583 = vperm.xlu0 %5582, %v5509
      %v5584 = vpop.permute.xlu0 %5583
      %5587 = vset.pattern.permute.xlu0 0
      %5588 = vperm.xlu0 %5587, %v5510
      %v5589 = vpop.permute.xlu0 %5588
      %v5591 = vmul.f32 %v5463, %v5514
      %v5592 = vmul.f32 %v5464, %v5519
      %v5593 = vmul.f32 %v5465, %v5524
      %v5594 = vmul.f32 %v5466, %v5529
      %v5595 = vmul.f32 %v5467, %v5534
      %v5596 = vmul.f32 %v5468, %v5539
      %v5597 = vmul.f32 %v5469, %v5544
      %v5598 = vmul.f32 %v5470, %v5549
      %v5599 = vmul.f32 %v5471, %v5554
      %v5600 = vmul.f32 %v5472, %v5559
      %v5601 = vmul.f32 %v5473, %v5564
      %v5602 = vmul.f32 %v5474, %v5569
      %v5603 = vmul.f32 %v5475, %v5574
      %v5604 = vmul.f32 %v5476, %v5579
      %v5605 = vmul.f32 %v5477, %v5584
      %v5606 = vmul.f32 %v5478, %v5589
      %v5607 = vsel %vm373, %v5591, 0.0
      %v5608 = vsel %vm373, %v5592, 0.0
      %v5609 = vadd.f32 %v5607, %v5608
      %v5610 = vsel %vm373, %v5593, 0.0
      %v5611 = vadd.f32 %v5609, %v5610
      %v5612 = vsel %vm373, %v5594, 0.0
      %v5613 = vadd.f32 %v5611, %v5612
      %v5614 = vsel %vm373, %v5595, 0.0
      %v5615 = vadd.f32 %v5613, %v5614
      %v5616 = vsel %vm373, %v5596, 0.0
      %v5617 = vadd.f32 %v5615, %v5616
      %v5618 = vsel %vm373, %v5597, 0.0
      %v5619 = vadd.f32 %v5617, %v5618
      %v5620 = vsel %vm373, %v5598, 0.0
      %v5621 = vadd.f32 %v5619, %v5620
      %v5622 = vsel %vm373, %v5599, 0.0
      %v5623 = vadd.f32 %v5621, %v5622
      %v5624 = vsel %vm373, %v5600, 0.0
      %v5625 = vadd.f32 %v5623, %v5624
      %v5626 = vsel %vm373, %v5601, 0.0
      %v5627 = vadd.f32 %v5625, %v5626
      %v5628 = vsel %vm373, %v5602, 0.0
      %v5629 = vadd.f32 %v5627, %v5628
      %v5630 = vsel %vm373, %v5603, 0.0
      %v5631 = vadd.f32 %v5629, %v5630
      %v5632 = vsel %vm373, %v5604, 0.0
      %v5633 = vadd.f32 %v5631, %v5632
      %v5634 = vsel %vm373, %v5605, 0.0
      %v5635 = vadd.f32 %v5633, %v5634
      %v5636 = vsel %vm373, %v5606, 0.0
      %v5637 = vadd.f32 %v5635, %v5636
      %v5638 = vrot.slane %v5637, 4
      %v5639 = vadd.f32 %v5637, %v5638
      %v5640 = vrot.slane %v5639, 2
      %v5641 = vadd.f32 %v5639, %v5640
      %v5642 = vrot.slane %v5641, 1
      %v5643 = vadd.f32 %v5641, %v5642
      %vm5644 = vcmask 24576
      %5645 = vst.msk [vmem:[%s268] sm:$0x1] %vm5644, %v5643
      %v5646 = vmul.f32 %v5591, %v5463
      %v5647 = vmul.f32 %v5592, %v5464
      %v5648 = vmul.f32 %v5593, %v5465
      %v5649 = vmul.f32 %v5594, %v5466
      %v5650 = vmul.f32 %v5595, %v5467
      %v5651 = vmul.f32 %v5596, %v5468
      %v5652 = vmul.f32 %v5597, %v5469
      %v5653 = vmul.f32 %v5598, %v5470
      %v5654 = vmul.f32 %v5599, %v5471
      %v5655 = vmul.f32 %v5600, %v5472
      %v5656 = vmul.f32 %v5601, %v5473
      %v5657 = vmul.f32 %v5602, %v5474
      %v5658 = vmul.f32 %v5603, %v5475
      %v5659 = vmul.f32 %v5604, %v5476
      %v5660 = vmul.f32 %v5605, %v5477
      %v5661 = vmul.f32 %v5606, %v5478
      %v5662 = vsel %vm373, %v5646, 0.0
      %v5663 = vsel %vm373, %v5647, 0.0
      %v5664 = vadd.f32 %v5662, %v5663
      %v5665 = vsel %vm373, %v5648, 0.0
      %v5666 = vadd.f32 %v5664, %v5665
      %v5667 = vsel %vm373, %v5649, 0.0
      %v5668 = vadd.f32 %v5666, %v5667
      %v5669 = vsel %vm373, %v5650, 0.0
      %v5670 = vadd.f32 %v5668, %v5669
      %v5671 = vsel %vm373, %v5651, 0.0
      %v5672 = vadd.f32 %v5670, %v5671
      %v5673 = vsel %vm373, %v5652, 0.0
      %v5674 = vadd.f32 %v5672, %v5673
      %v5675 = vsel %vm373, %v5653, 0.0
      %v5676 = vadd.f32 %v5674, %v5675
      %v5677 = vsel %vm373, %v5654, 0.0
      %v5678 = vadd.f32 %v5676, %v5677
      %v5679 = vsel %vm373, %v5655, 0.0
      %v5680 = vadd.f32 %v5678, %v5679
      %v5681 = vsel %vm373, %v5656, 0.0
      %v5682 = vadd.f32 %v5680, %v5681
      %v5683 = vsel %vm373, %v5657, 0.0
      %v5684 = vadd.f32 %v5682, %v5683
      %v5685 = vsel %vm373, %v5658, 0.0
      %v5686 = vadd.f32 %v5684, %v5685
      %v5687 = vsel %vm373, %v5659, 0.0
      %v5688 = vadd.f32 %v5686, %v5687
      %v5689 = vsel %vm373, %v5660, 0.0
      %v5690 = vadd.f32 %v5688, %v5689
      %v5691 = vsel %vm373, %v5661, 0.0
      %v5692 = vadd.f32 %v5690, %v5691
      %v5693 = vrot.slane %v5692, 4
      %v5694 = vadd.f32 %v5692, %v5693
      %v5695 = vrot.slane %v5694, 2
      %v5696 = vadd.f32 %v5694, %v5695
      %v5697 = vrot.slane %v5696, 1
      %v5698 = vadd.f32 %v5696, %v5697
      %5699 = vst.msk [vmem:[%s271] sm:$0x1] %vm5644, %v5698
      %s5700 = smul.u32 16, %s18
      %p5701 = scmp.lt.s32.totalorder %s5700, 191
      %s5702 = scalar_select %p5701, %s5700, 191
      %s5703 = smul.addr %s5702, 8
      %s5704 = scalar_lea.vmem %s4, %s5703
      %p5705 = scmp.lt.s32.totalorder %s18, 11
      %s5706 = scalar_select %p5705, %s18, 11
      %s5707 = scalar_lea.vmem %s5, %s5706
      %p5708 = scmp.lt.s32.totalorder %s18, 11
      %s5709 = scalar_select %p5708, %s18, 11
      %s5710 = scalar_lea.vmem %s6, %s5709
      // Predicated region
      $region37: #{deconv_block_forward.5} parent=35 // pred_check
        %p5711 = pneg %p125
      $region38: #{deconv_block_forward.5} parent=35 // pred_check_branch
        %5713 = sbr.rel (%p5711) target = $region40
      $region39: #{deconv_block_forward.5} parent=35 // pred_region
        %s5714 = smul.u32 16, %s18
      $region40: #{deconv_block_forward.5} parent=35 // pred_fallthru
        _
      // Predicated region
      $region41: #{deconv_block_forward.5} parent=35 // pred_check
        %p5715 = pneg %p151
      $region42: #{deconv_block_forward.5} parent=35 // pred_check_branch
        %5717 = sbr.rel (%p5715) target = $region44
      $region43: #{deconv_block_forward.5} parent=35 // pred_region
        _
      $region44: #{deconv_block_forward.5} parent=35 // pred_fallthru
        _
      // Predicated region
      $region45: #{deconv_block_forward.5} parent=35 // pred_check
        %p5718 = pneg %p177
      $region46: #{deconv_block_forward.5} parent=35 // pred_check_branch
        %5720 = sbr.rel (%p5718) target = $region48
      $region47: #{deconv_block_forward.5} parent=35 // pred_region
        _
      $region48: #{deconv_block_forward.5} parent=35 // pred_fallthru
        _
    $region36: #{deconv_block_forward.5} parent=5 // pred_fallthru
      _
    %p5721 = scmp.le.s32.totalorder 2, %s13
    // Predicated region
    $region49: #{deconv_block_forward.5} parent=5 // pred_check
      %p5722 = pneg %p5721
    $region50: #{deconv_block_forward.5} parent=5 // pred_check_branch
      %5724 = sbr.rel (%p5722) target = $region52
    $region51: #{deconv_block_forward.5} parent=5 // pred_region
      %s5725 = ssub.s32 %s13, 2
      // Predicated region
      $region53: #{deconv_block_forward.5} parent=51 // pred_check
        %p5726 = pneg %p131
      $region54: #{deconv_block_forward.5} parent=51 // pred_check_branch
        %5728 = sbr.rel (%p5726) target = $region56
      $region55: #{deconv_block_forward.5} parent=51 // pred_region
        %s5729 = smul.u32 16, %s19
        %p5730 = scmp.lt.s32.totalorder %s5729, 191
        %s5731 = scalar_select %p5730, %s5729, 191
        %s5732 = smul.addr %s5731, 8
        %s5733 = scalar_lea.vmem %s4, %s5732
      $region56: #{deconv_block_forward.5} parent=51 // pred_fallthru
        _
      // Predicated region
      $region57: #{deconv_block_forward.5} parent=51 // pred_check
        %p5734 = pneg %p157
      $region58: #{deconv_block_forward.5} parent=51 // pred_check_branch
        %5736 = sbr.rel (%p5734) target = $region60
      $region59: #{deconv_block_forward.5} parent=51 // pred_region
        %p5737 = scmp.lt.s32.totalorder %s19, 11
        %s5738 = scalar_select %p5737, %s19, 11
        %s5739 = scalar_lea.vmem %s5, %s5738
      $region60: #{deconv_block_forward.5} parent=51 // pred_fallthru
        _
      // Predicated region
      $region61: #{deconv_block_forward.5} parent=51 // pred_check
        %p5740 = pneg %p183
      $region62: #{deconv_block_forward.5} parent=51 // pred_check_branch
        %5742 = sbr.rel (%p5740) target = $region64
      $region63: #{deconv_block_forward.5} parent=51 // pred_region
        %p5743 = scmp.lt.s32.totalorder %s19, 11
        %s5744 = scalar_select %p5743, %s19, 11
        %s5745 = scalar_lea.vmem %s6, %s5744
      $region64: #{deconv_block_forward.5} parent=51 // pred_fallthru
        _
    $region52: #{deconv_block_forward.5} parent=5 // pred_fallthru
      _
  $region6: #{deconv_block_forward.5} parent=0 // loop_footer
    %s17 = sadd.s32 1, %s13
  $region7: #{deconv_block_forward.5} parent=0 // loop_footer_branch
    %12 = sbr.rel target = $region3
  $region8: #{deconv_block_forward.5} parent=0 // loop_exit
    _

// kernel: deconv_block_forward.9
$region0: #{deconv_block_forward.9}
  #allocation0 [shape = 'u32[]', space=smem, size = 0x4, offset = 0x4, fixed_abs, tag = 'smem constant byte address 0x4 - core index']
  #allocation1 [shape = 'u32[144,128]{1,0:T(1,128)}', space=vmem, size = 0x12000, scoped, tag = 'internal scratch']
  %s0 = inlined_call_operand.vmem [shape: f32[1024,4], index: 0, kind: input, shape index: {}]
  %s1 = inlined_call_operand.vmem [shape: f32[1,4], index: 1, kind: input, shape index: {}]
  %s2 = inlined_call_operand.vmem [shape: f32[1,4], index: 2, kind: input, shape index: {}]
  %s3 = inlined_call_operand.vmem [shape: f32[1024,4], index: 3, kind: input, shape index: {}]
  %s4 = inlined_call_operand.vmem [shape: f32[1,4], index: 4, kind: input, shape index: {}]
  %s5 = inlined_call_operand.vmem [shape: f32[1,4], index: 5, kind: input, shape index: {}]
  %s6 = inlined_call_operand.vmem [shape: f32[1024,4], index: 6, kind: output, shape index: {}]
  %s7 = sld [smem:[#allocation0]]
  $region57: #{deconv_block_forward.9} parent=0
    _
  %s9 = ssub.s32 1, %s7
  %s10 = scalar_select 0, %s9, %s7
  loop: start=0, step=1, limit=4
  $region2: #{deconv_block_forward.9} parent=0 // loop_pre_header
    _
  $region3: #{deconv_block_forward.9} parent=0 // loop_header
    %s12 = sphi 0, %s16
    %p13 = scmp.ge.s32.totalorder %s12, 4
    %s22 = sphi 0, %s24
    %s25 = sphi 0, %s22
    %s26 = sphi 0, %s25
    %s42 = sphi 0, %s26
    %s46 = sphi 0, %s46
    %s48 = sphi 0, %s46
    %s49 = sphi 0, %s48
    %s63 = sphi 0, %s49
    %s67 = sphi 0, %s67
    %s69 = sphi 0, %s67
    %s70 = sphi 0, %s69
    %s84 = sphi 0, %s70
    %s90 = sphi 0, %s92
    %s93 = sphi 0, %s90
    %s94 = sphi 0, %s93
    %s110 = sphi 0, %s94
    %s114 = sphi 0, %s114
    %s116 = sphi 0, %s114
    %s117 = sphi 0, %s116
    %s131 = sphi 0, %s117
    %s135 = sphi 0, %s135
    %s137 = sphi 0, %s135
    %s138 = sphi 0, %s137
    %s152 = sphi 0, %s138
    %s158 = sphi 0, %s160
    %s161 = sphi 0, %s158
    %s162 = sphi 0, %s161
    %s178 = sphi 0, %s162
  $region4: #{deconv_block_forward.9} parent=0 // loop_header_branch
    %15 = sbr.rel (%p13) target = $region8
  $region5: #{deconv_block_forward.9} parent=0 // loop_body
    %s17 = ssub.s32 %s12, 1
    %s18 = ssub.s32 %s12, 2
    %s19 = sadd.s32 %s12, 1
    %s20 = ssub.s32 %s12, %s19
    %p21 = scmp.eq.s32.totalorder %s20, 0
    %s23 = sadd.s32 %s22, 1
    %s24 = scalar_select %p21, %s22, %s23
    %p27 = pneg %p21
    %p28 = scmp.eq.s32.totalorder %s12, 1
    %p29 = por %p27, %p28
    %p30 = scmp.ne.s32.totalorder %s22, %s25
    %p31 = scmp.eq.s32.totalorder %s12, 0
    %p32 = por %p30, %p31
    %p33 = scmp.ne.s32.totalorder %s22, %s25
    %p34 = scmp.eq.s32.totalorder %s17, 1
    %p35 = por %p33, %p34
    %p36 = scmp.ne.s32.totalorder %s25, %s26
    %p37 = scmp.eq.s32.totalorder %s17, 0
    %p38 = por %p36, %p37
    %p39 = scmp.ne.s32.totalorder %s25, %s26
    %p40 = scmp.eq.s32.totalorder %s18, 1
    %p41 = por %p39, %p40
    %p43 = scmp.ne.s32.totalorder %s26, %s42
    %p44 = scmp.eq.s32.totalorder %s18, 0
    %p45 = por %p43, %p44
    %s47 = sadd.s32 %s46, 1
    %p50 = scmp.eq.s32.totalorder %s12, 1
    %p51 = scmp.ne.s32.totalorder %s46, %s48
    %p52 = scmp.eq.s32.totalorder %s12, 0
    %p53 = por %p51, %p52
    %p54 = scmp.ne.s32.totalorder %s46, %s48
    %p55 = scmp.eq.s32.totalorder %s17, 1
    %p56 = por %p54, %p55
    %p57 = scmp.ne.s32.totalorder %s48, %s49
    %p58 = scmp.eq.s32.totalorder %s17, 0
    %p59 = por %p57, %p58
    %p60 = scmp.ne.s32.totalorder %s48, %s49
    %p61 = scmp.eq.s32.totalorder %s18, 1
    %p62 = por %p60, %p61
    %p64 = scmp.ne.s32.totalorder %s49, %s63
    %p65 = scmp.eq.s32.totalorder %s18, 0
    %p66 = por %p64, %p65
    %s68 = sadd.s32 %s67, 1
    %p71 = scmp.eq.s32.totalorder %s12, 1
    %p72 = scmp.ne.s32.totalorder %s67, %s69
    %p73 = scmp.eq.s32.totalorder %s12, 0
    %p74 = por %p72, %p73
    %p75 = scmp.ne.s32.totalorder %s67, %s69
    %p76 = scmp.eq.s32.totalorder %s17, 1
    %p77 = por %p75, %p76
    %p78 = scmp.ne.s32.totalorder %s69, %s70
    %p79 = scmp.eq.s32.totalorder %s17, 0
    %p80 = por %p78, %p79
    %p81 = scmp.ne.s32.totalorder %s69, %s70
    %p82 = scmp.eq.s32.totalorder %s18, 1
    %p83 = por %p81, %p82
    %p85 = scmp.ne.s32.totalorder %s70, %s84
    %p86 = scmp.eq.s32.totalorder %s18, 0
    %p87 = por %p85, %p86
    %s88 = ssub.s32 %s12, %s19
    %p89 = scmp.eq.s32.totalorder %s88, 0
    %s91 = sadd.s32 %s90, 1
    %s92 = scalar_select %p89, %s90, %s91
    %p95 = pneg %p89
    %p96 = scmp.eq.s32.totalorder %s12, 1
    %p97 = por %p95, %p96
    %p98 = scmp.ne.s32.totalorder %s90, %s93
    %p99 = scmp.eq.s32.totalorder %s12, 0
    %p100 = por %p98, %p99
    %p101 = scmp.ne.s32.totalorder %s90, %s93
    %p102 = scmp.eq.s32.totalorder %s17, 1
    %p103 = por %p101, %p102
    %p104 = scmp.ne.s32.totalorder %s93, %s94
    %p105 = scmp.eq.s32.totalorder %s17, 0
    %p106 = por %p104, %p105
    %p107 = scmp.ne.s32.totalorder %s93, %s94
    %p108 = scmp.eq.s32.totalorder %s18, 1
    %p109 = por %p107, %p108
    %p111 = scmp.ne.s32.totalorder %s94, %s110
    %p112 = scmp.eq.s32.totalorder %s18, 0
    %p113 = por %p111, %p112
    %s115 = sadd.s32 %s114, 1
    %p118 = scmp.eq.s32.totalorder %s12, 1
    %p119 = scmp.ne.s32.totalorder %s114, %s116
    %p120 = scmp.eq.s32.totalorder %s12, 0
    %p121 = por %p119, %p120
    %p122 = scmp.ne.s32.totalorder %s114, %s116
    %p123 = scmp.eq.s32.totalorder %s17, 1
    %p124 = por %p122, %p123
    %p125 = scmp.ne.s32.totalorder %s116, %s117
    %p126 = scmp.eq.s32.totalorder %s17, 0
    %p127 = por %p125, %p126
    %p128 = scmp.ne.s32.totalorder %s116, %s117
    %p129 = scmp.eq.s32.totalorder %s18, 1
    %p130 = por %p128, %p129
    %p132 = scmp.ne.s32.totalorder %s117, %s131
    %p133 = scmp.eq.s32.totalorder %s18, 0
    %p134 = por %p132, %p133
    %s136 = sadd.s32 %s135, 1
    %p139 = scmp.eq.s32.totalorder %s12, 1
    %p140 = scmp.ne.s32.totalorder %s135, %s137
    %p141 = scmp.eq.s32.totalorder %s12, 0
    %p142 = por %p140, %p141
    %p143 = scmp.ne.s32.totalorder %s135, %s137
    %p144 = scmp.eq.s32.totalorder %s17, 1
    %p145 = por %p143, %p144
    %p146 = scmp.ne.s32.totalorder %s137, %s138
    %p147 = scmp.eq.s32.totalorder %s17, 0
    %p148 = por %p146, %p147
    %p149 = scmp.ne.s32.totalorder %s137, %s138
    %p150 = scmp.eq.s32.totalorder %s18, 1
    %p151 = por %p149, %p150
    %p153 = scmp.ne.s32.totalorder %s138, %s152
    %p154 = scmp.eq.s32.totalorder %s18, 0
    %p155 = por %p153, %p154
    %s156 = ssub.s32 %s12, %s19
    %p157 = scmp.eq.s32.totalorder %s156, 0
    %s159 = sadd.s32 %s158, 1
    %s160 = scalar_select %p157, %s158, %s159
    %p163 = pneg %p157
    %p164 = scmp.eq.s32.totalorder %s12, 1
    %p165 = por %p163, %p164
    %p166 = scmp.ne.s32.totalorder %s158, %s161
    %p167 = scmp.eq.s32.totalorder %s12, 0
    %p168 = por %p166, %p167
    %p169 = scmp.ne.s32.totalorder %s158, %s161
    %p170 = scmp.eq.s32.totalorder %s17, 1
    %p171 = por %p169, %p170
    %p172 = scmp.ne.s32.totalorder %s161, %s162
    %p173 = scmp.eq.s32.totalorder %s17, 0
    %p174 = por %p172, %p173
    %p175 = scmp.ne.s32.totalorder %s161, %s162
    %p176 = scmp.eq.s32.totalorder %s18, 1
    %p177 = por %p175, %p176
    %p179 = scmp.ne.s32.totalorder %s162, %s178
    %p180 = scmp.eq.s32.totalorder %s18, 0
    %p181 = por %p179, %p180
    %p182 = scmp.le.s32.totalorder 1, %s12
    %p183 = scmp.lt.s32.totalorder %s12, 3
    %p184 = pnand %p182, %p183
    %p185 = pneg %p184
    // Predicated region
    $region9: #{deconv_block_forward.9} parent=5 // pred_check
      _
    $region10: #{deconv_block_forward.9} parent=5 // pred_check_branch
      %187 = sbr.rel (%p184) target = $region12
    $region11: #{deconv_block_forward.9} parent=5 // pred_region
      %s188 = ssub.s32 %s12, 1
      // Predicated region
      $region13: #{deconv_block_forward.9} parent=11 // pred_check
        %p189 = pneg %p59
      $region14: #{deconv_block_forward.9} parent=11 // pred_check_branch
        %191 = sbr.rel (%p189) target = $region16
      $region15: #{deconv_block_forward.9} parent=11 // pred_region
        _
      $region16: #{deconv_block_forward.9} parent=11 // pred_fallthru
        _
      // Predicated region
      $region17: #{deconv_block_forward.9} parent=11 // pred_check
        %p192 = pneg %p80
      $region18: #{deconv_block_forward.9} parent=11 // pred_check_branch
        %194 = sbr.rel (%p192) target = $region20
      $region19: #{deconv_block_forward.9} parent=11 // pred_region
        _
      $region20: #{deconv_block_forward.9} parent=11 // pred_fallthru
        _
      // Predicated region
      $region21: #{deconv_block_forward.9} parent=11 // pred_check
        %p195 = pneg %p127
      $region22: #{deconv_block_forward.9} parent=11 // pred_check_branch
        %197 = sbr.rel (%p195) target = $region24
      $region23: #{deconv_block_forward.9} parent=11 // pred_region
        _
      $region24: #{deconv_block_forward.9} parent=11 // pred_fallthru
        _
      // Predicated region
      $region25: #{deconv_block_forward.9} parent=11 // pred_check
        %p198 = pneg %p148
      $region26: #{deconv_block_forward.9} parent=11 // pred_check_branch
        %200 = sbr.rel (%p198) target = $region28
      $region27: #{deconv_block_forward.9} parent=11 // pred_region
        _
      $region28: #{deconv_block_forward.9} parent=11 // pred_fallthru
        _
    $region12: #{deconv_block_forward.9} parent=5 // pred_fallthru
      _
    %p201 = scmp.lt.s32.totalorder %s12, 2
    // Predicated region
    $region29: #{deconv_block_forward.9} parent=5 // pred_check
      %p202 = pneg %p201
    $region30: #{deconv_block_forward.9} parent=5 // pred_check_branch
      %204 = sbr.rel (%p202) target = $region32
    $region31: #{deconv_block_forward.9} parent=5 // pred_region
      // Predicated region
      $region33: #{deconv_block_forward.9} parent=31 // pred_check
        %p205 = pneg %p32
      $region34: #{deconv_block_forward.9} parent=31 // pred_check_branch
        %207 = sbr.rel (%p205) target = $region36
      $region35: #{deconv_block_forward.9} parent=31 // pred_region
        %s208 = smul.u32 64, %s12
        %p209 = scmp.lt.s32.totalorder %s208, 127
        %s210 = scalar_select %p209, %s208, 127
        %s211 = smul.addr %s210, 8
        %s212 = scalar_lea.vmem %s0, %s211
        %s213 = smul.u32 64, %s12
      $region36: #{deconv_block_forward.9} parent=31 // pred_fallthru
        _
      // Predicated region
      $region37: #{deconv_block_forward.9} parent=31 // pred_check
        %p214 = pneg %p100
      $region38: #{deconv_block_forward.9} parent=31 // pred_check_branch
        %216 = sbr.rel (%p214) target = $region40
      $region39: #{deconv_block_forward.9} parent=31 // pred_region
        %s217 = smul.u32 64, %s12
        %p218 = scmp.lt.s32.totalorder %s217, 127
        %s219 = scalar_select %p218, %s217, 127
        %s220 = smul.addr %s219, 8
        %s221 = scalar_lea.vmem %s3, %s220
        %s222 = smul.u32 64, %s12
      $region40: #{deconv_block_forward.9} parent=31 // pred_fallthru
        _
    $region32: #{deconv_block_forward.9} parent=5 // pred_fallthru
      _
    %p223 = scmp.le.s32.totalorder 1, %s12
    %p224 = scmp.lt.s32.totalorder %s12, 3
    %p225 = pnand %p223, %p224
    %p226 = pneg %p225
    // Predicated region
    $region41: #{deconv_block_forward.9} parent=5 // pred_check
      _
    $region42: #{deconv_block_forward.9} parent=5 // pred_check_branch
      %228 = sbr.rel (%p225) target = $region44
    $region43: #{deconv_block_forward.9} parent=5 // pred_region
      %s229 = ssub.s32 %s12, 1
      %s230 = smul.u32 64, %s17
      %p231 = scmp.lt.s32.totalorder %s230, 127
      %s232 = scalar_select %p231, %s230, 127
      %s233 = smul.addr %s232, 8
      %s234 = scalar_lea.vmem %s0, %s233
      %p235 = pneg %p38
      %p236 = pneg %p35
      %p237 = pneg %p59
      %p238 = pneg %p56
      %p239 = pneg %p80
      %p240 = pneg %p77
      %s241 = smul.u32 64, %s17
      %p242 = scmp.lt.s32.totalorder %s241, 127
      %s243 = scalar_select %p242, %s241, 127
      %s244 = smul.addr %s243, 8
      %s245 = scalar_lea.vmem %s3, %s244
      %p246 = pneg %p106
      %p247 = pneg %p103
      %p248 = pneg %p127
      %p249 = pneg %p124
      %p250 = pneg %p148
      %p251 = pneg %p145
      %p252 = pneg %p174
      %p253 = pneg %p171
      %s254 = smul.u32 64, %s17
      %p255 = scmp.lt.s32.totalorder %s254, 127
      %s256 = scalar_select %p255, %s254, 127
      %s257 = smul.addr %s256, 8
      %s258 = scalar_lea.vmem %s6, %s257
      %s259 = smul.u32 64, %s17
      %p260 = scmp.lt.s32.totalorder %s259, 127
      %s261 = scalar_select %p260, %s259, 127
      %s262 = smul.addr %s261, 8
      %s263 = scalar_lea.vmem %s0, %s262
      %s264 = smul.u32 64, %s17
      %s265 = smul.u32 64, %s17
      %p266 = scmp.lt.s32.totalorder %s265, 127
      %s267 = scalar_select %p266, %s265, 127
      %s268 = smul.addr %s267, 8
      %s269 = scalar_lea.vmem %s3, %s268
      %s270 = smul.u32 64, %s17
      %s271 = smul.u32 64, %s17
      %p272 = scmp.lt.s32.totalorder %s271, 127
      %s273 = scalar_select %p272, %s271, 127
      %s274 = smul.addr %s273, 8
      %s275 = scalar_lea.vmem %s6, %s274
      %s276 = smul.u32 64, %s17
      %v277 = vld [vmem:[%s263] sm:$0xff]
      %v278 = vld [vmem:[%s263 + $0x8] sm:$0xff]
      %v279 = vld [vmem:[%s263 + $0x10] sm:$0xff]
      %v280 = vld [vmem:[%s263 + $0x18] sm:$0xff]
      %v281 = vld [vmem:[%s263 + $0x20] sm:$0xff]
      %v282 = vld [vmem:[%s263 + $0x28] sm:$0xff]
      %v283 = vld [vmem:[%s263 + $0x30] sm:$0xff]
      %v284 = vld [vmem:[%s263 + $0x38] sm:$0xff]
      %v285 = vld [vmem:[%s263 + $0x40] sm:$0xff]
      %v286 = vld [vmem:[%s263 + $0x48] sm:$0xff]
      %v287 = vld [vmem:[%s263 + $0x50] sm:$0xff]
      %v288 = vld [vmem:[%s263 + $0x58] sm:$0xff]
      %v289 = vld [vmem:[%s263 + $0x60] sm:$0xff]
      %v290 = vld [vmem:[%s263 + $0x68] sm:$0xff]
      %v291 = vld [vmem:[%s263 + $0x70] sm:$0xff]
      %v292 = vld [vmem:[%s263 + $0x78] sm:$0xff]
      %v293 = vld [vmem:[%s263 + $0x80] sm:$0xff]
      %v294 = vld [vmem:[%s263 + $0x88] sm:$0xff]
      %v295 = vld [vmem:[%s263 + $0x90] sm:$0xff]
      %v296 = vld [vmem:[%s263 + $0x98] sm:$0xff]
      %v297 = vld [vmem:[%s263 + $0xa0] sm:$0xff]
      %v298 = vld [vmem:[%s263 + $0xa8] sm:$0xff]
      %v299 = vld [vmem:[%s263 + $0xb0] sm:$0xff]
      %v300 = vld [vmem:[%s263 + $0xb8] sm:$0xff]
      %v301 = vld [vmem:[%s263 + $0xc0] sm:$0xff]
      %v302 = vld [vmem:[%s263 + $0xc8] sm:$0xff]
      %v303 = vld [vmem:[%s263 + $0xd0] sm:$0xff]
      %v304 = vld [vmem:[%s263 + $0xd8] sm:$0xff]
      %v305 = vld [vmem:[%s263 + $0xe0] sm:$0xff]
      %v306 = vld [vmem:[%s263 + $0xe8] sm:$0xff]
      %v307 = vld [vmem:[%s263 + $0xf0] sm:$0xff]
      %v308 = vld [vmem:[%s263 + $0xf8] sm:$0xff]
      %v309 = vld [vmem:[%s263 + $0x100] sm:$0xff]
      %v310 = vld [vmem:[%s263 + $0x108] sm:$0xff]
      %v311 = vld [vmem:[%s263 + $0x110] sm:$0xff]
      %v312 = vld [vmem:[%s263 + $0x118] sm:$0xff]
      %v313 = vld [vmem:[%s263 + $0x120] sm:$0xff]
      %v314 = vld [vmem:[%s263 + $0x128] sm:$0xff]
      %v315 = vld [vmem:[%s263 + $0x130] sm:$0xff]
      %v316 = vld [vmem:[%s263 + $0x138] sm:$0xff]
      %v317 = vld [vmem:[%s263 + $0x140] sm:$0xff]
      %v318 = vld [vmem:[%s263 + $0x148] sm:$0xff]
      %v319 = vld [vmem:[%s263 + $0x150] sm:$0xff]
      %v320 = vld [vmem:[%s263 + $0x158] sm:$0xff]
      %v321 = vld [vmem:[%s263 + $0x160] sm:$0xff]
      %v322 = vld [vmem:[%s263 + $0x168] sm:$0xff]
      %v323 = vld [vmem:[%s263 + $0x170] sm:$0xff]
      %v324 = vld [vmem:[%s263 + $0x178] sm:$0xff]
      %v325 = vld [vmem:[%s263 + $0x180] sm:$0xff]
      %v326 = vld [vmem:[%s263 + $0x188] sm:$0xff]
      %v327 = vld [vmem:[%s263 + $0x190] sm:$0xff]
      %v328 = vld [vmem:[%s263 + $0x198] sm:$0xff]
      %v329 = vld [vmem:[%s263 + $0x1a0] sm:$0xff]
      %v330 = vld [vmem:[%s263 + $0x1a8] sm:$0xff]
      %v331 = vld [vmem:[%s263 + $0x1b0] sm:$0xff]
      %v332 = vld [vmem:[%s263 + $0x1b8] sm:$0xff]
      %v333 = vld [vmem:[%s263 + $0x1c0] sm:$0xff]
      %v334 = vld [vmem:[%s263 + $0x1c8] sm:$0xff]
      %v335 = vld [vmem:[%s263 + $0x1d0] sm:$0xff]
      %v336 = vld [vmem:[%s263 + $0x1d8] sm:$0xff]
      %v337 = vld [vmem:[%s263 + $0x1e0] sm:$0xff]
      %v338 = vld [vmem:[%s263 + $0x1e8] sm:$0xff]
      %v339 = vld [vmem:[%s263 + $0x1f0] sm:$0xff]
      %v340 = vld [vmem:[%s263 + $0x1f8] sm:$0xff]
      %v341 = vld [vmem:[%s1] sm:$0x1]
      %v343 = vlaneseq
      %v344 = vshrl.u32 %v343, 7
      %v345 = vsub.s32 0, %v344
      %v346 = vrot.slane %v341, %v345
      %v348 = vmul.f32 %v277, %v346
      %v349 = vmul.f32 %v278, %v346
      %v350 = vmul.f32 %v279, %v346
      %v351 = vmul.f32 %v280, %v346
      %v352 = vmul.f32 %v281, %v346
      %v353 = vmul.f32 %v282, %v346
      %v354 = vmul.f32 %v283, %v346
      %v355 = vmul.f32 %v284, %v346
      %v356 = vmul.f32 %v285, %v346
      %v357 = vmul.f32 %v286, %v346
      %v358 = vmul.f32 %v287, %v346
      %v359 = vmul.f32 %v288, %v346
      %v360 = vmul.f32 %v289, %v346
      %v361 = vmul.f32 %v290, %v346
      %v362 = vmul.f32 %v291, %v346
      %v363 = vmul.f32 %v292, %v346
      %v364 = vmul.f32 %v293, %v346
      %v365 = vmul.f32 %v294, %v346
      %v366 = vmul.f32 %v295, %v346
      %v367 = vmul.f32 %v296, %v346
      %v368 = vmul.f32 %v297, %v346
      %v369 = vmul.f32 %v298, %v346
      %v370 = vmul.f32 %v299, %v346
      %v371 = vmul.f32 %v300, %v346
      %v372 = vmul.f32 %v301, %v346
      %v373 = vmul.f32 %v302, %v346
      %v374 = vmul.f32 %v303, %v346
      %v375 = vmul.f32 %v304, %v346
      %v376 = vmul.f32 %v305, %v346
      %v377 = vmul.f32 %v306, %v346
      %v378 = vmul.f32 %v307, %v346
      %v379 = vmul.f32 %v308, %v346
      %v380 = vmul.f32 %v309, %v346
      %v381 = vmul.f32 %v310, %v346
      %v382 = vmul.f32 %v311, %v346
      %v383 = vmul.f32 %v312, %v346
      %v384 = vmul.f32 %v313, %v346
      %v385 = vmul.f32 %v314, %v346
      %v386 = vmul.f32 %v315, %v346
      %v387 = vmul.f32 %v316, %v346
      %v388 = vmul.f32 %v317, %v346
      %v389 = vmul.f32 %v318, %v346
      %v390 = vmul.f32 %v319, %v346
      %v391 = vmul.f32 %v320, %v346
      %v392 = vmul.f32 %v321, %v346
      %v393 = vmul.f32 %v322, %v346
      %v394 = vmul.f32 %v323, %v346
      %v395 = vmul.f32 %v324, %v346
      %v396 = vmul.f32 %v325, %v346
      %v397 = vmul.f32 %v326, %v346
      %v398 = vmul.f32 %v327, %v346
      %v399 = vmul.f32 %v328, %v346
      %v400 = vmul.f32 %v329, %v346
      %v401 = vmul.f32 %v330, %v346
      %v402 = vmul.f32 %v331, %v346
      %v403 = vmul.f32 %v332, %v346
      %v404 = vmul.f32 %v333, %v346
      %v405 = vmul.f32 %v334, %v346
      %v406 = vmul.f32 %v335, %v346
      %v407 = vmul.f32 %v336, %v346
      %v408 = vmul.f32 %v337, %v346
      %v409 = vmul.f32 %v338, %v346
      %v410 = vmul.f32 %v339, %v346
      %v411 = vmul.f32 %v340, %v346
      %v412 = vld [vmem:[%s2] sm:$0x1]
      %v414 = vlaneseq
      %v415 = vshrl.u32 %v414, 7
      %v416 = vsub.s32 0, %v415
      %v417 = vrot.slane %v412, %v416
      %v419 = vadd.f32 %v348, %v417
      %v420 = vadd.f32 %v349, %v417
      %v421 = vadd.f32 %v350, %v417
      %v422 = vadd.f32 %v351, %v417
      %v423 = vadd.f32 %v352, %v417
      %v424 = vadd.f32 %v353, %v417
      %v425 = vadd.f32 %v354, %v417
      %v426 = vadd.f32 %v355, %v417
      %v427 = vadd.f32 %v356, %v417
      %v428 = vadd.f32 %v357, %v417
      %v429 = vadd.f32 %v358, %v417
      %v430 = vadd.f32 %v359, %v417
      %v431 = vadd.f32 %v360, %v417
      %v432 = vadd.f32 %v361, %v417
      %v433 = vadd.f32 %v362, %v417
      %v434 = vadd.f32 %v363, %v417
      %v435 = vadd.f32 %v364, %v417
      %v436 = vadd.f32 %v365, %v417
      %v437 = vadd.f32 %v366, %v417
      %v438 = vadd.f32 %v367, %v417
      %v439 = vadd.f32 %v368, %v417
      %v440 = vadd.f32 %v369, %v417
      %v441 = vadd.f32 %v370, %v417
      %v442 = vadd.f32 %v371, %v417
      %v443 = vadd.f32 %v372, %v417
      %v444 = vadd.f32 %v373, %v417
      %v445 = vadd.f32 %v374, %v417
      %v446 = vadd.f32 %v375, %v417
      %v447 = vadd.f32 %v376, %v417
      %v448 = vadd.f32 %v377, %v417
      %v449 = vadd.f32 %v378, %v417
      %v450 = vadd.f32 %v379, %v417
      %v451 = vadd.f32 %v380, %v417
      %v452 = vadd.f32 %v381, %v417
      %v453 = vadd.f32 %v382, %v417
      %v454 = vadd.f32 %v383, %v417
      %v455 = vadd.f32 %v384, %v417
      %v456 = vadd.f32 %v385, %v417
      %v457 = vadd.f32 %v386, %v417
      %v458 = vadd.f32 %v387, %v417
      %v459 = vadd.f32 %v388, %v417
      %v460 = vadd.f32 %v389, %v417
      %v461 = vadd.f32 %v390, %v417
      %v462 = vadd.f32 %v391, %v417
      %v463 = vadd.f32 %v392, %v417
      %v464 = vadd.f32 %v393, %v417
      %v465 = vadd.f32 %v394, %v417
      %v466 = vadd.f32 %v395, %v417
      %v467 = vadd.f32 %v396, %v417
      %v468 = vadd.f32 %v397, %v417
      %v469 = vadd.f32 %v398, %v417
      %v470 = vadd.f32 %v399, %v417
      %v471 = vadd.f32 %v400, %v417
      %v472 = vadd.f32 %v401, %v417
      %v473 = vadd.f32 %v402, %v417
      %v474 = vadd.f32 %v403, %v417
      %v475 = vadd.f32 %v404, %v417
      %v476 = vadd.f32 %v405, %v417
      %v477 = vadd.f32 %v406, %v417
      %v478 = vadd.f32 %v407, %v417
      %v479 = vadd.f32 %v408, %v417
      %v480 = vadd.f32 %v409, %v417
      %v481 = vadd.f32 %v410, %v417
      %v482 = vadd.f32 %v411, %v417
      %v483 = vmax.f32 %v419, 0.0
      %v484 = vmax.f32 %v420, 0.0
      %v485 = vmax.f32 %v421, 0.0
      %v486 = vmax.f32 %v422, 0.0
      %v487 = vmax.f32 %v423, 0.0
      %v488 = vmax.f32 %v424, 0.0
      %v489 = vmax.f32 %v425, 0.0
      %v490 = vmax.f32 %v426, 0.0
      %v491 = vmax.f32 %v427, 0.0
      %v492 = vmax.f32 %v428, 0.0
      %v493 = vmax.f32 %v429, 0.0
      %v494 = vmax.f32 %v430, 0.0
      %v495 = vmax.f32 %v431, 0.0
      %v496 = vmax.f32 %v432, 0.0
      %v497 = vmax.f32 %v433, 0.0
      %v498 = vmax.f32 %v434, 0.0
      %v499 = vmax.f32 %v435, 0.0
      %v500 = vmax.f32 %v436, 0.0
      %v501 = vmax.f32 %v437, 0.0
      %v502 = vmax.f32 %v438, 0.0
      %v503 = vmax.f32 %v439, 0.0
      %v504 = vmax.f32 %v440, 0.0
      %v505 = vmax.f32 %v441, 0.0
      %v506 = vmax.f32 %v442, 0.0
      %v507 = vmax.f32 %v443, 0.0
      %v508 = vmax.f32 %v444, 0.0
      %v509 = vmax.f32 %v445, 0.0
      %v510 = vmax.f32 %v446, 0.0
      %v511 = vmax.f32 %v447, 0.0
      %v512 = vmax.f32 %v448, 0.0
      %v513 = vmax.f32 %v449, 0.0
      %v514 = vmax.f32 %v450, 0.0
      %v515 = vmax.f32 %v451, 0.0
      %v516 = vmax.f32 %v452, 0.0
      %v517 = vmax.f32 %v453, 0.0
      %v518 = vmax.f32 %v454, 0.0
      %v519 = vmax.f32 %v455, 0.0
      %v520 = vmax.f32 %v456, 0.0
      %v521 = vmax.f32 %v457, 0.0
      %v522 = vmax.f32 %v458, 0.0
      %v523 = vmax.f32 %v459, 0.0
      %v524 = vmax.f32 %v460, 0.0
      %v525 = vmax.f32 %v461, 0.0
      %v526 = vmax.f32 %v462, 0.0
      %v527 = vmax.f32 %v463, 0.0
      %v528 = vmax.f32 %v464, 0.0
      %v529 = vmax.f32 %v465, 0.0
      %v530 = vmax.f32 %v466, 0.0
      %v531 = vmax.f32 %v467, 0.0
      %v532 = vmax.f32 %v468, 0.0
      %v533 = vmax.f32 %v469, 0.0
      %v534 = vmax.f32 %v470, 0.0
      %v535 = vmax.f32 %v471, 0.0
      %v536 = vmax.f32 %v472, 0.0
      %v537 = vmax.f32 %v473, 0.0
      %v538 = vmax.f32 %v474, 0.0
      %v539 = vmax.f32 %v475, 0.0
      %v540 = vmax.f32 %v476, 0.0
      %v541 = vmax.f32 %v477, 0.0
      %v542 = vmax.f32 %v478, 0.0
      %v543 = vmax.f32 %v479, 0.0
      %v544 = vmax.f32 %v480, 0.0
      %v545 = vmax.f32 %v481, 0.0
      %v546 = vmax.f32 %v482, 0.0
      %v547 = vld [vmem:[%s269] sm:$0xff]
      %v548 = vld [vmem:[%s269 + $0x8] sm:$0xff]
      %v549 = vld [vmem:[%s269 + $0x10] sm:$0xff]
      %v550 = vld [vmem:[%s269 + $0x18] sm:$0xff]
      %v551 = vld [vmem:[%s269 + $0x20] sm:$0xff]
      %v552 = vld [vmem:[%s269 + $0x28] sm:$0xff]
      %v553 = vld [vmem:[%s269 + $0x30] sm:$0xff]
      %v554 = vld [vmem:[%s269 + $0x38] sm:$0xff]
      %v555 = vld [vmem:[%s269 + $0x40] sm:$0xff]
      %v556 = vld [vmem:[%s269 + $0x48] sm:$0xff]
      %v557 = vld [vmem:[%s269 + $0x50] sm:$0xff]
      %v558 = vld [vmem:[%s269 + $0x58] sm:$0xff]
      %v559 = vld [vmem:[%s269 + $0x60] sm:$0xff]
      %v560 = vld [vmem:[%s269 + $0x68] sm:$0xff]
      %v561 = vld [vmem:[%s269 + $0x70] sm:$0xff]
      %v562 = vld [vmem:[%s269 + $0x78] sm:$0xff]
      %v563 = vld [vmem:[%s269 + $0x80] sm:$0xff]
      %v564 = vld [vmem:[%s269 + $0x88] sm:$0xff]
      %v565 = vld [vmem:[%s269 + $0x90] sm:$0xff]
      %v566 = vld [vmem:[%s269 + $0x98] sm:$0xff]
      %v567 = vld [vmem:[%s269 + $0xa0] sm:$0xff]
      %v568 = vld [vmem:[%s269 + $0xa8] sm:$0xff]
      %v569 = vld [vmem:[%s269 + $0xb0] sm:$0xff]
      %v570 = vld [vmem:[%s269 + $0xb8] sm:$0xff]
      %v571 = vld [vmem:[%s269 + $0xc0] sm:$0xff]
      %v572 = vld [vmem:[%s269 + $0xc8] sm:$0xff]
      %v573 = vld [vmem:[%s269 + $0xd0] sm:$0xff]
      %v574 = vld [vmem:[%s269 + $0xd8] sm:$0xff]
      %v575 = vld [vmem:[%s269 + $0xe0] sm:$0xff]
      %v576 = vld [vmem:[%s269 + $0xe8] sm:$0xff]
      %v577 = vld [vmem:[%s269 + $0xf0] sm:$0xff]
      %v578 = vld [vmem:[%s269 + $0xf8] sm:$0xff]
      %v579 = vld [vmem:[%s269 + $0x100] sm:$0xff]
      %v580 = vld [vmem:[%s269 + $0x108] sm:$0xff]
      %v581 = vld [vmem:[%s269 + $0x110] sm:$0xff]
      %v582 = vld [vmem:[%s269 + $0x118] sm:$0xff]
      %v583 = vld [vmem:[%s269 + $0x120] sm:$0xff]
      %v584 = vld [vmem:[%s269 + $0x128] sm:$0xff]
      %v585 = vld [vmem:[%s269 + $0x130] sm:$0xff]
      %v586 = vld [vmem:[%s269 + $0x138] sm:$0xff]
      %v587 = vld [vmem:[%s269 + $0x140] sm:$0xff]
      %v588 = vld [vmem:[%s269 + $0x148] sm:$0xff]
      %v589 = vld [vmem:[%s269 + $0x150] sm:$0xff]
      %v590 = vld [vmem:[%s269 + $0x158] sm:$0xff]
      %v591 = vld [vmem:[%s269 + $0x160] sm:$0xff]
      %v592 = vld [vmem:[%s269 + $0x168] sm:$0xff]
      %v593 = vld [vmem:[%s269 + $0x170] sm:$0xff]
      %v594 = vld [vmem:[%s269 + $0x178] sm:$0xff]
      %v595 = vld [vmem:[%s269 + $0x180] sm:$0xff]
      %v596 = vld [vmem:[%s269 + $0x188] sm:$0xff]
      %v597 = vld [vmem:[%s269 + $0x190] sm:$0xff]
      %v598 = vld [vmem:[%s269 + $0x198] sm:$0xff]
      %v599 = vld [vmem:[%s269 + $0x1a0] sm:$0xff]
      %v600 = vld [vmem:[%s269 + $0x1a8] sm:$0xff]
      %v601 = vld [vmem:[%s269 + $0x1b0] sm:$0xff]
      %v602 = vld [vmem:[%s269 + $0x1b8] sm:$0xff]
      %v603 = vld [vmem:[%s269 + $0x1c0] sm:$0xff]
      %v604 = vld [vmem:[%s269 + $0x1c8] sm:$0xff]
      %v605 = vld [vmem:[%s269 + $0x1d0] sm:$0xff]
      %v606 = vld [vmem:[%s269 + $0x1d8] sm:$0xff]
      %v607 = vld [vmem:[%s269 + $0x1e0] sm:$0xff]
      %v608 = vld [vmem:[%s269 + $0x1e8] sm:$0xff]
      %v609 = vld [vmem:[%s269 + $0x1f0] sm:$0xff]
      %v610 = vld [vmem:[%s269 + $0x1f8] sm:$0xff]
      %v611 = vld [vmem:[%s4] sm:$0x1]
      %v613 = vlaneseq
      %v614 = vshrl.u32 %v613, 7
      %v615 = vsub.s32 0, %v614
      %v616 = vrot.slane %v611, %v615
      %v618 = vmul.f32 %v547, %v616
      %v619 = vmul.f32 %v548, %v616
      %v620 = vmul.f32 %v549, %v616
      %v621 = vmul.f32 %v550, %v616
      %v622 = vmul.f32 %v551, %v616
      %v623 = vmul.f32 %v552, %v616
      %v624 = vmul.f32 %v553, %v616
      %v625 = vmul.f32 %v554, %v616
      %v626 = vmul.f32 %v555, %v616
      %v627 = vmul.f32 %v556, %v616
      %v628 = vmul.f32 %v557, %v616
      %v629 = vmul.f32 %v558, %v616
      %v630 = vmul.f32 %v559, %v616
      %v631 = vmul.f32 %v560, %v616
      %v632 = vmul.f32 %v561, %v616
      %v633 = vmul.f32 %v562, %v616
      %v634 = vmul.f32 %v563, %v616
      %v635 = vmul.f32 %v564, %v616
      %v636 = vmul.f32 %v565, %v616
      %v637 = vmul.f32 %v566, %v616
      %v638 = vmul.f32 %v567, %v616
      %v639 = vmul.f32 %v568, %v616
      %v640 = vmul.f32 %v569, %v616
      %v641 = vmul.f32 %v570, %v616
      %v642 = vmul.f32 %v571, %v616
      %v643 = vmul.f32 %v572, %v616
      %v644 = vmul.f32 %v573, %v616
      %v645 = vmul.f32 %v574, %v616
      %v646 = vmul.f32 %v575, %v616
      %v647 = vmul.f32 %v576, %v616
      %v648 = vmul.f32 %v577, %v616
      %v649 = vmul.f32 %v578, %v616
      %v650 = vmul.f32 %v579, %v616
      %v651 = vmul.f32 %v580, %v616
      %v652 = vmul.f32 %v581, %v616
      %v653 = vmul.f32 %v582, %v616
      %v654 = vmul.f32 %v583, %v616
      %v655 = vmul.f32 %v584, %v616
      %v656 = vmul.f32 %v585, %v616
      %v657 = vmul.f32 %v586, %v616
      %v658 = vmul.f32 %v587, %v616
      %v659 = vmul.f32 %v588, %v616
      %v660 = vmul.f32 %v589, %v616
      %v661 = vmul.f32 %v590, %v616
      %v662 = vmul.f32 %v591, %v616
      %v663 = vmul.f32 %v592, %v616
      %v664 = vmul.f32 %v593, %v616
      %v665 = vmul.f32 %v594, %v616
      %v666 = vmul.f32 %v595, %v616
      %v667 = vmul.f32 %v596, %v616
      %v668 = vmul.f32 %v597, %v616
      %v669 = vmul.f32 %v598, %v616
      %v670 = vmul.f32 %v599, %v616
      %v671 = vmul.f32 %v600, %v616
      %v672 = vmul.f32 %v601, %v616
      %v673 = vmul.f32 %v602, %v616
      %v674 = vmul.f32 %v603, %v616
      %v675 = vmul.f32 %v604, %v616
      %v676 = vmul.f32 %v605, %v616
      %v677 = vmul.f32 %v606, %v616
      %v678 = vmul.f32 %v607, %v616
      %v679 = vmul.f32 %v608, %v616
      %v680 = vmul.f32 %v609, %v616
      %v681 = vmul.f32 %v610, %v616
      %v682 = vld [vmem:[%s5] sm:$0x1]
      %v684 = vlaneseq
      %v685 = vshrl.u32 %v684, 7
      %v686 = vsub.s32 0, %v685
      %v687 = vrot.slane %v682, %v686
      %v689 = vadd.f32 %v618, %v687
      %v690 = vadd.f32 %v619, %v687
      %v691 = vadd.f32 %v620, %v687
      %v692 = vadd.f32 %v621, %v687
      %v693 = vadd.f32 %v622, %v687
      %v694 = vadd.f32 %v623, %v687
      %v695 = vadd.f32 %v624, %v687
      %v696 = vadd.f32 %v625, %v687
      %v697 = vadd.f32 %v626, %v687
      %v698 = vadd.f32 %v627, %v687
      %v699 = vadd.f32 %v628, %v687
      %v700 = vadd.f32 %v629, %v687
      %v701 = vadd.f32 %v630, %v687
      %v702 = vadd.f32 %v631, %v687
      %v703 = vadd.f32 %v632, %v687
      %v704 = vadd.f32 %v633, %v687
      %v705 = vadd.f32 %v634, %v687
      %v706 = vadd.f32 %v635, %v687
      %v707 = vadd.f32 %v636, %v687
      %v708 = vadd.f32 %v637, %v687
      %v709 = vadd.f32 %v638, %v687
      %v710 = vadd.f32 %v639, %v687
      %v711 = vadd.f32 %v640, %v687
      %v712 = vadd.f32 %v641, %v687
      %v713 = vadd.f32 %v642, %v687
      %v714 = vadd.f32 %v643, %v687
      %v715 = vadd.f32 %v644, %v687
      %v716 = vadd.f32 %v645, %v687
      %v717 = vadd.f32 %v646, %v687
      %v718 = vadd.f32 %v647, %v687
      %v719 = vadd.f32 %v648, %v687
      %v720 = vadd.f32 %v649, %v687
      %v721 = vadd.f32 %v650, %v687
      %v722 = vadd.f32 %v651, %v687
      %v723 = vadd.f32 %v652, %v687
      %v724 = vadd.f32 %v653, %v687
      %v725 = vadd.f32 %v654, %v687
      %v726 = vadd.f32 %v655, %v687
      %v727 = vadd.f32 %v656, %v687
      %v728 = vadd.f32 %v657, %v687
      %v729 = vadd.f32 %v658, %v687
      %v730 = vadd.f32 %v659, %v687
      %v731 = vadd.f32 %v660, %v687
      %v732 = vadd.f32 %v661, %v687
      %v733 = vadd.f32 %v662, %v687
      %v734 = vadd.f32 %v663, %v687
      %v735 = vadd.f32 %v664, %v687
      %v736 = vadd.f32 %v665, %v687
      %v737 = vadd.f32 %v666, %v687
      %v738 = vadd.f32 %v667, %v687
      %v739 = vadd.f32 %v668, %v687
      %v740 = vadd.f32 %v669, %v687
      %v741 = vadd.f32 %v670, %v687
      %v742 = vadd.f32 %v671, %v687
      %v743 = vadd.f32 %v672, %v687
      %v744 = vadd.f32 %v673, %v687
      %v745 = vadd.f32 %v674, %v687
      %v746 = vadd.f32 %v675, %v687
      %v747 = vadd.f32 %v676, %v687
      %v748 = vadd.f32 %v677, %v687
      %v749 = vadd.f32 %v678, %v687
      %v750 = vadd.f32 %v679, %v687
      %v751 = vadd.f32 %v680, %v687
      %v752 = vadd.f32 %v681, %v687
      %v753 = vadd.f32 %v483, %v689
      %v754 = vadd.f32 %v484, %v690
      %v755 = vadd.f32 %v485, %v691
      %v756 = vadd.f32 %v486, %v692
      %v757 = vadd.f32 %v487, %v693
      %v758 = vadd.f32 %v488, %v694
      %v759 = vadd.f32 %v489, %v695
      %v760 = vadd.f32 %v490, %v696
      %v761 = vadd.f32 %v491, %v697
      %v762 = vadd.f32 %v492, %v698
      %v763 = vadd.f32 %v493, %v699
      %v764 = vadd.f32 %v494, %v700
      %v765 = vadd.f32 %v495, %v701
      %v766 = vadd.f32 %v496, %v702
      %v767 = vadd.f32 %v497, %v703
      %v768 = vadd.f32 %v498, %v704
      %v769 = vadd.f32 %v499, %v705
      %v770 = vadd.f32 %v500, %v706
      %v771 = vadd.f32 %v501, %v707
      %v772 = vadd.f32 %v502, %v708
      %v773 = vadd.f32 %v503, %v709
      %v774 = vadd.f32 %v504, %v710
      %v775 = vadd.f32 %v505, %v711
      %v776 = vadd.f32 %v506, %v712
      %v777 = vadd.f32 %v507, %v713
      %v778 = vadd.f32 %v508, %v714
      %v779 = vadd.f32 %v509, %v715
      %v780 = vadd.f32 %v510, %v716
      %v781 = vadd.f32 %v511, %v717
      %v782 = vadd.f32 %v512, %v718
      %v783 = vadd.f32 %v513, %v719
      %v784 = vadd.f32 %v514, %v720
      %v785 = vadd.f32 %v515, %v721
      %v786 = vadd.f32 %v516, %v722
      %v787 = vadd.f32 %v517, %v723
      %v788 = vadd.f32 %v518, %v724
      %v789 = vadd.f32 %v519, %v725
      %v790 = vadd.f32 %v520, %v726
      %v791 = vadd.f32 %v521, %v727
      %v792 = vadd.f32 %v522, %v728
      %v793 = vadd.f32 %v523, %v729
      %v794 = vadd.f32 %v524, %v730
      %v795 = vadd.f32 %v525, %v731
      %v796 = vadd.f32 %v526, %v732
      %v797 = vadd.f32 %v527, %v733
      %v798 = vadd.f32 %v528, %v734
      %v799 = vadd.f32 %v529, %v735
      %v800 = vadd.f32 %v530, %v736
      %v801 = vadd.f32 %v531, %v737
      %v802 = vadd.f32 %v532, %v738
      %v803 = vadd.f32 %v533, %v739
      %v804 = vadd.f32 %v534, %v740
      %v805 = vadd.f32 %v535, %v741
      %v806 = vadd.f32 %v536, %v742
      %v807 = vadd.f32 %v537, %v743
      %v808 = vadd.f32 %v538, %v744
      %v809 = vadd.f32 %v539, %v745
      %v810 = vadd.f32 %v540, %v746
      %v811 = vadd.f32 %v541, %v747
      %v812 = vadd.f32 %v542, %v748
      %v813 = vadd.f32 %v543, %v749
      %v814 = vadd.f32 %v544, %v750
      %v815 = vadd.f32 %v545, %v751
      %v816 = vadd.f32 %v546, %v752
      %v817 = vmax.f32 %v753, 0.0
      %v818 = vmax.f32 %v754, 0.0
      %v819 = vmax.f32 %v755, 0.0
      %v820 = vmax.f32 %v756, 0.0
      %v821 = vmax.f32 %v757, 0.0
      %v822 = vmax.f32 %v758, 0.0
      %v823 = vmax.f32 %v759, 0.0
      %v824 = vmax.f32 %v760, 0.0
      %v825 = vmax.f32 %v761, 0.0
      %v826 = vmax.f32 %v762, 0.0
      %v827 = vmax.f32 %v763, 0.0
      %v828 = vmax.f32 %v764, 0.0
      %v829 = vmax.f32 %v765, 0.0
      %v830 = vmax.f32 %v766, 0.0
      %v831 = vmax.f32 %v767, 0.0
      %v832 = vmax.f32 %v768, 0.0
      %v833 = vmax.f32 %v769, 0.0
      %v834 = vmax.f32 %v770, 0.0
      %v835 = vmax.f32 %v771, 0.0
      %v836 = vmax.f32 %v772, 0.0
      %v837 = vmax.f32 %v773, 0.0
      %v838 = vmax.f32 %v774, 0.0
      %v839 = vmax.f32 %v775, 0.0
      %v840 = vmax.f32 %v776, 0.0
      %v841 = vmax.f32 %v777, 0.0
      %v842 = vmax.f32 %v778, 0.0
      %v843 = vmax.f32 %v779, 0.0
      %v844 = vmax.f32 %v780, 0.0
      %v845 = vmax.f32 %v781, 0.0
      %v846 = vmax.f32 %v782, 0.0
      %v847 = vmax.f32 %v783, 0.0
      %v848 = vmax.f32 %v784, 0.0
      %v849 = vmax.f32 %v785, 0.0
      %v850 = vmax.f32 %v786, 0.0
      %v851 = vmax.f32 %v787, 0.0
      %v852 = vmax.f32 %v788, 0.0
      %v853 = vmax.f32 %v789, 0.0
      %v854 = vmax.f32 %v790, 0.0
      %v855 = vmax.f32 %v791, 0.0
      %v856 = vmax.f32 %v792, 0.0
      %v857 = vmax.f32 %v793, 0.0
      %v858 = vmax.f32 %v794, 0.0
      %v859 = vmax.f32 %v795, 0.0
      %v860 = vmax.f32 %v796, 0.0
      %v861 = vmax.f32 %v797, 0.0
      %v862 = vmax.f32 %v798, 0.0
      %v863 = vmax.f32 %v799, 0.0
      %v864 = vmax.f32 %v800, 0.0
      %v865 = vmax.f32 %v801, 0.0
      %v866 = vmax.f32 %v802, 0.0
      %v867 = vmax.f32 %v803, 0.0
      %v868 = vmax.f32 %v804, 0.0
      %v869 = vmax.f32 %v805, 0.0
      %v870 = vmax.f32 %v806, 0.0
      %v871 = vmax.f32 %v807, 0.0
      %v872 = vmax.f32 %v808, 0.0
      %v873 = vmax.f32 %v809, 0.0
      %v874 = vmax.f32 %v810, 0.0
      %v875 = vmax.f32 %v811, 0.0
      %v876 = vmax.f32 %v812, 0.0
      %v877 = vmax.f32 %v813, 0.0
      %v878 = vmax.f32 %v814, 0.0
      %v879 = vmax.f32 %v815, 0.0
      %v880 = vmax.f32 %v816, 0.0
      %vm881 = vcmask 31744
      %882 = vst.msk [vmem:[%s275] sm:$0xff] %vm881, %v817
      %883 = vst.msk [vmem:[%s275 + $0x8] sm:$0xff] %vm881, %v818
      %884 = vst.msk [vmem:[%s275 + $0x10] sm:$0xff] %vm881, %v819
      %885 = vst.msk [vmem:[%s275 + $0x18] sm:$0xff] %vm881, %v820
      %886 = vst.msk [vmem:[%s275 + $0x20] sm:$0xff] %vm881, %v821
      %887 = vst.msk [vmem:[%s275 + $0x28] sm:$0xff] %vm881, %v822
      %888 = vst.msk [vmem:[%s275 + $0x30] sm:$0xff] %vm881, %v823
      %889 = vst.msk [vmem:[%s275 + $0x38] sm:$0xff] %vm881, %v824
      %890 = vst.msk [vmem:[%s275 + $0x40] sm:$0xff] %vm881, %v825
      %891 = vst.msk [vmem:[%s275 + $0x48] sm:$0xff] %vm881, %v826
      %892 = vst.msk [vmem:[%s275 + $0x50] sm:$0xff] %vm881, %v827
      %893 = vst.msk [vmem:[%s275 + $0x58] sm:$0xff] %vm881, %v828
      %894 = vst.msk [vmem:[%s275 + $0x60] sm:$0xff] %vm881, %v829
      %895 = vst.msk [vmem:[%s275 + $0x68] sm:$0xff] %vm881, %v830
      %896 = vst.msk [vmem:[%s275 + $0x70] sm:$0xff] %vm881, %v831
      %897 = vst.msk [vmem:[%s275 + $0x78] sm:$0xff] %vm881, %v832
      %898 = vst.msk [vmem:[%s275 + $0x80] sm:$0xff] %vm881, %v833
      %899 = vst.msk [vmem:[%s275 + $0x88] sm:$0xff] %vm881, %v834
      %900 = vst.msk [vmem:[%s275 + $0x90] sm:$0xff] %vm881, %v835
      %901 = vst.msk [vmem:[%s275 + $0x98] sm:$0xff] %vm881, %v836
      %902 = vst.msk [vmem:[%s275 + $0xa0] sm:$0xff] %vm881, %v837
      %903 = vst.msk [vmem:[%s275 + $0xa8] sm:$0xff] %vm881, %v838
      %904 = vst.msk [vmem:[%s275 + $0xb0] sm:$0xff] %vm881, %v839
      %905 = vst.msk [vmem:[%s275 + $0xb8] sm:$0xff] %vm881, %v840
      %906 = vst.msk [vmem:[%s275 + $0xc0] sm:$0xff] %vm881, %v841
      %907 = vst.msk [vmem:[%s275 + $0xc8] sm:$0xff] %vm881, %v842
      %908 = vst.msk [vmem:[%s275 + $0xd0] sm:$0xff] %vm881, %v843
      %909 = vst.msk [vmem:[%s275 + $0xd8] sm:$0xff] %vm881, %v844
      %910 = vst.msk [vmem:[%s275 + $0xe0] sm:$0xff] %vm881, %v845
      %911 = vst.msk [vmem:[%s275 + $0xe8] sm:$0xff] %vm881, %v846
      %912 = vst.msk [vmem:[%s275 + $0xf0] sm:$0xff] %vm881, %v847
      %913 = vst.msk [vmem:[%s275 + $0xf8] sm:$0xff] %vm881, %v848
      %914 = vst.msk [vmem:[%s275 + $0x100] sm:$0xff] %vm881, %v849
      %915 = vst.msk [vmem:[%s275 + $0x108] sm:$0xff] %vm881, %v850
      %916 = vst.msk [vmem:[%s275 + $0x110] sm:$0xff] %vm881, %v851
      %917 = vst.msk [vmem:[%s275 + $0x118] sm:$0xff] %vm881, %v852
      %918 = vst.msk [vmem:[%s275 + $0x120] sm:$0xff] %vm881, %v853
      %919 = vst.msk [vmem:[%s275 + $0x128] sm:$0xff] %vm881, %v854
      %920 = vst.msk [vmem:[%s275 + $0x130] sm:$0xff] %vm881, %v855
      %921 = vst.msk [vmem:[%s275 + $0x138] sm:$0xff] %vm881, %v856
      %922 = vst.msk [vmem:[%s275 + $0x140] sm:$0xff] %vm881, %v857
      %923 = vst.msk [vmem:[%s275 + $0x148] sm:$0xff] %vm881, %v858
      %924 = vst.msk [vmem:[%s275 + $0x150] sm:$0xff] %vm881, %v859
      %925 = vst.msk [vmem:[%s275 + $0x158] sm:$0xff] %vm881, %v860
      %926 = vst.msk [vmem:[%s275 + $0x160] sm:$0xff] %vm881, %v861
      %927 = vst.msk [vmem:[%s275 + $0x168] sm:$0xff] %vm881, %v862
      %928 = vst.msk [vmem:[%s275 + $0x170] sm:$0xff] %vm881, %v863
      %929 = vst.msk [vmem:[%s275 + $0x178] sm:$0xff] %vm881, %v864
      %930 = vst.msk [vmem:[%s275 + $0x180] sm:$0xff] %vm881, %v865
      %931 = vst.msk [vmem:[%s275 + $0x188] sm:$0xff] %vm881, %v866
      %932 = vst.msk [vmem:[%s275 + $0x190] sm:$0xff] %vm881, %v867
      %933 = vst.msk [vmem:[%s275 + $0x198] sm:$0xff] %vm881, %v868
      %934 = vst.msk [vmem:[%s275 + $0x1a0] sm:$0xff] %vm881, %v869
      %935 = vst.msk [vmem:[%s275 + $0x1a8] sm:$0xff] %vm881, %v870
      %936 = vst.msk [vmem:[%s275 + $0x1b0] sm:$0xff] %vm881, %v871
      %937 = vst.msk [vmem:[%s275 + $0x1b8] sm:$0xff] %vm881, %v872
      %938 = vst.msk [vmem:[%s275 + $0x1c0] sm:$0xff] %vm881, %v873
      %939 = vst.msk [vmem:[%s275 + $0x1c8] sm:$0xff] %vm881, %v874
      %940 = vst.msk [vmem:[%s275 + $0x1d0] sm:$0xff] %vm881, %v875
      %941 = vst.msk [vmem:[%s275 + $0x1d8] sm:$0xff] %vm881, %v876
      %942 = vst.msk [vmem:[%s275 + $0x1e0] sm:$0xff] %vm881, %v877
      %943 = vst.msk [vmem:[%s275 + $0x1e8] sm:$0xff] %vm881, %v878
      %944 = vst.msk [vmem:[%s275 + $0x1f0] sm:$0xff] %vm881, %v879
      %945 = vst.msk [vmem:[%s275 + $0x1f8] sm:$0xff] %vm881, %v880
      %s946 = smul.u32 64, %s17
      %p947 = scmp.lt.s32.totalorder %s946, 127
      %s948 = scalar_select %p947, %s946, 127
      %s949 = smul.addr %s948, 8
      %s950 = scalar_lea.vmem %s6, %s949
      // Predicated region
      $region45: #{deconv_block_forward.9} parent=43 // pred_check
        %p951 = pneg %p171
      $region46: #{deconv_block_forward.9} parent=43 // pred_check_branch
        %953 = sbr.rel (%p951) target = $region48
      $region47: #{deconv_block_forward.9} parent=43 // pred_region
        %s954 = smul.u32 64, %s17
      $region48: #{deconv_block_forward.9} parent=43 // pred_fallthru
        _
    $region44: #{deconv_block_forward.9} parent=5 // pred_fallthru
      _
    %p955 = scmp.le.s32.totalorder 2, %s12
    // Predicated region
    $region49: #{deconv_block_forward.9} parent=5 // pred_check
      %p956 = pneg %p955
    $region50: #{deconv_block_forward.9} parent=5 // pred_check_branch
      %958 = sbr.rel (%p956) target = $region52
    $region51: #{deconv_block_forward.9} parent=5 // pred_region
      %s959 = ssub.s32 %s12, 2
      // Predicated region
      $region53: #{deconv_block_forward.9} parent=51 // pred_check
        %p960 = pneg %p177
      $region54: #{deconv_block_forward.9} parent=51 // pred_check_branch
        %962 = sbr.rel (%p960) target = $region56
      $region55: #{deconv_block_forward.9} parent=51 // pred_region
        %s963 = smul.u32 64, %s18
        %p964 = scmp.lt.s32.totalorder %s963, 127
        %s965 = scalar_select %p964, %s963, 127
        %s966 = smul.addr %s965, 8
        %s967 = scalar_lea.vmem %s6, %s966
      $region56: #{deconv_block_forward.9} parent=51 // pred_fallthru
        _
    $region52: #{deconv_block_forward.9} parent=5 // pred_fallthru
      _
  $region6: #{deconv_block_forward.9} parent=0 // loop_footer
    %s16 = sadd.s32 1, %s12
  $region7: #{deconv_block_forward.9} parent=0 // loop_footer_branch
    %11 = sbr.rel target = $region3
  $region8: #{deconv_block_forward.9} parent=0 // loop_exit
    _

// kernel: deconv_block_forward.8
$region0: #{deconv_block_forward.8}
  #allocation0 [shape = 'u32[]', space=smem, size = 0x4, offset = 0x4, fixed_abs, tag = 'smem constant byte address 0x4 - core index']
  #allocation1 [shape = 'u32[144,128]{1,0:T(1,128)}', space=vmem, size = 0x12000, scoped, tag = 'internal scratch']
  %s0 = inlined_call_operand.vmem [shape: f32[784,4], index: 0, kind: input, shape index: {}]
  %s1 = inlined_call_operand.vmem [shape: bf16[1,4,4], index: 1, kind: input, shape index: {}]
  %s2 = inlined_call_operand.vmem [shape: f32[1,4], index: 2, kind: input, shape index: {}]
  %s3 = inlined_call_operand.vmem [shape: f32[768,1], index: 3, kind: input, shape index: {}]
  %s4 = inlined_call_operand.vmem [shape: f32[768,4], index: 4, kind: output, shape index: {0}]
  %s5 = inlined_call_operand.vmem [shape: f32[6,1,4], index: 5, kind: output, shape index: {1}]
  %s6 = inlined_call_operand.vmem [shape: f32[6,1,4], index: 6, kind: output, shape index: {2}]
  %7 = xla_tuple %s4, %s5, %s6
  %s8 = sld [smem:[#allocation0]]
  $region65: #{deconv_block_forward.8} parent=0
    _
  %s10 = ssub.s32 1, %s8
  %s11 = scalar_select 0, %s10, %s8
  loop: start=0, step=1, limit=8
  $region2: #{deconv_block_forward.8} parent=0 // loop_pre_header
    _
  $region3: #{deconv_block_forward.8} parent=0 // loop_header
    %s13 = sphi 0, %s17
    %p14 = scmp.ge.s32.totalorder %s13, 8
    %s21 = sphi 0, %s21
    %s23 = sphi 0, %s21
    %s24 = sphi 0, %s23
    %s38 = sphi 0, %s24
    %s42 = sphi 0, %s42
    %s44 = sphi 0, %s42
    %s45 = sphi 0, %s44
    %s59 = sphi 0, %s45
    %s63 = sphi 0, %s63
    %s65 = sphi 0, %s63
    %s66 = sphi 0, %s65
    %s80 = sphi 0, %s66
    %s86 = sphi 0, %s88
    %s89 = sphi 0, %s86
    %s90 = sphi 0, %s89
    %s106 = sphi 0, %s90
    %s112 = sphi 0, %s114
    %s115 = sphi 0, %s112
    %s116 = sphi 0, %s115
    %s132 = sphi 0, %s116
    %s138 = sphi 0, %s140
    %s141 = sphi 0, %s138
    %s142 = sphi 0, %s141
    %s158 = sphi 0, %s142
    %s164 = sphi 0, %s166
    %s167 = sphi 0, %s164
    %s168 = sphi 0, %s167
    %s184 = sphi 0, %s168
  $region4: #{deconv_block_forward.8} parent=0 // loop_header_branch
    %16 = sbr.rel (%p14) target = $region8
  $region5: #{deconv_block_forward.8} parent=0 // loop_body
    %s18 = ssub.s32 %s13, 1
    %s19 = ssub.s32 %s13, 2
    %s20 = sadd.s32 %s13, 1
    %s22 = sadd.s32 %s21, 1
    %p25 = scmp.eq.s32.totalorder %s13, 5
    %p26 = scmp.ne.s32.totalorder %s21, %s23
    %p27 = scmp.eq.s32.totalorder %s13, 0
    %p28 = por %p26, %p27
    %p29 = scmp.ne.s32.totalorder %s21, %s23
    %p30 = scmp.eq.s32.totalorder %s18, 5
    %p31 = por %p29, %p30
    %p32 = scmp.ne.s32.totalorder %s23, %s24
    %p33 = scmp.eq.s32.totalorder %s18, 0
    %p34 = por %p32, %p33
    %p35 = scmp.ne.s32.totalorder %s23, %s24
    %p36 = scmp.eq.s32.totalorder %s19, 5
    %p37 = por %p35, %p36
    %p39 = scmp.ne.s32.totalorder %s24, %s38
    %p40 = scmp.eq.s32.totalorder %s19, 0
    %p41 = por %p39, %p40
    %s43 = sadd.s32 %s42, 1
    %p46 = scmp.eq.s32.totalorder %s13, 5
    %p47 = scmp.ne.s32.totalorder %s42, %s44
    %p48 = scmp.eq.s32.totalorder %s13, 0
    %p49 = por %p47, %p48
    %p50 = scmp.ne.s32.totalorder %s42, %s44
    %p51 = scmp.eq.s32.totalorder %s18, 5
    %p52 = por %p50, %p51
    %p53 = scmp.ne.s32.totalorder %s44, %s45
    %p54 = scmp.eq.s32.totalorder %s18, 0
    %p55 = por %p53, %p54
    %p56 = scmp.ne.s32.totalorder %s44, %s45
    %p57 = scmp.eq.s32.totalorder %s19, 5
    %p58 = por %p56, %p57
    %p60 = scmp.ne.s32.totalorder %s45, %s59
    %p61 = scmp.eq.s32.totalorder %s19, 0
    %p62 = por %p60, %p61
    %s64 = sadd.s32 %s63, 1
    %p67 = scmp.eq.s32.totalorder %s13, 5
    %p68 = scmp.ne.s32.totalorder %s63, %s65
    %p69 = scmp.eq.s32.totalorder %s13, 0
    %p70 = por %p68, %p69
    %p71 = scmp.ne.s32.totalorder %s63, %s65
    %p72 = scmp.eq.s32.totalorder %s18, 5
    %p73 = por %p71, %p72
    %p74 = scmp.ne.s32.totalorder %s65, %s66
    %p75 = scmp.eq.s32.totalorder %s18, 0
    %p76 = por %p74, %p75
    %p77 = scmp.ne.s32.totalorder %s65, %s66
    %p78 = scmp.eq.s32.totalorder %s19, 5
    %p79 = por %p77, %p78
    %p81 = scmp.ne.s32.totalorder %s66, %s80
    %p82 = scmp.eq.s32.totalorder %s19, 0
    %p83 = por %p81, %p82
    %s84 = ssub.s32 %s13, %s20
    %p85 = scmp.eq.s32.totalorder %s84, 0
    %s87 = sadd.s32 %s86, 1
    %s88 = scalar_select %p85, %s86, %s87
    %p91 = pneg %p85
    %p92 = scmp.eq.s32.totalorder %s13, 5
    %p93 = por %p91, %p92
    %p94 = scmp.ne.s32.totalorder %s86, %s89
    %p95 = scmp.eq.s32.totalorder %s13, 0
    %p96 = por %p94, %p95
    %p97 = scmp.ne.s32.totalorder %s86, %s89
    %p98 = scmp.eq.s32.totalorder %s18, 5
    %p99 = por %p97, %p98
    %p100 = scmp.ne.s32.totalorder %s89, %s90
    %p101 = scmp.eq.s32.totalorder %s18, 0
    %p102 = por %p100, %p101
    %p103 = scmp.ne.s32.totalorder %s89, %s90
    %p104 = scmp.eq.s32.totalorder %s19, 5
    %p105 = por %p103, %p104
    %p107 = scmp.ne.s32.totalorder %s90, %s106
    %p108 = scmp.eq.s32.totalorder %s19, 0
    %p109 = por %p107, %p108
    %s110 = ssub.s32 %s13, %s20
    %p111 = scmp.eq.s32.totalorder %s110, 0
    %s113 = sadd.s32 %s112, 1
    %s114 = scalar_select %p111, %s112, %s113
    %p117 = pneg %p111
    %p118 = scmp.eq.s32.totalorder %s13, 5
    %p119 = por %p117, %p118
    %p120 = scmp.ne.s32.totalorder %s112, %s115
    %p121 = scmp.eq.s32.totalorder %s13, 0
    %p122 = por %p120, %p121
    %p123 = scmp.ne.s32.totalorder %s112, %s115
    %p124 = scmp.eq.s32.totalorder %s18, 5
    %p125 = por %p123, %p124
    %p126 = scmp.ne.s32.totalorder %s115, %s116
    %p127 = scmp.eq.s32.totalorder %s18, 0
    %p128 = por %p126, %p127
    %p129 = scmp.ne.s32.totalorder %s115, %s116
    %p130 = scmp.eq.s32.totalorder %s19, 5
    %p131 = por %p129, %p130
    %p133 = scmp.ne.s32.totalorder %s116, %s132
    %p134 = scmp.eq.s32.totalorder %s19, 0
    %p135 = por %p133, %p134
    %s136 = ssub.s32 %s13, %s20
    %p137 = scmp.eq.s32.totalorder %s136, 0
    %s139 = sadd.s32 %s138, 1
    %s140 = scalar_select %p137, %s138, %s139
    %p143 = pneg %p137
    %p144 = scmp.eq.s32.totalorder %s13, 5
    %p145 = por %p143, %p144
    %p146 = scmp.ne.s32.totalorder %s138, %s141
    %p147 = scmp.eq.s32.totalorder %s13, 0
    %p148 = por %p146, %p147
    %p149 = scmp.ne.s32.totalorder %s138, %s141
    %p150 = scmp.eq.s32.totalorder %s18, 5
    %p151 = por %p149, %p150
    %p152 = scmp.ne.s32.totalorder %s141, %s142
    %p153 = scmp.eq.s32.totalorder %s18, 0
    %p154 = por %p152, %p153
    %p155 = scmp.ne.s32.totalorder %s141, %s142
    %p156 = scmp.eq.s32.totalorder %s19, 5
    %p157 = por %p155, %p156
    %p159 = scmp.ne.s32.totalorder %s142, %s158
    %p160 = scmp.eq.s32.totalorder %s19, 0
    %p161 = por %p159, %p160
    %s162 = ssub.s32 %s13, %s20
    %p163 = scmp.eq.s32.totalorder %s162, 0
    %s165 = sadd.s32 %s164, 1
    %s166 = scalar_select %p163, %s164, %s165
    %p169 = pneg %p163
    %p170 = scmp.eq.s32.totalorder %s13, 5
    %p171 = por %p169, %p170
    %p172 = scmp.ne.s32.totalorder %s164, %s167
    %p173 = scmp.eq.s32.totalorder %s13, 0
    %p174 = por %p172, %p173
    %p175 = scmp.ne.s32.totalorder %s164, %s167
    %p176 = scmp.eq.s32.totalorder %s18, 5
    %p177 = por %p175, %p176
    %p178 = scmp.ne.s32.totalorder %s167, %s168
    %p179 = scmp.eq.s32.totalorder %s18, 0
    %p180 = por %p178, %p179
    %p181 = scmp.ne.s32.totalorder %s167, %s168
    %p182 = scmp.eq.s32.totalorder %s19, 5
    %p183 = por %p181, %p182
    %p185 = scmp.ne.s32.totalorder %s168, %s184
    %p186 = scmp.eq.s32.totalorder %s19, 0
    %p187 = por %p185, %p186
    %p188 = scmp.le.s32.totalorder 1, %s13
    %p189 = scmp.lt.s32.totalorder %s13, 7
    %p190 = pnand %p188, %p189
    %p191 = pneg %p190
    // Predicated region
    $region9: #{deconv_block_forward.8} parent=5 // pred_check
      _
    $region10: #{deconv_block_forward.8} parent=5 // pred_check_branch
      %193 = sbr.rel (%p190) target = $region12
    $region11: #{deconv_block_forward.8} parent=5 // pred_region
      %s194 = ssub.s32 %s13, 1
      // Predicated region
      $region13: #{deconv_block_forward.8} parent=11 // pred_check
        %p195 = pneg %p34
      $region14: #{deconv_block_forward.8} parent=11 // pred_check_branch
        %197 = sbr.rel (%p195) target = $region16
      $region15: #{deconv_block_forward.8} parent=11 // pred_region
        _
      $region16: #{deconv_block_forward.8} parent=11 // pred_fallthru
        _
      // Predicated region
      $region17: #{deconv_block_forward.8} parent=11 // pred_check
        %p198 = pneg %p55
      $region18: #{deconv_block_forward.8} parent=11 // pred_check_branch
        %200 = sbr.rel (%p198) target = $region20
      $region19: #{deconv_block_forward.8} parent=11 // pred_region
        _
      $region20: #{deconv_block_forward.8} parent=11 // pred_fallthru
        _
      // Predicated region
      $region21: #{deconv_block_forward.8} parent=11 // pred_check
        %p201 = pneg %p76
      $region22: #{deconv_block_forward.8} parent=11 // pred_check_branch
        %203 = sbr.rel (%p201) target = $region24
      $region23: #{deconv_block_forward.8} parent=11 // pred_region
        _
      $region24: #{deconv_block_forward.8} parent=11 // pred_fallthru
        _
    $region12: #{deconv_block_forward.8} parent=5 // pred_fallthru
      _
    %p204 = scmp.lt.s32.totalorder %s13, 6
    // Predicated region
    $region25: #{deconv_block_forward.8} parent=5 // pred_check
      %p205 = pneg %p204
    $region26: #{deconv_block_forward.8} parent=5 // pred_check_branch
      %207 = sbr.rel (%p205) target = $region28
    $region27: #{deconv_block_forward.8} parent=5 // pred_region
      // Predicated region
      $region29: #{deconv_block_forward.8} parent=27 // pred_check
        %p208 = pneg %p96
      $region30: #{deconv_block_forward.8} parent=27 // pred_check_branch
        %210 = sbr.rel (%p208) target = $region32
      $region31: #{deconv_block_forward.8} parent=27 // pred_region
        %s211 = smul.u32 16, %s13
        %p212 = scmp.lt.s32.totalorder %s211, 95
        %s213 = scalar_select %p212, %s211, 95
        %s214 = smul.addr %s213, 8
        %s215 = scalar_lea.vmem %s3, %s214
        %s216 = smul.u32 16, %s13
      $region32: #{deconv_block_forward.8} parent=27 // pred_fallthru
        _
    $region28: #{deconv_block_forward.8} parent=5 // pred_fallthru
      _
    %p217 = scmp.le.s32.totalorder 1, %s13
    %p218 = scmp.lt.s32.totalorder %s13, 7
    %p219 = pnand %p217, %p218
    %p220 = pneg %p219
    // Predicated region
    $region33: #{deconv_block_forward.8} parent=5 // pred_check
      _
    $region34: #{deconv_block_forward.8} parent=5 // pred_check_branch
      %222 = sbr.rel (%p219) target = $region36
    $region35: #{deconv_block_forward.8} parent=5 // pred_region
      %s223 = ssub.s32 %s13, 1
      %p224 = pneg %p34
      %p225 = pneg %p31
      %p226 = pneg %p55
      %p227 = pneg %p52
      %p228 = pneg %p76
      %p229 = pneg %p73
      %s230 = smul.u32 16, %s18
      %p231 = scmp.lt.s32.totalorder %s230, 95
      %s232 = scalar_select %p231, %s230, 95
      %s233 = smul.addr %s232, 8
      %s234 = scalar_lea.vmem %s3, %s233
      %p235 = pneg %p102
      %p236 = pneg %p99
      %p237 = pneg %p128
      %p238 = pneg %p125
      %s239 = smul.u32 16, %s18
      %p240 = scmp.lt.s32.totalorder %s239, 95
      %s241 = scalar_select %p240, %s239, 95
      %s242 = smul.addr %s241, 8
      %s243 = scalar_lea.vmem %s4, %s242
      %p244 = pneg %p154
      %p245 = pneg %p151
      %p246 = scmp.lt.s32.totalorder %s18, 5
      %s247 = scalar_select %p246, %s18, 5
      %s248 = scalar_lea.vmem %s5, %s247
      %p249 = pneg %p180
      %p250 = pneg %p177
      %p251 = scmp.lt.s32.totalorder %s18, 5
      %s252 = scalar_select %p251, %s18, 5
      %s253 = scalar_lea.vmem %s6, %s252
      %s254 = smul.u32 16, %s18
      %p255 = scmp.lt.s32.totalorder %s254, 95
      %s256 = scalar_select %p255, %s254, 95
      %s257 = smul.addr %s256, 8
      %s258 = scalar_lea.vmem %s3, %s257
      %s259 = smul.u32 16, %s18
      %s260 = smul.u32 16, %s18
      %p261 = scmp.lt.s32.totalorder %s260, 95
      %s262 = scalar_select %p261, %s260, 95
      %s263 = smul.addr %s262, 8
      %s264 = scalar_lea.vmem %s4, %s263
      %s265 = smul.u32 16, %s18
      %p266 = scmp.lt.s32.totalorder %s18, 5
      %s267 = scalar_select %p266, %s18, 5
      %s268 = scalar_lea.vmem %s5, %s267
      %p269 = scmp.lt.s32.totalorder %s18, 5
      %s270 = scalar_select %p269, %s18, 5
      %s271 = scalar_lea.vmem %s6, %s270
      %s273 = smul.u32 %s18, 128
      %s274 = scalar_lea.vmem %s0, %s273
      %v275 = vld [vmem:[%s274] sm:$0xff]
      %v276 = vld [vmem:[%s274 + $0x8] sm:$0xff]
      %v277 = vld [vmem:[%s274 + $0x10] sm:$0xff]
      %v278 = vld [vmem:[%s274 + $0x18] sm:$0xff]
      %v279 = vld [vmem:[%s274 + $0x20] sm:$0xff]
      %v280 = vld [vmem:[%s274 + $0x28] sm:$0xff]
      %v281 = vld [vmem:[%s274 + $0x30] sm:$0xff]
      %v282 = vld [vmem:[%s274 + $0x38] sm:$0xff]
      %v283 = vld [vmem:[%s274 + $0x40] sm:$0xff]
      %v284 = vld [vmem:[%s274 + $0x48] sm:$0xff]
      %v285 = vld [vmem:[%s274 + $0x50] sm:$0xff]
      %v286 = vld [vmem:[%s274 + $0x58] sm:$0xff]
      %v287 = vld [vmem:[%s274 + $0x60] sm:$0xff]
      %v288 = vld [vmem:[%s274 + $0x68] sm:$0xff]
      %v289 = vld [vmem:[%s274 + $0x70] sm:$0xff]
      %v290 = vld [vmem:[%s274 + $0x78] sm:$0xff]
      %v291 = vpack.c.bf16 %v276, %v275
      %v292 = vpack.c.bf16 %v278, %v277
      %v293 = vpack.c.bf16 %v280, %v279
      %v294 = vpack.c.bf16 %v282, %v281
      %v295 = vpack.c.bf16 %v284, %v283
      %v296 = vpack.c.bf16 %v286, %v285
      %v297 = vpack.c.bf16 %v288, %v287
      %v298 = vpack.c.bf16 %v290, %v289
      %v299 = vld [vmem:[%s1] sm:$0x3]
      %v300 = vld [vmem:[%s2] sm:$0x1]
      %v302 = vlaneseq
      %v303 = vshrl.u32 %v302, 7
      %v304 = vsub.s32 0, %v303
      %v305 = vrot.slane %v300, %v304
      %vm307 = vcmask 31744
      %v309 = vsel %vm307, %v291, 0
      %v312 = vsel %vm307, %v292, 0
      %v315 = vsel %vm307, %v293, 0
      %v318 = vsel %vm307, %v294, 0
      %v321 = vsel %vm307, %v295, 0
      %v324 = vsel %vm307, %v296, 0
      %v327 = vsel %vm307, %v297, 0
      %v330 = vsel %vm307, %v298, 0
      %vm332 = vcmask 1041408
      %v334 = vsel %vm332, %v299, 0
      %336 = vmatprep.subr.bf16.mxu0 0
      %337 = vmatpush1.bf16.msra.mxu0 %v334
      %338 = vmatprep.subr.bf16.mxu0 0
      %339 = vmatpush1.bf16.msra.mxu0 0
      %340 = vmatprep.subr.bf16.mxu0 0
      %341 = vmatpush1.bf16.msra.mxu0 0
      %342 = vmatprep.subr.bf16.mxu0 0
      %343 = vmatpush1.bf16.msra.mxu0 0
      %344 = vmatprep.subr.bf16.mxu0 0
      %345 = vmatpush1.bf16.msra.mxu0 0
      %346 = vmatprep.subr.bf16.mxu0 0
      %347 = vmatpush1.bf16.msra.mxu0 0
      %348 = vmatprep.subr.bf16.mxu0 0
      %349 = vmatpush1.bf16.msra.mxu0 0
      %350 = vmatprep.subr.bf16.mxu0 0
      %351 = vmatpush1.bf16.msra.mxu0 0
      %352 = vmatprep.subr.bf16.mxu0 0
      %353 = vmatpush1.bf16.msra.mxu0 0
      %354 = vmatprep.subr.bf16.mxu0 0
      %355 = vmatpush1.bf16.msra.mxu0 0
      %356 = vmatprep.subr.bf16.mxu0 0
      %357 = vmatpush1.bf16.msra.mxu0 0
      %358 = vmatprep.subr.bf16.mxu0 0
      %359 = vmatpush1.bf16.msra.mxu0 0
      %360 = vmatprep.subr.bf16.mxu0 0
      %361 = vmatpush1.bf16.msra.mxu0 0
      %362 = vmatprep.subr.bf16.mxu0 0
      %363 = vmatpush1.bf16.msra.mxu0 0
      %364 = vmatprep.subr.bf16.mxu0 0
      %365 = vmatpush1.bf16.msra.mxu0 0
      %366 = vmatprep.subr.bf16.mxu0 0
      %367 = vmatpush1.bf16.msra.mxu0 0
      %368 = vmatprep.mubr.bf16.mxu0 0
      %369 = vmatmul.mubr.bf16.gmra.mrb[0].mxu0 %v309
      %v370 = vpop.f32.mrb[0].mxu0
      %v371 = vadd.f32 %v305, %v370
      %v372 = vpop.f32.mrb[0].mxu0
      %v373 = vpop.f32.mrb[0].mxu0
      %v374 = vadd.f32 %v305, %v373
      %v375 = vpop.f32.mrb[0].mxu0
      %376 = vmatprep.mubr.bf16.mxu0 0
      %377 = vmatmul.mubr.bf16.gmra.mrb[0].mxu0 %v312
      %v378 = vpop.f32.mrb[0].mxu0
      %v379 = vadd.f32 %v305, %v378
      %v380 = vpop.f32.mrb[0].mxu0
      %v381 = vpop.f32.mrb[0].mxu0
      %v382 = vadd.f32 %v305, %v381
      %v383 = vpop.f32.mrb[0].mxu0
      %384 = vmatprep.mubr.bf16.mxu0 0
      %385 = vmatmul.mubr.bf16.gmra.mrb[0].mxu0 %v315
      %v386 = vpop.f32.mrb[0].mxu0
      %v387 = vadd.f32 %v305, %v386
      %v388 = vpop.f32.mrb[0].mxu0
      %v389 = vpop.f32.mrb[0].mxu0
      %v390 = vadd.f32 %v305, %v389
      %v391 = vpop.f32.mrb[0].mxu0
      %392 = vmatprep.mubr.bf16.mxu0 0
      %393 = vmatmul.mubr.bf16.gmra.mrb[0].mxu0 %v318
      %v394 = vpop.f32.mrb[0].mxu0
      %v395 = vadd.f32 %v305, %v394
      %v396 = vpop.f32.mrb[0].mxu0
      %v397 = vpop.f32.mrb[0].mxu0
      %v398 = vadd.f32 %v305, %v397
      %v399 = vpop.f32.mrb[0].mxu0
      %400 = vmatprep.mubr.bf16.mxu0 0
      %401 = vmatmul.mubr.bf16.gmra.mrb[0].mxu0 %v321
      %v402 = vpop.f32.mrb[0].mxu0
      %v403 = vadd.f32 %v305, %v402
      %v404 = vpop.f32.mrb[0].mxu0
      %v405 = vpop.f32.mrb[0].mxu0
      %v406 = vadd.f32 %v305, %v405
      %v407 = vpop.f32.mrb[0].mxu0
      %408 = vmatprep.mubr.bf16.mxu0 0
      %409 = vmatmul.mubr.bf16.gmra.mrb[0].mxu0 %v324
      %v410 = vpop.f32.mrb[0].mxu0
      %v411 = vadd.f32 %v305, %v410
      %v412 = vpop.f32.mrb[0].mxu0
      %v413 = vpop.f32.mrb[0].mxu0
      %v414 = vadd.f32 %v305, %v413
      %v415 = vpop.f32.mrb[0].mxu0
      %416 = vmatprep.mubr.bf16.mxu0 0
      %417 = vmatmul.mubr.bf16.gmra.mrb[0].mxu0 %v327
      %v418 = vpop.f32.mrb[0].mxu0
      %v419 = vadd.f32 %v305, %v418
      %v420 = vpop.f32.mrb[0].mxu0
      %v421 = vpop.f32.mrb[0].mxu0
      %v422 = vadd.f32 %v305, %v421
      %v423 = vpop.f32.mrb[0].mxu0
      %424 = vmatprep.mubr.bf16.mxu0 0
      %425 = vmatmul.mubr.bf16.gmra.mrb[0].mxu0 %v330
      %v426 = vpop.f32.mrb[0].mxu0
      %v427 = vadd.f32 %v305, %v426
      %v428 = vpop.f32.mrb[0].mxu0
      %v429 = vpop.f32.mrb[0].mxu0
      %v430 = vadd.f32 %v305, %v429
      %v431 = vpop.f32.mrb[0].mxu0
      %432 = vdwg.mxu0
      %433 = vst.msk [vmem:[%s264] sm:$0xff] %vm307, %v371
      %434 = vst.msk [vmem:[%s264 + $0x8] sm:$0xff] %vm307, %v374
      %435 = vst.msk [vmem:[%s264 + $0x10] sm:$0xff] %vm307, %v379
      %436 = vst.msk [vmem:[%s264 + $0x18] sm:$0xff] %vm307, %v382
      %437 = vst.msk [vmem:[%s264 + $0x20] sm:$0xff] %vm307, %v387
      %438 = vst.msk [vmem:[%s264 + $0x28] sm:$0xff] %vm307, %v390
      %439 = vst.msk [vmem:[%s264 + $0x30] sm:$0xff] %vm307, %v395
      %440 = vst.msk [vmem:[%s264 + $0x38] sm:$0xff] %vm307, %v398
      %441 = vst.msk [vmem:[%s264 + $0x40] sm:$0xff] %vm307, %v403
      %442 = vst.msk [vmem:[%s264 + $0x48] sm:$0xff] %vm307, %v406
      %443 = vst.msk [vmem:[%s264 + $0x50] sm:$0xff] %vm307, %v411
      %444 = vst.msk [vmem:[%s264 + $0x58] sm:$0xff] %vm307, %v414
      %445 = vst.msk [vmem:[%s264 + $0x60] sm:$0xff] %vm307, %v419
      %446 = vst.msk [vmem:[%s264 + $0x68] sm:$0xff] %vm307, %v422
      %447 = vst.msk [vmem:[%s264 + $0x70] sm:$0xff] %vm307, %v427
      %448 = vst.msk [vmem:[%s264 + $0x78] sm:$0xff] %vm307, %v430
      %v449 = vld [vmem:[%s258] sm:$0xff]
      %v450 = vld [vmem:[%s258 + $0x8] sm:$0xff]
      %v451 = vld [vmem:[%s258 + $0x10] sm:$0xff]
      %v452 = vld [vmem:[%s258 + $0x18] sm:$0xff]
      %v453 = vld [vmem:[%s258 + $0x20] sm:$0xff]
      %v454 = vld [vmem:[%s258 + $0x28] sm:$0xff]
      %v455 = vld [vmem:[%s258 + $0x30] sm:$0xff]
      %v456 = vld [vmem:[%s258 + $0x38] sm:$0xff]
      %v457 = vld [vmem:[%s258 + $0x40] sm:$0xff]
      %v458 = vld [vmem:[%s258 + $0x48] sm:$0xff]
      %v459 = vld [vmem:[%s258 + $0x50] sm:$0xff]
      %v460 = vld [vmem:[%s258 + $0x58] sm:$0xff]
      %v461 = vld [vmem:[%s258 + $0x60] sm:$0xff]
      %v462 = vld [vmem:[%s258 + $0x68] sm:$0xff]
      %v463 = vld [vmem:[%s258 + $0x70] sm:$0xff]
      %v464 = vld [vmem:[%s258 + $0x78] sm:$0xff]
      %466 = vset.pattern.permute.xlu0 0
      %467 = vperm.xlu0 %466, %v449
      %v468 = vpop.permute.xlu0 %467
      %471 = vset.pattern.permute.xlu0 0
      %472 = vperm.xlu0 %471, %v450
      %v473 = vpop.permute.xlu0 %472
      %476 = vset.pattern.permute.xlu0 0
      %477 = vperm.xlu0 %476, %v451
      %v478 = vpop.permute.xlu0 %477
      %481 = vset.pattern.permute.xlu0 0
      %482 = vperm.xlu0 %481, %v452
      %v483 = vpop.permute.xlu0 %482
      %486 = vset.pattern.permute.xlu0 0
      %487 = vperm.xlu0 %486, %v453
      %v488 = vpop.permute.xlu0 %487
      %491 = vset.pattern.permute.xlu0 0
      %492 = vperm.xlu0 %491, %v454
      %v493 = vpop.permute.xlu0 %492
      %496 = vset.pattern.permute.xlu0 0
      %497 = vperm.xlu0 %496, %v455
      %v498 = vpop.permute.xlu0 %497
      %501 = vset.pattern.permute.xlu0 0
      %502 = vperm.xlu0 %501, %v456
      %v503 = vpop.permute.xlu0 %502
      %506 = vset.pattern.permute.xlu0 0
      %507 = vperm.xlu0 %506, %v457
      %v508 = vpop.permute.xlu0 %507
      %511 = vset.pattern.permute.xlu0 0
      %512 = vperm.xlu0 %511, %v458
      %v513 = vpop.permute.xlu0 %512
      %516 = vset.pattern.permute.xlu0 0
      %517 = vperm.xlu0 %516, %v459
      %v518 = vpop.permute.xlu0 %517
      %521 = vset.pattern.permute.xlu0 0
      %522 = vperm.xlu0 %521, %v460
      %v523 = vpop.permute.xlu0 %522
      %526 = vset.pattern.permute.xlu0 0
      %527 = vperm.xlu0 %526, %v461
      %v528 = vpop.permute.xlu0 %527
      %531 = vset.pattern.permute.xlu0 0
      %532 = vperm.xlu0 %531, %v462
      %v533 = vpop.permute.xlu0 %532
      %536 = vset.pattern.permute.xlu0 0
      %537 = vperm.xlu0 %536, %v463
      %v538 = vpop.permute.xlu0 %537
      %541 = vset.pattern.permute.xlu0 0
      %542 = vperm.xlu0 %541, %v464
      %v543 = vpop.permute.xlu0 %542
      %v545 = vmul.f32 %v371, %v468
      %v546 = vmul.f32 %v374, %v473
      %v547 = vmul.f32 %v379, %v478
      %v548 = vmul.f32 %v382, %v483
      %v549 = vmul.f32 %v387, %v488
      %v550 = vmul.f32 %v390, %v493
      %v551 = vmul.f32 %v395, %v498
      %v552 = vmul.f32 %v398, %v503
      %v553 = vmul.f32 %v403, %v508
      %v554 = vmul.f32 %v406, %v513
      %v555 = vmul.f32 %v411, %v518
      %v556 = vmul.f32 %v414, %v523
      %v557 = vmul.f32 %v419, %v528
      %v558 = vmul.f32 %v422, %v533
      %v559 = vmul.f32 %v427, %v538
      %v560 = vmul.f32 %v430, %v543
      %v561 = vsel %vm307, %v545, 0.0
      %v562 = vsel %vm307, %v546, 0.0
      %v563 = vadd.f32 %v561, %v562
      %v564 = vsel %vm307, %v547, 0.0
      %v565 = vadd.f32 %v563, %v564
      %v566 = vsel %vm307, %v548, 0.0
      %v567 = vadd.f32 %v565, %v566
      %v568 = vsel %vm307, %v549, 0.0
      %v569 = vadd.f32 %v567, %v568
      %v570 = vsel %vm307, %v550, 0.0
      %v571 = vadd.f32 %v569, %v570
      %v572 = vsel %vm307, %v551, 0.0
      %v573 = vadd.f32 %v571, %v572
      %v574 = vsel %vm307, %v552, 0.0
      %v575 = vadd.f32 %v573, %v574
      %v576 = vsel %vm307, %v553, 0.0
      %v577 = vadd.f32 %v575, %v576
      %v578 = vsel %vm307, %v554, 0.0
      %v579 = vadd.f32 %v577, %v578
      %v580 = vsel %vm307, %v555, 0.0
      %v581 = vadd.f32 %v579, %v580
      %v582 = vsel %vm307, %v556, 0.0
      %v583 = vadd.f32 %v581, %v582
      %v584 = vsel %vm307, %v557, 0.0
      %v585 = vadd.f32 %v583, %v584
      %v586 = vsel %vm307, %v558, 0.0
      %v587 = vadd.f32 %v585, %v586
      %v588 = vsel %vm307, %v559, 0.0
      %v589 = vadd.f32 %v587, %v588
      %v590 = vsel %vm307, %v560, 0.0
      %v591 = vadd.f32 %v589, %v590
      %v592 = vrot.slane %v591, 4
      %v593 = vadd.f32 %v591, %v592
      %v594 = vrot.slane %v593, 2
      %v595 = vadd.f32 %v593, %v594
      %v596 = vrot.slane %v595, 1
      %v597 = vadd.f32 %v595, %v596
      %vm598 = vcmask 24576
      %599 = vst.msk [vmem:[%s268] sm:$0x1] %vm598, %v597
      %v600 = vmul.f32 %v545, %v371
      %v601 = vmul.f32 %v546, %v374
      %v602 = vmul.f32 %v547, %v379
      %v603 = vmul.f32 %v548, %v382
      %v604 = vmul.f32 %v549, %v387
      %v605 = vmul.f32 %v550, %v390
      %v606 = vmul.f32 %v551, %v395
      %v607 = vmul.f32 %v552, %v398
      %v608 = vmul.f32 %v553, %v403
      %v609 = vmul.f32 %v554, %v406
      %v610 = vmul.f32 %v555, %v411
      %v611 = vmul.f32 %v556, %v414
      %v612 = vmul.f32 %v557, %v419
      %v613 = vmul.f32 %v558, %v422
      %v614 = vmul.f32 %v559, %v427
      %v615 = vmul.f32 %v560, %v430
      %v616 = vsel %vm307, %v600, 0.0
      %v617 = vsel %vm307, %v601, 0.0
      %v618 = vadd.f32 %v616, %v617
      %v619 = vsel %vm307, %v602, 0.0
      %v620 = vadd.f32 %v618, %v619
      %v621 = vsel %vm307, %v603, 0.0
      %v622 = vadd.f32 %v620, %v621
      %v623 = vsel %vm307, %v604, 0.0
      %v624 = vadd.f32 %v622, %v623
      %v625 = vsel %vm307, %v605, 0.0
      %v626 = vadd.f32 %v624, %v625
      %v627 = vsel %vm307, %v606, 0.0
      %v628 = vadd.f32 %v626, %v627
      %v629 = vsel %vm307, %v607, 0.0
      %v630 = vadd.f32 %v628, %v629
      %v631 = vsel %vm307, %v608, 0.0
      %v632 = vadd.f32 %v630, %v631
      %v633 = vsel %vm307, %v609, 0.0
      %v634 = vadd.f32 %v632, %v633
      %v635 = vsel %vm307, %v610, 0.0
      %v636 = vadd.f32 %v634, %v635
      %v637 = vsel %vm307, %v611, 0.0
      %v638 = vadd.f32 %v636, %v637
      %v639 = vsel %vm307, %v612, 0.0
      %v640 = vadd.f32 %v638, %v639
      %v641 = vsel %vm307, %v613, 0.0
      %v642 = vadd.f32 %v640, %v641
      %v643 = vsel %vm307, %v614, 0.0
      %v644 = vadd.f32 %v642, %v643
      %v645 = vsel %vm307, %v615, 0.0
      %v646 = vadd.f32 %v644, %v645
      %v647 = vrot.slane %v646, 4
      %v648 = vadd.f32 %v646, %v647
      %v649 = vrot.slane %v648, 2
      %v650 = vadd.f32 %v648, %v649
      %v651 = vrot.slane %v650, 1
      %v652 = vadd.f32 %v650, %v651
      %653 = vst.msk [vmem:[%s271] sm:$0x1] %vm598, %v652
      %s654 = smul.u32 16, %s18
      %p655 = scmp.lt.s32.totalorder %s654, 95
      %s656 = scalar_select %p655, %s654, 95
      %s657 = smul.addr %s656, 8
      %s658 = scalar_lea.vmem %s4, %s657
      %p659 = scmp.lt.s32.totalorder %s18, 5
      %s660 = scalar_select %p659, %s18, 5
      %s661 = scalar_lea.vmem %s5, %s660
      %p662 = scmp.lt.s32.totalorder %s18, 5
      %s663 = scalar_select %p662, %s18, 5
      %s664 = scalar_lea.vmem %s6, %s663
      // Predicated region
      $region37: #{deconv_block_forward.8} parent=35 // pred_check
        %p665 = pneg %p125
      $region38: #{deconv_block_forward.8} parent=35 // pred_check_branch
        %667 = sbr.rel (%p665) target = $region40
      $region39: #{deconv_block_forward.8} parent=35 // pred_region
        %s668 = smul.u32 16, %s18
      $region40: #{deconv_block_forward.8} parent=35 // pred_fallthru
        _
      // Predicated region
      $region41: #{deconv_block_forward.8} parent=35 // pred_check
        %p669 = pneg %p151
      $region42: #{deconv_block_forward.8} parent=35 // pred_check_branch
        %671 = sbr.rel (%p669) target = $region44
      $region43: #{deconv_block_forward.8} parent=35 // pred_region
        _
      $region44: #{deconv_block_forward.8} parent=35 // pred_fallthru
        _
      // Predicated region
      $region45: #{deconv_block_forward.8} parent=35 // pred_check
        %p672 = pneg %p177
      $region46: #{deconv_block_forward.8} parent=35 // pred_check_branch
        %674 = sbr.rel (%p672) target = $region48
      $region47: #{deconv_block_forward.8} parent=35 // pred_region
        _
      $region48: #{deconv_block_forward.8} parent=35 // pred_fallthru
        _
    $region36: #{deconv_block_forward.8} parent=5 // pred_fallthru
      _
    %p675 = scmp.le.s32.totalorder 2, %s13
    // Predicated region
    $region49: #{deconv_block_forward.8} parent=5 // pred_check
      %p676 = pneg %p675
    $region50: #{deconv_block_forward.8} parent=5 // pred_check_branch
      %678 = sbr.rel (%p676) target = $region52
    $region51: #{deconv_block_forward.8} parent=5 // pred_region
      %s679 = ssub.s32 %s13, 2
      // Predicated region
      $region53: #{deconv_block_forward.8} parent=51 // pred_check
        %p680 = pneg %p131
      $region54: #{deconv_block_forward.8} parent=51 // pred_check_branch
        %682 = sbr.rel (%p680) target = $region56
      $region55: #{deconv_block_forward.8} parent=51 // pred_region
        %s683 = smul.u32 16, %s19
        %p684 = scmp.lt.s32.totalorder %s683, 95
        %s685 = scalar_select %p684, %s683, 95
        %s686 = smul.addr %s685, 8
        %s687 = scalar_lea.vmem %s4, %s686
      $region56: #{deconv_block_forward.8} parent=51 // pred_fallthru
        _
      // Predicated region
      $region57: #{deconv_block_forward.8} parent=51 // pred_check
        %p688 = pneg %p157
      $region58: #{deconv_block_forward.8} parent=51 // pred_check_branch
        %690 = sbr.rel (%p688) target = $region60
      $region59: #{deconv_block_forward.8} parent=51 // pred_region
        %p691 = scmp.lt.s32.totalorder %s19, 5
        %s692 = scalar_select %p691, %s19, 5
        %s693 = scalar_lea.vmem %s5, %s692
      $region60: #{deconv_block_forward.8} parent=51 // pred_fallthru
        _
      // Predicated region
      $region61: #{deconv_block_forward.8} parent=51 // pred_check
        %p694 = pneg %p183
      $region62: #{deconv_block_forward.8} parent=51 // pred_check_branch
        %696 = sbr.rel (%p694) target = $region64
      $region63: #{deconv_block_forward.8} parent=51 // pred_region
        %p697 = scmp.lt.s32.totalorder %s19, 5
        %s698 = scalar_select %p697, %s19, 5
        %s699 = scalar_lea.vmem %s6, %s698
      $region64: #{deconv_block_forward.8} parent=51 // pred_fallthru
        _
    $region52: #{deconv_block_forward.8} parent=5 // pred_fallthru
      _
  $region6: #{deconv_block_forward.8} parent=0 // loop_footer
    %s17 = sadd.s32 1, %s13
  $region7: #{deconv_block_forward.8} parent=0 // loop_footer_branch
    %12 = sbr.rel target = $region3
  $region8: #{deconv_block_forward.8} parent=0 // loop_exit
    _

</llo_original>
